<compile_context>
chip_gen: v5e
topology: v5e:2x2
jax: 0.10.0
libtpu: 0.0.40
codegen_flags: <defaults>
</compile_context>

<pallas_src>
import functools

import jax
import jax.numpy as jnp
from jax.experimental import pallas as pl
from jax.experimental.pallas import tpu as pltpu

EPS = 1e-5  # nn.BatchNorm2d default


# ----------------------------------------------------------------------------
# Pallas kernels
# ----------------------------------------------------------------------------
def _conv_matmul_kernel(x_ref, w_ref, b_ref, o_ref):
    # (tm, K) bf16 @ (K, F) bf16 -> f32 accumulate, + bias.
    o_ref[...] = (
        jnp.dot(x_ref[...], w_ref[...], preferred_element_type=jnp.float32)
        + b_ref[...]
    )


def _pick_tm(m, target):
    """Largest power-of-two-ish row tile <= target that divides m (fallback: m)."""
    tm = min(target, m)
    while tm > 8 and m % tm != 0:
        tm //= 2
    return tm if m % tm == 0 else m


def conv_matmul(flat_x_bf16, w_eff_bf16, bias2d, tm_target):
    """(B*H*W, C*9) @ w_eff + bias, tiled over rows with a 'parallel' grid."""
    M, K = flat_x_bf16.shape
    F = w_eff_bf16.shape[1]
    tm = _pick_tm(M, tm_target)
    return pl.pallas_call(
        _conv_matmul_kernel,
        out_shape=jax.ShapeDtypeStruct((M, F), jnp.float32),
        grid=(M // tm,),
        in_specs=[
            pl.BlockSpec((tm, K), lambda i: (i, 0)),
            pl.BlockSpec((K, F), lambda i: (0, 0)),
            pl.BlockSpec((1, F), lambda i: (0, 0)),
        ],
        out_specs=pl.BlockSpec((tm, F), lambda i: (i, 0)),
        compiler_params=pltpu.CompilerParams(dimension_semantics=("parallel",)),
    )(flat_x_bf16, w_eff_bf16, bias2d)


def _bn_relu_pool_kernel(x_ref, g_ref, b_ref, o_ref):
    # x_ref: (B, H, W/2, 2C) f32 where lanes are [even-w channels | odd-w channels]
    # g_ref, b_ref: (1, 1, 1, C);  o_ref: (B, H/2, W/2, C)
    # Training-mode BatchNorm2d (biased variance over B*H*W), affine, ReLU, 2x2 maxpool.
    x = x_ref[...]
    bsz, h, w2, c2 = x.shape
    c = c2 // 2
    xa = x[..., :c]        # even-w pixels
    xb = x[..., c:]        # odd-w pixels
    n = bsz * h * w2 * 2
    mean = (
        jnp.sum(xa, axis=(0, 1, 2), keepdims=True)
        + jnp.sum(xb, axis=(0, 1, 2), keepdims=True)
    ) * (1.0 / n)
    da = xa - mean
    db = xb - mean
    var = (
        jnp.sum(da * da, axis=(0, 1, 2), keepdims=True)
        + jnp.sum(db * db, axis=(0, 1, 2), keepdims=True)
    ) * (1.0 / n)
    scale = g_ref[...] * jax.lax.rsqrt(var + EPS)   # (1,1,1,C)
    shift = b_ref[...] - mean * scale
    ya = jnp.maximum(xa * scale + shift, 0.0)
    yb = jnp.maximum(xb * scale + shift, 0.0)
    yw = jnp.maximum(ya, yb)                        # pooled over W -> (B, H, W/2, C)
    for i in range(h // 2):                         # pool over H (static, short)
        o_ref[:, i : i + 1, :, :] = jnp.maximum(
            yw[:, 2 * i : 2 * i + 1], yw[:, 2 * i + 1 : 2 * i + 2]
        )


def bn_relu_pool(y_flat, gamma4d, beta4d, B, H, W):
    """Fused BN(batch stats) + ReLU + 2x2 maxpool on a (B*H*W, C) conv-output slab."""
    C = y_flat.shape[1]
    W2 = W // 2
    x2 = y_flat.reshape(B, H, W2, 2 * C)  # free row-major reshape: packs (w, w+1) into lanes
    return pl.pallas_call(
        _bn_relu_pool_kernel,
        out_shape=jax.ShapeDtypeStruct((B, H // 2, W2, C), jnp.float32),
        grid=(1,),
        in_specs=[
            pl.BlockSpec((B, H, W2, 2 * C), lambda i: (0, 0, 0, 0)),
            pl.BlockSpec((1, 1, 1, C), lambda i: (0, 0, 0, 0)),
            pl.BlockSpec((1, 1, 1, C), lambda i: (0, 0, 0, 0)),
        ],
        out_specs=pl.BlockSpec((B, H // 2, W2, C), lambda i: (0, 0, 0, 0)),
    )(x2, gamma4d, beta4d)


def _linear_kernel(x_ref, w_ref, b_ref, o_ref):
    o_ref[...] = (
        jnp.dot(x_ref[...], w_ref[...], preferred_element_type=jnp.float32)
        + b_ref[...]
    )


def linear(x_bf16, w_t_bf16, bias2d):
    M, K = x_bf16.shape
    N = w_t_bf16.shape[1]
    return pl.pallas_call(
        _linear_kernel,
        out_shape=jax.ShapeDtypeStruct((M, N), jnp.float32),
        grid=(1,),
        in_specs=[
            pl.BlockSpec((M, K), lambda i: (0, 0)),
            pl.BlockSpec((K, N), lambda i: (0, 0)),
            pl.BlockSpec((1, N), lambda i: (0, 0)),
        ],
        out_specs=pl.BlockSpec((M, N), lambda i: (0, 0)),
    )(x_bf16, w_t_bf16, bias2d)


# ----------------------------------------------------------------------------
# JAX glue: im2col (= nn.Unfold(3, padding=1)) and the forward pass
# ----------------------------------------------------------------------------
def im2col_3x3(x_nhwc):
    """nn.Unfold(3, padding=1, stride=1) column ordering: col = c*9 + kh*3 + kw."""
    B, H, W, C = x_nhwc.shape
    xp = jnp.pad(x_nhwc, ((0, 0), (1, 1), (1, 1), (0, 0)))
    pats = jnp.stack(
        [xp[:, kh : kh + H, kw : kw + W, :] for kh in range(3) for kw in range(3)],
        axis=-1,
    )  # (B, H, W, C, 9)
    return pats.reshape(B * H * W, C * 9)


_TM_TARGETS = {"conv1": 1024, "conv2": 256, "conv3": 64}  # 2 parallel grid steps each at B=2


def cnn_cifar_forward(x_nchw, params):
    x = jnp.transpose(x_nchw, (0, 2, 3, 1))  # -> NHWC internally (channels on lanes)
    for name in ("conv1", "conv2", "conv3"):
        cp = params[name]
        bnp = params["bn" + name[-1]]
        B, H, W, _ = x.shape
        flat_x = im2col_3x3(x).astype(jnp.bfloat16)               # (B*H*W, C*9)
        y_flat = conv_matmul(flat_x, cp["w_eff"], cp["bias2d"], _TM_TARGETS[name])
        x = bn_relu_pool(y_flat, bnp["gamma"], bnp["beta"], B, H, W)   # (B,H/2,W/2,F)
    # NHWC flatten; fc weight columns were pre-permuted to NHWC order at preprocessing.
    B = x.shape[0]
    feat = x.reshape(B, -1).astype(jnp.bfloat16)                  # (B, 4096)
    return linear(feat, params["fc"]["w_t"], params["fc"]["bias2d"])


# ----------------------------------------------------------------------------
# Deterministic parameter construction + one-time preprocessing
# ----------------------------------------------------------------------------
def init_conv_params(key, channels, filters, rows_n, cols_n):
    # TODO(synk): the reference builds weight_c/weight_r from an SVD + top-k row/col
    # selection of a Xavier-init matrix; here we use deterministic random params of
    # the same shapes (synthetic init, no checkpoint).
    kwr = channels * 3 * 3
    k1, k2, k3, k4, k5 = jax.random.split(key, 5)
    scale = 1.0 / jnp.sqrt(jnp.float32(kwr))
    return dict(
        weight_c=jax.random.normal(k1, (kwr, cols_n), jnp.float32) * scale,
        weight_r=jax.random.normal(k2, (rows_n, filters), jnp.float32) * scale,
        bias=jax.random.uniform(k3, (filters,), jnp.float32, -scale, scale),
        rows=jax.random.permutation(k4, kwr)[:rows_n],      # indices into k_w_rows
        cols=jax.random.permutation(k5, filters)[:cols_n],  # indices into filters
    )


def init_params(key, kerset, num_classes=10):
    ks = jax.random.split(key, 5)
    return {
        "conv1": init_conv_params(ks[0], 3, 64, kerset[0], kerset[1]),
        "conv2": init_conv_params(ks[1], 64, 128, kerset[2], kerset[3]),
        "conv3": init_conv_params(ks[2], 128, 256, kerset[4], kerset[5]),
        "bn1": dict(gamma=jnp.ones((64,), jnp.float32), beta=jnp.zeros((64,), jnp.float32)),
        "bn2": dict(gamma=jnp.ones((128,), jnp.float32), beta=jnp.zeros((128,), jnp.float32)),
        "bn3": dict(gamma=jnp.ones((256,), jnp.float32), beta=jnp.zeros((256,), jnp.float32)),
        "fc": dict(
            weight=jax.random.normal(ks[3], (num_classes, 4096), jnp.float32) / 64.0,
            bias=jax.random.uniform(ks[4], (num_classes,), jnp.float32, -1.0 / 64.0, 1.0 / 64.0),
        ),
    }


def preprocess_params(raw):
    """Hoist every x-independent op out of the forward pass (runs once):
       - w_eff = weight_c @ pinv((weight_c[rows] + weight_r[:, cols]) / 2) @ weight_r
         (the CurConv2d effective kernel, K x F), cast once to bf16 for the MXU.
       - fc weight permuted from NCHW-flatten to NHWC-flatten column order + transposed.
       NOTE: jnp.linalg.pinv's default rcond differs slightly from torch.pinverse's default."""
    out = {}
    for name in ("conv1", "conv2", "conv3"):
        p = raw[name]
        wc, wr = p["weight_c"], p["weight_r"]
        u = jnp.linalg.pinv((wc[p["rows"], :] + wr[:, p["cols"]]) / 2.0)  # (colsN, rowsN)
        w_eff = wc @ (u @ wr)                                             # (C*9, F)
        out[name] = dict(
            w_eff=w_eff.astype(jnp.bfloat16),
            bias2d=p["bias"][None, :].astype(jnp.float32),
        )
    for name in ("bn1", "bn2", "bn3"):
        out[name] = dict(
            gamma=raw[name]["gamma"].reshape(1, 1, 1, -1),
            beta=raw[name]["beta"].reshape(1, 1, 1, -1),
        )
    # fc: NCHW flatten column c*H*W + h*W + w  ->  NHWC flatten column h*W*C + w*C + c
    wfc = raw["fc"]["weight"]                      # (num_classes, 4096)
    C, H, W = 256, 4, 4
    w_nhwc = jnp.transpose(wfc.reshape(-1, C, H, W), (0, 2, 3, 1)).reshape(wfc.shape[0], -1)
    out["fc"] = dict(
        w_t=w_nhwc.T.astype(jnp.bfloat16),
        bias2d=raw["fc"]["bias"][None, :].astype(jnp.float32),
    )
    return out


if __name__ == "__main__":
    key = jax.random.PRNGKey(0)
    pkey, xkey = jax.random.split(key)

    # kerset = (rows, cols) per CurConv2d: rows <= C*9, cols <= filters
    kerset = [16, 32, 64, 64, 128, 128]
    raw_params = init_params(pkey, kerset, num_classes=10)
    params = jax.block_until_ready(preprocess_params(raw_params))  # one-time (pinv etc.)

    # CIFAR-style input, NCHW like PyTorch; fc=Linear(4096,10) forces 3x32x32.
    x = jax.random.normal(xkey, (2, 3, 32, 32), jnp.float32)

    fwd = jax.jit(functools.partial(cnn_cifar_forward, params=params))
    out = jax.block_until_ready(fwd(x))
    assert out.shape == (2, 10) and out.dtype == jnp.float32
    print("KERNEL_OK")
</pallas_src>

<mosaic_0001>
module attributes {stable_mosaic.version = 11 : i64} {
  func.func @_conv_matmul_kernel(%arg0: i32, %arg1: memref<1024x27xbf16, #tpu.memory_space<vmem>>, %arg2: memref<27x64xbf16, #tpu.memory_space<vmem>>, %arg3: memref<1x64xf32, #tpu.memory_space<vmem>>, %arg4: memref<1024x64xf32, #tpu.memory_space<vmem>>) attributes {dimension_semantics = [#tpu.dimension_semantics<parallel>], iteration_bounds = array<i64: 2>, scalar_prefetch = 0 : i64, scratch_operands = 0 : i64, tpu.core_type = #tpu.core_type<tc>, window_params = [{transform_indices = @transform_0, window_bounds = array<i64: 1024, 27>}, {pipeline_mode = #tpu.pipeline_mode<synchronous>, transform_indices = @transform_1, window_bounds = array<i64: 27, 64>}, {pipeline_mode = #tpu.pipeline_mode<synchronous>, transform_indices = @transform_2, window_bounds = array<i64: 1, 64>}, {transform_indices = @transform_3, window_bounds = array<i64: 1024, 64>}]} {
    %c0 = arith.constant 0 : index
    %c0_0 = arith.constant 0 : index
    %0 = vector.load %arg1[%c0, %c0_0] : memref<1024x27xbf16, #tpu.memory_space<vmem>>, vector<1024x27xbf16>
    %c0_1 = arith.constant 0 : index
    %c0_2 = arith.constant 0 : index
    %1 = vector.load %arg2[%c0_1, %c0_2] : memref<27x64xbf16, #tpu.memory_space<vmem>>, vector<27x64xbf16>
    %cst = arith.constant dense<0.000000e+00> : vector<1024x64xf32>
    %2 = tpu.matmul %0, %1, %cst {dimension_numbers = #tpu.dot_dimension_numbers<[1], [0], [0], [1], [0, 0, 1, 1], [], []>} : vector<1024x27xbf16>, vector<27x64xbf16>, vector<1024x64xf32> -> vector<1024x64xf32>
    %c0_3 = arith.constant 0 : index
    %c0_4 = arith.constant 0 : index
    %3 = vector.load %arg3[%c0_3, %c0_4] : memref<1x64xf32, #tpu.memory_space<vmem>>, vector<1x64xf32>
    %4 = vector.broadcast %3 : vector<1x64xf32> to vector<1024x64xf32>
    %5 = arith.addf %2, %4 : vector<1024x64xf32>
    %c0_5 = arith.constant 0 : index
    %c0_6 = arith.constant 0 : index
    %6 = vector.load %arg4[%c0_5, %c0_6] : memref<1024x64xf32, #tpu.memory_space<vmem>>, vector<1024x64xf32>
    tpu.vector_store %arg4[%c0_5, %c0_6], %5 {strides = array<i32>} : memref<1024x64xf32, #tpu.memory_space<vmem>>, vector<1024x64xf32>,
    return
  }
  func.func @transform_0(%arg0: i32) -> (i32, i32) {
    %c0_i32 = arith.constant 0 : i32
    %c0_i32_0 = arith.constant 0 : i32
    return %arg0, %c0_i32 : i32, i32
  }
  func.func @transform_1(%arg0: i32) -> (i32, i32) {
    %c0_i32 = arith.constant 0 : i32
    %c0_i32_0 = arith.constant 0 : i32
    %c0_i32_1 = arith.constant 0 : i32
    return %c0_i32, %c0_i32_0 : i32, i32
  }
  func.func @transform_2(%arg0: i32) -> (i32, i32) {
    %c0_i32 = arith.constant 0 : i32
    %c0_i32_0 = arith.constant 0 : i32
    %c0_i32_1 = arith.constant 0 : i32
    return %c0_i32, %c0_i32_0 : i32, i32
  }
  func.func @transform_3(%arg0: i32) -> (i32, i32) {
    %c0_i32 = arith.constant 0 : i32
    %c0_i32_0 = arith.constant 0 : i32
    return %arg0, %c0_i32 : i32, i32
  }
}

module attributes {stable_mosaic.version = 11 : i64} {
  func.func @_bn_relu_pool_kernel(%arg0: i32, %arg1: memref<2x32x16x128xf32, #tpu.memory_space<vmem>>, %arg2: memref<1x1x1x64xf32, #tpu.memory_space<vmem>>, %arg3: memref<1x1x1x64xf32, #tpu.memory_space<vmem>>, %arg4: memref<2x16x16x64xf32, #tpu.memory_space<vmem>>) attributes {dimension_semantics = [#tpu.dimension_semantics<arbitrary>], iteration_bounds = array<i64: 1>, scalar_prefetch = 0 : i64, scratch_operands = 0 : i64, tpu.core_type = #tpu.core_type<tc>, window_params = [{pipeline_mode = #tpu.pipeline_mode<synchronous>, transform_indices = @transform_0, window_bounds = array<i64: 2, 32, 16, 128>}, {pipeline_mode = #tpu.pipeline_mode<synchronous>, transform_indices = @transform_1, window_bounds = array<i64: 1, 1, 1, 64>}, {pipeline_mode = #tpu.pipeline_mode<synchronous>, transform_indices = @transform_2, window_bounds = array<i64: 1, 1, 1, 64>}, {pipeline_mode = #tpu.pipeline_mode<synchronous>, transform_indices = @transform_3, window_bounds = array<i64: 2, 16, 16, 64>}]} {
    %c0 = arith.constant 0 : index
    %c0_0 = arith.constant 0 : index
    %c0_1 = arith.constant 0 : index
    %c0_2 = arith.constant 0 : index
    %0 = vector.load %arg1[%c0, %c0_0, %c0_1, %c0_2] : memref<2x32x16x128xf32, #tpu.memory_space<vmem>>, vector<2x32x16x128xf32>
    %1 = vector.extract_strided_slice %0 {offsets = [0, 0, 0, 0], sizes = [2, 32, 16, 64], strides = [1, 1, 1, 1]} : vector<2x32x16x128xf32> to vector<2x32x16x64xf32>
    %2 = vector.extract_strided_slice %0 {offsets = [0, 0, 0, 64], sizes = [2, 32, 16, 64], strides = [1, 1, 1, 1]} : vector<2x32x16x128xf32> to vector<2x32x16x64xf32>
    %cst = arith.constant dense<0.000000e+00> : vector<64xf32>
    %3 = vector.multi_reduction <add>, %1, %cst [0, 1, 2] : vector<2x32x16x64xf32> to vector<64xf32>
    %4 = vector.shape_cast %3 : vector<64xf32> to vector<1x1x1x64xf32>
    %cst_3 = arith.constant dense<0.000000e+00> : vector<64xf32>
    %5 = vector.multi_reduction <add>, %2, %cst_3 [0, 1, 2] : vector<2x32x16x64xf32> to vector<64xf32>
    %6 = vector.shape_cast %5 : vector<64xf32> to vector<1x1x1x64xf32>
    %7 = arith.addf %4, %6 : vector<1x1x1x64xf32>
    %cst_4 = arith.constant 4.8828125E-4 : f32
    %8 = vector.broadcast %cst_4 : f32 to vector<1x1x1x64xf32>
    %9 = arith.mulf %7, %8 : vector<1x1x1x64xf32>
    %10 = vector.broadcast %9 : vector<1x1x1x64xf32> to vector<2x32x16x64xf32>
    %11 = arith.subf %1, %10 : vector<2x32x16x64xf32>
    %12 = vector.broadcast %9 : vector<1x1x1x64xf32> to vector<2x32x16x64xf32>
    %13 = arith.subf %2, %12 : vector<2x32x16x64xf32>
    %14 = arith.mulf %11, %11 : vector<2x32x16x64xf32>
    %cst_5 = arith.constant dense<0.000000e+00> : vector<64xf32>
    %15 = vector.multi_reduction <add>, %14, %cst_5 [0, 1, 2] : vector<2x32x16x64xf32> to vector<64xf32>
    %16 = vector.shape_cast %15 : vector<64xf32> to vector<1x1x1x64xf32>
    %17 = arith.mulf %13, %13 : vector<2x32x16x64xf32>
    %cst_6 = arith.constant dense<0.000000e+00> : vector<64xf32>
    %18 = vector.multi_reduction <add>, %17, %cst_6 [0, 1, 2] : vector<2x32x16x64xf32> to vector<64xf32>
    %19 = vector.shape_cast %18 : vector<64xf32> to vector<1x1x1x64xf32>
    %20 = arith.addf %16, %19 : vector<1x1x1x64xf32>
    %cst_7 = arith.constant 4.8828125E-4 : f32
    %21 = vector.broadcast %cst_7 : f32 to vector<1x1x1x64xf32>
    %22 = arith.mulf %20, %21 : vector<1x1x1x64xf32>
    %c0_8 = arith.constant 0 : index
    %c0_9 = arith.constant 0 : index
    %c0_10 = arith.constant 0 : index
    %c0_11 = arith.constant 0 : index
    %23 = vector.load %arg2[%c0_8, %c0_9, %c0_10, %c0_11] : memref<1x1x1x64xf32, #tpu.memory_space<vmem>>, vector<1x1x1x64xf32>
    %cst_12 = arith.constant 9.99999974E-6 : f32
    %24 = vector.broadcast %cst_12 : f32 to vector<1x1x1x64xf32>
    %25 = arith.addf %22, %24 : vector<1x1x1x64xf32>
    %26 = math.rsqrt %25 : vector<1x1x1x64xf32>
    %27 = arith.mulf %23, %26 : vector<1x1x1x64xf32>
    %c0_13 = arith.constant 0 : index
    %c0_14 = arith.constant 0 : index
    %c0_15 = arith.constant 0 : index
    %c0_16 = arith.constant 0 : index
    %28 = vector.load %arg3[%c0_13, %c0_14, %c0_15, %c0_16] : memref<1x1x1x64xf32, #tpu.memory_space<vmem>>, vector<1x1x1x64xf32>
    %29 = arith.mulf %9, %27 : vector<1x1x1x64xf32>
    %30 = arith.subf %28, %29 : vector<1x1x1x64xf32>
    %31 = vector.broadcast %27 : vector<1x1x1x64xf32> to vector<2x32x16x64xf32>
    %32 = arith.mulf %1, %31 : vector<2x32x16x64xf32>
    %33 = vector.broadcast %30 : vector<1x1x1x64xf32> to vector<2x32x16x64xf32>
    %34 = arith.addf %32, %33 : vector<2x32x16x64xf32>
    %cst_17 = arith.constant 0.000000e+00 : f32
    %35 = vector.broadcast %cst_17 : f32 to vector<2x32x16x64xf32>
    %36 = arith.maximumf %34, %35 : vector<2x32x16x64xf32>
    %37 = vector.broadcast %27 : vector<1x1x1x64xf32> to vector<2x32x16x64xf32>
    %38 = arith.mulf %2, %37 : vector<2x32x16x64xf32>
    %39 = vector.broadcast %30 : vector<1x1x1x64xf32> to vector<2x32x16x64xf32>
    %40 = arith.addf %38, %39 : vector<2x32x16x64xf32>
    %cst_18 = arith.constant 0.000000e+00 : f32
    %41 = vector.broadcast %cst_18 : f32 to vector<2x32x16x64xf32>
    %42 = arith.maximumf %40, %41 : vector<2x32x16x64xf32>
    %43 = arith.maximumf %36, %42 : vector<2x32x16x64xf32>
    %44 = vector.extract_strided_slice %43 {offsets = [0, 0, 0, 0], sizes = [2, 1, 16, 64], strides = [1, 1, 1, 1]} : vector<2x32x16x64xf32> to vector<2x1x16x64xf32>
    %45 = vector.extract_strided_slice %43 {offsets = [0, 1, 0, 0], sizes = [2, 1, 16, 64], strides = [1, 1, 1, 1]} : vector<2x32x16x64xf32> to vector<2x1x16x64xf32>
    %46 = arith.maximumf %44, %45 : vector<2x1x16x64xf32>
    %c0_19 = arith.constant 0 : index
    %c0_20 = arith.constant 0 : index
    %c0_21 = arith.constant 0 : index
    %c0_22 = arith.constant 0 : index
    %47 = vector.load %arg4[%c0_19, %c0_20, %c0_21, %c0_22] : memref<2x16x16x64xf32, #tpu.memory_space<vmem>>, vector<2x1x16x64xf32>
    tpu.vector_store %arg4[%c0_19, %c0_20, %c0_21, %c0_22], %46 {strides = array<i32>} : memref<2x16x16x64xf32, #tpu.memory_space<vmem>>, vector<2x1x16x64xf32>,
    %48 = vector.extract_strided_slice %43 {offsets = [0, 2, 0, 0], sizes = [2, 1, 16, 64], strides = [1, 1, 1, 1]} : vector<2x32x16x64xf32> to vector<2x1x16x64xf32>
    %49 = vector.extract_strided_slice %43 {offsets = [0, 3, 0, 0], sizes = [2, 1, 16, 64], strides = [1, 1, 1, 1]} : vector<2x32x16x64xf32> to vector<2x1x16x64xf32>
    %50 = arith.maximumf %48, %49 : vector<2x1x16x64xf32>
    %c0_23 = arith.constant 0 : index
    %c1 = arith.constant 1 : index
    %c0_24 = arith.constant 0 : index
    %c0_25 = arith.constant 0 : index
    %51 = vector.load %arg4[%c0_23, %c1, %c0_24, %c0_25] : memref<2x16x16x64xf32, #tpu.memory_space<vmem>>, vector<2x1x16x64xf32>
    tpu.vector_store %arg4[%c0_23, %c1, %c0_24, %c0_25], %50 {strides = array<i32>} : memref<2x16x16x64xf32, #tpu.memory_space<vmem>>, vector<2x1x16x64xf32>,
    %52 = vector.extract_strided_slice %43 {offsets = [0, 4, 0, 0], sizes = [2, 1, 16, 64], strides = [1, 1, 1, 1]} : vector<2x32x16x64xf32> to vector<2x1x16x64xf32>
    %53 = vector.extract_strided_slice %43 {offsets = [0, 5, 0, 0], sizes = [2, 1, 16, 64], strides = [1, 1, 1, 1]} : vector<2x32x16x64xf32> to vector<2x1x16x64xf32>
    %54 = arith.maximumf %52, %53 : vector<2x1x16x64xf32>
    %c0_26 = arith.constant 0 : index
    %c2 = arith.constant 2 : index
    %c0_27 = arith.constant 0 : index
    %c0_28 = arith.constant 0 : index
    %55 = vector.load %arg4[%c0_26, %c2, %c0_27, %c0_28] : memref<2x16x16x64xf32, #tpu.memory_space<vmem>>, vector<2x1x16x64xf32>
    tpu.vector_store %arg4[%c0_26, %c2, %c0_27, %c0_28], %54 {strides = array<i32>} : memref<2x16x16x64xf32, #tpu.memory_space<vmem>>, vector<2x1x16x64xf32>,
    %56 = vector.extract_strided_slice %43 {offsets = [0, 6, 0, 0], sizes = [2, 1, 16, 64], strides = [1, 1, 1, 1]} : vector<2x32x16x64xf32> to vector<2x1x16x64xf32>
    %57 = vector.extract_strided_slice %43 {offsets = [0, 7, 0, 0], sizes = [2, 1, 16, 64], strides = [1, 1, 1, 1]} : vector<2x32x16x64xf32> to vector<2x1x16x64xf32>
    %58 = arith.maximumf %56, %57 : vector<2x1x16x64xf32>
    %c0_29 = arith.constant 0 : index
    %c3 = arith.constant 3 : index
    %c0_30 = arith.constant 0 : index
    %c0_31 = arith.constant 0 : index
    %59 = vector.load %arg4[%c0_29, %c3, %c0_30, %c0_31] : memref<2x16x16x64xf32, #tpu.memory_space<vmem>>, vector<2x1x16x64xf32>
    tpu.vector_store %arg4[%c0_29, %c3, %c0_30, %c0_31], %58 {strides = array<i32>} : memref<2x16x16x64xf32, #tpu.memory_space<vmem>>, vector<2x1x16x64xf32>,
    %60 = vector.extract_strided_slice %43 {offsets = [0, 8, 0, 0], sizes = [2, 1, 16, 64], strides = [1, 1, 1, 1]} : vector<2x32x16x64xf32> to vector<2x1x16x64xf32>
    %61 = vector.extract_strided_slice %43 {offsets = [0, 9, 0, 0], sizes = [2, 1, 16, 64], strides = [1, 1, 1, 1]} : vector<2x32x16x64xf32> to vector<2x1x16x64xf32>
    %62 = arith.maximumf %60, %61 : vector<2x1x16x64xf32>
    %c0_32 = arith.constant 0 : index
    %c4 = arith.constant 4 : index
    %c0_33 = arith.constant 0 : index
    %c0_34 = arith.constant 0 : index
    %63 = vector.load %arg4[%c0_32, %c4, %c0_33, %c0_34] : memref<2x16x16x64xf32, #tpu.memory_space<vmem>>, vector<2x1x16x64xf32>
    tpu.vector_store %arg4[%c0_32, %c4, %c0_33, %c0_34], %62 {strides = array<i32>} : memref<2x16x16x64xf32, #tpu.memory_space<vmem>>, vector<2x1x16x64xf32>,
    %64 = vector.extract_strided_slice %43 {offsets = [0, 10, 0, 0], sizes = [2, 1, 16, 64], strides = [1, 1, 1, 1]} : vector<2x32x16x64xf32> to vector<2x1x16x64xf32>
    %65 = vector.extract_strided_slice %43 {offsets = [0, 11, 0, 0], sizes = [2, 1, 16, 64], strides = [1, 1, 1, 1]} : vector<2x32x16x64xf32> to vector<2x1x16x64xf32>
    %66 = arith.maximumf %64, %65 : vector<2x1x16x64xf32>
    %c0_35 = arith.constant 0 : index
    %c5 = arith.constant 5 : index
    %c0_36 = arith.constant 0 : index
    %c0_37 = arith.constant 0 : index
    %67 = vector.load %arg4[%c0_35, %c5, %c0_36, %c0_37] : memref<2x16x16x64xf32, #tpu.memory_space<vmem>>, vector<2x1x16x64xf32>
    tpu.vector_store %arg4[%c0_35, %c5, %c0_36, %c0_37], %66 {strides = array<i32>} : memref<2x16x16x64xf32, #tpu.memory_space<vmem>>, vector<2x1x16x64xf32>,
    %68 = vector.extract_strided_slice %43 {offsets = [0, 12, 0, 0], sizes = [2, 1, 16, 64], strides = [1, 1, 1, 1]} : vector<2x32x16x64xf32> to vector<2x1x16x64xf32>
    %69 = vector.extract_strided_slice %43 {offsets = [0, 13, 0, 0], sizes = [2, 1, 16, 64], strides = [1, 1, 1, 1]} : vector<2x32x16x64xf32> to vector<2x1x16x64xf32>
    %70 = arith.maximumf %68, %69 : vector<2x1x16x64xf32>
    %c0_38 = arith.constant 0 : index
    %c6 = arith.constant 6 : index
    %c0_39 = arith.constant 0 : index
    %c0_40 = arith.constant 0 : index
    %71 = vector.load %arg4[%c0_38, %c6, %c0_39, %c0_40] : memref<2x16x16x64xf32, #tpu.memory_space<vmem>>, vector<2x1x16x64xf32>
    tpu.vector_store %arg4[%c0_38, %c6, %c0_39, %c0_40], %70 {strides = array<i32>} : memref<2x16x16x64xf32, #tpu.memory_space<vmem>>, vector<2x1x16x64xf32>,
    %72 = vector.extract_strided_slice %43 {offsets = [0, 14, 0, 0], sizes = [2, 1, 16, 64], strides = [1, 1, 1, 1]} : vector<2x32x16x64xf32> to vector<2x1x16x64xf32>
    %73 = vector.extract_strided_slice %43 {offsets = [0, 15, 0, 0], sizes = [2, 1, 16, 64], strides = [1, 1, 1, 1]} : vector<2x32x16x64xf32> to vector<2x1x16x64xf32>
    %74 = arith.maximumf %72, %73 : vector<2x1x16x64xf32>
    %c0_41 = arith.constant 0 : index
    %c7 = arith.constant 7 : index
    %c0_42 = arith.constant 0 : index
    %c0_43 = arith.constant 0 : index
    %75 = vector.load %arg4[%c0_41, %c7, %c0_42, %c0_43] : memref<2x16x16x64xf32, #tpu.memory_space<vmem>>, vector<2x1x16x64xf32>
    tpu.vector_store %arg4[%c0_41, %c7, %c0_42, %c0_43], %74 {strides = array<i32>} : memref<2x16x16x64xf32, #tpu.memory_space<vmem>>, vector<2x1x16x64xf32>,
    %76 = vector.extract_strided_slice %43 {offsets = [0, 16, 0, 0], sizes = [2, 1, 16, 64], strides = [1, 1, 1, 1]} : vector<2x32x16x64xf32> to vector<2x1x16x64xf32>
    %77 = vector.extract_strided_slice %43 {offsets = [0, 17, 0, 0], sizes = [2, 1, 16, 64], strides = [1, 1, 1, 1]} : vector<2x32x16x64xf32> to vector<2x1x16x64xf32>
    %78 = arith.maximumf %76, %77 : vector<2x1x16x64xf32>
    %c0_44 = arith.constant 0 : index
    %c8 = arith.constant 8 : index
    %c0_45 = arith.constant 0 : index
    %c0_46 = arith.constant 0 : index
    %79 = vector.load %arg4[%c0_44, %c8, %c0_45, %c0_46] : memref<2x16x16x64xf32, #tpu.memory_space<vmem>>, vector<2x1x16x64xf32>
    tpu.vector_store %arg4[%c0_44, %c8, %c0_45, %c0_46], %78 {strides = array<i32>} : memref<2x16x16x64xf32, #tpu.memory_space<vmem>>, vector<2x1x16x64xf32>,
    %80 = vector.extract_strided_slice %43 {offsets = [0, 18, 0, 0], sizes = [2, 1, 16, 64], strides = [1, 1, 1, 1]} : vector<2x32x16x64xf32> to vector<2x1x16x64xf32>
    %81 = vector.extract_strided_slice %43 {offsets = [0, 19, 0, 0], sizes = [2, 1, 16, 64], strides = [1, 1, 1, 1]} : vector<2x32x16x64xf32> to vector<2x1x16x64xf32>
    %82 = arith.maximumf %80, %81 : vector<2x1x16x64xf32>
    %c0_47 = arith.constant 0 : index
    %c9 = arith.constant 9 : index
    %c0_48 = arith.constant 0 : index
    %c0_49 = arith.constant 0 : index
    %83 = vector.load %arg4[%c0_47, %c9, %c0_48, %c0_49] : memref<2x16x16x64xf32, #tpu.memory_space<vmem>>, vector<2x1x16x64xf32>
    tpu.vector_store %arg4[%c0_47, %c9, %c0_48, %c0_49], %82 {strides = array<i32>} : memref<2x16x16x64xf32, #tpu.memory_space<vmem>>, vector<2x1x16x64xf32>,
    %84 = vector.extract_strided_slice %43 {offsets = [0, 20, 0, 0], sizes = [2, 1, 16, 64], strides = [1, 1, 1, 1]} : vector<2x32x16x64xf32> to vector<2x1x16x64xf32>
    %85 = vector.extract_strided_slice %43 {offsets = [0, 21, 0, 0], sizes = [2, 1, 16, 64], strides = [1, 1, 1, 1]} : vector<2x32x16x64xf32> to vector<2x1x16x64xf32>
    %86 = arith.maximumf %84, %85 : vector<2x1x16x64xf32>
    %c0_50 = arith.constant 0 : index
    %c10 = arith.constant 10 : index
    %c0_51 = arith.constant 0 : index
    %c0_52 = arith.constant 0 : index
    %87 = vector.load %arg4[%c0_50, %c10, %c0_51, %c0_52] : memref<2x16x16x64xf32, #tpu.memory_space<vmem>>, vector<2x1x16x64xf32>
    tpu.vector_store %arg4[%c0_50, %c10, %c0_51, %c0_52], %86 {strides = array<i32>} : memref<2x16x16x64xf32, #tpu.memory_space<vmem>>, vector<2x1x16x64xf32>,
    %88 = vector.extract_strided_slice %43 {offsets = [0, 22, 0, 0], sizes = [2, 1, 16, 64], strides = [1, 1, 1, 1]} : vector<2x32x16x64xf32> to vector<2x1x16x64xf32>
    %89 = vector.extract_strided_slice %43 {offsets = [0, 23, 0, 0], sizes = [2, 1, 16, 64], strides = [1, 1, 1, 1]} : vector<2x32x16x64xf32> to vector<2x1x16x64xf32>
    %90 = arith.maximumf %88, %89 : vector<2x1x16x64xf32>
    %c0_53 = arith.constant 0 : index
    %c11 = arith.constant 11 : index
    %c0_54 = arith.constant 0 : index
    %c0_55 = arith.constant 0 : index
    %91 = vector.load %arg4[%c0_53, %c11, %c0_54, %c0_55] : memref<2x16x16x64xf32, #tpu.memory_space<vmem>>, vector<2x1x16x64xf32>
    tpu.vector_store %arg4[%c0_53, %c11, %c0_54, %c0_55], %90 {strides = array<i32>} : memref<2x16x16x64xf32, #tpu.memory_space<vmem>>, vector<2x1x16x64xf32>,
    %92 = vector.extract_strided_slice %43 {offsets = [0, 24, 0, 0], sizes = [2, 1, 16, 64], strides = [1, 1, 1, 1]} : vector<2x32x16x64xf32> to vector<2x1x16x64xf32>
    %93 = vector.extract_strided_slice %43 {offsets = [0, 25, 0, 0], sizes = [2, 1, 16, 64], strides = [1, 1, 1, 1]} : vector<2x32x16x64xf32> to vector<2x1x16x64xf32>
    %94 = arith.maximumf %92, %93 : vector<2x1x16x64xf32>
    %c0_56 = arith.constant 0 : index
    %c12 = arith.constant 12 : index
    %c0_57 = arith.constant 0 : index
    %c0_58 = arith.constant 0 : index
    %95 = vector.load %arg4[%c0_56, %c12, %c0_57, %c0_58] : memref<2x16x16x64xf32, #tpu.memory_space<vmem>>, vector<2x1x16x64xf32>
    tpu.vector_store %arg4[%c0_56, %c12, %c0_57, %c0_58], %94 {strides = array<i32>} : memref<2x16x16x64xf32, #tpu.memory_space<vmem>>, vector<2x1x16x64xf32>,
    %96 = vector.extract_strided_slice %43 {offsets = [0, 26, 0, 0], sizes = [2, 1, 16, 64], strides = [1, 1, 1, 1]} : vector<2x32x16x64xf32> to vector<2x1x16x64xf32>
    %97 = vector.extract_strided_slice %43 {offsets = [0, 27, 0, 0], sizes = [2, 1, 16, 64], strides = [1, 1, 1, 1]} : vector<2x32x16x64xf32> to vector<2x1x16x64xf32>
    %98 = arith.maximumf %96, %97 : vector<2x1x16x64xf32>
    %c0_59 = arith.constant 0 : index
    %c13 = arith.constant 13 : index
    %c0_60 = arith.constant 0 : index
    %c0_61 = arith.constant 0 : index
    %99 = vector.load %arg4[%c0_59, %c13, %c0_60, %c0_61] : memref<2x16x16x64xf32, #tpu.memory_space<vmem>>, vector<2x1x16x64xf32>
    tpu.vector_store %arg4[%c0_59, %c13, %c0_60, %c0_61], %98 {strides = array<i32>} : memref<2x16x16x64xf32, #tpu.memory_space<vmem>>, vector<2x1x16x64xf32>,
    %100 = vector.extract_strided_slice %43 {offsets = [0, 28, 0, 0], sizes = [2, 1, 16, 64], strides = [1, 1, 1, 1]} : vector<2x32x16x64xf32> to vector<2x1x16x64xf32>
    %101 = vector.extract_strided_slice %43 {offsets = [0, 29, 0, 0], sizes = [2, 1, 16, 64], strides = [1, 1, 1, 1]} : vector<2x32x16x64xf32> to vector<2x1x16x64xf32>
    %102 = arith.maximumf %100, %101 : vector<2x1x16x64xf32>
    %c0_62 = arith.constant 0 : index
    %c14 = arith.constant 14 : index
    %c0_63 = arith.constant 0 : index
    %c0_64 = arith.constant 0 : index
    %103 = vector.load %arg4[%c0_62, %c14, %c0_63, %c0_64] : memref<2x16x16x64xf32, #tpu.memory_space<vmem>>, vector<2x1x16x64xf32>
    tpu.vector_store %arg4[%c0_62, %c14, %c0_63, %c0_64], %102 {strides = array<i32>} : memref<2x16x16x64xf32, #tpu.memory_space<vmem>>, vector<2x1x16x64xf32>,
    %104 = vector.extract_strided_slice %43 {offsets = [0, 30, 0, 0], sizes = [2, 1, 16, 64], strides = [1, 1, 1, 1]} : vector<2x32x16x64xf32> to vector<2x1x16x64xf32>
    %105 = vector.extract_strided_slice %43 {offsets = [0, 31, 0, 0], sizes = [2, 1, 16, 64], strides = [1, 1, 1, 1]} : vector<2x32x16x64xf32> to vector<2x1x16x64xf32>
    %106 = arith.maximumf %104, %105 : vector<2x1x16x64xf32>
    %c0_65 = arith.constant 0 : index
    %c15 = arith.constant 15 : index
    %c0_66 = arith.constant 0 : index
    %c0_67 = arith.constant 0 : index
    %107 = vector.load %arg4[%c0_65, %c15, %c0_66, %c0_67] : memref<2x16x16x64xf32, #tpu.memory_space<vmem>>, vector<2x1x16x64xf32>
    tpu.vector_store %arg4[%c0_65, %c15, %c0_66, %c0_67], %106 {strides = array<i32>} : memref<2x16x16x64xf32, #tpu.memory_space<vmem>>, vector<2x1x16x64xf32>,
    return
  }
  func.func @transform_0(%arg0: i32) -> (i32, i32, i32, i32) {
    %c0_i32 = arith.constant 0 : i32
    %c0_i32_0 = arith.constant 0 : i32
    %c0_i32_1 = arith.constant 0 : i32
    %c0_i32_2 = arith.constant 0 : i32
    %c0_i32_3 = arith.constant 0 : i32
    return %c0_i32, %c0_i32_0, %c0_i32_1, %c0_i32_2 : i32, i32, i32, i32
  }
  func.func @transform_1(%arg0: i32) -> (i32, i32, i32, i32) {
    %c0_i32 = arith.constant 0 : i32
    %c0_i32_0 = arith.constant 0 : i32
    %c0_i32_1 = arith.constant 0 : i32
    %c0_i32_2 = arith.constant 0 : i32
    %c0_i32_3 = arith.constant 0 : i32
    return %c0_i32, %c0_i32_0, %c0_i32_1, %c0_i32_2 : i32, i32, i32, i32
  }
  func.func @transform_2(%arg0: i32) -> (i32, i32, i32, i32) {
    %c0_i32 = arith.constant 0 : i32
    %c0_i32_0 = arith.constant 0 : i32
    %c0_i32_1 = arith.constant 0 : i32
    %c0_i32_2 = arith.constant 0 : i32
    %c0_i32_3 = arith.constant 0 : i32
    return %c0_i32, %c0_i32_0, %c0_i32_1, %c0_i32_2 : i32, i32, i32, i32
  }
  func.func @transform_3(%arg0: i32) -> (i32, i32, i32, i32) {
    %c0_i32 = arith.constant 0 : i32
    %c0_i32_0 = arith.constant 0 : i32
    %c0_i32_1 = arith.constant 0 : i32
    %c0_i32_2 = arith.constant 0 : i32
    %c0_i32_3 = arith.constant 0 : i32
    return %c0_i32, %c0_i32_0, %c0_i32_1, %c0_i32_2 : i32, i32, i32, i32
  }
}

module attributes {stable_mosaic.version = 11 : i64} {
  func.func @_conv_matmul_kernel(%arg0: i32, %arg1: memref<256x576xbf16, #tpu.memory_space<vmem>>, %arg2: memref<576x128xbf16, #tpu.memory_space<vmem>>, %arg3: memref<1x128xf32, #tpu.memory_space<vmem>>, %arg4: memref<256x128xf32, #tpu.memory_space<vmem>>) attributes {dimension_semantics = [#tpu.dimension_semantics<parallel>], iteration_bounds = array<i64: 2>, scalar_prefetch = 0 : i64, scratch_operands = 0 : i64, tpu.core_type = #tpu.core_type<tc>, window_params = [{transform_indices = @transform_0, window_bounds = array<i64: 256, 576>}, {pipeline_mode = #tpu.pipeline_mode<synchronous>, transform_indices = @transform_1, window_bounds = array<i64: 576, 128>}, {pipeline_mode = #tpu.pipeline_mode<synchronous>, transform_indices = @transform_2, window_bounds = array<i64: 1, 128>}, {transform_indices = @transform_3, window_bounds = array<i64: 256, 128>}]} {
    %c0 = arith.constant 0 : index
    %c0_0 = arith.constant 0 : index
    %0 = vector.load %arg1[%c0, %c0_0] : memref<256x576xbf16, #tpu.memory_space<vmem>>, vector<256x576xbf16>
    %c0_1 = arith.constant 0 : index
    %c0_2 = arith.constant 0 : index
    %1 = vector.load %arg2[%c0_1, %c0_2] : memref<576x128xbf16, #tpu.memory_space<vmem>>, vector<576x128xbf16>
    %cst = arith.constant dense<0.000000e+00> : vector<256x128xf32>
    %2 = tpu.matmul %0, %1, %cst {dimension_numbers = #tpu.dot_dimension_numbers<[1], [0], [0], [1], [0, 0, 1, 1], [], []>} : vector<256x576xbf16>, vector<576x128xbf16>, vector<256x128xf32> -> vector<256x128xf32>
    %c0_3 = arith.constant 0 : index
    %c0_4 = arith.constant 0 : index
    %3 = vector.load %arg3[%c0_3, %c0_4] : memref<1x128xf32, #tpu.memory_space<vmem>>, vector<1x128xf32>
    %4 = vector.broadcast %3 : vector<1x128xf32> to vector<256x128xf32>
    %5 = arith.addf %2, %4 : vector<256x128xf32>
    %c0_5 = arith.constant 0 : index
    %c0_6 = arith.constant 0 : index
    %6 = vector.load %arg4[%c0_5, %c0_6] : memref<256x128xf32, #tpu.memory_space<vmem>>, vector<256x128xf32>
    tpu.vector_store %arg4[%c0_5, %c0_6], %5 {strides = array<i32>} : memref<256x128xf32, #tpu.memory_space<vmem>>, vector<256x128xf32>,
    return
  }
  func.func @transform_0(%arg0: i32) -> (i32, i32) {
    %c0_i32 = arith.constant 0 : i32
    %c0_i32_0 = arith.constant 0 : i32
    return %arg0, %c0_i32 : i32, i32
  }
  func.func @transform_1(%arg0: i32) -> (i32, i32) {
    %c0_i32 = arith.constant 0 : i32
    %c0_i32_0 = arith.constant 0 : i32
    %c0_i32_1 = arith.constant 0 : i32
    return %c0_i32, %c0_i32_0 : i32, i32
  }
  func.func @transform_2(%arg0: i32) -> (i32, i32) {
    %c0_i32 = arith.constant 0 : i32
    %c0_i32_0 = arith.constant 0 : i32
    %c0_i32_1 = arith.constant 0 : i32
    return %c0_i32, %c0_i32_0 : i32, i32
  }
  func.func @transform_3(%arg0: i32) -> (i32, i32) {
    %c0_i32 = arith.constant 0 : i32
    %c0_i32_0 = arith.constant 0 : i32
    return %arg0, %c0_i32 : i32, i32
  }
}

module attributes {stable_mosaic.version = 11 : i64} {
  func.func @_bn_relu_pool_kernel(%arg0: i32, %arg1: memref<2x16x8x256xf32, #tpu.memory_space<vmem>>, %arg2: memref<1x1x1x128xf32, #tpu.memory_space<vmem>>, %arg3: memref<1x1x1x128xf32, #tpu.memory_space<vmem>>, %arg4: memref<2x8x8x128xf32, #tpu.memory_space<vmem>>) attributes {dimension_semantics = [#tpu.dimension_semantics<arbitrary>], iteration_bounds = array<i64: 1>, scalar_prefetch = 0 : i64, scratch_operands = 0 : i64, tpu.core_type = #tpu.core_type<tc>, window_params = [{pipeline_mode = #tpu.pipeline_mode<synchronous>, transform_indices = @transform_0, window_bounds = array<i64: 2, 16, 8, 256>}, {pipeline_mode = #tpu.pipeline_mode<synchronous>, transform_indices = @transform_1, window_bounds = array<i64: 1, 1, 1, 128>}, {pipeline_mode = #tpu.pipeline_mode<synchronous>, transform_indices = @transform_2, window_bounds = array<i64: 1, 1, 1, 128>}, {pipeline_mode = #tpu.pipeline_mode<synchronous>, transform_indices = @transform_3, window_bounds = array<i64: 2, 8, 8, 128>}]} {
    %c0 = arith.constant 0 : index
    %c0_0 = arith.constant 0 : index
    %c0_1 = arith.constant 0 : index
    %c0_2 = arith.constant 0 : index
    %0 = vector.load %arg1[%c0, %c0_0, %c0_1, %c0_2] : memref<2x16x8x256xf32, #tpu.memory_space<vmem>>, vector<2x16x8x256xf32>
    %1 = vector.extract_strided_slice %0 {offsets = [0, 0, 0, 0], sizes = [2, 16, 8, 128], strides = [1, 1, 1, 1]} : vector<2x16x8x256xf32> to vector<2x16x8x128xf32>
    %2 = vector.extract_strided_slice %0 {offsets = [0, 0, 0, 128], sizes = [2, 16, 8, 128], strides = [1, 1, 1, 1]} : vector<2x16x8x256xf32> to vector<2x16x8x128xf32>
    %cst = arith.constant dense<0.000000e+00> : vector<128xf32>
    %3 = vector.multi_reduction <add>, %1, %cst [0, 1, 2] : vector<2x16x8x128xf32> to vector<128xf32>
    %4 = vector.shape_cast %3 : vector<128xf32> to vector<1x1x1x128xf32>
    %cst_3 = arith.constant dense<0.000000e+00> : vector<128xf32>
    %5 = vector.multi_reduction <add>, %2, %cst_3 [0, 1, 2] : vector<2x16x8x128xf32> to vector<128xf32>
    %6 = vector.shape_cast %5 : vector<128xf32> to vector<1x1x1x128xf32>
    %7 = arith.addf %4, %6 : vector<1x1x1x128xf32>
    %cst_4 = arith.constant 0.001953125 : f32
    %8 = vector.broadcast %cst_4 : f32 to vector<1x1x1x128xf32>
    %9 = arith.mulf %7, %8 : vector<1x1x1x128xf32>
    %10 = vector.broadcast %9 : vector<1x1x1x128xf32> to vector<2x16x8x128xf32>
    %11 = arith.subf %1, %10 : vector<2x16x8x128xf32>
    %12 = vector.broadcast %9 : vector<1x1x1x128xf32> to vector<2x16x8x128xf32>
    %13 = arith.subf %2, %12 : vector<2x16x8x128xf32>
    %14 = arith.mulf %11, %11 : vector<2x16x8x128xf32>
    %cst_5 = arith.constant dense<0.000000e+00> : vector<128xf32>
    %15 = vector.multi_reduction <add>, %14, %cst_5 [0, 1, 2] : vector<2x16x8x128xf32> to vector<128xf32>
    %16 = vector.shape_cast %15 : vector<128xf32> to vector<1x1x1x128xf32>
    %17 = arith.mulf %13, %13 : vector<2x16x8x128xf32>
    %cst_6 = arith.constant dense<0.000000e+00> : vector<128xf32>
    %18 = vector.multi_reduction <add>, %17, %cst_6 [0, 1, 2] : vector<2x16x8x128xf32> to vector<128xf32>
    %19 = vector.shape_cast %18 : vector<128xf32> to vector<1x1x1x128xf32>
    %20 = arith.addf %16, %19 : vector<1x1x1x128xf32>
    %cst_7 = arith.constant 0.001953125 : f32
    %21 = vector.broadcast %cst_7 : f32 to vector<1x1x1x128xf32>
    %22 = arith.mulf %20, %21 : vector<1x1x1x128xf32>
    %c0_8 = arith.constant 0 : index
    %c0_9 = arith.constant 0 : index
    %c0_10 = arith.constant 0 : index
    %c0_11 = arith.constant 0 : index
    %23 = vector.load %arg2[%c0_8, %c0_9, %c0_10, %c0_11] : memref<1x1x1x128xf32, #tpu.memory_space<vmem>>, vector<1x1x1x128xf32>
    %cst_12 = arith.constant 9.99999974E-6 : f32
    %24 = vector.broadcast %cst_12 : f32 to vector<1x1x1x128xf32>
    %25 = arith.addf %22, %24 : vector<1x1x1x128xf32>
    %26 = math.rsqrt %25 : vector<1x1x1x128xf32>
    %27 = arith.mulf %23, %26 : vector<1x1x1x128xf32>
    %c0_13 = arith.constant 0 : index
    %c0_14 = arith.constant 0 : index
    %c0_15 = arith.constant 0 : index
    %c0_16 = arith.constant 0 : index
    %28 = vector.load %arg3[%c0_13, %c0_14, %c0_15, %c0_16] : memref<1x1x1x128xf32, #tpu.memory_space<vmem>>, vector<1x1x1x128xf32>
    %29 = arith.mulf %9, %27 : vector<1x1x1x128xf32>
    %30 = arith.subf %28, %29 : vector<1x1x1x128xf32>
    %31 = vector.broadcast %27 : vector<1x1x1x128xf32> to vector<2x16x8x128xf32>
    %32 = arith.mulf %1, %31 : vector<2x16x8x128xf32>
    %33 = vector.broadcast %30 : vector<1x1x1x128xf32> to vector<2x16x8x128xf32>
    %34 = arith.addf %32, %33 : vector<2x16x8x128xf32>
    %cst_17 = arith.constant 0.000000e+00 : f32
    %35 = vector.broadcast %cst_17 : f32 to vector<2x16x8x128xf32>
    %36 = arith.maximumf %34, %35 : vector<2x16x8x128xf32>
    %37 = vector.broadcast %27 : vector<1x1x1x128xf32> to vector<2x16x8x128xf32>
    %38 = arith.mulf %2, %37 : vector<2x16x8x128xf32>
    %39 = vector.broadcast %30 : vector<1x1x1x128xf32> to vector<2x16x8x128xf32>
    %40 = arith.addf %38, %39 : vector<2x16x8x128xf32>
    %cst_18 = arith.constant 0.000000e+00 : f32
    %41 = vector.broadcast %cst_18 : f32 to vector<2x16x8x128xf32>
    %42 = arith.maximumf %40, %41 : vector<2x16x8x128xf32>
    %43 = arith.maximumf %36, %42 : vector<2x16x8x128xf32>
    %44 = vector.extract_strided_slice %43 {offsets = [0, 0, 0, 0], sizes = [2, 1, 8, 128], strides = [1, 1, 1, 1]} : vector<2x16x8x128xf32> to vector<2x1x8x128xf32>
    %45 = vector.extract_strided_slice %43 {offsets = [0, 1, 0, 0], sizes = [2, 1, 8, 128], strides = [1, 1, 1, 1]} : vector<2x16x8x128xf32> to vector<2x1x8x128xf32>
    %46 = arith.maximumf %44, %45 : vector<2x1x8x128xf32>
    %c0_19 = arith.constant 0 : index
    %c0_20 = arith.constant 0 : index
    %c0_21 = arith.constant 0 : index
    %c0_22 = arith.constant 0 : index
    %47 = vector.load %arg4[%c0_19, %c0_20, %c0_21, %c0_22] : memref<2x8x8x128xf32, #tpu.memory_space<vmem>>, vector<2x1x8x128xf32>
    tpu.vector_store %arg4[%c0_19, %c0_20, %c0_21, %c0_22], %46 {strides = array<i32>} : memref<2x8x8x128xf32, #tpu.memory_space<vmem>>, vector<2x1x8x128xf32>,
    %48 = vector.extract_strided_slice %43 {offsets = [0, 2, 0, 0], sizes = [2, 1, 8, 128], strides = [1, 1, 1, 1]} : vector<2x16x8x128xf32> to vector<2x1x8x128xf32>
    %49 = vector.extract_strided_slice %43 {offsets = [0, 3, 0, 0], sizes = [2, 1, 8, 128], strides = [1, 1, 1, 1]} : vector<2x16x8x128xf32> to vector<2x1x8x128xf32>
    %50 = arith.maximumf %48, %49 : vector<2x1x8x128xf32>
    %c0_23 = arith.constant 0 : index
    %c1 = arith.constant 1 : index
    %c0_24 = arith.constant 0 : index
    %c0_25 = arith.constant 0 : index
    %51 = vector.load %arg4[%c0_23, %c1, %c0_24, %c0_25] : memref<2x8x8x128xf32, #tpu.memory_space<vmem>>, vector<2x1x8x128xf32>
    tpu.vector_store %arg4[%c0_23, %c1, %c0_24, %c0_25], %50 {strides = array<i32>} : memref<2x8x8x128xf32, #tpu.memory_space<vmem>>, vector<2x1x8x128xf32>,
    %52 = vector.extract_strided_slice %43 {offsets = [0, 4, 0, 0], sizes = [2, 1, 8, 128], strides = [1, 1, 1, 1]} : vector<2x16x8x128xf32> to vector<2x1x8x128xf32>
    %53 = vector.extract_strided_slice %43 {offsets = [0, 5, 0, 0], sizes = [2, 1, 8, 128], strides = [1, 1, 1, 1]} : vector<2x16x8x128xf32> to vector<2x1x8x128xf32>
    %54 = arith.maximumf %52, %53 : vector<2x1x8x128xf32>
    %c0_26 = arith.constant 0 : index
    %c2 = arith.constant 2 : index
    %c0_27 = arith.constant 0 : index
    %c0_28 = arith.constant 0 : index
    %55 = vector.load %arg4[%c0_26, %c2, %c0_27, %c0_28] : memref<2x8x8x128xf32, #tpu.memory_space<vmem>>, vector<2x1x8x128xf32>
    tpu.vector_store %arg4[%c0_26, %c2, %c0_27, %c0_28], %54 {strides = array<i32>} : memref<2x8x8x128xf32, #tpu.memory_space<vmem>>, vector<2x1x8x128xf32>,
    %56 = vector.extract_strided_slice %43 {offsets = [0, 6, 0, 0], sizes = [2, 1, 8, 128], strides = [1, 1, 1, 1]} : vector<2x16x8x128xf32> to vector<2x1x8x128xf32>
    %57 = vector.extract_strided_slice %43 {offsets = [0, 7, 0, 0], sizes = [2, 1, 8, 128], strides = [1, 1, 1, 1]} : vector<2x16x8x128xf32> to vector<2x1x8x128xf32>
    %58 = arith.maximumf %56, %57 : vector<2x1x8x128xf32>
    %c0_29 = arith.constant 0 : index
    %c3 = arith.constant 3 : index
    %c0_30 = arith.constant 0 : index
    %c0_31 = arith.constant 0 : index
    %59 = vector.load %arg4[%c0_29, %c3, %c0_30, %c0_31] : memref<2x8x8x128xf32, #tpu.memory_space<vmem>>, vector<2x1x8x128xf32>
    tpu.vector_store %arg4[%c0_29, %c3, %c0_30, %c0_31], %58 {strides = array<i32>} : memref<2x8x8x128xf32, #tpu.memory_space<vmem>>, vector<2x1x8x128xf32>,
    %60 = vector.extract_strided_slice %43 {offsets = [0, 8, 0, 0], sizes = [2, 1, 8, 128], strides = [1, 1, 1, 1]} : vector<2x16x8x128xf32> to vector<2x1x8x128xf32>
    %61 = vector.extract_strided_slice %43 {offsets = [0, 9, 0, 0], sizes = [2, 1, 8, 128], strides = [1, 1, 1, 1]} : vector<2x16x8x128xf32> to vector<2x1x8x128xf32>
    %62 = arith.maximumf %60, %61 : vector<2x1x8x128xf32>
    %c0_32 = arith.constant 0 : index
    %c4 = arith.constant 4 : index
    %c0_33 = arith.constant 0 : index
    %c0_34 = arith.constant 0 : index
    %63 = vector.load %arg4[%c0_32, %c4, %c0_33, %c0_34] : memref<2x8x8x128xf32, #tpu.memory_space<vmem>>, vector<2x1x8x128xf32>
    tpu.vector_store %arg4[%c0_32, %c4, %c0_33, %c0_34], %62 {strides = array<i32>} : memref<2x8x8x128xf32, #tpu.memory_space<vmem>>, vector<2x1x8x128xf32>,
    %64 = vector.extract_strided_slice %43 {offsets = [0, 10, 0, 0], sizes = [2, 1, 8, 128], strides = [1, 1, 1, 1]} : vector<2x16x8x128xf32> to vector<2x1x8x128xf32>
    %65 = vector.extract_strided_slice %43 {offsets = [0, 11, 0, 0], sizes = [2, 1, 8, 128], strides = [1, 1, 1, 1]} : vector<2x16x8x128xf32> to vector<2x1x8x128xf32>
    %66 = arith.maximumf %64, %65 : vector<2x1x8x128xf32>
    %c0_35 = arith.constant 0 : index
    %c5 = arith.constant 5 : index
    %c0_36 = arith.constant 0 : index
    %c0_37 = arith.constant 0 : index
    %67 = vector.load %arg4[%c0_35, %c5, %c0_36, %c0_37] : memref<2x8x8x128xf32, #tpu.memory_space<vmem>>, vector<2x1x8x128xf32>
    tpu.vector_store %arg4[%c0_35, %c5, %c0_36, %c0_37], %66 {strides = array<i32>} : memref<2x8x8x128xf32, #tpu.memory_space<vmem>>, vector<2x1x8x128xf32>,
    %68 = vector.extract_strided_slice %43 {offsets = [0, 12, 0, 0], sizes = [2, 1, 8, 128], strides = [1, 1, 1, 1]} : vector<2x16x8x128xf32> to vector<2x1x8x128xf32>
    %69 = vector.extract_strided_slice %43 {offsets = [0, 13, 0, 0], sizes = [2, 1, 8, 128], strides = [1, 1, 1, 1]} : vector<2x16x8x128xf32> to vector<2x1x8x128xf32>
    %70 = arith.maximumf %68, %69 : vector<2x1x8x128xf32>
    %c0_38 = arith.constant 0 : index
    %c6 = arith.constant 6 : index
    %c0_39 = arith.constant 0 : index
    %c0_40 = arith.constant 0 : index
    %71 = vector.load %arg4[%c0_38, %c6, %c0_39, %c0_40] : memref<2x8x8x128xf32, #tpu.memory_space<vmem>>, vector<2x1x8x128xf32>
    tpu.vector_store %arg4[%c0_38, %c6, %c0_39, %c0_40], %70 {strides = array<i32>} : memref<2x8x8x128xf32, #tpu.memory_space<vmem>>, vector<2x1x8x128xf32>,
    %72 = vector.extract_strided_slice %43 {offsets = [0, 14, 0, 0], sizes = [2, 1, 8, 128], strides = [1, 1, 1, 1]} : vector<2x16x8x128xf32> to vector<2x1x8x128xf32>
    %73 = vector.extract_strided_slice %43 {offsets = [0, 15, 0, 0], sizes = [2, 1, 8, 128], strides = [1, 1, 1, 1]} : vector<2x16x8x128xf32> to vector<2x1x8x128xf32>
    %74 = arith.maximumf %72, %73 : vector<2x1x8x128xf32>
    %c0_41 = arith.constant 0 : index
    %c7 = arith.constant 7 : index
    %c0_42 = arith.constant 0 : index
    %c0_43 = arith.constant 0 : index
    %75 = vector.load %arg4[%c0_41, %c7, %c0_42, %c0_43] : memref<2x8x8x128xf32, #tpu.memory_space<vmem>>, vector<2x1x8x128xf32>
    tpu.vector_store %arg4[%c0_41, %c7, %c0_42, %c0_43], %74 {strides = array<i32>} : memref<2x8x8x128xf32, #tpu.memory_space<vmem>>, vector<2x1x8x128xf32>,
    return
  }
  func.func @transform_0(%arg0: i32) -> (i32, i32, i32, i32) {
    %c0_i32 = arith.constant 0 : i32
    %c0_i32_0 = arith.constant 0 : i32
    %c0_i32_1 = arith.constant 0 : i32
    %c0_i32_2 = arith.constant 0 : i32
    %c0_i32_3 = arith.constant 0 : i32
    return %c0_i32, %c0_i32_0, %c0_i32_1, %c0_i32_2 : i32, i32, i32, i32
  }
  func.func @transform_1(%arg0: i32) -> (i32, i32, i32, i32) {
    %c0_i32 = arith.constant 0 : i32
    %c0_i32_0 = arith.constant 0 : i32
    %c0_i32_1 = arith.constant 0 : i32
    %c0_i32_2 = arith.constant 0 : i32
    %c0_i32_3 = arith.constant 0 : i32
    return %c0_i32, %c0_i32_0, %c0_i32_1, %c0_i32_2 : i32, i32, i32, i32
  }
  func.func @transform_2(%arg0: i32) -> (i32, i32, i32, i32) {
    %c0_i32 = arith.constant 0 : i32
    %c0_i32_0 = arith.constant 0 : i32
    %c0_i32_1 = arith.constant 0 : i32
    %c0_i32_2 = arith.constant 0 : i32
    %c0_i32_3 = arith.constant 0 : i32
    return %c0_i32, %c0_i32_0, %c0_i32_1, %c0_i32_2 : i32, i32, i32, i32
  }
  func.func @transform_3(%arg0: i32) -> (i32, i32, i32, i32) {
    %c0_i32 = arith.constant 0 : i32
    %c0_i32_0 = arith.constant 0 : i32
    %c0_i32_1 = arith.constant 0 : i32
    %c0_i32_2 = arith.constant 0 : i32
    %c0_i32_3 = arith.constant 0 : i32
    return %c0_i32, %c0_i32_0, %c0_i32_1, %c0_i32_2 : i32, i32, i32, i32
  }
}

module attributes {stable_mosaic.version = 11 : i64} {
  func.func @_conv_matmul_kernel(%arg0: i32, %arg1: memref<64x1152xbf16, #tpu.memory_space<vmem>>, %arg2: memref<1152x256xbf16, #tpu.memory_space<vmem>>, %arg3: memref<1x256xf32, #tpu.memory_space<vmem>>, %arg4: memref<64x256xf32, #tpu.memory_space<vmem>>) attributes {dimension_semantics = [#tpu.dimension_semantics<parallel>], iteration_bounds = array<i64: 2>, scalar_prefetch = 0 : i64, scratch_operands = 0 : i64, tpu.core_type = #tpu.core_type<tc>, window_params = [{transform_indices = @transform_0, window_bounds = array<i64: 64, 1152>}, {pipeline_mode = #tpu.pipeline_mode<synchronous>, transform_indices = @transform_1, window_bounds = array<i64: 1152, 256>}, {pipeline_mode = #tpu.pipeline_mode<synchronous>, transform_indices = @transform_2, window_bounds = array<i64: 1, 256>}, {transform_indices = @transform_3, window_bounds = array<i64: 64, 256>}]} {
    %c0 = arith.constant 0 : index
    %c0_0 = arith.constant 0 : index
    %0 = vector.load %arg1[%c0, %c0_0] : memref<64x1152xbf16, #tpu.memory_space<vmem>>, vector<64x1152xbf16>
    %c0_1 = arith.constant 0 : index
    %c0_2 = arith.constant 0 : index
    %1 = vector.load %arg2[%c0_1, %c0_2] : memref<1152x256xbf16, #tpu.memory_space<vmem>>, vector<1152x256xbf16>
    %cst = arith.constant dense<0.000000e+00> : vector<64x256xf32>
    %2 = tpu.matmul %0, %1, %cst {dimension_numbers = #tpu.dot_dimension_numbers<[1], [0], [0], [1], [0, 0, 1, 1], [], []>} : vector<64x1152xbf16>, vector<1152x256xbf16>, vector<64x256xf32> -> vector<64x256xf32>
    %c0_3 = arith.constant 0 : index
    %c0_4 = arith.constant 0 : index
    %3 = vector.load %arg3[%c0_3, %c0_4] : memref<1x256xf32, #tpu.memory_space<vmem>>, vector<1x256xf32>
    %4 = vector.broadcast %3 : vector<1x256xf32> to vector<64x256xf32>
    %5 = arith.addf %2, %4 : vector<64x256xf32>
    %c0_5 = arith.constant 0 : index
    %c0_6 = arith.constant 0 : index
    %6 = vector.load %arg4[%c0_5, %c0_6] : memref<64x256xf32, #tpu.memory_space<vmem>>, vector<64x256xf32>
    tpu.vector_store %arg4[%c0_5, %c0_6], %5 {strides = array<i32>} : memref<64x256xf32, #tpu.memory_space<vmem>>, vector<64x256xf32>,
    return
  }
  func.func @transform_0(%arg0: i32) -> (i32, i32) {
    %c0_i32 = arith.constant 0 : i32
    %c0_i32_0 = arith.constant 0 : i32
    return %arg0, %c0_i32 : i32, i32
  }
  func.func @transform_1(%arg0: i32) -> (i32, i32) {
    %c0_i32 = arith.constant 0 : i32
    %c0_i32_0 = arith.constant 0 : i32
    %c0_i32_1 = arith.constant 0 : i32
    return %c0_i32, %c0_i32_0 : i32, i32
  }
  func.func @transform_2(%arg0: i32) -> (i32, i32) {
    %c0_i32 = arith.constant 0 : i32
    %c0_i32_0 = arith.constant 0 : i32
    %c0_i32_1 = arith.constant 0 : i32
    return %c0_i32, %c0_i32_0 : i32, i32
  }
  func.func @transform_3(%arg0: i32) -> (i32, i32) {
    %c0_i32 = arith.constant 0 : i32
    %c0_i32_0 = arith.constant 0 : i32
    return %arg0, %c0_i32 : i32, i32
  }
}

module attributes {stable_mosaic.version = 11 : i64} {
  func.func @_bn_relu_pool_kernel(%arg0: i32, %arg1: memref<2x8x4x512xf32, #tpu.memory_space<vmem>>, %arg2: memref<1x1x1x256xf32, #tpu.memory_space<vmem>>, %arg3: memref<1x1x1x256xf32, #tpu.memory_space<vmem>>, %arg4: memref<2x4x4x256xf32, #tpu.memory_space<vmem>>) attributes {dimension_semantics = [#tpu.dimension_semantics<arbitrary>], iteration_bounds = array<i64: 1>, scalar_prefetch = 0 : i64, scratch_operands = 0 : i64, tpu.core_type = #tpu.core_type<tc>, window_params = [{pipeline_mode = #tpu.pipeline_mode<synchronous>, transform_indices = @transform_0, window_bounds = array<i64: 2, 8, 4, 512>}, {pipeline_mode = #tpu.pipeline_mode<synchronous>, transform_indices = @transform_1, window_bounds = array<i64: 1, 1, 1, 256>}, {pipeline_mode = #tpu.pipeline_mode<synchronous>, transform_indices = @transform_2, window_bounds = array<i64: 1, 1, 1, 256>}, {pipeline_mode = #tpu.pipeline_mode<synchronous>, transform_indices = @transform_3, window_bounds = array<i64: 2, 4, 4, 256>}]} {
    %c0 = arith.constant 0 : index
    %c0_0 = arith.constant 0 : index
    %c0_1 = arith.constant 0 : index
    %c0_2 = arith.constant 0 : index
    %0 = vector.load %arg1[%c0, %c0_0, %c0_1, %c0_2] : memref<2x8x4x512xf32, #tpu.memory_space<vmem>>, vector<2x8x4x512xf32>
    %1 = vector.extract_strided_slice %0 {offsets = [0, 0, 0, 0], sizes = [2, 8, 4, 256], strides = [1, 1, 1, 1]} : vector<2x8x4x512xf32> to vector<2x8x4x256xf32>
    %2 = vector.extract_strided_slice %0 {offsets = [0, 0, 0, 256], sizes = [2, 8, 4, 256], strides = [1, 1, 1, 1]} : vector<2x8x4x512xf32> to vector<2x8x4x256xf32>
    %cst = arith.constant dense<0.000000e+00> : vector<256xf32>
    %3 = vector.multi_reduction <add>, %1, %cst [0, 1, 2] : vector<2x8x4x256xf32> to vector<256xf32>
    %4 = vector.shape_cast %3 : vector<256xf32> to vector<1x1x1x256xf32>
    %cst_3 = arith.constant dense<0.000000e+00> : vector<256xf32>
    %5 = vector.multi_reduction <add>, %2, %cst_3 [0, 1, 2] : vector<2x8x4x256xf32> to vector<256xf32>
    %6 = vector.shape_cast %5 : vector<256xf32> to vector<1x1x1x256xf32>
    %7 = arith.addf %4, %6 : vector<1x1x1x256xf32>
    %cst_4 = arith.constant 7.812500e-03 : f32
    %8 = vector.broadcast %cst_4 : f32 to vector<1x1x1x256xf32>
    %9 = arith.mulf %7, %8 : vector<1x1x1x256xf32>
    %10 = vector.broadcast %9 : vector<1x1x1x256xf32> to vector<2x8x4x256xf32>
    %11 = arith.subf %1, %10 : vector<2x8x4x256xf32>
    %12 = vector.broadcast %9 : vector<1x1x1x256xf32> to vector<2x8x4x256xf32>
    %13 = arith.subf %2, %12 : vector<2x8x4x256xf32>
    %14 = arith.mulf %11, %11 : vector<2x8x4x256xf32>
    %cst_5 = arith.constant dense<0.000000e+00> : vector<256xf32>
    %15 = vector.multi_reduction <add>, %14, %cst_5 [0, 1, 2] : vector<2x8x4x256xf32> to vector<256xf32>
    %16 = vector.shape_cast %15 : vector<256xf32> to vector<1x1x1x256xf32>
    %17 = arith.mulf %13, %13 : vector<2x8x4x256xf32>
    %cst_6 = arith.constant dense<0.000000e+00> : vector<256xf32>
    %18 = vector.multi_reduction <add>, %17, %cst_6 [0, 1, 2] : vector<2x8x4x256xf32> to vector<256xf32>
    %19 = vector.shape_cast %18 : vector<256xf32> to vector<1x1x1x256xf32>
    %20 = arith.addf %16, %19 : vector<1x1x1x256xf32>
    %cst_7 = arith.constant 7.812500e-03 : f32
    %21 = vector.broadcast %cst_7 : f32 to vector<1x1x1x256xf32>
    %22 = arith.mulf %20, %21 : vector<1x1x1x256xf32>
    %c0_8 = arith.constant 0 : index
    %c0_9 = arith.constant 0 : index
    %c0_10 = arith.constant 0 : index
    %c0_11 = arith.constant 0 : index
    %23 = vector.load %arg2[%c0_8, %c0_9, %c0_10, %c0_11] : memref<1x1x1x256xf32, #tpu.memory_space<vmem>>, vector<1x1x1x256xf32>
    %cst_12 = arith.constant 9.99999974E-6 : f32
    %24 = vector.broadcast %cst_12 : f32 to vector<1x1x1x256xf32>
    %25 = arith.addf %22, %24 : vector<1x1x1x256xf32>
    %26 = math.rsqrt %25 : vector<1x1x1x256xf32>
    %27 = arith.mulf %23, %26 : vector<1x1x1x256xf32>
    %c0_13 = arith.constant 0 : index
    %c0_14 = arith.constant 0 : index
    %c0_15 = arith.constant 0 : index
    %c0_16 = arith.constant 0 : index
    %28 = vector.load %arg3[%c0_13, %c0_14, %c0_15, %c0_16] : memref<1x1x1x256xf32, #tpu.memory_space<vmem>>, vector<1x1x1x256xf32>
    %29 = arith.mulf %9, %27 : vector<1x1x1x256xf32>
    %30 = arith.subf %28, %29 : vector<1x1x1x256xf32>
    %31 = vector.broadcast %27 : vector<1x1x1x256xf32> to vector<2x8x4x256xf32>
    %32 = arith.mulf %1, %31 : vector<2x8x4x256xf32>
    %33 = vector.broadcast %30 : vector<1x1x1x256xf32> to vector<2x8x4x256xf32>
    %34 = arith.addf %32, %33 : vector<2x8x4x256xf32>
    %cst_17 = arith.constant 0.000000e+00 : f32
    %35 = vector.broadcast %cst_17 : f32 to vector<2x8x4x256xf32>
    %36 = arith.maximumf %34, %35 : vector<2x8x4x256xf32>
    %37 = vector.broadcast %27 : vector<1x1x1x256xf32> to vector<2x8x4x256xf32>
    %38 = arith.mulf %2, %37 : vector<2x8x4x256xf32>
    %39 = vector.broadcast %30 : vector<1x1x1x256xf32> to vector<2x8x4x256xf32>
    %40 = arith.addf %38, %39 : vector<2x8x4x256xf32>
    %cst_18 = arith.constant 0.000000e+00 : f32
    %41 = vector.broadcast %cst_18 : f32 to vector<2x8x4x256xf32>
    %42 = arith.maximumf %40, %41 : vector<2x8x4x256xf32>
    %43 = arith.maximumf %36, %42 : vector<2x8x4x256xf32>
    %44 = vector.extract_strided_slice %43 {offsets = [0, 0, 0, 0], sizes = [2, 1, 4, 256], strides = [1, 1, 1, 1]} : vector<2x8x4x256xf32> to vector<2x1x4x256xf32>
    %45 = vector.extract_strided_slice %43 {offsets = [0, 1, 0, 0], sizes = [2, 1, 4, 256], strides = [1, 1, 1, 1]} : vector<2x8x4x256xf32> to vector<2x1x4x256xf32>
    %46 = arith.maximumf %44, %45 : vector<2x1x4x256xf32>
    %c0_19 = arith.constant 0 : index
    %c0_20 = arith.constant 0 : index
    %c0_21 = arith.constant 0 : index
    %c0_22 = arith.constant 0 : index
    %47 = vector.load %arg4[%c0_19, %c0_20, %c0_21, %c0_22] : memref<2x4x4x256xf32, #tpu.memory_space<vmem>>, vector<2x1x4x256xf32>
    tpu.vector_store %arg4[%c0_19, %c0_20, %c0_21, %c0_22], %46 {strides = array<i32>} : memref<2x4x4x256xf32, #tpu.memory_space<vmem>>, vector<2x1x4x256xf32>,
    %48 = vector.extract_strided_slice %43 {offsets = [0, 2, 0, 0], sizes = [2, 1, 4, 256], strides = [1, 1, 1, 1]} : vector<2x8x4x256xf32> to vector<2x1x4x256xf32>
    %49 = vector.extract_strided_slice %43 {offsets = [0, 3, 0, 0], sizes = [2, 1, 4, 256], strides = [1, 1, 1, 1]} : vector<2x8x4x256xf32> to vector<2x1x4x256xf32>
    %50 = arith.maximumf %48, %49 : vector<2x1x4x256xf32>
    %c0_23 = arith.constant 0 : index
    %c1 = arith.constant 1 : index
    %c0_24 = arith.constant 0 : index
    %c0_25 = arith.constant 0 : index
    %51 = vector.load %arg4[%c0_23, %c1, %c0_24, %c0_25] : memref<2x4x4x256xf32, #tpu.memory_space<vmem>>, vector<2x1x4x256xf32>
    tpu.vector_store %arg4[%c0_23, %c1, %c0_24, %c0_25], %50 {strides = array<i32>} : memref<2x4x4x256xf32, #tpu.memory_space<vmem>>, vector<2x1x4x256xf32>,
    %52 = vector.extract_strided_slice %43 {offsets = [0, 4, 0, 0], sizes = [2, 1, 4, 256], strides = [1, 1, 1, 1]} : vector<2x8x4x256xf32> to vector<2x1x4x256xf32>
    %53 = vector.extract_strided_slice %43 {offsets = [0, 5, 0, 0], sizes = [2, 1, 4, 256], strides = [1, 1, 1, 1]} : vector<2x8x4x256xf32> to vector<2x1x4x256xf32>
    %54 = arith.maximumf %52, %53 : vector<2x1x4x256xf32>
    %c0_26 = arith.constant 0 : index
    %c2 = arith.constant 2 : index
    %c0_27 = arith.constant 0 : index
    %c0_28 = arith.constant 0 : index
    %55 = vector.load %arg4[%c0_26, %c2, %c0_27, %c0_28] : memref<2x4x4x256xf32, #tpu.memory_space<vmem>>, vector<2x1x4x256xf32>
    tpu.vector_store %arg4[%c0_26, %c2, %c0_27, %c0_28], %54 {strides = array<i32>} : memref<2x4x4x256xf32, #tpu.memory_space<vmem>>, vector<2x1x4x256xf32>,
    %56 = vector.extract_strided_slice %43 {offsets = [0, 6, 0, 0], sizes = [2, 1, 4, 256], strides = [1, 1, 1, 1]} : vector<2x8x4x256xf32> to vector<2x1x4x256xf32>
    %57 = vector.extract_strided_slice %43 {offsets = [0, 7, 0, 0], sizes = [2, 1, 4, 256], strides = [1, 1, 1, 1]} : vector<2x8x4x256xf32> to vector<2x1x4x256xf32>
    %58 = arith.maximumf %56, %57 : vector<2x1x4x256xf32>
    %c0_29 = arith.constant 0 : index
    %c3 = arith.constant 3 : index
    %c0_30 = arith.constant 0 : index
    %c0_31 = arith.constant 0 : index
    %59 = vector.load %arg4[%c0_29, %c3, %c0_30, %c0_31] : memref<2x4x4x256xf32, #tpu.memory_space<vmem>>, vector<2x1x4x256xf32>
    tpu.vector_store %arg4[%c0_29, %c3, %c0_30, %c0_31], %58 {strides = array<i32>} : memref<2x4x4x256xf32, #tpu.memory_space<vmem>>, vector<2x1x4x256xf32>,
    return
  }
  func.func @transform_0(%arg0: i32) -> (i32, i32, i32, i32) {
    %c0_i32 = arith.constant 0 : i32
    %c0_i32_0 = arith.constant 0 : i32
    %c0_i32_1 = arith.constant 0 : i32
    %c0_i32_2 = arith.constant 0 : i32
    %c0_i32_3 = arith.constant 0 : i32
    return %c0_i32, %c0_i32_0, %c0_i32_1, %c0_i32_2 : i32, i32, i32, i32
  }
  func.func @transform_1(%arg0: i32) -> (i32, i32, i32, i32) {
    %c0_i32 = arith.constant 0 : i32
    %c0_i32_0 = arith.constant 0 : i32
    %c0_i32_1 = arith.constant 0 : i32
    %c0_i32_2 = arith.constant 0 : i32
    %c0_i32_3 = arith.constant 0 : i32
    return %c0_i32, %c0_i32_0, %c0_i32_1, %c0_i32_2 : i32, i32, i32, i32
  }
  func.func @transform_2(%arg0: i32) -> (i32, i32, i32, i32) {
    %c0_i32 = arith.constant 0 : i32
    %c0_i32_0 = arith.constant 0 : i32
    %c0_i32_1 = arith.constant 0 : i32
    %c0_i32_2 = arith.constant 0 : i32
    %c0_i32_3 = arith.constant 0 : i32
    return %c0_i32, %c0_i32_0, %c0_i32_1, %c0_i32_2 : i32, i32, i32, i32
  }
  func.func @transform_3(%arg0: i32) -> (i32, i32, i32, i32) {
    %c0_i32 = arith.constant 0 : i32
    %c0_i32_0 = arith.constant 0 : i32
    %c0_i32_1 = arith.constant 0 : i32
    %c0_i32_2 = arith.constant 0 : i32
    %c0_i32_3 = arith.constant 0 : i32
    return %c0_i32, %c0_i32_0, %c0_i32_1, %c0_i32_2 : i32, i32, i32, i32
  }
}

module attributes {stable_mosaic.version = 11 : i64} {
  func.func @_linear_kernel(%arg0: i32, %arg1: memref<2x4096xbf16, #tpu.memory_space<vmem>>, %arg2: memref<4096x10xbf16, #tpu.memory_space<vmem>>, %arg3: memref<1x10xf32, #tpu.memory_space<vmem>>, %arg4: memref<2x10xf32, #tpu.memory_space<vmem>>) attributes {dimension_semantics = [#tpu.dimension_semantics<arbitrary>], iteration_bounds = array<i64: 1>, scalar_prefetch = 0 : i64, scratch_operands = 0 : i64, tpu.core_type = #tpu.core_type<tc>, window_params = [{pipeline_mode = #tpu.pipeline_mode<synchronous>, transform_indices = @transform_0, window_bounds = array<i64: 2, 4096>}, {pipeline_mode = #tpu.pipeline_mode<synchronous>, transform_indices = @transform_1, window_bounds = array<i64: 4096, 10>}, {pipeline_mode = #tpu.pipeline_mode<synchronous>, transform_indices = @transform_2, window_bounds = array<i64: 1, 10>}, {pipeline_mode = #tpu.pipeline_mode<synchronous>, transform_indices = @transform_3, window_bounds = array<i64: 2, 10>}]} {
    %c0 = arith.constant 0 : index
    %c0_0 = arith.constant 0 : index
    %0 = vector.load %arg1[%c0, %c0_0] : memref<2x4096xbf16, #tpu.memory_space<vmem>>, vector<2x4096xbf16>
    %c0_1 = arith.constant 0 : index
    %c0_2 = arith.constant 0 : index
    %1 = vector.load %arg2[%c0_1, %c0_2] : memref<4096x10xbf16, #tpu.memory_space<vmem>>, vector<4096x10xbf16>
    %cst = arith.constant dense<0.000000e+00> : vector<2x10xf32>
    %2 = tpu.matmul %0, %1, %cst {dimension_numbers = #tpu.dot_dimension_numbers<[1], [0], [0], [1], [0, 0, 1, 1], [], []>} : vector<2x4096xbf16>, vector<4096x10xbf16>, vector<2x10xf32> -> vector<2x10xf32>
    %c0_3 = arith.constant 0 : index
    %c0_4 = arith.constant 0 : index
    %3 = vector.load %arg3[%c0_3, %c0_4] : memref<1x10xf32, #tpu.memory_space<vmem>>, vector<1x10xf32>
    %4 = vector.broadcast %3 : vector<1x10xf32> to vector<2x10xf32>
    %5 = arith.addf %2, %4 : vector<2x10xf32>
    %c0_5 = arith.constant 0 : index
    %c0_6 = arith.constant 0 : index
    %6 = vector.load %arg4[%c0_5, %c0_6] : memref<2x10xf32, #tpu.memory_space<vmem>>, vector<2x10xf32>
    tpu.vector_store %arg4[%c0_5, %c0_6], %5 {strides = array<i32>} : memref<2x10xf32, #tpu.memory_space<vmem>>, vector<2x10xf32>,
    return
  }
  func.func @transform_0(%arg0: i32) -> (i32, i32) {
    %c0_i32 = arith.constant 0 : i32
    %c0_i32_0 = arith.constant 0 : i32
    %c0_i32_1 = arith.constant 0 : i32
    return %c0_i32, %c0_i32_0 : i32, i32
  }
  func.func @transform_1(%arg0: i32) -> (i32, i32) {
    %c0_i32 = arith.constant 0 : i32
    %c0_i32_0 = arith.constant 0 : i32
    %c0_i32_1 = arith.constant 0 : i32
    return %c0_i32, %c0_i32_0 : i32, i32
  }
  func.func @transform_2(%arg0: i32) -> (i32, i32) {
    %c0_i32 = arith.constant 0 : i32
    %c0_i32_0 = arith.constant 0 : i32
    %c0_i32_1 = arith.constant 0 : i32
    return %c0_i32, %c0_i32_0 : i32, i32
  }
  func.func @transform_3(%arg0: i32) -> (i32, i32) {
    %c0_i32 = arith.constant 0 : i32
    %c0_i32_0 = arith.constant 0 : i32
    %c0_i32_1 = arith.constant 0 : i32
    return %c0_i32, %c0_i32_0 : i32, i32
  }
}

</mosaic_0001>

<llo_original>
// kernel: cnn_cifar_forward.7
$region0: #{cnn_cifar_forward.7}
  #allocation0 [shape = 'u32[]', space=smem, size = 0x4, offset = 0x4, fixed_abs, tag = 'smem constant byte address 0x4 - core index']
  #allocation1 [shape = 'u32[72,128]{1,0:T(1,128)}', space=vmem, size = 0x9000, scoped, tag = 'internal scratch']
  %s0 = inlined_call_operand.vmem [shape: bf16[2048,27], index: 0, kind: input, shape index: {}]
  %s1 = inlined_call_operand.vmem [shape: bf16[27,64], index: 1, kind: input, shape index: {}]
  %s2 = inlined_call_operand.vmem [shape: f32[1,64], index: 2, kind: input, shape index: {}]
  %s3 = inlined_call_operand.vmem [shape: f32[2048,64], index: 3, kind: output, shape index: {}]
  %s4 = sld [smem:[#allocation0]]
  $region45: #{cnn_cifar_forward.7} parent=0
    _
  %s6 = ssub.s32 1, %s4
  %s7 = scalar_select 0, %s6, %s4
  loop: start=0, step=1, limit=4
  $region2: #{cnn_cifar_forward.7} parent=0 // loop_pre_header
    _
  $region3: #{cnn_cifar_forward.7} parent=0 // loop_header
    %s9 = sphi 0, %s13
    %p10 = scmp.ge.s32.totalorder %s9, 4
    %s19 = sphi 0, %s21
    %s22 = sphi 0, %s19
    %s23 = sphi 0, %s22
    %s39 = sphi 0, %s23
    %s43 = sphi 0, %s43
    %s45 = sphi 0, %s43
    %s46 = sphi 0, %s45
    %s60 = sphi 0, %s46
    %s64 = sphi 0, %s64
    %s66 = sphi 0, %s64
    %s67 = sphi 0, %s66
    %s81 = sphi 0, %s67
    %s87 = sphi 0, %s89
    %s90 = sphi 0, %s87
    %s91 = sphi 0, %s90
    %s107 = sphi 0, %s91
  $region4: #{cnn_cifar_forward.7} parent=0 // loop_header_branch
    %12 = sbr.rel (%p10) target = $region8
  $region5: #{cnn_cifar_forward.7} parent=0 // loop_body
    %s14 = ssub.s32 %s9, 1
    %s15 = ssub.s32 %s9, 2
    %s16 = sadd.s32 %s9, 1
    %s17 = ssub.s32 %s9, %s16
    %p18 = scmp.eq.s32.totalorder %s17, 0
    %s20 = sadd.s32 %s19, 1
    %s21 = scalar_select %p18, %s19, %s20
    %p24 = pneg %p18
    %p25 = scmp.eq.s32.totalorder %s9, 1
    %p26 = por %p24, %p25
    %p27 = scmp.ne.s32.totalorder %s19, %s22
    %p28 = scmp.eq.s32.totalorder %s9, 0
    %p29 = por %p27, %p28
    %p30 = scmp.ne.s32.totalorder %s19, %s22
    %p31 = scmp.eq.s32.totalorder %s14, 1
    %p32 = por %p30, %p31
    %p33 = scmp.ne.s32.totalorder %s22, %s23
    %p34 = scmp.eq.s32.totalorder %s14, 0
    %p35 = por %p33, %p34
    %p36 = scmp.ne.s32.totalorder %s22, %s23
    %p37 = scmp.eq.s32.totalorder %s15, 1
    %p38 = por %p36, %p37
    %p40 = scmp.ne.s32.totalorder %s23, %s39
    %p41 = scmp.eq.s32.totalorder %s15, 0
    %p42 = por %p40, %p41
    %s44 = sadd.s32 %s43, 1
    %p47 = scmp.eq.s32.totalorder %s9, 1
    %p48 = scmp.ne.s32.totalorder %s43, %s45
    %p49 = scmp.eq.s32.totalorder %s9, 0
    %p50 = por %p48, %p49
    %p51 = scmp.ne.s32.totalorder %s43, %s45
    %p52 = scmp.eq.s32.totalorder %s14, 1
    %p53 = por %p51, %p52
    %p54 = scmp.ne.s32.totalorder %s45, %s46
    %p55 = scmp.eq.s32.totalorder %s14, 0
    %p56 = por %p54, %p55
    %p57 = scmp.ne.s32.totalorder %s45, %s46
    %p58 = scmp.eq.s32.totalorder %s15, 1
    %p59 = por %p57, %p58
    %p61 = scmp.ne.s32.totalorder %s46, %s60
    %p62 = scmp.eq.s32.totalorder %s15, 0
    %p63 = por %p61, %p62
    %s65 = sadd.s32 %s64, 1
    %p68 = scmp.eq.s32.totalorder %s9, 1
    %p69 = scmp.ne.s32.totalorder %s64, %s66
    %p70 = scmp.eq.s32.totalorder %s9, 0
    %p71 = por %p69, %p70
    %p72 = scmp.ne.s32.totalorder %s64, %s66
    %p73 = scmp.eq.s32.totalorder %s14, 1
    %p74 = por %p72, %p73
    %p75 = scmp.ne.s32.totalorder %s66, %s67
    %p76 = scmp.eq.s32.totalorder %s14, 0
    %p77 = por %p75, %p76
    %p78 = scmp.ne.s32.totalorder %s66, %s67
    %p79 = scmp.eq.s32.totalorder %s15, 1
    %p80 = por %p78, %p79
    %p82 = scmp.ne.s32.totalorder %s67, %s81
    %p83 = scmp.eq.s32.totalorder %s15, 0
    %p84 = por %p82, %p83
    %s85 = ssub.s32 %s9, %s16
    %p86 = scmp.eq.s32.totalorder %s85, 0
    %s88 = sadd.s32 %s87, 1
    %s89 = scalar_select %p86, %s87, %s88
    %p92 = pneg %p86
    %p93 = scmp.eq.s32.totalorder %s9, 1
    %p94 = por %p92, %p93
    %p95 = scmp.ne.s32.totalorder %s87, %s90
    %p96 = scmp.eq.s32.totalorder %s9, 0
    %p97 = por %p95, %p96
    %p98 = scmp.ne.s32.totalorder %s87, %s90
    %p99 = scmp.eq.s32.totalorder %s14, 1
    %p100 = por %p98, %p99
    %p101 = scmp.ne.s32.totalorder %s90, %s91
    %p102 = scmp.eq.s32.totalorder %s14, 0
    %p103 = por %p101, %p102
    %p104 = scmp.ne.s32.totalorder %s90, %s91
    %p105 = scmp.eq.s32.totalorder %s15, 1
    %p106 = por %p104, %p105
    %p108 = scmp.ne.s32.totalorder %s91, %s107
    %p109 = scmp.eq.s32.totalorder %s15, 0
    %p110 = por %p108, %p109
    %p111 = scmp.le.s32.totalorder 1, %s9
    %p112 = scmp.lt.s32.totalorder %s9, 3
    %p113 = pnand %p111, %p112
    %p114 = pneg %p113
    // Predicated region
    $region9: #{cnn_cifar_forward.7} parent=5 // pred_check
      _
    $region10: #{cnn_cifar_forward.7} parent=5 // pred_check_branch
      %116 = sbr.rel (%p113) target = $region12
    $region11: #{cnn_cifar_forward.7} parent=5 // pred_region
      %s117 = ssub.s32 %s9, 1
      // Predicated region
      $region13: #{cnn_cifar_forward.7} parent=11 // pred_check
        %p118 = pneg %p56
      $region14: #{cnn_cifar_forward.7} parent=11 // pred_check_branch
        %120 = sbr.rel (%p118) target = $region16
      $region15: #{cnn_cifar_forward.7} parent=11 // pred_region
        _
      $region16: #{cnn_cifar_forward.7} parent=11 // pred_fallthru
        _
      // Predicated region
      $region17: #{cnn_cifar_forward.7} parent=11 // pred_check
        %p121 = pneg %p77
      $region18: #{cnn_cifar_forward.7} parent=11 // pred_check_branch
        %123 = sbr.rel (%p121) target = $region20
      $region19: #{cnn_cifar_forward.7} parent=11 // pred_region
        _
      $region20: #{cnn_cifar_forward.7} parent=11 // pred_fallthru
        _
    $region12: #{cnn_cifar_forward.7} parent=5 // pred_fallthru
      _
    %p124 = scmp.lt.s32.totalorder %s9, 2
    // Predicated region
    $region21: #{cnn_cifar_forward.7} parent=5 // pred_check
      %p125 = pneg %p124
    $region22: #{cnn_cifar_forward.7} parent=5 // pred_check_branch
      %127 = sbr.rel (%p125) target = $region24
    $region23: #{cnn_cifar_forward.7} parent=5 // pred_region
      // Predicated region
      $region25: #{cnn_cifar_forward.7} parent=23 // pred_check
        %p128 = pneg %p29
      $region26: #{cnn_cifar_forward.7} parent=23 // pred_check_branch
        %130 = sbr.rel (%p128) target = $region28
      $region27: #{cnn_cifar_forward.7} parent=23 // pred_region
        %s131 = smul.u32 128, %s9
        %p132 = scmp.lt.s32.totalorder %s131, 255
        %s133 = scalar_select %p132, %s131, 255
        %s134 = smul.addr %s133, 4
        %s135 = scalar_lea.vmem %s0, %s134
        %s136 = smul.u32 128, %s9
      $region28: #{cnn_cifar_forward.7} parent=23 // pred_fallthru
        _
    $region24: #{cnn_cifar_forward.7} parent=5 // pred_fallthru
      _
    %p137 = scmp.le.s32.totalorder 1, %s9
    %p138 = scmp.lt.s32.totalorder %s9, 3
    %p139 = pnand %p137, %p138
    %p140 = pneg %p139
    // Predicated region
    $region29: #{cnn_cifar_forward.7} parent=5 // pred_check
      _
    $region30: #{cnn_cifar_forward.7} parent=5 // pred_check_branch
      %142 = sbr.rel (%p139) target = $region32
    $region31: #{cnn_cifar_forward.7} parent=5 // pred_region
      %s143 = ssub.s32 %s9, 1
      %s144 = smul.u32 128, %s14
      %p145 = scmp.lt.s32.totalorder %s144, 255
      %s146 = scalar_select %p145, %s144, 255
      %s147 = smul.addr %s146, 4
      %s148 = scalar_lea.vmem %s0, %s147
      %p149 = pneg %p35
      %p150 = pneg %p32
      %p151 = pneg %p56
      %p152 = pneg %p53
      %p153 = pneg %p77
      %p154 = pneg %p74
      %p155 = pneg %p103
      %p156 = pneg %p100
      %s157 = smul.u32 128, %s14
      %p158 = scmp.lt.s32.totalorder %s157, 255
      %s159 = scalar_select %p158, %s157, 255
      %s160 = smul.addr %s159, 8
      %s161 = scalar_lea.vmem %s3, %s160
      %s162 = smul.u32 128, %s14
      %p163 = scmp.lt.s32.totalorder %s162, 255
      %s164 = scalar_select %p163, %s162, 255
      %s165 = smul.addr %s164, 4
      %s166 = scalar_lea.vmem %s0, %s165
      %s167 = smul.u32 128, %s14
      %s168 = smul.u32 128, %s14
      %p169 = scmp.lt.s32.totalorder %s168, 255
      %s170 = scalar_select %p169, %s168, 255
      %s171 = smul.addr %s170, 8
      %s172 = scalar_lea.vmem %s3, %s171
      %s173 = smul.u32 128, %s14
      %v175 = vld [vmem:[%s166] sm:$0xf]
      %v176 = vld [vmem:[%s166 + $0x4] sm:$0xf]
      %v177 = vld [vmem:[%s166 + $0x8] sm:$0xf]
      %v178 = vld [vmem:[%s166 + $0xc] sm:$0xf]
      %v179 = vld [vmem:[%s166 + $0x10] sm:$0xf]
      %v180 = vld [vmem:[%s166 + $0x14] sm:$0xf]
      %v181 = vld [vmem:[%s166 + $0x18] sm:$0xf]
      %v182 = vld [vmem:[%s166 + $0x1c] sm:$0xf]
      %v183 = vld [vmem:[%s166 + $0x20] sm:$0xf]
      %v184 = vld [vmem:[%s166 + $0x24] sm:$0xf]
      %v185 = vld [vmem:[%s166 + $0x28] sm:$0xf]
      %v186 = vld [vmem:[%s166 + $0x2c] sm:$0xf]
      %v187 = vld [vmem:[%s166 + $0x30] sm:$0xf]
      %v188 = vld [vmem:[%s166 + $0x34] sm:$0xf]
      %v189 = vld [vmem:[%s166 + $0x38] sm:$0xf]
      %v190 = vld [vmem:[%s166 + $0x3c] sm:$0xf]
      %v191 = vld [vmem:[%s166 + $0x40] sm:$0xf]
      %v192 = vld [vmem:[%s166 + $0x44] sm:$0xf]
      %v193 = vld [vmem:[%s166 + $0x48] sm:$0xf]
      %v194 = vld [vmem:[%s166 + $0x4c] sm:$0xf]
      %v195 = vld [vmem:[%s166 + $0x50] sm:$0xf]
      %v196 = vld [vmem:[%s166 + $0x54] sm:$0xf]
      %v197 = vld [vmem:[%s166 + $0x58] sm:$0xf]
      %v198 = vld [vmem:[%s166 + $0x5c] sm:$0xf]
      %v199 = vld [vmem:[%s166 + $0x60] sm:$0xf]
      %v200 = vld [vmem:[%s166 + $0x64] sm:$0xf]
      %v201 = vld [vmem:[%s166 + $0x68] sm:$0xf]
      %v202 = vld [vmem:[%s166 + $0x6c] sm:$0xf]
      %v203 = vld [vmem:[%s166 + $0x70] sm:$0xf]
      %v204 = vld [vmem:[%s166 + $0x74] sm:$0xf]
      %v205 = vld [vmem:[%s166 + $0x78] sm:$0xf]
      %v206 = vld [vmem:[%s166 + $0x7c] sm:$0xf]
      %v207 = vld [vmem:[%s166 + $0x80] sm:$0xf]
      %v208 = vld [vmem:[%s166 + $0x84] sm:$0xf]
      %v209 = vld [vmem:[%s166 + $0x88] sm:$0xf]
      %v210 = vld [vmem:[%s166 + $0x8c] sm:$0xf]
      %v211 = vld [vmem:[%s166 + $0x90] sm:$0xf]
      %v212 = vld [vmem:[%s166 + $0x94] sm:$0xf]
      %v213 = vld [vmem:[%s166 + $0x98] sm:$0xf]
      %v214 = vld [vmem:[%s166 + $0x9c] sm:$0xf]
      %v215 = vld [vmem:[%s166 + $0xa0] sm:$0xf]
      %v216 = vld [vmem:[%s166 + $0xa4] sm:$0xf]
      %v217 = vld [vmem:[%s166 + $0xa8] sm:$0xf]
      %v218 = vld [vmem:[%s166 + $0xac] sm:$0xf]
      %v219 = vld [vmem:[%s166 + $0xb0] sm:$0xf]
      %v220 = vld [vmem:[%s166 + $0xb4] sm:$0xf]
      %v221 = vld [vmem:[%s166 + $0xb8] sm:$0xf]
      %v222 = vld [vmem:[%s166 + $0xbc] sm:$0xf]
      %v223 = vld [vmem:[%s166 + $0xc0] sm:$0xf]
      %v224 = vld [vmem:[%s166 + $0xc4] sm:$0xf]
      %v225 = vld [vmem:[%s166 + $0xc8] sm:$0xf]
      %v226 = vld [vmem:[%s166 + $0xcc] sm:$0xf]
      %v227 = vld [vmem:[%s166 + $0xd0] sm:$0xf]
      %v228 = vld [vmem:[%s166 + $0xd4] sm:$0xf]
      %v229 = vld [vmem:[%s166 + $0xd8] sm:$0xf]
      %v230 = vld [vmem:[%s166 + $0xdc] sm:$0xf]
      %v231 = vld [vmem:[%s166 + $0xe0] sm:$0xf]
      %v232 = vld [vmem:[%s166 + $0xe4] sm:$0xf]
      %v233 = vld [vmem:[%s166 + $0xe8] sm:$0xf]
      %v234 = vld [vmem:[%s166 + $0xec] sm:$0xf]
      %v235 = vld [vmem:[%s166 + $0xf0] sm:$0xf]
      %v236 = vld [vmem:[%s166 + $0xf4] sm:$0xf]
      %v237 = vld [vmem:[%s166 + $0xf8] sm:$0xf]
      %v238 = vld [vmem:[%s166 + $0xfc] sm:$0xf]
      %v239 = vld [vmem:[%s166 + $0x100] sm:$0xf]
      %v240 = vld [vmem:[%s166 + $0x104] sm:$0xf]
      %v241 = vld [vmem:[%s166 + $0x108] sm:$0xf]
      %v242 = vld [vmem:[%s166 + $0x10c] sm:$0xf]
      %v243 = vld [vmem:[%s166 + $0x110] sm:$0xf]
      %v244 = vld [vmem:[%s166 + $0x114] sm:$0xf]
      %v245 = vld [vmem:[%s166 + $0x118] sm:$0xf]
      %v246 = vld [vmem:[%s166 + $0x11c] sm:$0xf]
      %v247 = vld [vmem:[%s166 + $0x120] sm:$0xf]
      %v248 = vld [vmem:[%s166 + $0x124] sm:$0xf]
      %v249 = vld [vmem:[%s166 + $0x128] sm:$0xf]
      %v250 = vld [vmem:[%s166 + $0x12c] sm:$0xf]
      %v251 = vld [vmem:[%s166 + $0x130] sm:$0xf]
      %v252 = vld [vmem:[%s166 + $0x134] sm:$0xf]
      %v253 = vld [vmem:[%s166 + $0x138] sm:$0xf]
      %v254 = vld [vmem:[%s166 + $0x13c] sm:$0xf]
      %v255 = vld [vmem:[%s166 + $0x140] sm:$0xf]
      %v256 = vld [vmem:[%s166 + $0x144] sm:$0xf]
      %v257 = vld [vmem:[%s166 + $0x148] sm:$0xf]
      %v258 = vld [vmem:[%s166 + $0x14c] sm:$0xf]
      %v259 = vld [vmem:[%s166 + $0x150] sm:$0xf]
      %v260 = vld [vmem:[%s166 + $0x154] sm:$0xf]
      %v261 = vld [vmem:[%s166 + $0x158] sm:$0xf]
      %v262 = vld [vmem:[%s166 + $0x15c] sm:$0xf]
      %v263 = vld [vmem:[%s166 + $0x160] sm:$0xf]
      %v264 = vld [vmem:[%s166 + $0x164] sm:$0xf]
      %v265 = vld [vmem:[%s166 + $0x168] sm:$0xf]
      %v266 = vld [vmem:[%s166 + $0x16c] sm:$0xf]
      %v267 = vld [vmem:[%s166 + $0x170] sm:$0xf]
      %v268 = vld [vmem:[%s166 + $0x174] sm:$0xf]
      %v269 = vld [vmem:[%s166 + $0x178] sm:$0xf]
      %v270 = vld [vmem:[%s166 + $0x17c] sm:$0xf]
      %v271 = vld [vmem:[%s166 + $0x180] sm:$0xf]
      %v272 = vld [vmem:[%s166 + $0x184] sm:$0xf]
      %v273 = vld [vmem:[%s166 + $0x188] sm:$0xf]
      %v274 = vld [vmem:[%s166 + $0x18c] sm:$0xf]
      %v275 = vld [vmem:[%s166 + $0x190] sm:$0xf]
      %v276 = vld [vmem:[%s166 + $0x194] sm:$0xf]
      %v277 = vld [vmem:[%s166 + $0x198] sm:$0xf]
      %v278 = vld [vmem:[%s166 + $0x19c] sm:$0xf]
      %v279 = vld [vmem:[%s166 + $0x1a0] sm:$0xf]
      %v280 = vld [vmem:[%s166 + $0x1a4] sm:$0xf]
      %v281 = vld [vmem:[%s166 + $0x1a8] sm:$0xf]
      %v282 = vld [vmem:[%s166 + $0x1ac] sm:$0xf]
      %v283 = vld [vmem:[%s166 + $0x1b0] sm:$0xf]
      %v284 = vld [vmem:[%s166 + $0x1b4] sm:$0xf]
      %v285 = vld [vmem:[%s166 + $0x1b8] sm:$0xf]
      %v286 = vld [vmem:[%s166 + $0x1bc] sm:$0xf]
      %v287 = vld [vmem:[%s166 + $0x1c0] sm:$0xf]
      %v288 = vld [vmem:[%s166 + $0x1c4] sm:$0xf]
      %v289 = vld [vmem:[%s166 + $0x1c8] sm:$0xf]
      %v290 = vld [vmem:[%s166 + $0x1cc] sm:$0xf]
      %v291 = vld [vmem:[%s166 + $0x1d0] sm:$0xf]
      %v292 = vld [vmem:[%s166 + $0x1d4] sm:$0xf]
      %v293 = vld [vmem:[%s166 + $0x1d8] sm:$0xf]
      %v294 = vld [vmem:[%s166 + $0x1dc] sm:$0xf]
      %v295 = vld [vmem:[%s166 + $0x1e0] sm:$0xf]
      %v296 = vld [vmem:[%s166 + $0x1e4] sm:$0xf]
      %v297 = vld [vmem:[%s166 + $0x1e8] sm:$0xf]
      %v298 = vld [vmem:[%s166 + $0x1ec] sm:$0xf]
      %v299 = vld [vmem:[%s166 + $0x1f0] sm:$0xf]
      %v300 = vld [vmem:[%s166 + $0x1f4] sm:$0xf]
      %v301 = vld [vmem:[%s166 + $0x1f8] sm:$0xf]
      %v302 = vld [vmem:[%s166 + $0x1fc] sm:$0xf]
      %v303 = vld [vmem:[%s1] sm:$0xf]
      %v304 = vld [vmem:[%s1 + $0x4] sm:$0xf]
      %v305 = vld [vmem:[%s1 + $0x8] sm:$0xf]
      %v306 = vld [vmem:[%s1 + $0xc] sm:$0x3]
      %v307 = vld [vmem:[%s2] sm:$0x1]
      %v309 = vperm.slane %v307, 0
      %v439 = vunpack.c.l.b16 %v175
      %v440 = vunpack.c.l.b16 %v176
      %v441 = vunpack.c.l.b16 %v177
      %v442 = vunpack.c.l.b16 %v178
      %v443 = vunpack.c.l.b16 %v179
      %v444 = vunpack.c.l.b16 %v180
      %v445 = vunpack.c.l.b16 %v181
      %v446 = vunpack.c.l.b16 %v182
      %v447 = vunpack.c.l.b16 %v183
      %v448 = vunpack.c.l.b16 %v184
      %v449 = vunpack.c.l.b16 %v185
      %v450 = vunpack.c.l.b16 %v186
      %v451 = vunpack.c.l.b16 %v187
      %v452 = vunpack.c.l.b16 %v188
      %v453 = vunpack.c.l.b16 %v189
      %v454 = vunpack.c.l.b16 %v190
      %v455 = vunpack.c.l.b16 %v191
      %v456 = vunpack.c.l.b16 %v192
      %v457 = vunpack.c.l.b16 %v193
      %v458 = vunpack.c.l.b16 %v194
      %v459 = vunpack.c.l.b16 %v195
      %v460 = vunpack.c.l.b16 %v196
      %v461 = vunpack.c.l.b16 %v197
      %v462 = vunpack.c.l.b16 %v198
      %v463 = vunpack.c.l.b16 %v199
      %v464 = vunpack.c.l.b16 %v200
      %v465 = vunpack.c.l.b16 %v201
      %v466 = vunpack.c.l.b16 %v202
      %v467 = vunpack.c.l.b16 %v203
      %v468 = vunpack.c.l.b16 %v204
      %v469 = vunpack.c.l.b16 %v205
      %v470 = vunpack.c.l.b16 %v206
      %v471 = vunpack.c.l.b16 %v207
      %v472 = vunpack.c.l.b16 %v208
      %v473 = vunpack.c.l.b16 %v209
      %v474 = vunpack.c.l.b16 %v210
      %v475 = vunpack.c.l.b16 %v211
      %v476 = vunpack.c.l.b16 %v212
      %v477 = vunpack.c.l.b16 %v213
      %v478 = vunpack.c.l.b16 %v214
      %v479 = vunpack.c.l.b16 %v215
      %v480 = vunpack.c.l.b16 %v216
      %v481 = vunpack.c.l.b16 %v217
      %v482 = vunpack.c.l.b16 %v218
      %v483 = vunpack.c.l.b16 %v219
      %v484 = vunpack.c.l.b16 %v220
      %v485 = vunpack.c.l.b16 %v221
      %v486 = vunpack.c.l.b16 %v222
      %v487 = vunpack.c.l.b16 %v223
      %v488 = vunpack.c.l.b16 %v224
      %v489 = vunpack.c.l.b16 %v225
      %v490 = vunpack.c.l.b16 %v226
      %v491 = vunpack.c.l.b16 %v227
      %v492 = vunpack.c.l.b16 %v228
      %v493 = vunpack.c.l.b16 %v229
      %v494 = vunpack.c.l.b16 %v230
      %v495 = vunpack.c.l.b16 %v231
      %v496 = vunpack.c.l.b16 %v232
      %v497 = vunpack.c.l.b16 %v233
      %v498 = vunpack.c.l.b16 %v234
      %v499 = vunpack.c.l.b16 %v235
      %v500 = vunpack.c.l.b16 %v236
      %v501 = vunpack.c.l.b16 %v237
      %v502 = vunpack.c.l.b16 %v238
      %v503 = vunpack.c.l.b16 %v239
      %v504 = vunpack.c.l.b16 %v240
      %v505 = vunpack.c.l.b16 %v241
      %v506 = vunpack.c.l.b16 %v242
      %v507 = vunpack.c.l.b16 %v243
      %v508 = vunpack.c.l.b16 %v244
      %v509 = vunpack.c.l.b16 %v245
      %v510 = vunpack.c.l.b16 %v246
      %v511 = vunpack.c.l.b16 %v247
      %v512 = vunpack.c.l.b16 %v248
      %v513 = vunpack.c.l.b16 %v249
      %v514 = vunpack.c.l.b16 %v250
      %v515 = vunpack.c.l.b16 %v251
      %v516 = vunpack.c.l.b16 %v252
      %v517 = vunpack.c.l.b16 %v253
      %v518 = vunpack.c.l.b16 %v254
      %v519 = vunpack.c.l.b16 %v255
      %v520 = vunpack.c.l.b16 %v256
      %v521 = vunpack.c.l.b16 %v257
      %v522 = vunpack.c.l.b16 %v258
      %v523 = vunpack.c.l.b16 %v259
      %v524 = vunpack.c.l.b16 %v260
      %v525 = vunpack.c.l.b16 %v261
      %v526 = vunpack.c.l.b16 %v262
      %v527 = vunpack.c.l.b16 %v263
      %v528 = vunpack.c.l.b16 %v264
      %v529 = vunpack.c.l.b16 %v265
      %v530 = vunpack.c.l.b16 %v266
      %v531 = vunpack.c.l.b16 %v267
      %v532 = vunpack.c.l.b16 %v268
      %v533 = vunpack.c.l.b16 %v269
      %v534 = vunpack.c.l.b16 %v270
      %v535 = vunpack.c.l.b16 %v271
      %v536 = vunpack.c.l.b16 %v272
      %v537 = vunpack.c.l.b16 %v273
      %v538 = vunpack.c.l.b16 %v274
      %v539 = vunpack.c.l.b16 %v275
      %v540 = vunpack.c.l.b16 %v276
      %v541 = vunpack.c.l.b16 %v277
      %v542 = vunpack.c.l.b16 %v278
      %v543 = vunpack.c.l.b16 %v279
      %v544 = vunpack.c.l.b16 %v280
      %v545 = vunpack.c.l.b16 %v281
      %v546 = vunpack.c.l.b16 %v282
      %v547 = vunpack.c.l.b16 %v283
      %v548 = vunpack.c.l.b16 %v284
      %v549 = vunpack.c.l.b16 %v285
      %v550 = vunpack.c.l.b16 %v286
      %v551 = vunpack.c.l.b16 %v287
      %v552 = vunpack.c.l.b16 %v288
      %v553 = vunpack.c.l.b16 %v289
      %v554 = vunpack.c.l.b16 %v290
      %v555 = vunpack.c.l.b16 %v291
      %v556 = vunpack.c.l.b16 %v292
      %v557 = vunpack.c.l.b16 %v293
      %v558 = vunpack.c.l.b16 %v294
      %v559 = vunpack.c.l.b16 %v295
      %v560 = vunpack.c.l.b16 %v296
      %v561 = vunpack.c.l.b16 %v297
      %v562 = vunpack.c.l.b16 %v298
      %v563 = vunpack.c.l.b16 %v299
      %v564 = vunpack.c.l.b16 %v300
      %v565 = vunpack.c.l.b16 %v301
      %v566 = vunpack.c.l.b16 %v302
      %v567 = vpack.c.b16 %v440, %v439
      %v568 = vpack.c.b16 %v442, %v441
      %v569 = vpack.c.b16 %v444, %v443
      %v570 = vpack.c.b16 %v446, %v445
      %v571 = vpack.c.b16 %v448, %v447
      %v572 = vpack.c.b16 %v450, %v449
      %v573 = vpack.c.b16 %v452, %v451
      %v574 = vpack.c.b16 %v454, %v453
      %v575 = vpack.c.b16 %v456, %v455
      %v576 = vpack.c.b16 %v458, %v457
      %v577 = vpack.c.b16 %v460, %v459
      %v578 = vpack.c.b16 %v462, %v461
      %v579 = vpack.c.b16 %v464, %v463
      %v580 = vpack.c.b16 %v466, %v465
      %v581 = vpack.c.b16 %v468, %v467
      %v582 = vpack.c.b16 %v470, %v469
      %v583 = vpack.c.b16 %v472, %v471
      %v584 = vpack.c.b16 %v474, %v473
      %v585 = vpack.c.b16 %v476, %v475
      %v586 = vpack.c.b16 %v478, %v477
      %v587 = vpack.c.b16 %v480, %v479
      %v588 = vpack.c.b16 %v482, %v481
      %v589 = vpack.c.b16 %v484, %v483
      %v590 = vpack.c.b16 %v486, %v485
      %v591 = vpack.c.b16 %v488, %v487
      %v592 = vpack.c.b16 %v490, %v489
      %v593 = vpack.c.b16 %v492, %v491
      %v594 = vpack.c.b16 %v494, %v493
      %v595 = vpack.c.b16 %v496, %v495
      %v596 = vpack.c.b16 %v498, %v497
      %v597 = vpack.c.b16 %v500, %v499
      %v598 = vpack.c.b16 %v502, %v501
      %v599 = vpack.c.b16 %v504, %v503
      %v600 = vpack.c.b16 %v506, %v505
      %v601 = vpack.c.b16 %v508, %v507
      %v602 = vpack.c.b16 %v510, %v509
      %v603 = vpack.c.b16 %v512, %v511
      %v604 = vpack.c.b16 %v514, %v513
      %v605 = vpack.c.b16 %v516, %v515
      %v606 = vpack.c.b16 %v518, %v517
      %v607 = vpack.c.b16 %v520, %v519
      %v608 = vpack.c.b16 %v522, %v521
      %v609 = vpack.c.b16 %v524, %v523
      %v610 = vpack.c.b16 %v526, %v525
      %v611 = vpack.c.b16 %v528, %v527
      %v612 = vpack.c.b16 %v530, %v529
      %v613 = vpack.c.b16 %v532, %v531
      %v614 = vpack.c.b16 %v534, %v533
      %v615 = vpack.c.b16 %v536, %v535
      %v616 = vpack.c.b16 %v538, %v537
      %v617 = vpack.c.b16 %v540, %v539
      %v618 = vpack.c.b16 %v542, %v541
      %v619 = vpack.c.b16 %v544, %v543
      %v620 = vpack.c.b16 %v546, %v545
      %v621 = vpack.c.b16 %v548, %v547
      %v622 = vpack.c.b16 %v550, %v549
      %v623 = vpack.c.b16 %v552, %v551
      %v624 = vpack.c.b16 %v554, %v553
      %v625 = vpack.c.b16 %v556, %v555
      %v626 = vpack.c.b16 %v558, %v557
      %v627 = vpack.c.b16 %v560, %v559
      %v628 = vpack.c.b16 %v562, %v561
      %v629 = vpack.c.b16 %v564, %v563
      %v630 = vpack.c.b16 %v566, %v565
      %v635 = vunpack.c.l.b16 %v303
      %v636 = vunpack.c.l.b16 %v304
      %v637 = vunpack.c.l.b16 %v305
      %v638 = vunpack.c.l.b16 %v306
      %v639 = vpack.c.b16 %v636, %v635
      %v640 = vpack.c.b16 %v638, %v637
      %vm642 = vcmask 220160
      %v644 = vsel %vm642, %v567, 0
      %v647 = vsel %vm642, %v568, 0
      %v650 = vsel %vm642, %v569, 0
      %v653 = vsel %vm642, %v570, 0
      %v656 = vsel %vm642, %v571, 0
      %v659 = vsel %vm642, %v572, 0
      %v662 = vsel %vm642, %v573, 0
      %v665 = vsel %vm642, %v574, 0
      %v668 = vsel %vm642, %v575, 0
      %v671 = vsel %vm642, %v576, 0
      %v674 = vsel %vm642, %v577, 0
      %v677 = vsel %vm642, %v578, 0
      %v680 = vsel %vm642, %v579, 0
      %v683 = vsel %vm642, %v580, 0
      %v686 = vsel %vm642, %v581, 0
      %v689 = vsel %vm642, %v582, 0
      %v692 = vsel %vm642, %v583, 0
      %v695 = vsel %vm642, %v584, 0
      %v698 = vsel %vm642, %v585, 0
      %v701 = vsel %vm642, %v586, 0
      %v704 = vsel %vm642, %v587, 0
      %v707 = vsel %vm642, %v588, 0
      %v710 = vsel %vm642, %v589, 0
      %v713 = vsel %vm642, %v590, 0
      %v716 = vsel %vm642, %v591, 0
      %v719 = vsel %vm642, %v592, 0
      %v722 = vsel %vm642, %v593, 0
      %v725 = vsel %vm642, %v594, 0
      %v728 = vsel %vm642, %v595, 0
      %v731 = vsel %vm642, %v596, 0
      %v734 = vsel %vm642, %v597, 0
      %v737 = vsel %vm642, %v598, 0
      %v740 = vsel %vm642, %v599, 0
      %v743 = vsel %vm642, %v600, 0
      %v746 = vsel %vm642, %v601, 0
      %v749 = vsel %vm642, %v602, 0
      %v752 = vsel %vm642, %v603, 0
      %v755 = vsel %vm642, %v604, 0
      %v758 = vsel %vm642, %v605, 0
      %v761 = vsel %vm642, %v606, 0
      %v764 = vsel %vm642, %v607, 0
      %v767 = vsel %vm642, %v608, 0
      %v770 = vsel %vm642, %v609, 0
      %v773 = vsel %vm642, %v610, 0
      %v776 = vsel %vm642, %v611, 0
      %v779 = vsel %vm642, %v612, 0
      %v782 = vsel %vm642, %v613, 0
      %v785 = vsel %vm642, %v614, 0
      %v788 = vsel %vm642, %v615, 0
      %v791 = vsel %vm642, %v616, 0
      %v794 = vsel %vm642, %v617, 0
      %v797 = vsel %vm642, %v618, 0
      %v800 = vsel %vm642, %v619, 0
      %v803 = vsel %vm642, %v620, 0
      %v806 = vsel %vm642, %v621, 0
      %v809 = vsel %vm642, %v622, 0
      %v812 = vsel %vm642, %v623, 0
      %v815 = vsel %vm642, %v624, 0
      %v818 = vsel %vm642, %v625, 0
      %v821 = vsel %vm642, %v626, 0
      %v824 = vsel %vm642, %v627, 0
      %v827 = vsel %vm642, %v628, 0
      %v830 = vsel %vm642, %v629, 0
      %v833 = vsel %vm642, %v630, 0
      %vm835 = vcmask 1044480
      %vm836 = vcmask 1045504
      %v837 = vsel %vm835, 4294967295, 65535
      %v838 = vsel %vm836, %v837, 0
      %v840 = vand.u32 %v640, %v838
      %842 = vmatpush.bf16.msra.mxu0 0
      %843 = vmatpush.bf16.msra.mxu0 0
      %844 = vmatpush.bf16.msra.mxu0 0
      %845 = vmatpush.bf16.msra.mxu0 0
      %846 = vmatpush.bf16.msra.mxu0 0
      %847 = vmatpush.bf16.msra.mxu0 0
      %848 = vmatpush.bf16.msra.mxu0 %v840
      %849 = vmatpush.bf16.msra.mxu0 %v639
      %850 = vmatmul.bf16.gmra.mxu0 %v644
      %v851 = vpop.f32.mrf.mxu0
      %v852 = vadd.f32 %v309, %v851
      %v853 = vpop.f32.mrf.mxu0
      %v854 = vadd.f32 %v309, %v853
      %855 = vmatmul.bf16.gmra.mxu0 %v647
      %v856 = vpop.f32.mrf.mxu0
      %v857 = vadd.f32 %v309, %v856
      %v858 = vpop.f32.mrf.mxu0
      %v859 = vadd.f32 %v309, %v858
      %860 = vmatmul.bf16.gmra.mxu0 %v650
      %v861 = vpop.f32.mrf.mxu0
      %v862 = vadd.f32 %v309, %v861
      %v863 = vpop.f32.mrf.mxu0
      %v864 = vadd.f32 %v309, %v863
      %865 = vmatmul.bf16.gmra.mxu0 %v653
      %v866 = vpop.f32.mrf.mxu0
      %v867 = vadd.f32 %v309, %v866
      %v868 = vpop.f32.mrf.mxu0
      %v869 = vadd.f32 %v309, %v868
      %870 = vmatmul.bf16.gmra.mxu0 %v656
      %v871 = vpop.f32.mrf.mxu0
      %v872 = vadd.f32 %v309, %v871
      %v873 = vpop.f32.mrf.mxu0
      %v874 = vadd.f32 %v309, %v873
      %875 = vmatmul.bf16.gmra.mxu0 %v659
      %v876 = vpop.f32.mrf.mxu0
      %v877 = vadd.f32 %v309, %v876
      %v878 = vpop.f32.mrf.mxu0
      %v879 = vadd.f32 %v309, %v878
      %880 = vmatmul.bf16.gmra.mxu0 %v662
      %v881 = vpop.f32.mrf.mxu0
      %v882 = vadd.f32 %v309, %v881
      %v883 = vpop.f32.mrf.mxu0
      %v884 = vadd.f32 %v309, %v883
      %885 = vmatmul.bf16.gmra.mxu0 %v665
      %v886 = vpop.f32.mrf.mxu0
      %v887 = vadd.f32 %v309, %v886
      %v888 = vpop.f32.mrf.mxu0
      %v889 = vadd.f32 %v309, %v888
      %890 = vmatmul.bf16.gmra.mxu0 %v668
      %v891 = vpop.f32.mrf.mxu0
      %v892 = vadd.f32 %v309, %v891
      %v893 = vpop.f32.mrf.mxu0
      %v894 = vadd.f32 %v309, %v893
      %895 = vmatmul.bf16.gmra.mxu0 %v671
      %v896 = vpop.f32.mrf.mxu0
      %v897 = vadd.f32 %v309, %v896
      %v898 = vpop.f32.mrf.mxu0
      %v899 = vadd.f32 %v309, %v898
      %900 = vmatmul.bf16.gmra.mxu0 %v674
      %v901 = vpop.f32.mrf.mxu0
      %v902 = vadd.f32 %v309, %v901
      %v903 = vpop.f32.mrf.mxu0
      %v904 = vadd.f32 %v309, %v903
      %905 = vmatmul.bf16.gmra.mxu0 %v677
      %v906 = vpop.f32.mrf.mxu0
      %v907 = vadd.f32 %v309, %v906
      %v908 = vpop.f32.mrf.mxu0
      %v909 = vadd.f32 %v309, %v908
      %910 = vmatmul.bf16.gmra.mxu0 %v680
      %v911 = vpop.f32.mrf.mxu0
      %v912 = vadd.f32 %v309, %v911
      %v913 = vpop.f32.mrf.mxu0
      %v914 = vadd.f32 %v309, %v913
      %915 = vmatmul.bf16.gmra.mxu0 %v683
      %v916 = vpop.f32.mrf.mxu0
      %v917 = vadd.f32 %v309, %v916
      %v918 = vpop.f32.mrf.mxu0
      %v919 = vadd.f32 %v309, %v918
      %920 = vmatmul.bf16.gmra.mxu0 %v686
      %v921 = vpop.f32.mrf.mxu0
      %v922 = vadd.f32 %v309, %v921
      %v923 = vpop.f32.mrf.mxu0
      %v924 = vadd.f32 %v309, %v923
      %925 = vmatmul.bf16.gmra.mxu0 %v689
      %v926 = vpop.f32.mrf.mxu0
      %v927 = vadd.f32 %v309, %v926
      %v928 = vpop.f32.mrf.mxu0
      %v929 = vadd.f32 %v309, %v928
      %930 = vmatmul.bf16.gmra.mxu0 %v692
      %v931 = vpop.f32.mrf.mxu0
      %v932 = vadd.f32 %v309, %v931
      %v933 = vpop.f32.mrf.mxu0
      %v934 = vadd.f32 %v309, %v933
      %935 = vmatmul.bf16.gmra.mxu0 %v695
      %v936 = vpop.f32.mrf.mxu0
      %v937 = vadd.f32 %v309, %v936
      %v938 = vpop.f32.mrf.mxu0
      %v939 = vadd.f32 %v309, %v938
      %940 = vmatmul.bf16.gmra.mxu0 %v698
      %v941 = vpop.f32.mrf.mxu0
      %v942 = vadd.f32 %v309, %v941
      %v943 = vpop.f32.mrf.mxu0
      %v944 = vadd.f32 %v309, %v943
      %945 = vmatmul.bf16.gmra.mxu0 %v701
      %v946 = vpop.f32.mrf.mxu0
      %v947 = vadd.f32 %v309, %v946
      %v948 = vpop.f32.mrf.mxu0
      %v949 = vadd.f32 %v309, %v948
      %950 = vmatmul.bf16.gmra.mxu0 %v704
      %v951 = vpop.f32.mrf.mxu0
      %v952 = vadd.f32 %v309, %v951
      %v953 = vpop.f32.mrf.mxu0
      %v954 = vadd.f32 %v309, %v953
      %955 = vmatmul.bf16.gmra.mxu0 %v707
      %v956 = vpop.f32.mrf.mxu0
      %v957 = vadd.f32 %v309, %v956
      %v958 = vpop.f32.mrf.mxu0
      %v959 = vadd.f32 %v309, %v958
      %960 = vmatmul.bf16.gmra.mxu0 %v710
      %v961 = vpop.f32.mrf.mxu0
      %v962 = vadd.f32 %v309, %v961
      %v963 = vpop.f32.mrf.mxu0
      %v964 = vadd.f32 %v309, %v963
      %965 = vmatmul.bf16.gmra.mxu0 %v713
      %v966 = vpop.f32.mrf.mxu0
      %v967 = vadd.f32 %v309, %v966
      %v968 = vpop.f32.mrf.mxu0
      %v969 = vadd.f32 %v309, %v968
      %970 = vmatmul.bf16.gmra.mxu0 %v716
      %v971 = vpop.f32.mrf.mxu0
      %v972 = vadd.f32 %v309, %v971
      %v973 = vpop.f32.mrf.mxu0
      %v974 = vadd.f32 %v309, %v973
      %975 = vmatmul.bf16.gmra.mxu0 %v719
      %v976 = vpop.f32.mrf.mxu0
      %v977 = vadd.f32 %v309, %v976
      %v978 = vpop.f32.mrf.mxu0
      %v979 = vadd.f32 %v309, %v978
      %980 = vmatmul.bf16.gmra.mxu0 %v722
      %v981 = vpop.f32.mrf.mxu0
      %v982 = vadd.f32 %v309, %v981
      %v983 = vpop.f32.mrf.mxu0
      %v984 = vadd.f32 %v309, %v983
      %985 = vmatmul.bf16.gmra.mxu0 %v725
      %v986 = vpop.f32.mrf.mxu0
      %v987 = vadd.f32 %v309, %v986
      %v988 = vpop.f32.mrf.mxu0
      %v989 = vadd.f32 %v309, %v988
      %990 = vmatmul.bf16.gmra.mxu0 %v728
      %v991 = vpop.f32.mrf.mxu0
      %v992 = vadd.f32 %v309, %v991
      %v993 = vpop.f32.mrf.mxu0
      %v994 = vadd.f32 %v309, %v993
      %995 = vmatmul.bf16.gmra.mxu0 %v731
      %v996 = vpop.f32.mrf.mxu0
      %v997 = vadd.f32 %v309, %v996
      %v998 = vpop.f32.mrf.mxu0
      %v999 = vadd.f32 %v309, %v998
      %1000 = vmatmul.bf16.gmra.mxu0 %v734
      %v1001 = vpop.f32.mrf.mxu0
      %v1002 = vadd.f32 %v309, %v1001
      %v1003 = vpop.f32.mrf.mxu0
      %v1004 = vadd.f32 %v309, %v1003
      %1005 = vmatmul.bf16.gmra.mxu0 %v737
      %v1006 = vpop.f32.mrf.mxu0
      %v1007 = vadd.f32 %v309, %v1006
      %v1008 = vpop.f32.mrf.mxu0
      %v1009 = vadd.f32 %v309, %v1008
      %1010 = vmatmul.bf16.gmra.mxu0 %v740
      %v1011 = vpop.f32.mrf.mxu0
      %v1012 = vadd.f32 %v309, %v1011
      %v1013 = vpop.f32.mrf.mxu0
      %v1014 = vadd.f32 %v309, %v1013
      %1015 = vmatmul.bf16.gmra.mxu0 %v743
      %v1016 = vpop.f32.mrf.mxu0
      %v1017 = vadd.f32 %v309, %v1016
      %v1018 = vpop.f32.mrf.mxu0
      %v1019 = vadd.f32 %v309, %v1018
      %1020 = vmatmul.bf16.gmra.mxu0 %v746
      %v1021 = vpop.f32.mrf.mxu0
      %v1022 = vadd.f32 %v309, %v1021
      %v1023 = vpop.f32.mrf.mxu0
      %v1024 = vadd.f32 %v309, %v1023
      %1025 = vmatmul.bf16.gmra.mxu0 %v749
      %v1026 = vpop.f32.mrf.mxu0
      %v1027 = vadd.f32 %v309, %v1026
      %v1028 = vpop.f32.mrf.mxu0
      %v1029 = vadd.f32 %v309, %v1028
      %1030 = vmatmul.bf16.gmra.mxu0 %v752
      %v1031 = vpop.f32.mrf.mxu0
      %v1032 = vadd.f32 %v309, %v1031
      %v1033 = vpop.f32.mrf.mxu0
      %v1034 = vadd.f32 %v309, %v1033
      %1035 = vmatmul.bf16.gmra.mxu0 %v755
      %v1036 = vpop.f32.mrf.mxu0
      %v1037 = vadd.f32 %v309, %v1036
      %v1038 = vpop.f32.mrf.mxu0
      %v1039 = vadd.f32 %v309, %v1038
      %1040 = vmatmul.bf16.gmra.mxu0 %v758
      %v1041 = vpop.f32.mrf.mxu0
      %v1042 = vadd.f32 %v309, %v1041
      %v1043 = vpop.f32.mrf.mxu0
      %v1044 = vadd.f32 %v309, %v1043
      %1045 = vmatmul.bf16.gmra.mxu0 %v761
      %v1046 = vpop.f32.mrf.mxu0
      %v1047 = vadd.f32 %v309, %v1046
      %v1048 = vpop.f32.mrf.mxu0
      %v1049 = vadd.f32 %v309, %v1048
      %1050 = vmatmul.bf16.gmra.mxu0 %v764
      %v1051 = vpop.f32.mrf.mxu0
      %v1052 = vadd.f32 %v309, %v1051
      %v1053 = vpop.f32.mrf.mxu0
      %v1054 = vadd.f32 %v309, %v1053
      %1055 = vmatmul.bf16.gmra.mxu0 %v767
      %v1056 = vpop.f32.mrf.mxu0
      %v1057 = vadd.f32 %v309, %v1056
      %v1058 = vpop.f32.mrf.mxu0
      %v1059 = vadd.f32 %v309, %v1058
      %1060 = vmatmul.bf16.gmra.mxu0 %v770
      %v1061 = vpop.f32.mrf.mxu0
      %v1062 = vadd.f32 %v309, %v1061
      %v1063 = vpop.f32.mrf.mxu0
      %v1064 = vadd.f32 %v309, %v1063
      %1065 = vmatmul.bf16.gmra.mxu0 %v773
      %v1066 = vpop.f32.mrf.mxu0
      %v1067 = vadd.f32 %v309, %v1066
      %v1068 = vpop.f32.mrf.mxu0
      %v1069 = vadd.f32 %v309, %v1068
      %1070 = vmatmul.bf16.gmra.mxu0 %v776
      %v1071 = vpop.f32.mrf.mxu0
      %v1072 = vadd.f32 %v309, %v1071
      %v1073 = vpop.f32.mrf.mxu0
      %v1074 = vadd.f32 %v309, %v1073
      %1075 = vmatmul.bf16.gmra.mxu0 %v779
      %v1076 = vpop.f32.mrf.mxu0
      %v1077 = vadd.f32 %v309, %v1076
      %v1078 = vpop.f32.mrf.mxu0
      %v1079 = vadd.f32 %v309, %v1078
      %1080 = vmatmul.bf16.gmra.mxu0 %v782
      %v1081 = vpop.f32.mrf.mxu0
      %v1082 = vadd.f32 %v309, %v1081
      %v1083 = vpop.f32.mrf.mxu0
      %v1084 = vadd.f32 %v309, %v1083
      %1085 = vmatmul.bf16.gmra.mxu0 %v785
      %v1086 = vpop.f32.mrf.mxu0
      %v1087 = vadd.f32 %v309, %v1086
      %v1088 = vpop.f32.mrf.mxu0
      %v1089 = vadd.f32 %v309, %v1088
      %1090 = vmatmul.bf16.gmra.mxu0 %v788
      %v1091 = vpop.f32.mrf.mxu0
      %v1092 = vadd.f32 %v309, %v1091
      %v1093 = vpop.f32.mrf.mxu0
      %v1094 = vadd.f32 %v309, %v1093
      %1095 = vmatmul.bf16.gmra.mxu0 %v791
      %v1096 = vpop.f32.mrf.mxu0
      %v1097 = vadd.f32 %v309, %v1096
      %v1098 = vpop.f32.mrf.mxu0
      %v1099 = vadd.f32 %v309, %v1098
      %1100 = vmatmul.bf16.gmra.mxu0 %v794
      %v1101 = vpop.f32.mrf.mxu0
      %v1102 = vadd.f32 %v309, %v1101
      %v1103 = vpop.f32.mrf.mxu0
      %v1104 = vadd.f32 %v309, %v1103
      %1105 = vmatmul.bf16.gmra.mxu0 %v797
      %v1106 = vpop.f32.mrf.mxu0
      %v1107 = vadd.f32 %v309, %v1106
      %v1108 = vpop.f32.mrf.mxu0
      %v1109 = vadd.f32 %v309, %v1108
      %1110 = vmatmul.bf16.gmra.mxu0 %v800
      %v1111 = vpop.f32.mrf.mxu0
      %v1112 = vadd.f32 %v309, %v1111
      %v1113 = vpop.f32.mrf.mxu0
      %v1114 = vadd.f32 %v309, %v1113
      %1115 = vmatmul.bf16.gmra.mxu0 %v803
      %v1116 = vpop.f32.mrf.mxu0
      %v1117 = vadd.f32 %v309, %v1116
      %v1118 = vpop.f32.mrf.mxu0
      %v1119 = vadd.f32 %v309, %v1118
      %1120 = vmatmul.bf16.gmra.mxu0 %v806
      %v1121 = vpop.f32.mrf.mxu0
      %v1122 = vadd.f32 %v309, %v1121
      %v1123 = vpop.f32.mrf.mxu0
      %v1124 = vadd.f32 %v309, %v1123
      %1125 = vmatmul.bf16.gmra.mxu0 %v809
      %v1126 = vpop.f32.mrf.mxu0
      %v1127 = vadd.f32 %v309, %v1126
      %v1128 = vpop.f32.mrf.mxu0
      %v1129 = vadd.f32 %v309, %v1128
      %1130 = vmatmul.bf16.gmra.mxu0 %v812
      %v1131 = vpop.f32.mrf.mxu0
      %v1132 = vadd.f32 %v309, %v1131
      %v1133 = vpop.f32.mrf.mxu0
      %v1134 = vadd.f32 %v309, %v1133
      %1135 = vmatmul.bf16.gmra.mxu0 %v815
      %v1136 = vpop.f32.mrf.mxu0
      %v1137 = vadd.f32 %v309, %v1136
      %v1138 = vpop.f32.mrf.mxu0
      %v1139 = vadd.f32 %v309, %v1138
      %1140 = vmatmul.bf16.gmra.mxu0 %v818
      %v1141 = vpop.f32.mrf.mxu0
      %v1142 = vadd.f32 %v309, %v1141
      %v1143 = vpop.f32.mrf.mxu0
      %v1144 = vadd.f32 %v309, %v1143
      %1145 = vmatmul.bf16.gmra.mxu0 %v821
      %v1146 = vpop.f32.mrf.mxu0
      %v1147 = vadd.f32 %v309, %v1146
      %v1148 = vpop.f32.mrf.mxu0
      %v1149 = vadd.f32 %v309, %v1148
      %1150 = vmatmul.bf16.gmra.mxu0 %v824
      %v1151 = vpop.f32.mrf.mxu0
      %v1152 = vadd.f32 %v309, %v1151
      %v1153 = vpop.f32.mrf.mxu0
      %v1154 = vadd.f32 %v309, %v1153
      %1155 = vmatmul.bf16.gmra.mxu0 %v827
      %v1156 = vpop.f32.mrf.mxu0
      %v1157 = vadd.f32 %v309, %v1156
      %v1158 = vpop.f32.mrf.mxu0
      %v1159 = vadd.f32 %v309, %v1158
      %1160 = vmatmul.bf16.gmra.mxu0 %v830
      %v1161 = vpop.f32.mrf.mxu0
      %v1162 = vadd.f32 %v309, %v1161
      %v1163 = vpop.f32.mrf.mxu0
      %v1164 = vadd.f32 %v309, %v1163
      %1165 = vmatmul.bf16.gmra.mxu0 %v833
      %v1166 = vpop.f32.mrf.mxu0
      %v1167 = vadd.f32 %v309, %v1166
      %v1168 = vpop.f32.mrf.mxu0
      %v1169 = vadd.f32 %v309, %v1168
      %1170 = vdwg.mxu0
      %vm1171 = vcmask 523264
      %1172 = vst.msk [vmem:[%s172] sm:$0xff] %vm1171, %v852
      %1173 = vst.msk [vmem:[%s172 + $0x8] sm:$0xff] %vm1171, %v854
      %1174 = vst.msk [vmem:[%s172 + $0x10] sm:$0xff] %vm1171, %v857
      %1175 = vst.msk [vmem:[%s172 + $0x18] sm:$0xff] %vm1171, %v859
      %1176 = vst.msk [vmem:[%s172 + $0x20] sm:$0xff] %vm1171, %v862
      %1177 = vst.msk [vmem:[%s172 + $0x28] sm:$0xff] %vm1171, %v864
      %1178 = vst.msk [vmem:[%s172 + $0x30] sm:$0xff] %vm1171, %v867
      %1179 = vst.msk [vmem:[%s172 + $0x38] sm:$0xff] %vm1171, %v869
      %1180 = vst.msk [vmem:[%s172 + $0x40] sm:$0xff] %vm1171, %v872
      %1181 = vst.msk [vmem:[%s172 + $0x48] sm:$0xff] %vm1171, %v874
      %1182 = vst.msk [vmem:[%s172 + $0x50] sm:$0xff] %vm1171, %v877
      %1183 = vst.msk [vmem:[%s172 + $0x58] sm:$0xff] %vm1171, %v879
      %1184 = vst.msk [vmem:[%s172 + $0x60] sm:$0xff] %vm1171, %v882
      %1185 = vst.msk [vmem:[%s172 + $0x68] sm:$0xff] %vm1171, %v884
      %1186 = vst.msk [vmem:[%s172 + $0x70] sm:$0xff] %vm1171, %v887
      %1187 = vst.msk [vmem:[%s172 + $0x78] sm:$0xff] %vm1171, %v889
      %1188 = vst.msk [vmem:[%s172 + $0x80] sm:$0xff] %vm1171, %v892
      %1189 = vst.msk [vmem:[%s172 + $0x88] sm:$0xff] %vm1171, %v894
      %1190 = vst.msk [vmem:[%s172 + $0x90] sm:$0xff] %vm1171, %v897
      %1191 = vst.msk [vmem:[%s172 + $0x98] sm:$0xff] %vm1171, %v899
      %1192 = vst.msk [vmem:[%s172 + $0xa0] sm:$0xff] %vm1171, %v902
      %1193 = vst.msk [vmem:[%s172 + $0xa8] sm:$0xff] %vm1171, %v904
      %1194 = vst.msk [vmem:[%s172 + $0xb0] sm:$0xff] %vm1171, %v907
      %1195 = vst.msk [vmem:[%s172 + $0xb8] sm:$0xff] %vm1171, %v909
      %1196 = vst.msk [vmem:[%s172 + $0xc0] sm:$0xff] %vm1171, %v912
      %1197 = vst.msk [vmem:[%s172 + $0xc8] sm:$0xff] %vm1171, %v914
      %1198 = vst.msk [vmem:[%s172 + $0xd0] sm:$0xff] %vm1171, %v917
      %1199 = vst.msk [vmem:[%s172 + $0xd8] sm:$0xff] %vm1171, %v919
      %1200 = vst.msk [vmem:[%s172 + $0xe0] sm:$0xff] %vm1171, %v922
      %1201 = vst.msk [vmem:[%s172 + $0xe8] sm:$0xff] %vm1171, %v924
      %1202 = vst.msk [vmem:[%s172 + $0xf0] sm:$0xff] %vm1171, %v927
      %1203 = vst.msk [vmem:[%s172 + $0xf8] sm:$0xff] %vm1171, %v929
      %1204 = vst.msk [vmem:[%s172 + $0x100] sm:$0xff] %vm1171, %v932
      %1205 = vst.msk [vmem:[%s172 + $0x108] sm:$0xff] %vm1171, %v934
      %1206 = vst.msk [vmem:[%s172 + $0x110] sm:$0xff] %vm1171, %v937
      %1207 = vst.msk [vmem:[%s172 + $0x118] sm:$0xff] %vm1171, %v939
      %1208 = vst.msk [vmem:[%s172 + $0x120] sm:$0xff] %vm1171, %v942
      %1209 = vst.msk [vmem:[%s172 + $0x128] sm:$0xff] %vm1171, %v944
      %1210 = vst.msk [vmem:[%s172 + $0x130] sm:$0xff] %vm1171, %v947
      %1211 = vst.msk [vmem:[%s172 + $0x138] sm:$0xff] %vm1171, %v949
      %1212 = vst.msk [vmem:[%s172 + $0x140] sm:$0xff] %vm1171, %v952
      %1213 = vst.msk [vmem:[%s172 + $0x148] sm:$0xff] %vm1171, %v954
      %1214 = vst.msk [vmem:[%s172 + $0x150] sm:$0xff] %vm1171, %v957
      %1215 = vst.msk [vmem:[%s172 + $0x158] sm:$0xff] %vm1171, %v959
      %1216 = vst.msk [vmem:[%s172 + $0x160] sm:$0xff] %vm1171, %v962
      %1217 = vst.msk [vmem:[%s172 + $0x168] sm:$0xff] %vm1171, %v964
      %1218 = vst.msk [vmem:[%s172 + $0x170] sm:$0xff] %vm1171, %v967
      %1219 = vst.msk [vmem:[%s172 + $0x178] sm:$0xff] %vm1171, %v969
      %1220 = vst.msk [vmem:[%s172 + $0x180] sm:$0xff] %vm1171, %v972
      %1221 = vst.msk [vmem:[%s172 + $0x188] sm:$0xff] %vm1171, %v974
      %1222 = vst.msk [vmem:[%s172 + $0x190] sm:$0xff] %vm1171, %v977
      %1223 = vst.msk [vmem:[%s172 + $0x198] sm:$0xff] %vm1171, %v979
      %1224 = vst.msk [vmem:[%s172 + $0x1a0] sm:$0xff] %vm1171, %v982
      %1225 = vst.msk [vmem:[%s172 + $0x1a8] sm:$0xff] %vm1171, %v984
      %1226 = vst.msk [vmem:[%s172 + $0x1b0] sm:$0xff] %vm1171, %v987
      %1227 = vst.msk [vmem:[%s172 + $0x1b8] sm:$0xff] %vm1171, %v989
      %1228 = vst.msk [vmem:[%s172 + $0x1c0] sm:$0xff] %vm1171, %v992
      %1229 = vst.msk [vmem:[%s172 + $0x1c8] sm:$0xff] %vm1171, %v994
      %1230 = vst.msk [vmem:[%s172 + $0x1d0] sm:$0xff] %vm1171, %v997
      %1231 = vst.msk [vmem:[%s172 + $0x1d8] sm:$0xff] %vm1171, %v999
      %1232 = vst.msk [vmem:[%s172 + $0x1e0] sm:$0xff] %vm1171, %v1002
      %1233 = vst.msk [vmem:[%s172 + $0x1e8] sm:$0xff] %vm1171, %v1004
      %1234 = vst.msk [vmem:[%s172 + $0x1f0] sm:$0xff] %vm1171, %v1007
      %1235 = vst.msk [vmem:[%s172 + $0x1f8] sm:$0xff] %vm1171, %v1009
      %1236 = vst.msk [vmem:[%s172 + $0x200] sm:$0xff] %vm1171, %v1012
      %1237 = vst.msk [vmem:[%s172 + $0x208] sm:$0xff] %vm1171, %v1014
      %1238 = vst.msk [vmem:[%s172 + $0x210] sm:$0xff] %vm1171, %v1017
      %1239 = vst.msk [vmem:[%s172 + $0x218] sm:$0xff] %vm1171, %v1019
      %1240 = vst.msk [vmem:[%s172 + $0x220] sm:$0xff] %vm1171, %v1022
      %1241 = vst.msk [vmem:[%s172 + $0x228] sm:$0xff] %vm1171, %v1024
      %1242 = vst.msk [vmem:[%s172 + $0x230] sm:$0xff] %vm1171, %v1027
      %1243 = vst.msk [vmem:[%s172 + $0x238] sm:$0xff] %vm1171, %v1029
      %1244 = vst.msk [vmem:[%s172 + $0x240] sm:$0xff] %vm1171, %v1032
      %1245 = vst.msk [vmem:[%s172 + $0x248] sm:$0xff] %vm1171, %v1034
      %1246 = vst.msk [vmem:[%s172 + $0x250] sm:$0xff] %vm1171, %v1037
      %1247 = vst.msk [vmem:[%s172 + $0x258] sm:$0xff] %vm1171, %v1039
      %1248 = vst.msk [vmem:[%s172 + $0x260] sm:$0xff] %vm1171, %v1042
      %1249 = vst.msk [vmem:[%s172 + $0x268] sm:$0xff] %vm1171, %v1044
      %1250 = vst.msk [vmem:[%s172 + $0x270] sm:$0xff] %vm1171, %v1047
      %1251 = vst.msk [vmem:[%s172 + $0x278] sm:$0xff] %vm1171, %v1049
      %1252 = vst.msk [vmem:[%s172 + $0x280] sm:$0xff] %vm1171, %v1052
      %1253 = vst.msk [vmem:[%s172 + $0x288] sm:$0xff] %vm1171, %v1054
      %1254 = vst.msk [vmem:[%s172 + $0x290] sm:$0xff] %vm1171, %v1057
      %1255 = vst.msk [vmem:[%s172 + $0x298] sm:$0xff] %vm1171, %v1059
      %1256 = vst.msk [vmem:[%s172 + $0x2a0] sm:$0xff] %vm1171, %v1062
      %1257 = vst.msk [vmem:[%s172 + $0x2a8] sm:$0xff] %vm1171, %v1064
      %1258 = vst.msk [vmem:[%s172 + $0x2b0] sm:$0xff] %vm1171, %v1067
      %1259 = vst.msk [vmem:[%s172 + $0x2b8] sm:$0xff] %vm1171, %v1069
      %1260 = vst.msk [vmem:[%s172 + $0x2c0] sm:$0xff] %vm1171, %v1072
      %1261 = vst.msk [vmem:[%s172 + $0x2c8] sm:$0xff] %vm1171, %v1074
      %1262 = vst.msk [vmem:[%s172 + $0x2d0] sm:$0xff] %vm1171, %v1077
      %1263 = vst.msk [vmem:[%s172 + $0x2d8] sm:$0xff] %vm1171, %v1079
      %1264 = vst.msk [vmem:[%s172 + $0x2e0] sm:$0xff] %vm1171, %v1082
      %1265 = vst.msk [vmem:[%s172 + $0x2e8] sm:$0xff] %vm1171, %v1084
      %1266 = vst.msk [vmem:[%s172 + $0x2f0] sm:$0xff] %vm1171, %v1087
      %1267 = vst.msk [vmem:[%s172 + $0x2f8] sm:$0xff] %vm1171, %v1089
      %1268 = vst.msk [vmem:[%s172 + $0x300] sm:$0xff] %vm1171, %v1092
      %1269 = vst.msk [vmem:[%s172 + $0x308] sm:$0xff] %vm1171, %v1094
      %1270 = vst.msk [vmem:[%s172 + $0x310] sm:$0xff] %vm1171, %v1097
      %1271 = vst.msk [vmem:[%s172 + $0x318] sm:$0xff] %vm1171, %v1099
      %1272 = vst.msk [vmem:[%s172 + $0x320] sm:$0xff] %vm1171, %v1102
      %1273 = vst.msk [vmem:[%s172 + $0x328] sm:$0xff] %vm1171, %v1104
      %1274 = vst.msk [vmem:[%s172 + $0x330] sm:$0xff] %vm1171, %v1107
      %1275 = vst.msk [vmem:[%s172 + $0x338] sm:$0xff] %vm1171, %v1109
      %1276 = vst.msk [vmem:[%s172 + $0x340] sm:$0xff] %vm1171, %v1112
      %1277 = vst.msk [vmem:[%s172 + $0x348] sm:$0xff] %vm1171, %v1114
      %1278 = vst.msk [vmem:[%s172 + $0x350] sm:$0xff] %vm1171, %v1117
      %1279 = vst.msk [vmem:[%s172 + $0x358] sm:$0xff] %vm1171, %v1119
      %1280 = vst.msk [vmem:[%s172 + $0x360] sm:$0xff] %vm1171, %v1122
      %1281 = vst.msk [vmem:[%s172 + $0x368] sm:$0xff] %vm1171, %v1124
      %1282 = vst.msk [vmem:[%s172 + $0x370] sm:$0xff] %vm1171, %v1127
      %1283 = vst.msk [vmem:[%s172 + $0x378] sm:$0xff] %vm1171, %v1129
      %1284 = vst.msk [vmem:[%s172 + $0x380] sm:$0xff] %vm1171, %v1132
      %1285 = vst.msk [vmem:[%s172 + $0x388] sm:$0xff] %vm1171, %v1134
      %1286 = vst.msk [vmem:[%s172 + $0x390] sm:$0xff] %vm1171, %v1137
      %1287 = vst.msk [vmem:[%s172 + $0x398] sm:$0xff] %vm1171, %v1139
      %1288 = vst.msk [vmem:[%s172 + $0x3a0] sm:$0xff] %vm1171, %v1142
      %1289 = vst.msk [vmem:[%s172 + $0x3a8] sm:$0xff] %vm1171, %v1144
      %1290 = vst.msk [vmem:[%s172 + $0x3b0] sm:$0xff] %vm1171, %v1147
      %1291 = vst.msk [vmem:[%s172 + $0x3b8] sm:$0xff] %vm1171, %v1149
      %1292 = vst.msk [vmem:[%s172 + $0x3c0] sm:$0xff] %vm1171, %v1152
      %1293 = vst.msk [vmem:[%s172 + $0x3c8] sm:$0xff] %vm1171, %v1154
      %1294 = vst.msk [vmem:[%s172 + $0x3d0] sm:$0xff] %vm1171, %v1157
      %1295 = vst.msk [vmem:[%s172 + $0x3d8] sm:$0xff] %vm1171, %v1159
      %1296 = vst.msk [vmem:[%s172 + $0x3e0] sm:$0xff] %vm1171, %v1162
      %1297 = vst.msk [vmem:[%s172 + $0x3e8] sm:$0xff] %vm1171, %v1164
      %1298 = vst.msk [vmem:[%s172 + $0x3f0] sm:$0xff] %vm1171, %v1167
      %1299 = vst.msk [vmem:[%s172 + $0x3f8] sm:$0xff] %vm1171, %v1169
      %s1300 = smul.u32 128, %s14
      %p1301 = scmp.lt.s32.totalorder %s1300, 255
      %s1302 = scalar_select %p1301, %s1300, 255
      %s1303 = smul.addr %s1302, 8
      %s1304 = scalar_lea.vmem %s3, %s1303
      // Predicated region
      $region33: #{cnn_cifar_forward.7} parent=31 // pred_check
        %p1305 = pneg %p100
      $region34: #{cnn_cifar_forward.7} parent=31 // pred_check_branch
        %1307 = sbr.rel (%p1305) target = $region36
      $region35: #{cnn_cifar_forward.7} parent=31 // pred_region
        %s1308 = smul.u32 128, %s14
      $region36: #{cnn_cifar_forward.7} parent=31 // pred_fallthru
        _
    $region32: #{cnn_cifar_forward.7} parent=5 // pred_fallthru
      _
    %p1309 = scmp.le.s32.totalorder 2, %s9
    // Predicated region
    $region37: #{cnn_cifar_forward.7} parent=5 // pred_check
      %p1310 = pneg %p1309
    $region38: #{cnn_cifar_forward.7} parent=5 // pred_check_branch
      %1312 = sbr.rel (%p1310) target = $region40
    $region39: #{cnn_cifar_forward.7} parent=5 // pred_region
      %s1313 = ssub.s32 %s9, 2
      // Predicated region
      $region41: #{cnn_cifar_forward.7} parent=39 // pred_check
        %p1314 = pneg %p106
      $region42: #{cnn_cifar_forward.7} parent=39 // pred_check_branch
        %1316 = sbr.rel (%p1314) target = $region44
      $region43: #{cnn_cifar_forward.7} parent=39 // pred_region
        %s1317 = smul.u32 128, %s15
        %p1318 = scmp.lt.s32.totalorder %s1317, 255
        %s1319 = scalar_select %p1318, %s1317, 255
        %s1320 = smul.addr %s1319, 8
        %s1321 = scalar_lea.vmem %s3, %s1320
      $region44: #{cnn_cifar_forward.7} parent=39 // pred_fallthru
        _
    $region40: #{cnn_cifar_forward.7} parent=5 // pred_fallthru
      _
  $region6: #{cnn_cifar_forward.7} parent=0 // loop_footer
    %s13 = sadd.s32 1, %s9
  $region7: #{cnn_cifar_forward.7} parent=0 // loop_footer_branch
    %8 = sbr.rel target = $region3
  $region8: #{cnn_cifar_forward.7} parent=0 // loop_exit
    _

// kernel: cnn_cifar_forward.8
$region0: #{cnn_cifar_forward.8}
  #allocation0 [shape = 'u32[]', space=smem, size = 0x4, offset = 0x4, fixed_abs, tag = 'smem constant byte address 0x4 - core index']
  #allocation1 [shape = 'u32[72,128]{1,0:T(1,128)}', space=vmem, size = 0x9000, scoped, tag = 'internal scratch']
  %s0 = inlined_call_operand.vmem [shape: f32[2,32,16,128], index: 0, kind: input, shape index: {}]
  %s1 = inlined_call_operand.vmem [shape: f32[1,1,1,64], index: 1, kind: input, shape index: {}]
  %s2 = inlined_call_operand.vmem [shape: f32[1,1,1,64], index: 2, kind: input, shape index: {}]
  %s3 = inlined_call_operand.vmem [shape: f32[2,16,16,64], index: 3, kind: output, shape index: {}]
  %s4 = sld [smem:[#allocation0]]
  $region22: #{cnn_cifar_forward.8} parent=0
    _
  %s6 = ssub.s32 1, %s4
  %s7 = scalar_select 0, %s6, %s4
  // Predicated region
  $region2: #{cnn_cifar_forward.8} parent=0 // pred_check
    _
  $region3: #{cnn_cifar_forward.8} parent=0 // pred_check_branch
    %9 = sbr.rel (0) target = $region5
  $region4: #{cnn_cifar_forward.8} parent=0 // pred_region
    _
  $region5: #{cnn_cifar_forward.8} parent=0 // pred_fallthru
    _
  // Predicated region
  $region6: #{cnn_cifar_forward.8} parent=0 // pred_check
    _
  $region7: #{cnn_cifar_forward.8} parent=0 // pred_check_branch
    %11 = sbr.rel (0) target = $region9
  $region8: #{cnn_cifar_forward.8} parent=0 // pred_region
    _
  $region9: #{cnn_cifar_forward.8} parent=0 // pred_fallthru
    _
  // Predicated region
  $region10: #{cnn_cifar_forward.8} parent=0 // pred_check
    _
  $region11: #{cnn_cifar_forward.8} parent=0 // pred_check_branch
    %13 = sbr.rel (0) target = $region13
  $region12: #{cnn_cifar_forward.8} parent=0 // pred_region
    _
  $region13: #{cnn_cifar_forward.8} parent=0 // pred_fallthru
    _
  %v14 = vld [vmem:[%s0] sm:$0xff]
  %v15 = vld [vmem:[%s0 + $0x8] sm:$0xff]
  %v16 = vld [vmem:[%s0 + $0x10] sm:$0xff]
  %v17 = vld [vmem:[%s0 + $0x18] sm:$0xff]
  %v18 = vld [vmem:[%s0 + $0x20] sm:$0xff]
  %v19 = vld [vmem:[%s0 + $0x28] sm:$0xff]
  %v20 = vld [vmem:[%s0 + $0x30] sm:$0xff]
  %v21 = vld [vmem:[%s0 + $0x38] sm:$0xff]
  %v22 = vld [vmem:[%s0 + $0x40] sm:$0xff]
  %v23 = vld [vmem:[%s0 + $0x48] sm:$0xff]
  %v24 = vld [vmem:[%s0 + $0x50] sm:$0xff]
  %v25 = vld [vmem:[%s0 + $0x58] sm:$0xff]
  %v26 = vld [vmem:[%s0 + $0x60] sm:$0xff]
  %v27 = vld [vmem:[%s0 + $0x68] sm:$0xff]
  %v28 = vld [vmem:[%s0 + $0x70] sm:$0xff]
  %v29 = vld [vmem:[%s0 + $0x78] sm:$0xff]
  %v30 = vld [vmem:[%s0 + $0x80] sm:$0xff]
  %v31 = vld [vmem:[%s0 + $0x88] sm:$0xff]
  %v32 = vld [vmem:[%s0 + $0x90] sm:$0xff]
  %v33 = vld [vmem:[%s0 + $0x98] sm:$0xff]
  %v34 = vld [vmem:[%s0 + $0xa0] sm:$0xff]
  %v35 = vld [vmem:[%s0 + $0xa8] sm:$0xff]
  %v36 = vld [vmem:[%s0 + $0xb0] sm:$0xff]
  %v37 = vld [vmem:[%s0 + $0xb8] sm:$0xff]
  %v38 = vld [vmem:[%s0 + $0xc0] sm:$0xff]
  %v39 = vld [vmem:[%s0 + $0xc8] sm:$0xff]
  %v40 = vld [vmem:[%s0 + $0xd0] sm:$0xff]
  %v41 = vld [vmem:[%s0 + $0xd8] sm:$0xff]
  %v42 = vld [vmem:[%s0 + $0xe0] sm:$0xff]
  %v43 = vld [vmem:[%s0 + $0xe8] sm:$0xff]
  %v44 = vld [vmem:[%s0 + $0xf0] sm:$0xff]
  %v45 = vld [vmem:[%s0 + $0xf8] sm:$0xff]
  %v46 = vld [vmem:[%s0 + $0x100] sm:$0xff]
  %v47 = vld [vmem:[%s0 + $0x108] sm:$0xff]
  %v48 = vld [vmem:[%s0 + $0x110] sm:$0xff]
  %v49 = vld [vmem:[%s0 + $0x118] sm:$0xff]
  %v50 = vld [vmem:[%s0 + $0x120] sm:$0xff]
  %v51 = vld [vmem:[%s0 + $0x128] sm:$0xff]
  %v52 = vld [vmem:[%s0 + $0x130] sm:$0xff]
  %v53 = vld [vmem:[%s0 + $0x138] sm:$0xff]
  %v54 = vld [vmem:[%s0 + $0x140] sm:$0xff]
  %v55 = vld [vmem:[%s0 + $0x148] sm:$0xff]
  %v56 = vld [vmem:[%s0 + $0x150] sm:$0xff]
  %v57 = vld [vmem:[%s0 + $0x158] sm:$0xff]
  %v58 = vld [vmem:[%s0 + $0x160] sm:$0xff]
  %v59 = vld [vmem:[%s0 + $0x168] sm:$0xff]
  %v60 = vld [vmem:[%s0 + $0x170] sm:$0xff]
  %v61 = vld [vmem:[%s0 + $0x178] sm:$0xff]
  %v62 = vld [vmem:[%s0 + $0x180] sm:$0xff]
  %v63 = vld [vmem:[%s0 + $0x188] sm:$0xff]
  %v64 = vld [vmem:[%s0 + $0x190] sm:$0xff]
  %v65 = vld [vmem:[%s0 + $0x198] sm:$0xff]
  %v66 = vld [vmem:[%s0 + $0x1a0] sm:$0xff]
  %v67 = vld [vmem:[%s0 + $0x1a8] sm:$0xff]
  %v68 = vld [vmem:[%s0 + $0x1b0] sm:$0xff]
  %v69 = vld [vmem:[%s0 + $0x1b8] sm:$0xff]
  %v70 = vld [vmem:[%s0 + $0x1c0] sm:$0xff]
  %v71 = vld [vmem:[%s0 + $0x1c8] sm:$0xff]
  %v72 = vld [vmem:[%s0 + $0x1d0] sm:$0xff]
  %v73 = vld [vmem:[%s0 + $0x1d8] sm:$0xff]
  %v74 = vld [vmem:[%s0 + $0x1e0] sm:$0xff]
  %v75 = vld [vmem:[%s0 + $0x1e8] sm:$0xff]
  %v76 = vld [vmem:[%s0 + $0x1f0] sm:$0xff]
  %v77 = vld [vmem:[%s0 + $0x1f8] sm:$0xff]
  %v78 = vld [vmem:[%s0 + $0x200] sm:$0xff]
  %v79 = vld [vmem:[%s0 + $0x208] sm:$0xff]
  %v80 = vld [vmem:[%s0 + $0x210] sm:$0xff]
  %v81 = vld [vmem:[%s0 + $0x218] sm:$0xff]
  %v82 = vld [vmem:[%s0 + $0x220] sm:$0xff]
  %v83 = vld [vmem:[%s0 + $0x228] sm:$0xff]
  %v84 = vld [vmem:[%s0 + $0x230] sm:$0xff]
  %v85 = vld [vmem:[%s0 + $0x238] sm:$0xff]
  %v86 = vld [vmem:[%s0 + $0x240] sm:$0xff]
  %v87 = vld [vmem:[%s0 + $0x248] sm:$0xff]
  %v88 = vld [vmem:[%s0 + $0x250] sm:$0xff]
  %v89 = vld [vmem:[%s0 + $0x258] sm:$0xff]
  %v90 = vld [vmem:[%s0 + $0x260] sm:$0xff]
  %v91 = vld [vmem:[%s0 + $0x268] sm:$0xff]
  %v92 = vld [vmem:[%s0 + $0x270] sm:$0xff]
  %v93 = vld [vmem:[%s0 + $0x278] sm:$0xff]
  %v94 = vld [vmem:[%s0 + $0x280] sm:$0xff]
  %v95 = vld [vmem:[%s0 + $0x288] sm:$0xff]
  %v96 = vld [vmem:[%s0 + $0x290] sm:$0xff]
  %v97 = vld [vmem:[%s0 + $0x298] sm:$0xff]
  %v98 = vld [vmem:[%s0 + $0x2a0] sm:$0xff]
  %v99 = vld [vmem:[%s0 + $0x2a8] sm:$0xff]
  %v100 = vld [vmem:[%s0 + $0x2b0] sm:$0xff]
  %v101 = vld [vmem:[%s0 + $0x2b8] sm:$0xff]
  %v102 = vld [vmem:[%s0 + $0x2c0] sm:$0xff]
  %v103 = vld [vmem:[%s0 + $0x2c8] sm:$0xff]
  %v104 = vld [vmem:[%s0 + $0x2d0] sm:$0xff]
  %v105 = vld [vmem:[%s0 + $0x2d8] sm:$0xff]
  %v106 = vld [vmem:[%s0 + $0x2e0] sm:$0xff]
  %v107 = vld [vmem:[%s0 + $0x2e8] sm:$0xff]
  %v108 = vld [vmem:[%s0 + $0x2f0] sm:$0xff]
  %v109 = vld [vmem:[%s0 + $0x2f8] sm:$0xff]
  %v110 = vld [vmem:[%s0 + $0x300] sm:$0xff]
  %v111 = vld [vmem:[%s0 + $0x308] sm:$0xff]
  %v112 = vld [vmem:[%s0 + $0x310] sm:$0xff]
  %v113 = vld [vmem:[%s0 + $0x318] sm:$0xff]
  %v114 = vld [vmem:[%s0 + $0x320] sm:$0xff]
  %v115 = vld [vmem:[%s0 + $0x328] sm:$0xff]
  %v116 = vld [vmem:[%s0 + $0x330] sm:$0xff]
  %v117 = vld [vmem:[%s0 + $0x338] sm:$0xff]
  %v118 = vld [vmem:[%s0 + $0x340] sm:$0xff]
  %v119 = vld [vmem:[%s0 + $0x348] sm:$0xff]
  %v120 = vld [vmem:[%s0 + $0x350] sm:$0xff]
  %v121 = vld [vmem:[%s0 + $0x358] sm:$0xff]
  %v122 = vld [vmem:[%s0 + $0x360] sm:$0xff]
  %v123 = vld [vmem:[%s0 + $0x368] sm:$0xff]
  %v124 = vld [vmem:[%s0 + $0x370] sm:$0xff]
  %v125 = vld [vmem:[%s0 + $0x378] sm:$0xff]
  %v126 = vld [vmem:[%s0 + $0x380] sm:$0xff]
  %v127 = vld [vmem:[%s0 + $0x388] sm:$0xff]
  %v128 = vld [vmem:[%s0 + $0x390] sm:$0xff]
  %v129 = vld [vmem:[%s0 + $0x398] sm:$0xff]
  %v130 = vld [vmem:[%s0 + $0x3a0] sm:$0xff]
  %v131 = vld [vmem:[%s0 + $0x3a8] sm:$0xff]
  %v132 = vld [vmem:[%s0 + $0x3b0] sm:$0xff]
  %v133 = vld [vmem:[%s0 + $0x3b8] sm:$0xff]
  %v134 = vld [vmem:[%s0 + $0x3c0] sm:$0xff]
  %v135 = vld [vmem:[%s0 + $0x3c8] sm:$0xff]
  %v136 = vld [vmem:[%s0 + $0x3d0] sm:$0xff]
  %v137 = vld [vmem:[%s0 + $0x3d8] sm:$0xff]
  %v138 = vld [vmem:[%s0 + $0x3e0] sm:$0xff]
  %v139 = vld [vmem:[%s0 + $0x3e8] sm:$0xff]
  %v140 = vld [vmem:[%s0 + $0x3f0] sm:$0xff]
  %v141 = vld [vmem:[%s0 + $0x3f8] sm:$0xff]
  %vm142 = vcmask 523264
  %v143 = vsel %vm142, %v14, 0.0
  %v144 = vsel %vm142, %v15, 0.0
  %v145 = vadd.f32 %v143, %v144
  %v146 = vsel %vm142, %v16, 0.0
  %v147 = vadd.f32 %v145, %v146
  %v148 = vsel %vm142, %v17, 0.0
  %v149 = vadd.f32 %v147, %v148
  %v150 = vsel %vm142, %v18, 0.0
  %v151 = vadd.f32 %v149, %v150
  %v152 = vsel %vm142, %v19, 0.0
  %v153 = vadd.f32 %v151, %v152
  %v154 = vsel %vm142, %v20, 0.0
  %v155 = vadd.f32 %v153, %v154
  %v156 = vsel %vm142, %v21, 0.0
  %v157 = vadd.f32 %v155, %v156
  %v158 = vsel %vm142, %v22, 0.0
  %v159 = vadd.f32 %v157, %v158
  %v160 = vsel %vm142, %v23, 0.0
  %v161 = vadd.f32 %v159, %v160
  %v162 = vsel %vm142, %v24, 0.0
  %v163 = vadd.f32 %v161, %v162
  %v164 = vsel %vm142, %v25, 0.0
  %v165 = vadd.f32 %v163, %v164
  %v166 = vsel %vm142, %v26, 0.0
  %v167 = vadd.f32 %v165, %v166
  %v168 = vsel %vm142, %v27, 0.0
  %v169 = vadd.f32 %v167, %v168
  %v170 = vsel %vm142, %v28, 0.0
  %v171 = vadd.f32 %v169, %v170
  %v172 = vsel %vm142, %v29, 0.0
  %v173 = vadd.f32 %v171, %v172
  %v174 = vsel %vm142, %v30, 0.0
  %v175 = vadd.f32 %v173, %v174
  %v176 = vsel %vm142, %v31, 0.0
  %v177 = vadd.f32 %v175, %v176
  %v178 = vsel %vm142, %v32, 0.0
  %v179 = vadd.f32 %v177, %v178
  %v180 = vsel %vm142, %v33, 0.0
  %v181 = vadd.f32 %v179, %v180
  %v182 = vsel %vm142, %v34, 0.0
  %v183 = vadd.f32 %v181, %v182
  %v184 = vsel %vm142, %v35, 0.0
  %v185 = vadd.f32 %v183, %v184
  %v186 = vsel %vm142, %v36, 0.0
  %v187 = vadd.f32 %v185, %v186
  %v188 = vsel %vm142, %v37, 0.0
  %v189 = vadd.f32 %v187, %v188
  %v190 = vsel %vm142, %v38, 0.0
  %v191 = vadd.f32 %v189, %v190
  %v192 = vsel %vm142, %v39, 0.0
  %v193 = vadd.f32 %v191, %v192
  %v194 = vsel %vm142, %v40, 0.0
  %v195 = vadd.f32 %v193, %v194
  %v196 = vsel %vm142, %v41, 0.0
  %v197 = vadd.f32 %v195, %v196
  %v198 = vsel %vm142, %v42, 0.0
  %v199 = vadd.f32 %v197, %v198
  %v200 = vsel %vm142, %v43, 0.0
  %v201 = vadd.f32 %v199, %v200
  %v202 = vsel %vm142, %v44, 0.0
  %v203 = vadd.f32 %v201, %v202
  %v204 = vsel %vm142, %v45, 0.0
  %v205 = vadd.f32 %v203, %v204
  %v206 = vsel %vm142, %v46, 0.0
  %v207 = vadd.f32 %v205, %v206
  %v208 = vsel %vm142, %v47, 0.0
  %v209 = vadd.f32 %v207, %v208
  %v210 = vsel %vm142, %v48, 0.0
  %v211 = vadd.f32 %v209, %v210
  %v212 = vsel %vm142, %v49, 0.0
  %v213 = vadd.f32 %v211, %v212
  %v214 = vsel %vm142, %v50, 0.0
  %v215 = vadd.f32 %v213, %v214
  %v216 = vsel %vm142, %v51, 0.0
  %v217 = vadd.f32 %v215, %v216
  %v218 = vsel %vm142, %v52, 0.0
  %v219 = vadd.f32 %v217, %v218
  %v220 = vsel %vm142, %v53, 0.0
  %v221 = vadd.f32 %v219, %v220
  %v222 = vsel %vm142, %v54, 0.0
  %v223 = vadd.f32 %v221, %v222
  %v224 = vsel %vm142, %v55, 0.0
  %v225 = vadd.f32 %v223, %v224
  %v226 = vsel %vm142, %v56, 0.0
  %v227 = vadd.f32 %v225, %v226
  %v228 = vsel %vm142, %v57, 0.0
  %v229 = vadd.f32 %v227, %v228
  %v230 = vsel %vm142, %v58, 0.0
  %v231 = vadd.f32 %v229, %v230
  %v232 = vsel %vm142, %v59, 0.0
  %v233 = vadd.f32 %v231, %v232
  %v234 = vsel %vm142, %v60, 0.0
  %v235 = vadd.f32 %v233, %v234
  %v236 = vsel %vm142, %v61, 0.0
  %v237 = vadd.f32 %v235, %v236
  %v238 = vsel %vm142, %v62, 0.0
  %v239 = vadd.f32 %v237, %v238
  %v240 = vsel %vm142, %v63, 0.0
  %v241 = vadd.f32 %v239, %v240
  %v242 = vsel %vm142, %v64, 0.0
  %v243 = vadd.f32 %v241, %v242
  %v244 = vsel %vm142, %v65, 0.0
  %v245 = vadd.f32 %v243, %v244
  %v246 = vsel %vm142, %v66, 0.0
  %v247 = vadd.f32 %v245, %v246
  %v248 = vsel %vm142, %v67, 0.0
  %v249 = vadd.f32 %v247, %v248
  %v250 = vsel %vm142, %v68, 0.0
  %v251 = vadd.f32 %v249, %v250
  %v252 = vsel %vm142, %v69, 0.0
  %v253 = vadd.f32 %v251, %v252
  %v254 = vsel %vm142, %v70, 0.0
  %v255 = vadd.f32 %v253, %v254
  %v256 = vsel %vm142, %v71, 0.0
  %v257 = vadd.f32 %v255, %v256
  %v258 = vsel %vm142, %v72, 0.0
  %v259 = vadd.f32 %v257, %v258
  %v260 = vsel %vm142, %v73, 0.0
  %v261 = vadd.f32 %v259, %v260
  %v262 = vsel %vm142, %v74, 0.0
  %v263 = vadd.f32 %v261, %v262
  %v264 = vsel %vm142, %v75, 0.0
  %v265 = vadd.f32 %v263, %v264
  %v266 = vsel %vm142, %v76, 0.0
  %v267 = vadd.f32 %v265, %v266
  %v268 = vsel %vm142, %v77, 0.0
  %v269 = vadd.f32 %v267, %v268
  %v270 = vsel %vm142, %v78, 0.0
  %v271 = vadd.f32 %v269, %v270
  %v272 = vsel %vm142, %v79, 0.0
  %v273 = vadd.f32 %v271, %v272
  %v274 = vsel %vm142, %v80, 0.0
  %v275 = vadd.f32 %v273, %v274
  %v276 = vsel %vm142, %v81, 0.0
  %v277 = vadd.f32 %v275, %v276
  %v278 = vsel %vm142, %v82, 0.0
  %v279 = vadd.f32 %v277, %v278
  %v280 = vsel %vm142, %v83, 0.0
  %v281 = vadd.f32 %v279, %v280
  %v282 = vsel %vm142, %v84, 0.0
  %v283 = vadd.f32 %v281, %v282
  %v284 = vsel %vm142, %v85, 0.0
  %v285 = vadd.f32 %v283, %v284
  %v286 = vsel %vm142, %v86, 0.0
  %v287 = vadd.f32 %v285, %v286
  %v288 = vsel %vm142, %v87, 0.0
  %v289 = vadd.f32 %v287, %v288
  %v290 = vsel %vm142, %v88, 0.0
  %v291 = vadd.f32 %v289, %v290
  %v292 = vsel %vm142, %v89, 0.0
  %v293 = vadd.f32 %v291, %v292
  %v294 = vsel %vm142, %v90, 0.0
  %v295 = vadd.f32 %v293, %v294
  %v296 = vsel %vm142, %v91, 0.0
  %v297 = vadd.f32 %v295, %v296
  %v298 = vsel %vm142, %v92, 0.0
  %v299 = vadd.f32 %v297, %v298
  %v300 = vsel %vm142, %v93, 0.0
  %v301 = vadd.f32 %v299, %v300
  %v302 = vsel %vm142, %v94, 0.0
  %v303 = vadd.f32 %v301, %v302
  %v304 = vsel %vm142, %v95, 0.0
  %v305 = vadd.f32 %v303, %v304
  %v306 = vsel %vm142, %v96, 0.0
  %v307 = vadd.f32 %v305, %v306
  %v308 = vsel %vm142, %v97, 0.0
  %v309 = vadd.f32 %v307, %v308
  %v310 = vsel %vm142, %v98, 0.0
  %v311 = vadd.f32 %v309, %v310
  %v312 = vsel %vm142, %v99, 0.0
  %v313 = vadd.f32 %v311, %v312
  %v314 = vsel %vm142, %v100, 0.0
  %v315 = vadd.f32 %v313, %v314
  %v316 = vsel %vm142, %v101, 0.0
  %v317 = vadd.f32 %v315, %v316
  %v318 = vsel %vm142, %v102, 0.0
  %v319 = vadd.f32 %v317, %v318
  %v320 = vsel %vm142, %v103, 0.0
  %v321 = vadd.f32 %v319, %v320
  %v322 = vsel %vm142, %v104, 0.0
  %v323 = vadd.f32 %v321, %v322
  %v324 = vsel %vm142, %v105, 0.0
  %v325 = vadd.f32 %v323, %v324
  %v326 = vsel %vm142, %v106, 0.0
  %v327 = vadd.f32 %v325, %v326
  %v328 = vsel %vm142, %v107, 0.0
  %v329 = vadd.f32 %v327, %v328
  %v330 = vsel %vm142, %v108, 0.0
  %v331 = vadd.f32 %v329, %v330
  %v332 = vsel %vm142, %v109, 0.0
  %v333 = vadd.f32 %v331, %v332
  %v334 = vsel %vm142, %v110, 0.0
  %v335 = vadd.f32 %v333, %v334
  %v336 = vsel %vm142, %v111, 0.0
  %v337 = vadd.f32 %v335, %v336
  %v338 = vsel %vm142, %v112, 0.0
  %v339 = vadd.f32 %v337, %v338
  %v340 = vsel %vm142, %v113, 0.0
  %v341 = vadd.f32 %v339, %v340
  %v342 = vsel %vm142, %v114, 0.0
  %v343 = vadd.f32 %v341, %v342
  %v344 = vsel %vm142, %v115, 0.0
  %v345 = vadd.f32 %v343, %v344
  %v346 = vsel %vm142, %v116, 0.0
  %v347 = vadd.f32 %v345, %v346
  %v348 = vsel %vm142, %v117, 0.0
  %v349 = vadd.f32 %v347, %v348
  %v350 = vsel %vm142, %v118, 0.0
  %v351 = vadd.f32 %v349, %v350
  %v352 = vsel %vm142, %v119, 0.0
  %v353 = vadd.f32 %v351, %v352
  %v354 = vsel %vm142, %v120, 0.0
  %v355 = vadd.f32 %v353, %v354
  %v356 = vsel %vm142, %v121, 0.0
  %v357 = vadd.f32 %v355, %v356
  %v358 = vsel %vm142, %v122, 0.0
  %v359 = vadd.f32 %v357, %v358
  %v360 = vsel %vm142, %v123, 0.0
  %v361 = vadd.f32 %v359, %v360
  %v362 = vsel %vm142, %v124, 0.0
  %v363 = vadd.f32 %v361, %v362
  %v364 = vsel %vm142, %v125, 0.0
  %v365 = vadd.f32 %v363, %v364
  %v366 = vsel %vm142, %v126, 0.0
  %v367 = vadd.f32 %v365, %v366
  %v368 = vsel %vm142, %v127, 0.0
  %v369 = vadd.f32 %v367, %v368
  %v370 = vsel %vm142, %v128, 0.0
  %v371 = vadd.f32 %v369, %v370
  %v372 = vsel %vm142, %v129, 0.0
  %v373 = vadd.f32 %v371, %v372
  %v374 = vsel %vm142, %v130, 0.0
  %v375 = vadd.f32 %v373, %v374
  %v376 = vsel %vm142, %v131, 0.0
  %v377 = vadd.f32 %v375, %v376
  %v378 = vsel %vm142, %v132, 0.0
  %v379 = vadd.f32 %v377, %v378
  %v380 = vsel %vm142, %v133, 0.0
  %v381 = vadd.f32 %v379, %v380
  %v382 = vsel %vm142, %v134, 0.0
  %v383 = vadd.f32 %v381, %v382
  %v384 = vsel %vm142, %v135, 0.0
  %v385 = vadd.f32 %v383, %v384
  %v386 = vsel %vm142, %v136, 0.0
  %v387 = vadd.f32 %v385, %v386
  %v388 = vsel %vm142, %v137, 0.0
  %v389 = vadd.f32 %v387, %v388
  %v390 = vsel %vm142, %v138, 0.0
  %v391 = vadd.f32 %v389, %v390
  %v392 = vsel %vm142, %v139, 0.0
  %v393 = vadd.f32 %v391, %v392
  %v394 = vsel %vm142, %v140, 0.0
  %v395 = vadd.f32 %v393, %v394
  %v396 = vsel %vm142, %v141, 0.0
  %v397 = vadd.f32 %v395, %v396
  %v398 = vrot.slane %v397, 4
  %v399 = vadd.f32 %v397, %v398
  %v400 = vrot.slane %v399, 2
  %v401 = vadd.f32 %v399, %v400
  %v402 = vrot.slane %v401, 1
  %v403 = vadd.f32 %v401, %v402
  %vm404 = vcmask 1048064
  %v405 = vsel %vm404, %v14, 0.0
  %v406 = vsel %vm404, %v15, 0.0
  %v407 = vadd.f32 %v405, %v406
  %v408 = vsel %vm404, %v16, 0.0
  %v409 = vadd.f32 %v407, %v408
  %v410 = vsel %vm404, %v17, 0.0
  %v411 = vadd.f32 %v409, %v410
  %v412 = vsel %vm404, %v18, 0.0
  %v413 = vadd.f32 %v411, %v412
  %v414 = vsel %vm404, %v19, 0.0
  %v415 = vadd.f32 %v413, %v414
  %v416 = vsel %vm404, %v20, 0.0
  %v417 = vadd.f32 %v415, %v416
  %v418 = vsel %vm404, %v21, 0.0
  %v419 = vadd.f32 %v417, %v418
  %v420 = vsel %vm404, %v22, 0.0
  %v421 = vadd.f32 %v419, %v420
  %v422 = vsel %vm404, %v23, 0.0
  %v423 = vadd.f32 %v421, %v422
  %v424 = vsel %vm404, %v24, 0.0
  %v425 = vadd.f32 %v423, %v424
  %v426 = vsel %vm404, %v25, 0.0
  %v427 = vadd.f32 %v425, %v426
  %v428 = vsel %vm404, %v26, 0.0
  %v429 = vadd.f32 %v427, %v428
  %v430 = vsel %vm404, %v27, 0.0
  %v431 = vadd.f32 %v429, %v430
  %v432 = vsel %vm404, %v28, 0.0
  %v433 = vadd.f32 %v431, %v432
  %v434 = vsel %vm404, %v29, 0.0
  %v435 = vadd.f32 %v433, %v434
  %v436 = vsel %vm404, %v30, 0.0
  %v437 = vadd.f32 %v435, %v436
  %v438 = vsel %vm404, %v31, 0.0
  %v439 = vadd.f32 %v437, %v438
  %v440 = vsel %vm404, %v32, 0.0
  %v441 = vadd.f32 %v439, %v440
  %v442 = vsel %vm404, %v33, 0.0
  %v443 = vadd.f32 %v441, %v442
  %v444 = vsel %vm404, %v34, 0.0
  %v445 = vadd.f32 %v443, %v444
  %v446 = vsel %vm404, %v35, 0.0
  %v447 = vadd.f32 %v445, %v446
  %v448 = vsel %vm404, %v36, 0.0
  %v449 = vadd.f32 %v447, %v448
  %v450 = vsel %vm404, %v37, 0.0
  %v451 = vadd.f32 %v449, %v450
  %v452 = vsel %vm404, %v38, 0.0
  %v453 = vadd.f32 %v451, %v452
  %v454 = vsel %vm404, %v39, 0.0
  %v455 = vadd.f32 %v453, %v454
  %v456 = vsel %vm404, %v40, 0.0
  %v457 = vadd.f32 %v455, %v456
  %v458 = vsel %vm404, %v41, 0.0
  %v459 = vadd.f32 %v457, %v458
  %v460 = vsel %vm404, %v42, 0.0
  %v461 = vadd.f32 %v459, %v460
  %v462 = vsel %vm404, %v43, 0.0
  %v463 = vadd.f32 %v461, %v462
  %v464 = vsel %vm404, %v44, 0.0
  %v465 = vadd.f32 %v463, %v464
  %v466 = vsel %vm404, %v45, 0.0
  %v467 = vadd.f32 %v465, %v466
  %v468 = vsel %vm404, %v46, 0.0
  %v469 = vadd.f32 %v467, %v468
  %v470 = vsel %vm404, %v47, 0.0
  %v471 = vadd.f32 %v469, %v470
  %v472 = vsel %vm404, %v48, 0.0
  %v473 = vadd.f32 %v471, %v472
  %v474 = vsel %vm404, %v49, 0.0
  %v475 = vadd.f32 %v473, %v474
  %v476 = vsel %vm404, %v50, 0.0
  %v477 = vadd.f32 %v475, %v476
  %v478 = vsel %vm404, %v51, 0.0
  %v479 = vadd.f32 %v477, %v478
  %v480 = vsel %vm404, %v52, 0.0
  %v481 = vadd.f32 %v479, %v480
  %v482 = vsel %vm404, %v53, 0.0
  %v483 = vadd.f32 %v481, %v482
  %v484 = vsel %vm404, %v54, 0.0
  %v485 = vadd.f32 %v483, %v484
  %v486 = vsel %vm404, %v55, 0.0
  %v487 = vadd.f32 %v485, %v486
  %v488 = vsel %vm404, %v56, 0.0
  %v489 = vadd.f32 %v487, %v488
  %v490 = vsel %vm404, %v57, 0.0
  %v491 = vadd.f32 %v489, %v490
  %v492 = vsel %vm404, %v58, 0.0
  %v493 = vadd.f32 %v491, %v492
  %v494 = vsel %vm404, %v59, 0.0
  %v495 = vadd.f32 %v493, %v494
  %v496 = vsel %vm404, %v60, 0.0
  %v497 = vadd.f32 %v495, %v496
  %v498 = vsel %vm404, %v61, 0.0
  %v499 = vadd.f32 %v497, %v498
  %v500 = vsel %vm404, %v62, 0.0
  %v501 = vadd.f32 %v499, %v500
  %v502 = vsel %vm404, %v63, 0.0
  %v503 = vadd.f32 %v501, %v502
  %v504 = vsel %vm404, %v64, 0.0
  %v505 = vadd.f32 %v503, %v504
  %v506 = vsel %vm404, %v65, 0.0
  %v507 = vadd.f32 %v505, %v506
  %v508 = vsel %vm404, %v66, 0.0
  %v509 = vadd.f32 %v507, %v508
  %v510 = vsel %vm404, %v67, 0.0
  %v511 = vadd.f32 %v509, %v510
  %v512 = vsel %vm404, %v68, 0.0
  %v513 = vadd.f32 %v511, %v512
  %v514 = vsel %vm404, %v69, 0.0
  %v515 = vadd.f32 %v513, %v514
  %v516 = vsel %vm404, %v70, 0.0
  %v517 = vadd.f32 %v515, %v516
  %v518 = vsel %vm404, %v71, 0.0
  %v519 = vadd.f32 %v517, %v518
  %v520 = vsel %vm404, %v72, 0.0
  %v521 = vadd.f32 %v519, %v520
  %v522 = vsel %vm404, %v73, 0.0
  %v523 = vadd.f32 %v521, %v522
  %v524 = vsel %vm404, %v74, 0.0
  %v525 = vadd.f32 %v523, %v524
  %v526 = vsel %vm404, %v75, 0.0
  %v527 = vadd.f32 %v525, %v526
  %v528 = vsel %vm404, %v76, 0.0
  %v529 = vadd.f32 %v527, %v528
  %v530 = vsel %vm404, %v77, 0.0
  %v531 = vadd.f32 %v529, %v530
  %v532 = vsel %vm404, %v78, 0.0
  %v533 = vadd.f32 %v531, %v532
  %v534 = vsel %vm404, %v79, 0.0
  %v535 = vadd.f32 %v533, %v534
  %v536 = vsel %vm404, %v80, 0.0
  %v537 = vadd.f32 %v535, %v536
  %v538 = vsel %vm404, %v81, 0.0
  %v539 = vadd.f32 %v537, %v538
  %v540 = vsel %vm404, %v82, 0.0
  %v541 = vadd.f32 %v539, %v540
  %v542 = vsel %vm404, %v83, 0.0
  %v543 = vadd.f32 %v541, %v542
  %v544 = vsel %vm404, %v84, 0.0
  %v545 = vadd.f32 %v543, %v544
  %v546 = vsel %vm404, %v85, 0.0
  %v547 = vadd.f32 %v545, %v546
  %v548 = vsel %vm404, %v86, 0.0
  %v549 = vadd.f32 %v547, %v548
  %v550 = vsel %vm404, %v87, 0.0
  %v551 = vadd.f32 %v549, %v550
  %v552 = vsel %vm404, %v88, 0.0
  %v553 = vadd.f32 %v551, %v552
  %v554 = vsel %vm404, %v89, 0.0
  %v555 = vadd.f32 %v553, %v554
  %v556 = vsel %vm404, %v90, 0.0
  %v557 = vadd.f32 %v555, %v556
  %v558 = vsel %vm404, %v91, 0.0
  %v559 = vadd.f32 %v557, %v558
  %v560 = vsel %vm404, %v92, 0.0
  %v561 = vadd.f32 %v559, %v560
  %v562 = vsel %vm404, %v93, 0.0
  %v563 = vadd.f32 %v561, %v562
  %v564 = vsel %vm404, %v94, 0.0
  %v565 = vadd.f32 %v563, %v564
  %v566 = vsel %vm404, %v95, 0.0
  %v567 = vadd.f32 %v565, %v566
  %v568 = vsel %vm404, %v96, 0.0
  %v569 = vadd.f32 %v567, %v568
  %v570 = vsel %vm404, %v97, 0.0
  %v571 = vadd.f32 %v569, %v570
  %v572 = vsel %vm404, %v98, 0.0
  %v573 = vadd.f32 %v571, %v572
  %v574 = vsel %vm404, %v99, 0.0
  %v575 = vadd.f32 %v573, %v574
  %v576 = vsel %vm404, %v100, 0.0
  %v577 = vadd.f32 %v575, %v576
  %v578 = vsel %vm404, %v101, 0.0
  %v579 = vadd.f32 %v577, %v578
  %v580 = vsel %vm404, %v102, 0.0
  %v581 = vadd.f32 %v579, %v580
  %v582 = vsel %vm404, %v103, 0.0
  %v583 = vadd.f32 %v581, %v582
  %v584 = vsel %vm404, %v104, 0.0
  %v585 = vadd.f32 %v583, %v584
  %v586 = vsel %vm404, %v105, 0.0
  %v587 = vadd.f32 %v585, %v586
  %v588 = vsel %vm404, %v106, 0.0
  %v589 = vadd.f32 %v587, %v588
  %v590 = vsel %vm404, %v107, 0.0
  %v591 = vadd.f32 %v589, %v590
  %v592 = vsel %vm404, %v108, 0.0
  %v593 = vadd.f32 %v591, %v592
  %v594 = vsel %vm404, %v109, 0.0
  %v595 = vadd.f32 %v593, %v594
  %v596 = vsel %vm404, %v110, 0.0
  %v597 = vadd.f32 %v595, %v596
  %v598 = vsel %vm404, %v111, 0.0
  %v599 = vadd.f32 %v597, %v598
  %v600 = vsel %vm404, %v112, 0.0
  %v601 = vadd.f32 %v599, %v600
  %v602 = vsel %vm404, %v113, 0.0
  %v603 = vadd.f32 %v601, %v602
  %v604 = vsel %vm404, %v114, 0.0
  %v605 = vadd.f32 %v603, %v604
  %v606 = vsel %vm404, %v115, 0.0
  %v607 = vadd.f32 %v605, %v606
  %v608 = vsel %vm404, %v116, 0.0
  %v609 = vadd.f32 %v607, %v608
  %v610 = vsel %vm404, %v117, 0.0
  %v611 = vadd.f32 %v609, %v610
  %v612 = vsel %vm404, %v118, 0.0
  %v613 = vadd.f32 %v611, %v612
  %v614 = vsel %vm404, %v119, 0.0
  %v615 = vadd.f32 %v613, %v614
  %v616 = vsel %vm404, %v120, 0.0
  %v617 = vadd.f32 %v615, %v616
  %v618 = vsel %vm404, %v121, 0.0
  %v619 = vadd.f32 %v617, %v618
  %v620 = vsel %vm404, %v122, 0.0
  %v621 = vadd.f32 %v619, %v620
  %v622 = vsel %vm404, %v123, 0.0
  %v623 = vadd.f32 %v621, %v622
  %v624 = vsel %vm404, %v124, 0.0
  %v625 = vadd.f32 %v623, %v624
  %v626 = vsel %vm404, %v125, 0.0
  %v627 = vadd.f32 %v625, %v626
  %v628 = vsel %vm404, %v126, 0.0
  %v629 = vadd.f32 %v627, %v628
  %v630 = vsel %vm404, %v127, 0.0
  %v631 = vadd.f32 %v629, %v630
  %v632 = vsel %vm404, %v128, 0.0
  %v633 = vadd.f32 %v631, %v632
  %v634 = vsel %vm404, %v129, 0.0
  %v635 = vadd.f32 %v633, %v634
  %v636 = vsel %vm404, %v130, 0.0
  %v637 = vadd.f32 %v635, %v636
  %v638 = vsel %vm404, %v131, 0.0
  %v639 = vadd.f32 %v637, %v638
  %v640 = vsel %vm404, %v132, 0.0
  %v641 = vadd.f32 %v639, %v640
  %v642 = vsel %vm404, %v133, 0.0
  %v643 = vadd.f32 %v641, %v642
  %v644 = vsel %vm404, %v134, 0.0
  %v645 = vadd.f32 %v643, %v644
  %v646 = vsel %vm404, %v135, 0.0
  %v647 = vadd.f32 %v645, %v646
  %v648 = vsel %vm404, %v136, 0.0
  %v649 = vadd.f32 %v647, %v648
  %v650 = vsel %vm404, %v137, 0.0
  %v651 = vadd.f32 %v649, %v650
  %v652 = vsel %vm404, %v138, 0.0
  %v653 = vadd.f32 %v651, %v652
  %v654 = vsel %vm404, %v139, 0.0
  %v655 = vadd.f32 %v653, %v654
  %v656 = vsel %vm404, %v140, 0.0
  %v657 = vadd.f32 %v655, %v656
  %v658 = vsel %vm404, %v141, 0.0
  %v659 = vadd.f32 %v657, %v658
  %v660 = vrot.slane %v659, 4
  %v661 = vadd.f32 %v659, %v660
  %v662 = vrot.slane %v661, 2
  %v663 = vadd.f32 %v661, %v662
  %v664 = vrot.slane %v663, 1
  %v665 = vadd.f32 %v663, %v664
  %667 = vrot.lane.b32.xlu0 %v665, 64
  %v668 = vpop.permute.xlu0 %667
  %v670 = vadd.f32 %v403, %v668
  %v671 = vmul.f32 %v670, 0.00048828125
  %v672 = vperm.slane %v671, 0
  %v673 = vsub.f32 %v14, %v672
  %v674 = vsub.f32 %v15, %v672
  %v675 = vsub.f32 %v16, %v672
  %v676 = vsub.f32 %v17, %v672
  %v677 = vsub.f32 %v18, %v672
  %v678 = vsub.f32 %v19, %v672
  %v679 = vsub.f32 %v20, %v672
  %v680 = vsub.f32 %v21, %v672
  %v681 = vsub.f32 %v22, %v672
  %v682 = vsub.f32 %v23, %v672
  %v683 = vsub.f32 %v24, %v672
  %v684 = vsub.f32 %v25, %v672
  %v685 = vsub.f32 %v26, %v672
  %v686 = vsub.f32 %v27, %v672
  %v687 = vsub.f32 %v28, %v672
  %v688 = vsub.f32 %v29, %v672
  %v689 = vsub.f32 %v30, %v672
  %v690 = vsub.f32 %v31, %v672
  %v691 = vsub.f32 %v32, %v672
  %v692 = vsub.f32 %v33, %v672
  %v693 = vsub.f32 %v34, %v672
  %v694 = vsub.f32 %v35, %v672
  %v695 = vsub.f32 %v36, %v672
  %v696 = vsub.f32 %v37, %v672
  %v697 = vsub.f32 %v38, %v672
  %v698 = vsub.f32 %v39, %v672
  %v699 = vsub.f32 %v40, %v672
  %v700 = vsub.f32 %v41, %v672
  %v701 = vsub.f32 %v42, %v672
  %v702 = vsub.f32 %v43, %v672
  %v703 = vsub.f32 %v44, %v672
  %v704 = vsub.f32 %v45, %v672
  %v705 = vsub.f32 %v46, %v672
  %v706 = vsub.f32 %v47, %v672
  %v707 = vsub.f32 %v48, %v672
  %v708 = vsub.f32 %v49, %v672
  %v709 = vsub.f32 %v50, %v672
  %v710 = vsub.f32 %v51, %v672
  %v711 = vsub.f32 %v52, %v672
  %v712 = vsub.f32 %v53, %v672
  %v713 = vsub.f32 %v54, %v672
  %v714 = vsub.f32 %v55, %v672
  %v715 = vsub.f32 %v56, %v672
  %v716 = vsub.f32 %v57, %v672
  %v717 = vsub.f32 %v58, %v672
  %v718 = vsub.f32 %v59, %v672
  %v719 = vsub.f32 %v60, %v672
  %v720 = vsub.f32 %v61, %v672
  %v721 = vsub.f32 %v62, %v672
  %v722 = vsub.f32 %v63, %v672
  %v723 = vsub.f32 %v64, %v672
  %v724 = vsub.f32 %v65, %v672
  %v725 = vsub.f32 %v66, %v672
  %v726 = vsub.f32 %v67, %v672
  %v727 = vsub.f32 %v68, %v672
  %v728 = vsub.f32 %v69, %v672
  %v729 = vsub.f32 %v70, %v672
  %v730 = vsub.f32 %v71, %v672
  %v731 = vsub.f32 %v72, %v672
  %v732 = vsub.f32 %v73, %v672
  %v733 = vsub.f32 %v74, %v672
  %v734 = vsub.f32 %v75, %v672
  %v735 = vsub.f32 %v76, %v672
  %v736 = vsub.f32 %v77, %v672
  %v737 = vsub.f32 %v78, %v672
  %v738 = vsub.f32 %v79, %v672
  %v739 = vsub.f32 %v80, %v672
  %v740 = vsub.f32 %v81, %v672
  %v741 = vsub.f32 %v82, %v672
  %v742 = vsub.f32 %v83, %v672
  %v743 = vsub.f32 %v84, %v672
  %v744 = vsub.f32 %v85, %v672
  %v745 = vsub.f32 %v86, %v672
  %v746 = vsub.f32 %v87, %v672
  %v747 = vsub.f32 %v88, %v672
  %v748 = vsub.f32 %v89, %v672
  %v749 = vsub.f32 %v90, %v672
  %v750 = vsub.f32 %v91, %v672
  %v751 = vsub.f32 %v92, %v672
  %v752 = vsub.f32 %v93, %v672
  %v753 = vsub.f32 %v94, %v672
  %v754 = vsub.f32 %v95, %v672
  %v755 = vsub.f32 %v96, %v672
  %v756 = vsub.f32 %v97, %v672
  %v757 = vsub.f32 %v98, %v672
  %v758 = vsub.f32 %v99, %v672
  %v759 = vsub.f32 %v100, %v672
  %v760 = vsub.f32 %v101, %v672
  %v761 = vsub.f32 %v102, %v672
  %v762 = vsub.f32 %v103, %v672
  %v763 = vsub.f32 %v104, %v672
  %v764 = vsub.f32 %v105, %v672
  %v765 = vsub.f32 %v106, %v672
  %v766 = vsub.f32 %v107, %v672
  %v767 = vsub.f32 %v108, %v672
  %v768 = vsub.f32 %v109, %v672
  %v769 = vsub.f32 %v110, %v672
  %v770 = vsub.f32 %v111, %v672
  %v771 = vsub.f32 %v112, %v672
  %v772 = vsub.f32 %v113, %v672
  %v773 = vsub.f32 %v114, %v672
  %v774 = vsub.f32 %v115, %v672
  %v775 = vsub.f32 %v116, %v672
  %v776 = vsub.f32 %v117, %v672
  %v777 = vsub.f32 %v118, %v672
  %v778 = vsub.f32 %v119, %v672
  %v779 = vsub.f32 %v120, %v672
  %v780 = vsub.f32 %v121, %v672
  %v781 = vsub.f32 %v122, %v672
  %v782 = vsub.f32 %v123, %v672
  %v783 = vsub.f32 %v124, %v672
  %v784 = vsub.f32 %v125, %v672
  %v785 = vsub.f32 %v126, %v672
  %v786 = vsub.f32 %v127, %v672
  %v787 = vsub.f32 %v128, %v672
  %v788 = vsub.f32 %v129, %v672
  %v789 = vsub.f32 %v130, %v672
  %v790 = vsub.f32 %v131, %v672
  %v791 = vsub.f32 %v132, %v672
  %v792 = vsub.f32 %v133, %v672
  %v793 = vsub.f32 %v134, %v672
  %v794 = vsub.f32 %v135, %v672
  %v795 = vsub.f32 %v136, %v672
  %v796 = vsub.f32 %v137, %v672
  %v797 = vsub.f32 %v138, %v672
  %v798 = vsub.f32 %v139, %v672
  %v799 = vsub.f32 %v140, %v672
  %v800 = vsub.f32 %v141, %v672
  %802 = vrot.lane.b32.xlu0 %v672, 64
  %v803 = vpop.permute.xlu0 %802
  %v805 = vsub.f32 %v14, %v803
  %v806 = vsub.f32 %v15, %v803
  %v807 = vsub.f32 %v16, %v803
  %v808 = vsub.f32 %v17, %v803
  %v809 = vsub.f32 %v18, %v803
  %v810 = vsub.f32 %v19, %v803
  %v811 = vsub.f32 %v20, %v803
  %v812 = vsub.f32 %v21, %v803
  %v813 = vsub.f32 %v22, %v803
  %v814 = vsub.f32 %v23, %v803
  %v815 = vsub.f32 %v24, %v803
  %v816 = vsub.f32 %v25, %v803
  %v817 = vsub.f32 %v26, %v803
  %v818 = vsub.f32 %v27, %v803
  %v819 = vsub.f32 %v28, %v803
  %v820 = vsub.f32 %v29, %v803
  %v821 = vsub.f32 %v30, %v803
  %v822 = vsub.f32 %v31, %v803
  %v823 = vsub.f32 %v32, %v803
  %v824 = vsub.f32 %v33, %v803
  %v825 = vsub.f32 %v34, %v803
  %v826 = vsub.f32 %v35, %v803
  %v827 = vsub.f32 %v36, %v803
  %v828 = vsub.f32 %v37, %v803
  %v829 = vsub.f32 %v38, %v803
  %v830 = vsub.f32 %v39, %v803
  %v831 = vsub.f32 %v40, %v803
  %v832 = vsub.f32 %v41, %v803
  %v833 = vsub.f32 %v42, %v803
  %v834 = vsub.f32 %v43, %v803
  %v835 = vsub.f32 %v44, %v803
  %v836 = vsub.f32 %v45, %v803
  %v837 = vsub.f32 %v46, %v803
  %v838 = vsub.f32 %v47, %v803
  %v839 = vsub.f32 %v48, %v803
  %v840 = vsub.f32 %v49, %v803
  %v841 = vsub.f32 %v50, %v803
  %v842 = vsub.f32 %v51, %v803
  %v843 = vsub.f32 %v52, %v803
  %v844 = vsub.f32 %v53, %v803
  %v845 = vsub.f32 %v54, %v803
  %v846 = vsub.f32 %v55, %v803
  %v847 = vsub.f32 %v56, %v803
  %v848 = vsub.f32 %v57, %v803
  %v849 = vsub.f32 %v58, %v803
  %v850 = vsub.f32 %v59, %v803
  %v851 = vsub.f32 %v60, %v803
  %v852 = vsub.f32 %v61, %v803
  %v853 = vsub.f32 %v62, %v803
  %v854 = vsub.f32 %v63, %v803
  %v855 = vsub.f32 %v64, %v803
  %v856 = vsub.f32 %v65, %v803
  %v857 = vsub.f32 %v66, %v803
  %v858 = vsub.f32 %v67, %v803
  %v859 = vsub.f32 %v68, %v803
  %v860 = vsub.f32 %v69, %v803
  %v861 = vsub.f32 %v70, %v803
  %v862 = vsub.f32 %v71, %v803
  %v863 = vsub.f32 %v72, %v803
  %v864 = vsub.f32 %v73, %v803
  %v865 = vsub.f32 %v74, %v803
  %v866 = vsub.f32 %v75, %v803
  %v867 = vsub.f32 %v76, %v803
  %v868 = vsub.f32 %v77, %v803
  %v869 = vsub.f32 %v78, %v803
  %v870 = vsub.f32 %v79, %v803
  %v871 = vsub.f32 %v80, %v803
  %v872 = vsub.f32 %v81, %v803
  %v873 = vsub.f32 %v82, %v803
  %v874 = vsub.f32 %v83, %v803
  %v875 = vsub.f32 %v84, %v803
  %v876 = vsub.f32 %v85, %v803
  %v877 = vsub.f32 %v86, %v803
  %v878 = vsub.f32 %v87, %v803
  %v879 = vsub.f32 %v88, %v803
  %v880 = vsub.f32 %v89, %v803
  %v881 = vsub.f32 %v90, %v803
  %v882 = vsub.f32 %v91, %v803
  %v883 = vsub.f32 %v92, %v803
  %v884 = vsub.f32 %v93, %v803
  %v885 = vsub.f32 %v94, %v803
  %v886 = vsub.f32 %v95, %v803
  %v887 = vsub.f32 %v96, %v803
  %v888 = vsub.f32 %v97, %v803
  %v889 = vsub.f32 %v98, %v803
  %v890 = vsub.f32 %v99, %v803
  %v891 = vsub.f32 %v100, %v803
  %v892 = vsub.f32 %v101, %v803
  %v893 = vsub.f32 %v102, %v803
  %v894 = vsub.f32 %v103, %v803
  %v895 = vsub.f32 %v104, %v803
  %v896 = vsub.f32 %v105, %v803
  %v897 = vsub.f32 %v106, %v803
  %v898 = vsub.f32 %v107, %v803
  %v899 = vsub.f32 %v108, %v803
  %v900 = vsub.f32 %v109, %v803
  %v901 = vsub.f32 %v110, %v803
  %v902 = vsub.f32 %v111, %v803
  %v903 = vsub.f32 %v112, %v803
  %v904 = vsub.f32 %v113, %v803
  %v905 = vsub.f32 %v114, %v803
  %v906 = vsub.f32 %v115, %v803
  %v907 = vsub.f32 %v116, %v803
  %v908 = vsub.f32 %v117, %v803
  %v909 = vsub.f32 %v118, %v803
  %v910 = vsub.f32 %v119, %v803
  %v911 = vsub.f32 %v120, %v803
  %v912 = vsub.f32 %v121, %v803
  %v913 = vsub.f32 %v122, %v803
  %v914 = vsub.f32 %v123, %v803
  %v915 = vsub.f32 %v124, %v803
  %v916 = vsub.f32 %v125, %v803
  %v917 = vsub.f32 %v126, %v803
  %v918 = vsub.f32 %v127, %v803
  %v919 = vsub.f32 %v128, %v803
  %v920 = vsub.f32 %v129, %v803
  %v921 = vsub.f32 %v130, %v803
  %v922 = vsub.f32 %v131, %v803
  %v923 = vsub.f32 %v132, %v803
  %v924 = vsub.f32 %v133, %v803
  %v925 = vsub.f32 %v134, %v803
  %v926 = vsub.f32 %v135, %v803
  %v927 = vsub.f32 %v136, %v803
  %v928 = vsub.f32 %v137, %v803
  %v929 = vsub.f32 %v138, %v803
  %v930 = vsub.f32 %v139, %v803
  %v931 = vsub.f32 %v140, %v803
  %v932 = vsub.f32 %v141, %v803
  %v933 = vmul.f32 %v673, %v673
  %v934 = vmul.f32 %v674, %v674
  %v935 = vmul.f32 %v675, %v675
  %v936 = vmul.f32 %v676, %v676
  %v937 = vmul.f32 %v677, %v677
  %v938 = vmul.f32 %v678, %v678
  %v939 = vmul.f32 %v679, %v679
  %v940 = vmul.f32 %v680, %v680
  %v941 = vmul.f32 %v681, %v681
  %v942 = vmul.f32 %v682, %v682
  %v943 = vmul.f32 %v683, %v683
  %v944 = vmul.f32 %v684, %v684
  %v945 = vmul.f32 %v685, %v685
  %v946 = vmul.f32 %v686, %v686
  %v947 = vmul.f32 %v687, %v687
  %v948 = vmul.f32 %v688, %v688
  %v949 = vmul.f32 %v689, %v689
  %v950 = vmul.f32 %v690, %v690
  %v951 = vmul.f32 %v691, %v691
  %v952 = vmul.f32 %v692, %v692
  %v953 = vmul.f32 %v693, %v693
  %v954 = vmul.f32 %v694, %v694
  %v955 = vmul.f32 %v695, %v695
  %v956 = vmul.f32 %v696, %v696
  %v957 = vmul.f32 %v697, %v697
  %v958 = vmul.f32 %v698, %v698
  %v959 = vmul.f32 %v699, %v699
  %v960 = vmul.f32 %v700, %v700
  %v961 = vmul.f32 %v701, %v701
  %v962 = vmul.f32 %v702, %v702
  %v963 = vmul.f32 %v703, %v703
  %v964 = vmul.f32 %v704, %v704
  %v965 = vmul.f32 %v705, %v705
  %v966 = vmul.f32 %v706, %v706
  %v967 = vmul.f32 %v707, %v707
  %v968 = vmul.f32 %v708, %v708
  %v969 = vmul.f32 %v709, %v709
  %v970 = vmul.f32 %v710, %v710
  %v971 = vmul.f32 %v711, %v711
  %v972 = vmul.f32 %v712, %v712
  %v973 = vmul.f32 %v713, %v713
  %v974 = vmul.f32 %v714, %v714
  %v975 = vmul.f32 %v715, %v715
  %v976 = vmul.f32 %v716, %v716
  %v977 = vmul.f32 %v717, %v717
  %v978 = vmul.f32 %v718, %v718
  %v979 = vmul.f32 %v719, %v719
  %v980 = vmul.f32 %v720, %v720
  %v981 = vmul.f32 %v721, %v721
  %v982 = vmul.f32 %v722, %v722
  %v983 = vmul.f32 %v723, %v723
  %v984 = vmul.f32 %v724, %v724
  %v985 = vmul.f32 %v725, %v725
  %v986 = vmul.f32 %v726, %v726
  %v987 = vmul.f32 %v727, %v727
  %v988 = vmul.f32 %v728, %v728
  %v989 = vmul.f32 %v729, %v729
  %v990 = vmul.f32 %v730, %v730
  %v991 = vmul.f32 %v731, %v731
  %v992 = vmul.f32 %v732, %v732
  %v993 = vmul.f32 %v733, %v733
  %v994 = vmul.f32 %v734, %v734
  %v995 = vmul.f32 %v735, %v735
  %v996 = vmul.f32 %v736, %v736
  %v997 = vmul.f32 %v737, %v737
  %v998 = vmul.f32 %v738, %v738
  %v999 = vmul.f32 %v739, %v739
  %v1000 = vmul.f32 %v740, %v740
  %v1001 = vmul.f32 %v741, %v741
  %v1002 = vmul.f32 %v742, %v742
  %v1003 = vmul.f32 %v743, %v743
  %v1004 = vmul.f32 %v744, %v744
  %v1005 = vmul.f32 %v745, %v745
  %v1006 = vmul.f32 %v746, %v746
  %v1007 = vmul.f32 %v747, %v747
  %v1008 = vmul.f32 %v748, %v748
  %v1009 = vmul.f32 %v749, %v749
  %v1010 = vmul.f32 %v750, %v750
  %v1011 = vmul.f32 %v751, %v751
  %v1012 = vmul.f32 %v752, %v752
  %v1013 = vmul.f32 %v753, %v753
  %v1014 = vmul.f32 %v754, %v754
  %v1015 = vmul.f32 %v755, %v755
  %v1016 = vmul.f32 %v756, %v756
  %v1017 = vmul.f32 %v757, %v757
  %v1018 = vmul.f32 %v758, %v758
  %v1019 = vmul.f32 %v759, %v759
  %v1020 = vmul.f32 %v760, %v760
  %v1021 = vmul.f32 %v761, %v761
  %v1022 = vmul.f32 %v762, %v762
  %v1023 = vmul.f32 %v763, %v763
  %v1024 = vmul.f32 %v764, %v764
  %v1025 = vmul.f32 %v765, %v765
  %v1026 = vmul.f32 %v766, %v766
  %v1027 = vmul.f32 %v767, %v767
  %v1028 = vmul.f32 %v768, %v768
  %v1029 = vmul.f32 %v769, %v769
  %v1030 = vmul.f32 %v770, %v770
  %v1031 = vmul.f32 %v771, %v771
  %v1032 = vmul.f32 %v772, %v772
  %v1033 = vmul.f32 %v773, %v773
  %v1034 = vmul.f32 %v774, %v774
  %v1035 = vmul.f32 %v775, %v775
  %v1036 = vmul.f32 %v776, %v776
  %v1037 = vmul.f32 %v777, %v777
  %v1038 = vmul.f32 %v778, %v778
  %v1039 = vmul.f32 %v779, %v779
  %v1040 = vmul.f32 %v780, %v780
  %v1041 = vmul.f32 %v781, %v781
  %v1042 = vmul.f32 %v782, %v782
  %v1043 = vmul.f32 %v783, %v783
  %v1044 = vmul.f32 %v784, %v784
  %v1045 = vmul.f32 %v785, %v785
  %v1046 = vmul.f32 %v786, %v786
  %v1047 = vmul.f32 %v787, %v787
  %v1048 = vmul.f32 %v788, %v788
  %v1049 = vmul.f32 %v789, %v789
  %v1050 = vmul.f32 %v790, %v790
  %v1051 = vmul.f32 %v791, %v791
  %v1052 = vmul.f32 %v792, %v792
  %v1053 = vmul.f32 %v793, %v793
  %v1054 = vmul.f32 %v794, %v794
  %v1055 = vmul.f32 %v795, %v795
  %v1056 = vmul.f32 %v796, %v796
  %v1057 = vmul.f32 %v797, %v797
  %v1058 = vmul.f32 %v798, %v798
  %v1059 = vmul.f32 %v799, %v799
  %v1060 = vmul.f32 %v800, %v800
  %v1061 = vsel %vm142, %v933, 0.0
  %v1062 = vsel %vm142, %v934, 0.0
  %v1063 = vadd.f32 %v1061, %v1062
  %v1064 = vsel %vm142, %v935, 0.0
  %v1065 = vadd.f32 %v1063, %v1064
  %v1066 = vsel %vm142, %v936, 0.0
  %v1067 = vadd.f32 %v1065, %v1066
  %v1068 = vsel %vm142, %v937, 0.0
  %v1069 = vadd.f32 %v1067, %v1068
  %v1070 = vsel %vm142, %v938, 0.0
  %v1071 = vadd.f32 %v1069, %v1070
  %v1072 = vsel %vm142, %v939, 0.0
  %v1073 = vadd.f32 %v1071, %v1072
  %v1074 = vsel %vm142, %v940, 0.0
  %v1075 = vadd.f32 %v1073, %v1074
  %v1076 = vsel %vm142, %v941, 0.0
  %v1077 = vadd.f32 %v1075, %v1076
  %v1078 = vsel %vm142, %v942, 0.0
  %v1079 = vadd.f32 %v1077, %v1078
  %v1080 = vsel %vm142, %v943, 0.0
  %v1081 = vadd.f32 %v1079, %v1080
  %v1082 = vsel %vm142, %v944, 0.0
  %v1083 = vadd.f32 %v1081, %v1082
  %v1084 = vsel %vm142, %v945, 0.0
  %v1085 = vadd.f32 %v1083, %v1084
  %v1086 = vsel %vm142, %v946, 0.0
  %v1087 = vadd.f32 %v1085, %v1086
  %v1088 = vsel %vm142, %v947, 0.0
  %v1089 = vadd.f32 %v1087, %v1088
  %v1090 = vsel %vm142, %v948, 0.0
  %v1091 = vadd.f32 %v1089, %v1090
  %v1092 = vsel %vm142, %v949, 0.0
  %v1093 = vadd.f32 %v1091, %v1092
  %v1094 = vsel %vm142, %v950, 0.0
  %v1095 = vadd.f32 %v1093, %v1094
  %v1096 = vsel %vm142, %v951, 0.0
  %v1097 = vadd.f32 %v1095, %v1096
  %v1098 = vsel %vm142, %v952, 0.0
  %v1099 = vadd.f32 %v1097, %v1098
  %v1100 = vsel %vm142, %v953, 0.0
  %v1101 = vadd.f32 %v1099, %v1100
  %v1102 = vsel %vm142, %v954, 0.0
  %v1103 = vadd.f32 %v1101, %v1102
  %v1104 = vsel %vm142, %v955, 0.0
  %v1105 = vadd.f32 %v1103, %v1104
  %v1106 = vsel %vm142, %v956, 0.0
  %v1107 = vadd.f32 %v1105, %v1106
  %v1108 = vsel %vm142, %v957, 0.0
  %v1109 = vadd.f32 %v1107, %v1108
  %v1110 = vsel %vm142, %v958, 0.0
  %v1111 = vadd.f32 %v1109, %v1110
  %v1112 = vsel %vm142, %v959, 0.0
  %v1113 = vadd.f32 %v1111, %v1112
  %v1114 = vsel %vm142, %v960, 0.0
  %v1115 = vadd.f32 %v1113, %v1114
  %v1116 = vsel %vm142, %v961, 0.0
  %v1117 = vadd.f32 %v1115, %v1116
  %v1118 = vsel %vm142, %v962, 0.0
  %v1119 = vadd.f32 %v1117, %v1118
  %v1120 = vsel %vm142, %v963, 0.0
  %v1121 = vadd.f32 %v1119, %v1120
  %v1122 = vsel %vm142, %v964, 0.0
  %v1123 = vadd.f32 %v1121, %v1122
  %v1124 = vsel %vm142, %v965, 0.0
  %v1125 = vadd.f32 %v1123, %v1124
  %v1126 = vsel %vm142, %v966, 0.0
  %v1127 = vadd.f32 %v1125, %v1126
  %v1128 = vsel %vm142, %v967, 0.0
  %v1129 = vadd.f32 %v1127, %v1128
  %v1130 = vsel %vm142, %v968, 0.0
  %v1131 = vadd.f32 %v1129, %v1130
  %v1132 = vsel %vm142, %v969, 0.0
  %v1133 = vadd.f32 %v1131, %v1132
  %v1134 = vsel %vm142, %v970, 0.0
  %v1135 = vadd.f32 %v1133, %v1134
  %v1136 = vsel %vm142, %v971, 0.0
  %v1137 = vadd.f32 %v1135, %v1136
  %v1138 = vsel %vm142, %v972, 0.0
  %v1139 = vadd.f32 %v1137, %v1138
  %v1140 = vsel %vm142, %v973, 0.0
  %v1141 = vadd.f32 %v1139, %v1140
  %v1142 = vsel %vm142, %v974, 0.0
  %v1143 = vadd.f32 %v1141, %v1142
  %v1144 = vsel %vm142, %v975, 0.0
  %v1145 = vadd.f32 %v1143, %v1144
  %v1146 = vsel %vm142, %v976, 0.0
  %v1147 = vadd.f32 %v1145, %v1146
  %v1148 = vsel %vm142, %v977, 0.0
  %v1149 = vadd.f32 %v1147, %v1148
  %v1150 = vsel %vm142, %v978, 0.0
  %v1151 = vadd.f32 %v1149, %v1150
  %v1152 = vsel %vm142, %v979, 0.0
  %v1153 = vadd.f32 %v1151, %v1152
  %v1154 = vsel %vm142, %v980, 0.0
  %v1155 = vadd.f32 %v1153, %v1154
  %v1156 = vsel %vm142, %v981, 0.0
  %v1157 = vadd.f32 %v1155, %v1156
  %v1158 = vsel %vm142, %v982, 0.0
  %v1159 = vadd.f32 %v1157, %v1158
  %v1160 = vsel %vm142, %v983, 0.0
  %v1161 = vadd.f32 %v1159, %v1160
  %v1162 = vsel %vm142, %v984, 0.0
  %v1163 = vadd.f32 %v1161, %v1162
  %v1164 = vsel %vm142, %v985, 0.0
  %v1165 = vadd.f32 %v1163, %v1164
  %v1166 = vsel %vm142, %v986, 0.0
  %v1167 = vadd.f32 %v1165, %v1166
  %v1168 = vsel %vm142, %v987, 0.0
  %v1169 = vadd.f32 %v1167, %v1168
  %v1170 = vsel %vm142, %v988, 0.0
  %v1171 = vadd.f32 %v1169, %v1170
  %v1172 = vsel %vm142, %v989, 0.0
  %v1173 = vadd.f32 %v1171, %v1172
  %v1174 = vsel %vm142, %v990, 0.0
  %v1175 = vadd.f32 %v1173, %v1174
  %v1176 = vsel %vm142, %v991, 0.0
  %v1177 = vadd.f32 %v1175, %v1176
  %v1178 = vsel %vm142, %v992, 0.0
  %v1179 = vadd.f32 %v1177, %v1178
  %v1180 = vsel %vm142, %v993, 0.0
  %v1181 = vadd.f32 %v1179, %v1180
  %v1182 = vsel %vm142, %v994, 0.0
  %v1183 = vadd.f32 %v1181, %v1182
  %v1184 = vsel %vm142, %v995, 0.0
  %v1185 = vadd.f32 %v1183, %v1184
  %v1186 = vsel %vm142, %v996, 0.0
  %v1187 = vadd.f32 %v1185, %v1186
  %v1188 = vsel %vm142, %v997, 0.0
  %v1189 = vadd.f32 %v1187, %v1188
  %v1190 = vsel %vm142, %v998, 0.0
  %v1191 = vadd.f32 %v1189, %v1190
  %v1192 = vsel %vm142, %v999, 0.0
  %v1193 = vadd.f32 %v1191, %v1192
  %v1194 = vsel %vm142, %v1000, 0.0
  %v1195 = vadd.f32 %v1193, %v1194
  %v1196 = vsel %vm142, %v1001, 0.0
  %v1197 = vadd.f32 %v1195, %v1196
  %v1198 = vsel %vm142, %v1002, 0.0
  %v1199 = vadd.f32 %v1197, %v1198
  %v1200 = vsel %vm142, %v1003, 0.0
  %v1201 = vadd.f32 %v1199, %v1200
  %v1202 = vsel %vm142, %v1004, 0.0
  %v1203 = vadd.f32 %v1201, %v1202
  %v1204 = vsel %vm142, %v1005, 0.0
  %v1205 = vadd.f32 %v1203, %v1204
  %v1206 = vsel %vm142, %v1006, 0.0
  %v1207 = vadd.f32 %v1205, %v1206
  %v1208 = vsel %vm142, %v1007, 0.0
  %v1209 = vadd.f32 %v1207, %v1208
  %v1210 = vsel %vm142, %v1008, 0.0
  %v1211 = vadd.f32 %v1209, %v1210
  %v1212 = vsel %vm142, %v1009, 0.0
  %v1213 = vadd.f32 %v1211, %v1212
  %v1214 = vsel %vm142, %v1010, 0.0
  %v1215 = vadd.f32 %v1213, %v1214
  %v1216 = vsel %vm142, %v1011, 0.0
  %v1217 = vadd.f32 %v1215, %v1216
  %v1218 = vsel %vm142, %v1012, 0.0
  %v1219 = vadd.f32 %v1217, %v1218
  %v1220 = vsel %vm142, %v1013, 0.0
  %v1221 = vadd.f32 %v1219, %v1220
  %v1222 = vsel %vm142, %v1014, 0.0
  %v1223 = vadd.f32 %v1221, %v1222
  %v1224 = vsel %vm142, %v1015, 0.0
  %v1225 = vadd.f32 %v1223, %v1224
  %v1226 = vsel %vm142, %v1016, 0.0
  %v1227 = vadd.f32 %v1225, %v1226
  %v1228 = vsel %vm142, %v1017, 0.0
  %v1229 = vadd.f32 %v1227, %v1228
  %v1230 = vsel %vm142, %v1018, 0.0
  %v1231 = vadd.f32 %v1229, %v1230
  %v1232 = vsel %vm142, %v1019, 0.0
  %v1233 = vadd.f32 %v1231, %v1232
  %v1234 = vsel %vm142, %v1020, 0.0
  %v1235 = vadd.f32 %v1233, %v1234
  %v1236 = vsel %vm142, %v1021, 0.0
  %v1237 = vadd.f32 %v1235, %v1236
  %v1238 = vsel %vm142, %v1022, 0.0
  %v1239 = vadd.f32 %v1237, %v1238
  %v1240 = vsel %vm142, %v1023, 0.0
  %v1241 = vadd.f32 %v1239, %v1240
  %v1242 = vsel %vm142, %v1024, 0.0
  %v1243 = vadd.f32 %v1241, %v1242
  %v1244 = vsel %vm142, %v1025, 0.0
  %v1245 = vadd.f32 %v1243, %v1244
  %v1246 = vsel %vm142, %v1026, 0.0
  %v1247 = vadd.f32 %v1245, %v1246
  %v1248 = vsel %vm142, %v1027, 0.0
  %v1249 = vadd.f32 %v1247, %v1248
  %v1250 = vsel %vm142, %v1028, 0.0
  %v1251 = vadd.f32 %v1249, %v1250
  %v1252 = vsel %vm142, %v1029, 0.0
  %v1253 = vadd.f32 %v1251, %v1252
  %v1254 = vsel %vm142, %v1030, 0.0
  %v1255 = vadd.f32 %v1253, %v1254
  %v1256 = vsel %vm142, %v1031, 0.0
  %v1257 = vadd.f32 %v1255, %v1256
  %v1258 = vsel %vm142, %v1032, 0.0
  %v1259 = vadd.f32 %v1257, %v1258
  %v1260 = vsel %vm142, %v1033, 0.0
  %v1261 = vadd.f32 %v1259, %v1260
  %v1262 = vsel %vm142, %v1034, 0.0
  %v1263 = vadd.f32 %v1261, %v1262
  %v1264 = vsel %vm142, %v1035, 0.0
  %v1265 = vadd.f32 %v1263, %v1264
  %v1266 = vsel %vm142, %v1036, 0.0
  %v1267 = vadd.f32 %v1265, %v1266
  %v1268 = vsel %vm142, %v1037, 0.0
  %v1269 = vadd.f32 %v1267, %v1268
  %v1270 = vsel %vm142, %v1038, 0.0
  %v1271 = vadd.f32 %v1269, %v1270
  %v1272 = vsel %vm142, %v1039, 0.0
  %v1273 = vadd.f32 %v1271, %v1272
  %v1274 = vsel %vm142, %v1040, 0.0
  %v1275 = vadd.f32 %v1273, %v1274
  %v1276 = vsel %vm142, %v1041, 0.0
  %v1277 = vadd.f32 %v1275, %v1276
  %v1278 = vsel %vm142, %v1042, 0.0
  %v1279 = vadd.f32 %v1277, %v1278
  %v1280 = vsel %vm142, %v1043, 0.0
  %v1281 = vadd.f32 %v1279, %v1280
  %v1282 = vsel %vm142, %v1044, 0.0
  %v1283 = vadd.f32 %v1281, %v1282
  %v1284 = vsel %vm142, %v1045, 0.0
  %v1285 = vadd.f32 %v1283, %v1284
  %v1286 = vsel %vm142, %v1046, 0.0
  %v1287 = vadd.f32 %v1285, %v1286
  %v1288 = vsel %vm142, %v1047, 0.0
  %v1289 = vadd.f32 %v1287, %v1288
  %v1290 = vsel %vm142, %v1048, 0.0
  %v1291 = vadd.f32 %v1289, %v1290
  %v1292 = vsel %vm142, %v1049, 0.0
  %v1293 = vadd.f32 %v1291, %v1292
  %v1294 = vsel %vm142, %v1050, 0.0
  %v1295 = vadd.f32 %v1293, %v1294
  %v1296 = vsel %vm142, %v1051, 0.0
  %v1297 = vadd.f32 %v1295, %v1296
  %v1298 = vsel %vm142, %v1052, 0.0
  %v1299 = vadd.f32 %v1297, %v1298
  %v1300 = vsel %vm142, %v1053, 0.0
  %v1301 = vadd.f32 %v1299, %v1300
  %v1302 = vsel %vm142, %v1054, 0.0
  %v1303 = vadd.f32 %v1301, %v1302
  %v1304 = vsel %vm142, %v1055, 0.0
  %v1305 = vadd.f32 %v1303, %v1304
  %v1306 = vsel %vm142, %v1056, 0.0
  %v1307 = vadd.f32 %v1305, %v1306
  %v1308 = vsel %vm142, %v1057, 0.0
  %v1309 = vadd.f32 %v1307, %v1308
  %v1310 = vsel %vm142, %v1058, 0.0
  %v1311 = vadd.f32 %v1309, %v1310
  %v1312 = vsel %vm142, %v1059, 0.0
  %v1313 = vadd.f32 %v1311, %v1312
  %v1314 = vsel %vm142, %v1060, 0.0
  %v1315 = vadd.f32 %v1313, %v1314
  %v1316 = vrot.slane %v1315, 4
  %v1317 = vadd.f32 %v1315, %v1316
  %v1318 = vrot.slane %v1317, 2
  %v1319 = vadd.f32 %v1317, %v1318
  %v1320 = vrot.slane %v1319, 1
  %v1321 = vadd.f32 %v1319, %v1320
  %v1322 = vmul.f32 %v805, %v805
  %v1323 = vmul.f32 %v806, %v806
  %v1324 = vmul.f32 %v807, %v807
  %v1325 = vmul.f32 %v808, %v808
  %v1326 = vmul.f32 %v809, %v809
  %v1327 = vmul.f32 %v810, %v810
  %v1328 = vmul.f32 %v811, %v811
  %v1329 = vmul.f32 %v812, %v812
  %v1330 = vmul.f32 %v813, %v813
  %v1331 = vmul.f32 %v814, %v814
  %v1332 = vmul.f32 %v815, %v815
  %v1333 = vmul.f32 %v816, %v816
  %v1334 = vmul.f32 %v817, %v817
  %v1335 = vmul.f32 %v818, %v818
  %v1336 = vmul.f32 %v819, %v819
  %v1337 = vmul.f32 %v820, %v820
  %v1338 = vmul.f32 %v821, %v821
  %v1339 = vmul.f32 %v822, %v822
  %v1340 = vmul.f32 %v823, %v823
  %v1341 = vmul.f32 %v824, %v824
  %v1342 = vmul.f32 %v825, %v825
  %v1343 = vmul.f32 %v826, %v826
  %v1344 = vmul.f32 %v827, %v827
  %v1345 = vmul.f32 %v828, %v828
  %v1346 = vmul.f32 %v829, %v829
  %v1347 = vmul.f32 %v830, %v830
  %v1348 = vmul.f32 %v831, %v831
  %v1349 = vmul.f32 %v832, %v832
  %v1350 = vmul.f32 %v833, %v833
  %v1351 = vmul.f32 %v834, %v834
  %v1352 = vmul.f32 %v835, %v835
  %v1353 = vmul.f32 %v836, %v836
  %v1354 = vmul.f32 %v837, %v837
  %v1355 = vmul.f32 %v838, %v838
  %v1356 = vmul.f32 %v839, %v839
  %v1357 = vmul.f32 %v840, %v840
  %v1358 = vmul.f32 %v841, %v841
  %v1359 = vmul.f32 %v842, %v842
  %v1360 = vmul.f32 %v843, %v843
  %v1361 = vmul.f32 %v844, %v844
  %v1362 = vmul.f32 %v845, %v845
  %v1363 = vmul.f32 %v846, %v846
  %v1364 = vmul.f32 %v847, %v847
  %v1365 = vmul.f32 %v848, %v848
  %v1366 = vmul.f32 %v849, %v849
  %v1367 = vmul.f32 %v850, %v850
  %v1368 = vmul.f32 %v851, %v851
  %v1369 = vmul.f32 %v852, %v852
  %v1370 = vmul.f32 %v853, %v853
  %v1371 = vmul.f32 %v854, %v854
  %v1372 = vmul.f32 %v855, %v855
  %v1373 = vmul.f32 %v856, %v856
  %v1374 = vmul.f32 %v857, %v857
  %v1375 = vmul.f32 %v858, %v858
  %v1376 = vmul.f32 %v859, %v859
  %v1377 = vmul.f32 %v860, %v860
  %v1378 = vmul.f32 %v861, %v861
  %v1379 = vmul.f32 %v862, %v862
  %v1380 = vmul.f32 %v863, %v863
  %v1381 = vmul.f32 %v864, %v864
  %v1382 = vmul.f32 %v865, %v865
  %v1383 = vmul.f32 %v866, %v866
  %v1384 = vmul.f32 %v867, %v867
  %v1385 = vmul.f32 %v868, %v868
  %v1386 = vmul.f32 %v869, %v869
  %v1387 = vmul.f32 %v870, %v870
  %v1388 = vmul.f32 %v871, %v871
  %v1389 = vmul.f32 %v872, %v872
  %v1390 = vmul.f32 %v873, %v873
  %v1391 = vmul.f32 %v874, %v874
  %v1392 = vmul.f32 %v875, %v875
  %v1393 = vmul.f32 %v876, %v876
  %v1394 = vmul.f32 %v877, %v877
  %v1395 = vmul.f32 %v878, %v878
  %v1396 = vmul.f32 %v879, %v879
  %v1397 = vmul.f32 %v880, %v880
  %v1398 = vmul.f32 %v881, %v881
  %v1399 = vmul.f32 %v882, %v882
  %v1400 = vmul.f32 %v883, %v883
  %v1401 = vmul.f32 %v884, %v884
  %v1402 = vmul.f32 %v885, %v885
  %v1403 = vmul.f32 %v886, %v886
  %v1404 = vmul.f32 %v887, %v887
  %v1405 = vmul.f32 %v888, %v888
  %v1406 = vmul.f32 %v889, %v889
  %v1407 = vmul.f32 %v890, %v890
  %v1408 = vmul.f32 %v891, %v891
  %v1409 = vmul.f32 %v892, %v892
  %v1410 = vmul.f32 %v893, %v893
  %v1411 = vmul.f32 %v894, %v894
  %v1412 = vmul.f32 %v895, %v895
  %v1413 = vmul.f32 %v896, %v896
  %v1414 = vmul.f32 %v897, %v897
  %v1415 = vmul.f32 %v898, %v898
  %v1416 = vmul.f32 %v899, %v899
  %v1417 = vmul.f32 %v900, %v900
  %v1418 = vmul.f32 %v901, %v901
  %v1419 = vmul.f32 %v902, %v902
  %v1420 = vmul.f32 %v903, %v903
  %v1421 = vmul.f32 %v904, %v904
  %v1422 = vmul.f32 %v905, %v905
  %v1423 = vmul.f32 %v906, %v906
  %v1424 = vmul.f32 %v907, %v907
  %v1425 = vmul.f32 %v908, %v908
  %v1426 = vmul.f32 %v909, %v909
  %v1427 = vmul.f32 %v910, %v910
  %v1428 = vmul.f32 %v911, %v911
  %v1429 = vmul.f32 %v912, %v912
  %v1430 = vmul.f32 %v913, %v913
  %v1431 = vmul.f32 %v914, %v914
  %v1432 = vmul.f32 %v915, %v915
  %v1433 = vmul.f32 %v916, %v916
  %v1434 = vmul.f32 %v917, %v917
  %v1435 = vmul.f32 %v918, %v918
  %v1436 = vmul.f32 %v919, %v919
  %v1437 = vmul.f32 %v920, %v920
  %v1438 = vmul.f32 %v921, %v921
  %v1439 = vmul.f32 %v922, %v922
  %v1440 = vmul.f32 %v923, %v923
  %v1441 = vmul.f32 %v924, %v924
  %v1442 = vmul.f32 %v925, %v925
  %v1443 = vmul.f32 %v926, %v926
  %v1444 = vmul.f32 %v927, %v927
  %v1445 = vmul.f32 %v928, %v928
  %v1446 = vmul.f32 %v929, %v929
  %v1447 = vmul.f32 %v930, %v930
  %v1448 = vmul.f32 %v931, %v931
  %v1449 = vmul.f32 %v932, %v932
  %v1450 = vsel %vm404, %v1322, 0.0
  %v1451 = vsel %vm404, %v1323, 0.0
  %v1452 = vadd.f32 %v1450, %v1451
  %v1453 = vsel %vm404, %v1324, 0.0
  %v1454 = vadd.f32 %v1452, %v1453
  %v1455 = vsel %vm404, %v1325, 0.0
  %v1456 = vadd.f32 %v1454, %v1455
  %v1457 = vsel %vm404, %v1326, 0.0
  %v1458 = vadd.f32 %v1456, %v1457
  %v1459 = vsel %vm404, %v1327, 0.0
  %v1460 = vadd.f32 %v1458, %v1459
  %v1461 = vsel %vm404, %v1328, 0.0
  %v1462 = vadd.f32 %v1460, %v1461
  %v1463 = vsel %vm404, %v1329, 0.0
  %v1464 = vadd.f32 %v1462, %v1463
  %v1465 = vsel %vm404, %v1330, 0.0
  %v1466 = vadd.f32 %v1464, %v1465
  %v1467 = vsel %vm404, %v1331, 0.0
  %v1468 = vadd.f32 %v1466, %v1467
  %v1469 = vsel %vm404, %v1332, 0.0
  %v1470 = vadd.f32 %v1468, %v1469
  %v1471 = vsel %vm404, %v1333, 0.0
  %v1472 = vadd.f32 %v1470, %v1471
  %v1473 = vsel %vm404, %v1334, 0.0
  %v1474 = vadd.f32 %v1472, %v1473
  %v1475 = vsel %vm404, %v1335, 0.0
  %v1476 = vadd.f32 %v1474, %v1475
  %v1477 = vsel %vm404, %v1336, 0.0
  %v1478 = vadd.f32 %v1476, %v1477
  %v1479 = vsel %vm404, %v1337, 0.0
  %v1480 = vadd.f32 %v1478, %v1479
  %v1481 = vsel %vm404, %v1338, 0.0
  %v1482 = vadd.f32 %v1480, %v1481
  %v1483 = vsel %vm404, %v1339, 0.0
  %v1484 = vadd.f32 %v1482, %v1483
  %v1485 = vsel %vm404, %v1340, 0.0
  %v1486 = vadd.f32 %v1484, %v1485
  %v1487 = vsel %vm404, %v1341, 0.0
  %v1488 = vadd.f32 %v1486, %v1487
  %v1489 = vsel %vm404, %v1342, 0.0
  %v1490 = vadd.f32 %v1488, %v1489
  %v1491 = vsel %vm404, %v1343, 0.0
  %v1492 = vadd.f32 %v1490, %v1491
  %v1493 = vsel %vm404, %v1344, 0.0
  %v1494 = vadd.f32 %v1492, %v1493
  %v1495 = vsel %vm404, %v1345, 0.0
  %v1496 = vadd.f32 %v1494, %v1495
  %v1497 = vsel %vm404, %v1346, 0.0
  %v1498 = vadd.f32 %v1496, %v1497
  %v1499 = vsel %vm404, %v1347, 0.0
  %v1500 = vadd.f32 %v1498, %v1499
  %v1501 = vsel %vm404, %v1348, 0.0
  %v1502 = vadd.f32 %v1500, %v1501
  %v1503 = vsel %vm404, %v1349, 0.0
  %v1504 = vadd.f32 %v1502, %v1503
  %v1505 = vsel %vm404, %v1350, 0.0
  %v1506 = vadd.f32 %v1504, %v1505
  %v1507 = vsel %vm404, %v1351, 0.0
  %v1508 = vadd.f32 %v1506, %v1507
  %v1509 = vsel %vm404, %v1352, 0.0
  %v1510 = vadd.f32 %v1508, %v1509
  %v1511 = vsel %vm404, %v1353, 0.0
  %v1512 = vadd.f32 %v1510, %v1511
  %v1513 = vsel %vm404, %v1354, 0.0
  %v1514 = vadd.f32 %v1512, %v1513
  %v1515 = vsel %vm404, %v1355, 0.0
  %v1516 = vadd.f32 %v1514, %v1515
  %v1517 = vsel %vm404, %v1356, 0.0
  %v1518 = vadd.f32 %v1516, %v1517
  %v1519 = vsel %vm404, %v1357, 0.0
  %v1520 = vadd.f32 %v1518, %v1519
  %v1521 = vsel %vm404, %v1358, 0.0
  %v1522 = vadd.f32 %v1520, %v1521
  %v1523 = vsel %vm404, %v1359, 0.0
  %v1524 = vadd.f32 %v1522, %v1523
  %v1525 = vsel %vm404, %v1360, 0.0
  %v1526 = vadd.f32 %v1524, %v1525
  %v1527 = vsel %vm404, %v1361, 0.0
  %v1528 = vadd.f32 %v1526, %v1527
  %v1529 = vsel %vm404, %v1362, 0.0
  %v1530 = vadd.f32 %v1528, %v1529
  %v1531 = vsel %vm404, %v1363, 0.0
  %v1532 = vadd.f32 %v1530, %v1531
  %v1533 = vsel %vm404, %v1364, 0.0
  %v1534 = vadd.f32 %v1532, %v1533
  %v1535 = vsel %vm404, %v1365, 0.0
  %v1536 = vadd.f32 %v1534, %v1535
  %v1537 = vsel %vm404, %v1366, 0.0
  %v1538 = vadd.f32 %v1536, %v1537
  %v1539 = vsel %vm404, %v1367, 0.0
  %v1540 = vadd.f32 %v1538, %v1539
  %v1541 = vsel %vm404, %v1368, 0.0
  %v1542 = vadd.f32 %v1540, %v1541
  %v1543 = vsel %vm404, %v1369, 0.0
  %v1544 = vadd.f32 %v1542, %v1543
  %v1545 = vsel %vm404, %v1370, 0.0
  %v1546 = vadd.f32 %v1544, %v1545
  %v1547 = vsel %vm404, %v1371, 0.0
  %v1548 = vadd.f32 %v1546, %v1547
  %v1549 = vsel %vm404, %v1372, 0.0
  %v1550 = vadd.f32 %v1548, %v1549
  %v1551 = vsel %vm404, %v1373, 0.0
  %v1552 = vadd.f32 %v1550, %v1551
  %v1553 = vsel %vm404, %v1374, 0.0
  %v1554 = vadd.f32 %v1552, %v1553
  %v1555 = vsel %vm404, %v1375, 0.0
  %v1556 = vadd.f32 %v1554, %v1555
  %v1557 = vsel %vm404, %v1376, 0.0
  %v1558 = vadd.f32 %v1556, %v1557
  %v1559 = vsel %vm404, %v1377, 0.0
  %v1560 = vadd.f32 %v1558, %v1559
  %v1561 = vsel %vm404, %v1378, 0.0
  %v1562 = vadd.f32 %v1560, %v1561
  %v1563 = vsel %vm404, %v1379, 0.0
  %v1564 = vadd.f32 %v1562, %v1563
  %v1565 = vsel %vm404, %v1380, 0.0
  %v1566 = vadd.f32 %v1564, %v1565
  %v1567 = vsel %vm404, %v1381, 0.0
  %v1568 = vadd.f32 %v1566, %v1567
  %v1569 = vsel %vm404, %v1382, 0.0
  %v1570 = vadd.f32 %v1568, %v1569
  %v1571 = vsel %vm404, %v1383, 0.0
  %v1572 = vadd.f32 %v1570, %v1571
  %v1573 = vsel %vm404, %v1384, 0.0
  %v1574 = vadd.f32 %v1572, %v1573
  %v1575 = vsel %vm404, %v1385, 0.0
  %v1576 = vadd.f32 %v1574, %v1575
  %v1577 = vsel %vm404, %v1386, 0.0
  %v1578 = vadd.f32 %v1576, %v1577
  %v1579 = vsel %vm404, %v1387, 0.0
  %v1580 = vadd.f32 %v1578, %v1579
  %v1581 = vsel %vm404, %v1388, 0.0
  %v1582 = vadd.f32 %v1580, %v1581
  %v1583 = vsel %vm404, %v1389, 0.0
  %v1584 = vadd.f32 %v1582, %v1583
  %v1585 = vsel %vm404, %v1390, 0.0
  %v1586 = vadd.f32 %v1584, %v1585
  %v1587 = vsel %vm404, %v1391, 0.0
  %v1588 = vadd.f32 %v1586, %v1587
  %v1589 = vsel %vm404, %v1392, 0.0
  %v1590 = vadd.f32 %v1588, %v1589
  %v1591 = vsel %vm404, %v1393, 0.0
  %v1592 = vadd.f32 %v1590, %v1591
  %v1593 = vsel %vm404, %v1394, 0.0
  %v1594 = vadd.f32 %v1592, %v1593
  %v1595 = vsel %vm404, %v1395, 0.0
  %v1596 = vadd.f32 %v1594, %v1595
  %v1597 = vsel %vm404, %v1396, 0.0
  %v1598 = vadd.f32 %v1596, %v1597
  %v1599 = vsel %vm404, %v1397, 0.0
  %v1600 = vadd.f32 %v1598, %v1599
  %v1601 = vsel %vm404, %v1398, 0.0
  %v1602 = vadd.f32 %v1600, %v1601
  %v1603 = vsel %vm404, %v1399, 0.0
  %v1604 = vadd.f32 %v1602, %v1603
  %v1605 = vsel %vm404, %v1400, 0.0
  %v1606 = vadd.f32 %v1604, %v1605
  %v1607 = vsel %vm404, %v1401, 0.0
  %v1608 = vadd.f32 %v1606, %v1607
  %v1609 = vsel %vm404, %v1402, 0.0
  %v1610 = vadd.f32 %v1608, %v1609
  %v1611 = vsel %vm404, %v1403, 0.0
  %v1612 = vadd.f32 %v1610, %v1611
  %v1613 = vsel %vm404, %v1404, 0.0
  %v1614 = vadd.f32 %v1612, %v1613
  %v1615 = vsel %vm404, %v1405, 0.0
  %v1616 = vadd.f32 %v1614, %v1615
  %v1617 = vsel %vm404, %v1406, 0.0
  %v1618 = vadd.f32 %v1616, %v1617
  %v1619 = vsel %vm404, %v1407, 0.0
  %v1620 = vadd.f32 %v1618, %v1619
  %v1621 = vsel %vm404, %v1408, 0.0
  %v1622 = vadd.f32 %v1620, %v1621
  %v1623 = vsel %vm404, %v1409, 0.0
  %v1624 = vadd.f32 %v1622, %v1623
  %v1625 = vsel %vm404, %v1410, 0.0
  %v1626 = vadd.f32 %v1624, %v1625
  %v1627 = vsel %vm404, %v1411, 0.0
  %v1628 = vadd.f32 %v1626, %v1627
  %v1629 = vsel %vm404, %v1412, 0.0
  %v1630 = vadd.f32 %v1628, %v1629
  %v1631 = vsel %vm404, %v1413, 0.0
  %v1632 = vadd.f32 %v1630, %v1631
  %v1633 = vsel %vm404, %v1414, 0.0
  %v1634 = vadd.f32 %v1632, %v1633
  %v1635 = vsel %vm404, %v1415, 0.0
  %v1636 = vadd.f32 %v1634, %v1635
  %v1637 = vsel %vm404, %v1416, 0.0
  %v1638 = vadd.f32 %v1636, %v1637
  %v1639 = vsel %vm404, %v1417, 0.0
  %v1640 = vadd.f32 %v1638, %v1639
  %v1641 = vsel %vm404, %v1418, 0.0
  %v1642 = vadd.f32 %v1640, %v1641
  %v1643 = vsel %vm404, %v1419, 0.0
  %v1644 = vadd.f32 %v1642, %v1643
  %v1645 = vsel %vm404, %v1420, 0.0
  %v1646 = vadd.f32 %v1644, %v1645
  %v1647 = vsel %vm404, %v1421, 0.0
  %v1648 = vadd.f32 %v1646, %v1647
  %v1649 = vsel %vm404, %v1422, 0.0
  %v1650 = vadd.f32 %v1648, %v1649
  %v1651 = vsel %vm404, %v1423, 0.0
  %v1652 = vadd.f32 %v1650, %v1651
  %v1653 = vsel %vm404, %v1424, 0.0
  %v1654 = vadd.f32 %v1652, %v1653
  %v1655 = vsel %vm404, %v1425, 0.0
  %v1656 = vadd.f32 %v1654, %v1655
  %v1657 = vsel %vm404, %v1426, 0.0
  %v1658 = vadd.f32 %v1656, %v1657
  %v1659 = vsel %vm404, %v1427, 0.0
  %v1660 = vadd.f32 %v1658, %v1659
  %v1661 = vsel %vm404, %v1428, 0.0
  %v1662 = vadd.f32 %v1660, %v1661
  %v1663 = vsel %vm404, %v1429, 0.0
  %v1664 = vadd.f32 %v1662, %v1663
  %v1665 = vsel %vm404, %v1430, 0.0
  %v1666 = vadd.f32 %v1664, %v1665
  %v1667 = vsel %vm404, %v1431, 0.0
  %v1668 = vadd.f32 %v1666, %v1667
  %v1669 = vsel %vm404, %v1432, 0.0
  %v1670 = vadd.f32 %v1668, %v1669
  %v1671 = vsel %vm404, %v1433, 0.0
  %v1672 = vadd.f32 %v1670, %v1671
  %v1673 = vsel %vm404, %v1434, 0.0
  %v1674 = vadd.f32 %v1672, %v1673
  %v1675 = vsel %vm404, %v1435, 0.0
  %v1676 = vadd.f32 %v1674, %v1675
  %v1677 = vsel %vm404, %v1436, 0.0
  %v1678 = vadd.f32 %v1676, %v1677
  %v1679 = vsel %vm404, %v1437, 0.0
  %v1680 = vadd.f32 %v1678, %v1679
  %v1681 = vsel %vm404, %v1438, 0.0
  %v1682 = vadd.f32 %v1680, %v1681
  %v1683 = vsel %vm404, %v1439, 0.0
  %v1684 = vadd.f32 %v1682, %v1683
  %v1685 = vsel %vm404, %v1440, 0.0
  %v1686 = vadd.f32 %v1684, %v1685
  %v1687 = vsel %vm404, %v1441, 0.0
  %v1688 = vadd.f32 %v1686, %v1687
  %v1689 = vsel %vm404, %v1442, 0.0
  %v1690 = vadd.f32 %v1688, %v1689
  %v1691 = vsel %vm404, %v1443, 0.0
  %v1692 = vadd.f32 %v1690, %v1691
  %v1693 = vsel %vm404, %v1444, 0.0
  %v1694 = vadd.f32 %v1692, %v1693
  %v1695 = vsel %vm404, %v1445, 0.0
  %v1696 = vadd.f32 %v1694, %v1695
  %v1697 = vsel %vm404, %v1446, 0.0
  %v1698 = vadd.f32 %v1696, %v1697
  %v1699 = vsel %vm404, %v1447, 0.0
  %v1700 = vadd.f32 %v1698, %v1699
  %v1701 = vsel %vm404, %v1448, 0.0
  %v1702 = vadd.f32 %v1700, %v1701
  %v1703 = vsel %vm404, %v1449, 0.0
  %v1704 = vadd.f32 %v1702, %v1703
  %v1705 = vrot.slane %v1704, 4
  %v1706 = vadd.f32 %v1704, %v1705
  %v1707 = vrot.slane %v1706, 2
  %v1708 = vadd.f32 %v1706, %v1707
  %v1709 = vrot.slane %v1708, 1
  %v1710 = vadd.f32 %v1708, %v1709
  %1712 = vrot.lane.b32.xlu0 %v1710, 64
  %v1713 = vpop.permute.xlu0 %1712
  %v1715 = vadd.f32 %v1321, %v1713
  %v1716 = vmul.f32 %v1715, 0.00048828125
  %v1717 = vld [vmem:[%s1] sm:$0x1]
  %v1718 = vadd.f32 %v1716, 1e-05
  %v1719 = vrsqrt.pop %v1718
  %v1720 = vmul.f32 %v1719, %v1718
  %v1721 = vmul.f32 %v1720, %v1719
  %v1722 = vmul.f32 0.5, %v1721
  %v1723 = vsub.f32 1.5, %v1722
  %v1724 = vmul.f32 %v1719, %v1723
  %vm1725 = vweird.f32 %v1718
  %vm1726 = vweird.f32 %v1719
  %vm1727 = vmor %vm1725, %vm1726
  %v1728 = vsel %vm1727, %v1719, %v1724
  %v1729 = vmul.f32 %v1717, %v1728
  %v1730 = vld [vmem:[%s2] sm:$0x1]
  %v1731 = vmul.f32 %v671, %v1729
  %v1732 = vsub.f32 %v1730, %v1731
  %v1734 = vperm.slane %v1729, 0
  %v1736 = vmul.f32 %v14, %v1734
  %v1737 = vmul.f32 %v15, %v1734
  %v1738 = vmul.f32 %v16, %v1734
  %v1739 = vmul.f32 %v17, %v1734
  %v1740 = vmul.f32 %v18, %v1734
  %v1741 = vmul.f32 %v19, %v1734
  %v1742 = vmul.f32 %v20, %v1734
  %v1743 = vmul.f32 %v21, %v1734
  %v1744 = vmul.f32 %v22, %v1734
  %v1745 = vmul.f32 %v23, %v1734
  %v1746 = vmul.f32 %v24, %v1734
  %v1747 = vmul.f32 %v25, %v1734
  %v1748 = vmul.f32 %v26, %v1734
  %v1749 = vmul.f32 %v27, %v1734
  %v1750 = vmul.f32 %v28, %v1734
  %v1751 = vmul.f32 %v29, %v1734
  %v1752 = vmul.f32 %v30, %v1734
  %v1753 = vmul.f32 %v31, %v1734
  %v1754 = vmul.f32 %v32, %v1734
  %v1755 = vmul.f32 %v33, %v1734
  %v1756 = vmul.f32 %v34, %v1734
  %v1757 = vmul.f32 %v35, %v1734
  %v1758 = vmul.f32 %v36, %v1734
  %v1759 = vmul.f32 %v37, %v1734
  %v1760 = vmul.f32 %v38, %v1734
  %v1761 = vmul.f32 %v39, %v1734
  %v1762 = vmul.f32 %v40, %v1734
  %v1763 = vmul.f32 %v41, %v1734
  %v1764 = vmul.f32 %v42, %v1734
  %v1765 = vmul.f32 %v43, %v1734
  %v1766 = vmul.f32 %v44, %v1734
  %v1767 = vmul.f32 %v45, %v1734
  %v1768 = vmul.f32 %v46, %v1734
  %v1769 = vmul.f32 %v47, %v1734
  %v1770 = vmul.f32 %v48, %v1734
  %v1771 = vmul.f32 %v49, %v1734
  %v1772 = vmul.f32 %v50, %v1734
  %v1773 = vmul.f32 %v51, %v1734
  %v1774 = vmul.f32 %v52, %v1734
  %v1775 = vmul.f32 %v53, %v1734
  %v1776 = vmul.f32 %v54, %v1734
  %v1777 = vmul.f32 %v55, %v1734
  %v1778 = vmul.f32 %v56, %v1734
  %v1779 = vmul.f32 %v57, %v1734
  %v1780 = vmul.f32 %v58, %v1734
  %v1781 = vmul.f32 %v59, %v1734
  %v1782 = vmul.f32 %v60, %v1734
  %v1783 = vmul.f32 %v61, %v1734
  %v1784 = vmul.f32 %v62, %v1734
  %v1785 = vmul.f32 %v63, %v1734
  %v1786 = vmul.f32 %v64, %v1734
  %v1787 = vmul.f32 %v65, %v1734
  %v1788 = vmul.f32 %v66, %v1734
  %v1789 = vmul.f32 %v67, %v1734
  %v1790 = vmul.f32 %v68, %v1734
  %v1791 = vmul.f32 %v69, %v1734
  %v1792 = vmul.f32 %v70, %v1734
  %v1793 = vmul.f32 %v71, %v1734
  %v1794 = vmul.f32 %v72, %v1734
  %v1795 = vmul.f32 %v73, %v1734
  %v1796 = vmul.f32 %v74, %v1734
  %v1797 = vmul.f32 %v75, %v1734
  %v1798 = vmul.f32 %v76, %v1734
  %v1799 = vmul.f32 %v77, %v1734
  %v1800 = vmul.f32 %v78, %v1734
  %v1801 = vmul.f32 %v79, %v1734
  %v1802 = vmul.f32 %v80, %v1734
  %v1803 = vmul.f32 %v81, %v1734
  %v1804 = vmul.f32 %v82, %v1734
  %v1805 = vmul.f32 %v83, %v1734
  %v1806 = vmul.f32 %v84, %v1734
  %v1807 = vmul.f32 %v85, %v1734
  %v1808 = vmul.f32 %v86, %v1734
  %v1809 = vmul.f32 %v87, %v1734
  %v1810 = vmul.f32 %v88, %v1734
  %v1811 = vmul.f32 %v89, %v1734
  %v1812 = vmul.f32 %v90, %v1734
  %v1813 = vmul.f32 %v91, %v1734
  %v1814 = vmul.f32 %v92, %v1734
  %v1815 = vmul.f32 %v93, %v1734
  %v1816 = vmul.f32 %v94, %v1734
  %v1817 = vmul.f32 %v95, %v1734
  %v1818 = vmul.f32 %v96, %v1734
  %v1819 = vmul.f32 %v97, %v1734
  %v1820 = vmul.f32 %v98, %v1734
  %v1821 = vmul.f32 %v99, %v1734
  %v1822 = vmul.f32 %v100, %v1734
  %v1823 = vmul.f32 %v101, %v1734
  %v1824 = vmul.f32 %v102, %v1734
  %v1825 = vmul.f32 %v103, %v1734
  %v1826 = vmul.f32 %v104, %v1734
  %v1827 = vmul.f32 %v105, %v1734
  %v1828 = vmul.f32 %v106, %v1734
  %v1829 = vmul.f32 %v107, %v1734
  %v1830 = vmul.f32 %v108, %v1734
  %v1831 = vmul.f32 %v109, %v1734
  %v1832 = vmul.f32 %v110, %v1734
  %v1833 = vmul.f32 %v111, %v1734
  %v1834 = vmul.f32 %v112, %v1734
  %v1835 = vmul.f32 %v113, %v1734
  %v1836 = vmul.f32 %v114, %v1734
  %v1837 = vmul.f32 %v115, %v1734
  %v1838 = vmul.f32 %v116, %v1734
  %v1839 = vmul.f32 %v117, %v1734
  %v1840 = vmul.f32 %v118, %v1734
  %v1841 = vmul.f32 %v119, %v1734
  %v1842 = vmul.f32 %v120, %v1734
  %v1843 = vmul.f32 %v121, %v1734
  %v1844 = vmul.f32 %v122, %v1734
  %v1845 = vmul.f32 %v123, %v1734
  %v1846 = vmul.f32 %v124, %v1734
  %v1847 = vmul.f32 %v125, %v1734
  %v1848 = vmul.f32 %v126, %v1734
  %v1849 = vmul.f32 %v127, %v1734
  %v1850 = vmul.f32 %v128, %v1734
  %v1851 = vmul.f32 %v129, %v1734
  %v1852 = vmul.f32 %v130, %v1734
  %v1853 = vmul.f32 %v131, %v1734
  %v1854 = vmul.f32 %v132, %v1734
  %v1855 = vmul.f32 %v133, %v1734
  %v1856 = vmul.f32 %v134, %v1734
  %v1857 = vmul.f32 %v135, %v1734
  %v1858 = vmul.f32 %v136, %v1734
  %v1859 = vmul.f32 %v137, %v1734
  %v1860 = vmul.f32 %v138, %v1734
  %v1861 = vmul.f32 %v139, %v1734
  %v1862 = vmul.f32 %v140, %v1734
  %v1863 = vmul.f32 %v141, %v1734
  %v1865 = vperm.slane %v1732, 0
  %v1867 = vadd.f32 %v1736, %v1865
  %v1868 = vadd.f32 %v1737, %v1865
  %v1869 = vadd.f32 %v1738, %v1865
  %v1870 = vadd.f32 %v1739, %v1865
  %v1871 = vadd.f32 %v1740, %v1865
  %v1872 = vadd.f32 %v1741, %v1865
  %v1873 = vadd.f32 %v1742, %v1865
  %v1874 = vadd.f32 %v1743, %v1865
  %v1875 = vadd.f32 %v1744, %v1865
  %v1876 = vadd.f32 %v1745, %v1865
  %v1877 = vadd.f32 %v1746, %v1865
  %v1878 = vadd.f32 %v1747, %v1865
  %v1879 = vadd.f32 %v1748, %v1865
  %v1880 = vadd.f32 %v1749, %v1865
  %v1881 = vadd.f32 %v1750, %v1865
  %v1882 = vadd.f32 %v1751, %v1865
  %v1883 = vadd.f32 %v1752, %v1865
  %v1884 = vadd.f32 %v1753, %v1865
  %v1885 = vadd.f32 %v1754, %v1865
  %v1886 = vadd.f32 %v1755, %v1865
  %v1887 = vadd.f32 %v1756, %v1865
  %v1888 = vadd.f32 %v1757, %v1865
  %v1889 = vadd.f32 %v1758, %v1865
  %v1890 = vadd.f32 %v1759, %v1865
  %v1891 = vadd.f32 %v1760, %v1865
  %v1892 = vadd.f32 %v1761, %v1865
  %v1893 = vadd.f32 %v1762, %v1865
  %v1894 = vadd.f32 %v1763, %v1865
  %v1895 = vadd.f32 %v1764, %v1865
  %v1896 = vadd.f32 %v1765, %v1865
  %v1897 = vadd.f32 %v1766, %v1865
  %v1898 = vadd.f32 %v1767, %v1865
  %v1899 = vadd.f32 %v1768, %v1865
  %v1900 = vadd.f32 %v1769, %v1865
  %v1901 = vadd.f32 %v1770, %v1865
  %v1902 = vadd.f32 %v1771, %v1865
  %v1903 = vadd.f32 %v1772, %v1865
  %v1904 = vadd.f32 %v1773, %v1865
  %v1905 = vadd.f32 %v1774, %v1865
  %v1906 = vadd.f32 %v1775, %v1865
  %v1907 = vadd.f32 %v1776, %v1865
  %v1908 = vadd.f32 %v1777, %v1865
  %v1909 = vadd.f32 %v1778, %v1865
  %v1910 = vadd.f32 %v1779, %v1865
  %v1911 = vadd.f32 %v1780, %v1865
  %v1912 = vadd.f32 %v1781, %v1865
  %v1913 = vadd.f32 %v1782, %v1865
  %v1914 = vadd.f32 %v1783, %v1865
  %v1915 = vadd.f32 %v1784, %v1865
  %v1916 = vadd.f32 %v1785, %v1865
  %v1917 = vadd.f32 %v1786, %v1865
  %v1918 = vadd.f32 %v1787, %v1865
  %v1919 = vadd.f32 %v1788, %v1865
  %v1920 = vadd.f32 %v1789, %v1865
  %v1921 = vadd.f32 %v1790, %v1865
  %v1922 = vadd.f32 %v1791, %v1865
  %v1923 = vadd.f32 %v1792, %v1865
  %v1924 = vadd.f32 %v1793, %v1865
  %v1925 = vadd.f32 %v1794, %v1865
  %v1926 = vadd.f32 %v1795, %v1865
  %v1927 = vadd.f32 %v1796, %v1865
  %v1928 = vadd.f32 %v1797, %v1865
  %v1929 = vadd.f32 %v1798, %v1865
  %v1930 = vadd.f32 %v1799, %v1865
  %v1931 = vadd.f32 %v1800, %v1865
  %v1932 = vadd.f32 %v1801, %v1865
  %v1933 = vadd.f32 %v1802, %v1865
  %v1934 = vadd.f32 %v1803, %v1865
  %v1935 = vadd.f32 %v1804, %v1865
  %v1936 = vadd.f32 %v1805, %v1865
  %v1937 = vadd.f32 %v1806, %v1865
  %v1938 = vadd.f32 %v1807, %v1865
  %v1939 = vadd.f32 %v1808, %v1865
  %v1940 = vadd.f32 %v1809, %v1865
  %v1941 = vadd.f32 %v1810, %v1865
  %v1942 = vadd.f32 %v1811, %v1865
  %v1943 = vadd.f32 %v1812, %v1865
  %v1944 = vadd.f32 %v1813, %v1865
  %v1945 = vadd.f32 %v1814, %v1865
  %v1946 = vadd.f32 %v1815, %v1865
  %v1947 = vadd.f32 %v1816, %v1865
  %v1948 = vadd.f32 %v1817, %v1865
  %v1949 = vadd.f32 %v1818, %v1865
  %v1950 = vadd.f32 %v1819, %v1865
  %v1951 = vadd.f32 %v1820, %v1865
  %v1952 = vadd.f32 %v1821, %v1865
  %v1953 = vadd.f32 %v1822, %v1865
  %v1954 = vadd.f32 %v1823, %v1865
  %v1955 = vadd.f32 %v1824, %v1865
  %v1956 = vadd.f32 %v1825, %v1865
  %v1957 = vadd.f32 %v1826, %v1865
  %v1958 = vadd.f32 %v1827, %v1865
  %v1959 = vadd.f32 %v1828, %v1865
  %v1960 = vadd.f32 %v1829, %v1865
  %v1961 = vadd.f32 %v1830, %v1865
  %v1962 = vadd.f32 %v1831, %v1865
  %v1963 = vadd.f32 %v1832, %v1865
  %v1964 = vadd.f32 %v1833, %v1865
  %v1965 = vadd.f32 %v1834, %v1865
  %v1966 = vadd.f32 %v1835, %v1865
  %v1967 = vadd.f32 %v1836, %v1865
  %v1968 = vadd.f32 %v1837, %v1865
  %v1969 = vadd.f32 %v1838, %v1865
  %v1970 = vadd.f32 %v1839, %v1865
  %v1971 = vadd.f32 %v1840, %v1865
  %v1972 = vadd.f32 %v1841, %v1865
  %v1973 = vadd.f32 %v1842, %v1865
  %v1974 = vadd.f32 %v1843, %v1865
  %v1975 = vadd.f32 %v1844, %v1865
  %v1976 = vadd.f32 %v1845, %v1865
  %v1977 = vadd.f32 %v1846, %v1865
  %v1978 = vadd.f32 %v1847, %v1865
  %v1979 = vadd.f32 %v1848, %v1865
  %v1980 = vadd.f32 %v1849, %v1865
  %v1981 = vadd.f32 %v1850, %v1865
  %v1982 = vadd.f32 %v1851, %v1865
  %v1983 = vadd.f32 %v1852, %v1865
  %v1984 = vadd.f32 %v1853, %v1865
  %v1985 = vadd.f32 %v1854, %v1865
  %v1986 = vadd.f32 %v1855, %v1865
  %v1987 = vadd.f32 %v1856, %v1865
  %v1988 = vadd.f32 %v1857, %v1865
  %v1989 = vadd.f32 %v1858, %v1865
  %v1990 = vadd.f32 %v1859, %v1865
  %v1991 = vadd.f32 %v1860, %v1865
  %v1992 = vadd.f32 %v1861, %v1865
  %v1993 = vadd.f32 %v1862, %v1865
  %v1994 = vadd.f32 %v1863, %v1865
  %v1995 = vmax.f32 %v1867, 0.0
  %v1996 = vmax.f32 %v1868, 0.0
  %v1997 = vmax.f32 %v1869, 0.0
  %v1998 = vmax.f32 %v1870, 0.0
  %v1999 = vmax.f32 %v1871, 0.0
  %v2000 = vmax.f32 %v1872, 0.0
  %v2001 = vmax.f32 %v1873, 0.0
  %v2002 = vmax.f32 %v1874, 0.0
  %v2003 = vmax.f32 %v1875, 0.0
  %v2004 = vmax.f32 %v1876, 0.0
  %v2005 = vmax.f32 %v1877, 0.0
  %v2006 = vmax.f32 %v1878, 0.0
  %v2007 = vmax.f32 %v1879, 0.0
  %v2008 = vmax.f32 %v1880, 0.0
  %v2009 = vmax.f32 %v1881, 0.0
  %v2010 = vmax.f32 %v1882, 0.0
  %v2011 = vmax.f32 %v1883, 0.0
  %v2012 = vmax.f32 %v1884, 0.0
  %v2013 = vmax.f32 %v1885, 0.0
  %v2014 = vmax.f32 %v1886, 0.0
  %v2015 = vmax.f32 %v1887, 0.0
  %v2016 = vmax.f32 %v1888, 0.0
  %v2017 = vmax.f32 %v1889, 0.0
  %v2018 = vmax.f32 %v1890, 0.0
  %v2019 = vmax.f32 %v1891, 0.0
  %v2020 = vmax.f32 %v1892, 0.0
  %v2021 = vmax.f32 %v1893, 0.0
  %v2022 = vmax.f32 %v1894, 0.0
  %v2023 = vmax.f32 %v1895, 0.0
  %v2024 = vmax.f32 %v1896, 0.0
  %v2025 = vmax.f32 %v1897, 0.0
  %v2026 = vmax.f32 %v1898, 0.0
  %v2027 = vmax.f32 %v1899, 0.0
  %v2028 = vmax.f32 %v1900, 0.0
  %v2029 = vmax.f32 %v1901, 0.0
  %v2030 = vmax.f32 %v1902, 0.0
  %v2031 = vmax.f32 %v1903, 0.0
  %v2032 = vmax.f32 %v1904, 0.0
  %v2033 = vmax.f32 %v1905, 0.0
  %v2034 = vmax.f32 %v1906, 0.0
  %v2035 = vmax.f32 %v1907, 0.0
  %v2036 = vmax.f32 %v1908, 0.0
  %v2037 = vmax.f32 %v1909, 0.0
  %v2038 = vmax.f32 %v1910, 0.0
  %v2039 = vmax.f32 %v1911, 0.0
  %v2040 = vmax.f32 %v1912, 0.0
  %v2041 = vmax.f32 %v1913, 0.0
  %v2042 = vmax.f32 %v1914, 0.0
  %v2043 = vmax.f32 %v1915, 0.0
  %v2044 = vmax.f32 %v1916, 0.0
  %v2045 = vmax.f32 %v1917, 0.0
  %v2046 = vmax.f32 %v1918, 0.0
  %v2047 = vmax.f32 %v1919, 0.0
  %v2048 = vmax.f32 %v1920, 0.0
  %v2049 = vmax.f32 %v1921, 0.0
  %v2050 = vmax.f32 %v1922, 0.0
  %v2051 = vmax.f32 %v1923, 0.0
  %v2052 = vmax.f32 %v1924, 0.0
  %v2053 = vmax.f32 %v1925, 0.0
  %v2054 = vmax.f32 %v1926, 0.0
  %v2055 = vmax.f32 %v1927, 0.0
  %v2056 = vmax.f32 %v1928, 0.0
  %v2057 = vmax.f32 %v1929, 0.0
  %v2058 = vmax.f32 %v1930, 0.0
  %v2059 = vmax.f32 %v1931, 0.0
  %v2060 = vmax.f32 %v1932, 0.0
  %v2061 = vmax.f32 %v1933, 0.0
  %v2062 = vmax.f32 %v1934, 0.0
  %v2063 = vmax.f32 %v1935, 0.0
  %v2064 = vmax.f32 %v1936, 0.0
  %v2065 = vmax.f32 %v1937, 0.0
  %v2066 = vmax.f32 %v1938, 0.0
  %v2067 = vmax.f32 %v1939, 0.0
  %v2068 = vmax.f32 %v1940, 0.0
  %v2069 = vmax.f32 %v1941, 0.0
  %v2070 = vmax.f32 %v1942, 0.0
  %v2071 = vmax.f32 %v1943, 0.0
  %v2072 = vmax.f32 %v1944, 0.0
  %v2073 = vmax.f32 %v1945, 0.0
  %v2074 = vmax.f32 %v1946, 0.0
  %v2075 = vmax.f32 %v1947, 0.0
  %v2076 = vmax.f32 %v1948, 0.0
  %v2077 = vmax.f32 %v1949, 0.0
  %v2078 = vmax.f32 %v1950, 0.0
  %v2079 = vmax.f32 %v1951, 0.0
  %v2080 = vmax.f32 %v1952, 0.0
  %v2081 = vmax.f32 %v1953, 0.0
  %v2082 = vmax.f32 %v1954, 0.0
  %v2083 = vmax.f32 %v1955, 0.0
  %v2084 = vmax.f32 %v1956, 0.0
  %v2085 = vmax.f32 %v1957, 0.0
  %v2086 = vmax.f32 %v1958, 0.0
  %v2087 = vmax.f32 %v1959, 0.0
  %v2088 = vmax.f32 %v1960, 0.0
  %v2089 = vmax.f32 %v1961, 0.0
  %v2090 = vmax.f32 %v1962, 0.0
  %v2091 = vmax.f32 %v1963, 0.0
  %v2092 = vmax.f32 %v1964, 0.0
  %v2093 = vmax.f32 %v1965, 0.0
  %v2094 = vmax.f32 %v1966, 0.0
  %v2095 = vmax.f32 %v1967, 0.0
  %v2096 = vmax.f32 %v1968, 0.0
  %v2097 = vmax.f32 %v1969, 0.0
  %v2098 = vmax.f32 %v1970, 0.0
  %v2099 = vmax.f32 %v1971, 0.0
  %v2100 = vmax.f32 %v1972, 0.0
  %v2101 = vmax.f32 %v1973, 0.0
  %v2102 = vmax.f32 %v1974, 0.0
  %v2103 = vmax.f32 %v1975, 0.0
  %v2104 = vmax.f32 %v1976, 0.0
  %v2105 = vmax.f32 %v1977, 0.0
  %v2106 = vmax.f32 %v1978, 0.0
  %v2107 = vmax.f32 %v1979, 0.0
  %v2108 = vmax.f32 %v1980, 0.0
  %v2109 = vmax.f32 %v1981, 0.0
  %v2110 = vmax.f32 %v1982, 0.0
  %v2111 = vmax.f32 %v1983, 0.0
  %v2112 = vmax.f32 %v1984, 0.0
  %v2113 = vmax.f32 %v1985, 0.0
  %v2114 = vmax.f32 %v1986, 0.0
  %v2115 = vmax.f32 %v1987, 0.0
  %v2116 = vmax.f32 %v1988, 0.0
  %v2117 = vmax.f32 %v1989, 0.0
  %v2118 = vmax.f32 %v1990, 0.0
  %v2119 = vmax.f32 %v1991, 0.0
  %v2120 = vmax.f32 %v1992, 0.0
  %v2121 = vmax.f32 %v1993, 0.0
  %v2122 = vmax.f32 %v1994, 0.0
  %2123 = vrot.lane.b32.xlu0 %v1734, 64
  %v2124 = vpop.permute.xlu0 %2123
  %v2126 = vmul.f32 %v14, %v2124
  %v2127 = vmul.f32 %v15, %v2124
  %v2128 = vmul.f32 %v16, %v2124
  %v2129 = vmul.f32 %v17, %v2124
  %v2130 = vmul.f32 %v18, %v2124
  %v2131 = vmul.f32 %v19, %v2124
  %v2132 = vmul.f32 %v20, %v2124
  %v2133 = vmul.f32 %v21, %v2124
  %v2134 = vmul.f32 %v22, %v2124
  %v2135 = vmul.f32 %v23, %v2124
  %v2136 = vmul.f32 %v24, %v2124
  %v2137 = vmul.f32 %v25, %v2124
  %v2138 = vmul.f32 %v26, %v2124
  %v2139 = vmul.f32 %v27, %v2124
  %v2140 = vmul.f32 %v28, %v2124
  %v2141 = vmul.f32 %v29, %v2124
  %v2142 = vmul.f32 %v30, %v2124
  %v2143 = vmul.f32 %v31, %v2124
  %v2144 = vmul.f32 %v32, %v2124
  %v2145 = vmul.f32 %v33, %v2124
  %v2146 = vmul.f32 %v34, %v2124
  %v2147 = vmul.f32 %v35, %v2124
  %v2148 = vmul.f32 %v36, %v2124
  %v2149 = vmul.f32 %v37, %v2124
  %v2150 = vmul.f32 %v38, %v2124
  %v2151 = vmul.f32 %v39, %v2124
  %v2152 = vmul.f32 %v40, %v2124
  %v2153 = vmul.f32 %v41, %v2124
  %v2154 = vmul.f32 %v42, %v2124
  %v2155 = vmul.f32 %v43, %v2124
  %v2156 = vmul.f32 %v44, %v2124
  %v2157 = vmul.f32 %v45, %v2124
  %v2158 = vmul.f32 %v46, %v2124
  %v2159 = vmul.f32 %v47, %v2124
  %v2160 = vmul.f32 %v48, %v2124
  %v2161 = vmul.f32 %v49, %v2124
  %v2162 = vmul.f32 %v50, %v2124
  %v2163 = vmul.f32 %v51, %v2124
  %v2164 = vmul.f32 %v52, %v2124
  %v2165 = vmul.f32 %v53, %v2124
  %v2166 = vmul.f32 %v54, %v2124
  %v2167 = vmul.f32 %v55, %v2124
  %v2168 = vmul.f32 %v56, %v2124
  %v2169 = vmul.f32 %v57, %v2124
  %v2170 = vmul.f32 %v58, %v2124
  %v2171 = vmul.f32 %v59, %v2124
  %v2172 = vmul.f32 %v60, %v2124
  %v2173 = vmul.f32 %v61, %v2124
  %v2174 = vmul.f32 %v62, %v2124
  %v2175 = vmul.f32 %v63, %v2124
  %v2176 = vmul.f32 %v64, %v2124
  %v2177 = vmul.f32 %v65, %v2124
  %v2178 = vmul.f32 %v66, %v2124
  %v2179 = vmul.f32 %v67, %v2124
  %v2180 = vmul.f32 %v68, %v2124
  %v2181 = vmul.f32 %v69, %v2124
  %v2182 = vmul.f32 %v70, %v2124
  %v2183 = vmul.f32 %v71, %v2124
  %v2184 = vmul.f32 %v72, %v2124
  %v2185 = vmul.f32 %v73, %v2124
  %v2186 = vmul.f32 %v74, %v2124
  %v2187 = vmul.f32 %v75, %v2124
  %v2188 = vmul.f32 %v76, %v2124
  %v2189 = vmul.f32 %v77, %v2124
  %v2190 = vmul.f32 %v78, %v2124
  %v2191 = vmul.f32 %v79, %v2124
  %v2192 = vmul.f32 %v80, %v2124
  %v2193 = vmul.f32 %v81, %v2124
  %v2194 = vmul.f32 %v82, %v2124
  %v2195 = vmul.f32 %v83, %v2124
  %v2196 = vmul.f32 %v84, %v2124
  %v2197 = vmul.f32 %v85, %v2124
  %v2198 = vmul.f32 %v86, %v2124
  %v2199 = vmul.f32 %v87, %v2124
  %v2200 = vmul.f32 %v88, %v2124
  %v2201 = vmul.f32 %v89, %v2124
  %v2202 = vmul.f32 %v90, %v2124
  %v2203 = vmul.f32 %v91, %v2124
  %v2204 = vmul.f32 %v92, %v2124
  %v2205 = vmul.f32 %v93, %v2124
  %v2206 = vmul.f32 %v94, %v2124
  %v2207 = vmul.f32 %v95, %v2124
  %v2208 = vmul.f32 %v96, %v2124
  %v2209 = vmul.f32 %v97, %v2124
  %v2210 = vmul.f32 %v98, %v2124
  %v2211 = vmul.f32 %v99, %v2124
  %v2212 = vmul.f32 %v100, %v2124
  %v2213 = vmul.f32 %v101, %v2124
  %v2214 = vmul.f32 %v102, %v2124
  %v2215 = vmul.f32 %v103, %v2124
  %v2216 = vmul.f32 %v104, %v2124
  %v2217 = vmul.f32 %v105, %v2124
  %v2218 = vmul.f32 %v106, %v2124
  %v2219 = vmul.f32 %v107, %v2124
  %v2220 = vmul.f32 %v108, %v2124
  %v2221 = vmul.f32 %v109, %v2124
  %v2222 = vmul.f32 %v110, %v2124
  %v2223 = vmul.f32 %v111, %v2124
  %v2224 = vmul.f32 %v112, %v2124
  %v2225 = vmul.f32 %v113, %v2124
  %v2226 = vmul.f32 %v114, %v2124
  %v2227 = vmul.f32 %v115, %v2124
  %v2228 = vmul.f32 %v116, %v2124
  %v2229 = vmul.f32 %v117, %v2124
  %v2230 = vmul.f32 %v118, %v2124
  %v2231 = vmul.f32 %v119, %v2124
  %v2232 = vmul.f32 %v120, %v2124
  %v2233 = vmul.f32 %v121, %v2124
  %v2234 = vmul.f32 %v122, %v2124
  %v2235 = vmul.f32 %v123, %v2124
  %v2236 = vmul.f32 %v124, %v2124
  %v2237 = vmul.f32 %v125, %v2124
  %v2238 = vmul.f32 %v126, %v2124
  %v2239 = vmul.f32 %v127, %v2124
  %v2240 = vmul.f32 %v128, %v2124
  %v2241 = vmul.f32 %v129, %v2124
  %v2242 = vmul.f32 %v130, %v2124
  %v2243 = vmul.f32 %v131, %v2124
  %v2244 = vmul.f32 %v132, %v2124
  %v2245 = vmul.f32 %v133, %v2124
  %v2246 = vmul.f32 %v134, %v2124
  %v2247 = vmul.f32 %v135, %v2124
  %v2248 = vmul.f32 %v136, %v2124
  %v2249 = vmul.f32 %v137, %v2124
  %v2250 = vmul.f32 %v138, %v2124
  %v2251 = vmul.f32 %v139, %v2124
  %v2252 = vmul.f32 %v140, %v2124
  %v2253 = vmul.f32 %v141, %v2124
  %2254 = vrot.lane.b32.xlu0 %v1865, 64
  %v2255 = vpop.permute.xlu0 %2254
  %v2257 = vadd.f32 %v2126, %v2255
  %v2258 = vadd.f32 %v2127, %v2255
  %v2259 = vadd.f32 %v2128, %v2255
  %v2260 = vadd.f32 %v2129, %v2255
  %v2261 = vadd.f32 %v2130, %v2255
  %v2262 = vadd.f32 %v2131, %v2255
  %v2263 = vadd.f32 %v2132, %v2255
  %v2264 = vadd.f32 %v2133, %v2255
  %v2265 = vadd.f32 %v2134, %v2255
  %v2266 = vadd.f32 %v2135, %v2255
  %v2267 = vadd.f32 %v2136, %v2255
  %v2268 = vadd.f32 %v2137, %v2255
  %v2269 = vadd.f32 %v2138, %v2255
  %v2270 = vadd.f32 %v2139, %v2255
  %v2271 = vadd.f32 %v2140, %v2255
  %v2272 = vadd.f32 %v2141, %v2255
  %v2273 = vadd.f32 %v2142, %v2255
  %v2274 = vadd.f32 %v2143, %v2255
  %v2275 = vadd.f32 %v2144, %v2255
  %v2276 = vadd.f32 %v2145, %v2255
  %v2277 = vadd.f32 %v2146, %v2255
  %v2278 = vadd.f32 %v2147, %v2255
  %v2279 = vadd.f32 %v2148, %v2255
  %v2280 = vadd.f32 %v2149, %v2255
  %v2281 = vadd.f32 %v2150, %v2255
  %v2282 = vadd.f32 %v2151, %v2255
  %v2283 = vadd.f32 %v2152, %v2255
  %v2284 = vadd.f32 %v2153, %v2255
  %v2285 = vadd.f32 %v2154, %v2255
  %v2286 = vadd.f32 %v2155, %v2255
  %v2287 = vadd.f32 %v2156, %v2255
  %v2288 = vadd.f32 %v2157, %v2255
  %v2289 = vadd.f32 %v2158, %v2255
  %v2290 = vadd.f32 %v2159, %v2255
  %v2291 = vadd.f32 %v2160, %v2255
  %v2292 = vadd.f32 %v2161, %v2255
  %v2293 = vadd.f32 %v2162, %v2255
  %v2294 = vadd.f32 %v2163, %v2255
  %v2295 = vadd.f32 %v2164, %v2255
  %v2296 = vadd.f32 %v2165, %v2255
  %v2297 = vadd.f32 %v2166, %v2255
  %v2298 = vadd.f32 %v2167, %v2255
  %v2299 = vadd.f32 %v2168, %v2255
  %v2300 = vadd.f32 %v2169, %v2255
  %v2301 = vadd.f32 %v2170, %v2255
  %v2302 = vadd.f32 %v2171, %v2255
  %v2303 = vadd.f32 %v2172, %v2255
  %v2304 = vadd.f32 %v2173, %v2255
  %v2305 = vadd.f32 %v2174, %v2255
  %v2306 = vadd.f32 %v2175, %v2255
  %v2307 = vadd.f32 %v2176, %v2255
  %v2308 = vadd.f32 %v2177, %v2255
  %v2309 = vadd.f32 %v2178, %v2255
  %v2310 = vadd.f32 %v2179, %v2255
  %v2311 = vadd.f32 %v2180, %v2255
  %v2312 = vadd.f32 %v2181, %v2255
  %v2313 = vadd.f32 %v2182, %v2255
  %v2314 = vadd.f32 %v2183, %v2255
  %v2315 = vadd.f32 %v2184, %v2255
  %v2316 = vadd.f32 %v2185, %v2255
  %v2317 = vadd.f32 %v2186, %v2255
  %v2318 = vadd.f32 %v2187, %v2255
  %v2319 = vadd.f32 %v2188, %v2255
  %v2320 = vadd.f32 %v2189, %v2255
  %v2321 = vadd.f32 %v2190, %v2255
  %v2322 = vadd.f32 %v2191, %v2255
  %v2323 = vadd.f32 %v2192, %v2255
  %v2324 = vadd.f32 %v2193, %v2255
  %v2325 = vadd.f32 %v2194, %v2255
  %v2326 = vadd.f32 %v2195, %v2255
  %v2327 = vadd.f32 %v2196, %v2255
  %v2328 = vadd.f32 %v2197, %v2255
  %v2329 = vadd.f32 %v2198, %v2255
  %v2330 = vadd.f32 %v2199, %v2255
  %v2331 = vadd.f32 %v2200, %v2255
  %v2332 = vadd.f32 %v2201, %v2255
  %v2333 = vadd.f32 %v2202, %v2255
  %v2334 = vadd.f32 %v2203, %v2255
  %v2335 = vadd.f32 %v2204, %v2255
  %v2336 = vadd.f32 %v2205, %v2255
  %v2337 = vadd.f32 %v2206, %v2255
  %v2338 = vadd.f32 %v2207, %v2255
  %v2339 = vadd.f32 %v2208, %v2255
  %v2340 = vadd.f32 %v2209, %v2255
  %v2341 = vadd.f32 %v2210, %v2255
  %v2342 = vadd.f32 %v2211, %v2255
  %v2343 = vadd.f32 %v2212, %v2255
  %v2344 = vadd.f32 %v2213, %v2255
  %v2345 = vadd.f32 %v2214, %v2255
  %v2346 = vadd.f32 %v2215, %v2255
  %v2347 = vadd.f32 %v2216, %v2255
  %v2348 = vadd.f32 %v2217, %v2255
  %v2349 = vadd.f32 %v2218, %v2255
  %v2350 = vadd.f32 %v2219, %v2255
  %v2351 = vadd.f32 %v2220, %v2255
  %v2352 = vadd.f32 %v2221, %v2255
  %v2353 = vadd.f32 %v2222, %v2255
  %v2354 = vadd.f32 %v2223, %v2255
  %v2355 = vadd.f32 %v2224, %v2255
  %v2356 = vadd.f32 %v2225, %v2255
  %v2357 = vadd.f32 %v2226, %v2255
  %v2358 = vadd.f32 %v2227, %v2255
  %v2359 = vadd.f32 %v2228, %v2255
  %v2360 = vadd.f32 %v2229, %v2255
  %v2361 = vadd.f32 %v2230, %v2255
  %v2362 = vadd.f32 %v2231, %v2255
  %v2363 = vadd.f32 %v2232, %v2255
  %v2364 = vadd.f32 %v2233, %v2255
  %v2365 = vadd.f32 %v2234, %v2255
  %v2366 = vadd.f32 %v2235, %v2255
  %v2367 = vadd.f32 %v2236, %v2255
  %v2368 = vadd.f32 %v2237, %v2255
  %v2369 = vadd.f32 %v2238, %v2255
  %v2370 = vadd.f32 %v2239, %v2255
  %v2371 = vadd.f32 %v2240, %v2255
  %v2372 = vadd.f32 %v2241, %v2255
  %v2373 = vadd.f32 %v2242, %v2255
  %v2374 = vadd.f32 %v2243, %v2255
  %v2375 = vadd.f32 %v2244, %v2255
  %v2376 = vadd.f32 %v2245, %v2255
  %v2377 = vadd.f32 %v2246, %v2255
  %v2378 = vadd.f32 %v2247, %v2255
  %v2379 = vadd.f32 %v2248, %v2255
  %v2380 = vadd.f32 %v2249, %v2255
  %v2381 = vadd.f32 %v2250, %v2255
  %v2382 = vadd.f32 %v2251, %v2255
  %v2383 = vadd.f32 %v2252, %v2255
  %v2384 = vadd.f32 %v2253, %v2255
  %v2385 = vmax.f32 %v2257, 0.0
  %v2386 = vmax.f32 %v2258, 0.0
  %v2387 = vmax.f32 %v2259, 0.0
  %v2388 = vmax.f32 %v2260, 0.0
  %v2389 = vmax.f32 %v2261, 0.0
  %v2390 = vmax.f32 %v2262, 0.0
  %v2391 = vmax.f32 %v2263, 0.0
  %v2392 = vmax.f32 %v2264, 0.0
  %v2393 = vmax.f32 %v2265, 0.0
  %v2394 = vmax.f32 %v2266, 0.0
  %v2395 = vmax.f32 %v2267, 0.0
  %v2396 = vmax.f32 %v2268, 0.0
  %v2397 = vmax.f32 %v2269, 0.0
  %v2398 = vmax.f32 %v2270, 0.0
  %v2399 = vmax.f32 %v2271, 0.0
  %v2400 = vmax.f32 %v2272, 0.0
  %v2401 = vmax.f32 %v2273, 0.0
  %v2402 = vmax.f32 %v2274, 0.0
  %v2403 = vmax.f32 %v2275, 0.0
  %v2404 = vmax.f32 %v2276, 0.0
  %v2405 = vmax.f32 %v2277, 0.0
  %v2406 = vmax.f32 %v2278, 0.0
  %v2407 = vmax.f32 %v2279, 0.0
  %v2408 = vmax.f32 %v2280, 0.0
  %v2409 = vmax.f32 %v2281, 0.0
  %v2410 = vmax.f32 %v2282, 0.0
  %v2411 = vmax.f32 %v2283, 0.0
  %v2412 = vmax.f32 %v2284, 0.0
  %v2413 = vmax.f32 %v2285, 0.0
  %v2414 = vmax.f32 %v2286, 0.0
  %v2415 = vmax.f32 %v2287, 0.0
  %v2416 = vmax.f32 %v2288, 0.0
  %v2417 = vmax.f32 %v2289, 0.0
  %v2418 = vmax.f32 %v2290, 0.0
  %v2419 = vmax.f32 %v2291, 0.0
  %v2420 = vmax.f32 %v2292, 0.0
  %v2421 = vmax.f32 %v2293, 0.0
  %v2422 = vmax.f32 %v2294, 0.0
  %v2423 = vmax.f32 %v2295, 0.0
  %v2424 = vmax.f32 %v2296, 0.0
  %v2425 = vmax.f32 %v2297, 0.0
  %v2426 = vmax.f32 %v2298, 0.0
  %v2427 = vmax.f32 %v2299, 0.0
  %v2428 = vmax.f32 %v2300, 0.0
  %v2429 = vmax.f32 %v2301, 0.0
  %v2430 = vmax.f32 %v2302, 0.0
  %v2431 = vmax.f32 %v2303, 0.0
  %v2432 = vmax.f32 %v2304, 0.0
  %v2433 = vmax.f32 %v2305, 0.0
  %v2434 = vmax.f32 %v2306, 0.0
  %v2435 = vmax.f32 %v2307, 0.0
  %v2436 = vmax.f32 %v2308, 0.0
  %v2437 = vmax.f32 %v2309, 0.0
  %v2438 = vmax.f32 %v2310, 0.0
  %v2439 = vmax.f32 %v2311, 0.0
  %v2440 = vmax.f32 %v2312, 0.0
  %v2441 = vmax.f32 %v2313, 0.0
  %v2442 = vmax.f32 %v2314, 0.0
  %v2443 = vmax.f32 %v2315, 0.0
  %v2444 = vmax.f32 %v2316, 0.0
  %v2445 = vmax.f32 %v2317, 0.0
  %v2446 = vmax.f32 %v2318, 0.0
  %v2447 = vmax.f32 %v2319, 0.0
  %v2448 = vmax.f32 %v2320, 0.0
  %v2449 = vmax.f32 %v2321, 0.0
  %v2450 = vmax.f32 %v2322, 0.0
  %v2451 = vmax.f32 %v2323, 0.0
  %v2452 = vmax.f32 %v2324, 0.0
  %v2453 = vmax.f32 %v2325, 0.0
  %v2454 = vmax.f32 %v2326, 0.0
  %v2455 = vmax.f32 %v2327, 0.0
  %v2456 = vmax.f32 %v2328, 0.0
  %v2457 = vmax.f32 %v2329, 0.0
  %v2458 = vmax.f32 %v2330, 0.0
  %v2459 = vmax.f32 %v2331, 0.0
  %v2460 = vmax.f32 %v2332, 0.0
  %v2461 = vmax.f32 %v2333, 0.0
  %v2462 = vmax.f32 %v2334, 0.0
  %v2463 = vmax.f32 %v2335, 0.0
  %v2464 = vmax.f32 %v2336, 0.0
  %v2465 = vmax.f32 %v2337, 0.0
  %v2466 = vmax.f32 %v2338, 0.0
  %v2467 = vmax.f32 %v2339, 0.0
  %v2468 = vmax.f32 %v2340, 0.0
  %v2469 = vmax.f32 %v2341, 0.0
  %v2470 = vmax.f32 %v2342, 0.0
  %v2471 = vmax.f32 %v2343, 0.0
  %v2472 = vmax.f32 %v2344, 0.0
  %v2473 = vmax.f32 %v2345, 0.0
  %v2474 = vmax.f32 %v2346, 0.0
  %v2475 = vmax.f32 %v2347, 0.0
  %v2476 = vmax.f32 %v2348, 0.0
  %v2477 = vmax.f32 %v2349, 0.0
  %v2478 = vmax.f32 %v2350, 0.0
  %v2479 = vmax.f32 %v2351, 0.0
  %v2480 = vmax.f32 %v2352, 0.0
  %v2481 = vmax.f32 %v2353, 0.0
  %v2482 = vmax.f32 %v2354, 0.0
  %v2483 = vmax.f32 %v2355, 0.0
  %v2484 = vmax.f32 %v2356, 0.0
  %v2485 = vmax.f32 %v2357, 0.0
  %v2486 = vmax.f32 %v2358, 0.0
  %v2487 = vmax.f32 %v2359, 0.0
  %v2488 = vmax.f32 %v2360, 0.0
  %v2489 = vmax.f32 %v2361, 0.0
  %v2490 = vmax.f32 %v2362, 0.0
  %v2491 = vmax.f32 %v2363, 0.0
  %v2492 = vmax.f32 %v2364, 0.0
  %v2493 = vmax.f32 %v2365, 0.0
  %v2494 = vmax.f32 %v2366, 0.0
  %v2495 = vmax.f32 %v2367, 0.0
  %v2496 = vmax.f32 %v2368, 0.0
  %v2497 = vmax.f32 %v2369, 0.0
  %v2498 = vmax.f32 %v2370, 0.0
  %v2499 = vmax.f32 %v2371, 0.0
  %v2500 = vmax.f32 %v2372, 0.0
  %v2501 = vmax.f32 %v2373, 0.0
  %v2502 = vmax.f32 %v2374, 0.0
  %v2503 = vmax.f32 %v2375, 0.0
  %v2504 = vmax.f32 %v2376, 0.0
  %v2505 = vmax.f32 %v2377, 0.0
  %v2506 = vmax.f32 %v2378, 0.0
  %v2507 = vmax.f32 %v2379, 0.0
  %v2508 = vmax.f32 %v2380, 0.0
  %v2509 = vmax.f32 %v2381, 0.0
  %v2510 = vmax.f32 %v2382, 0.0
  %v2511 = vmax.f32 %v2383, 0.0
  %v2512 = vmax.f32 %v2384, 0.0
  %2641 = vrot.lane.b32.xlu0 %v2385, 64
  %v2642 = vpop.permute.xlu0 %2641
  %2643 = vrot.lane.b32.xlu0 %v2386, 64
  %v2644 = vpop.permute.xlu0 %2643
  %2645 = vrot.lane.b32.xlu0 %v2387, 64
  %v2646 = vpop.permute.xlu0 %2645
  %2647 = vrot.lane.b32.xlu0 %v2388, 64
  %v2648 = vpop.permute.xlu0 %2647
  %2649 = vrot.lane.b32.xlu0 %v2389, 64
  %v2650 = vpop.permute.xlu0 %2649
  %2651 = vrot.lane.b32.xlu0 %v2390, 64
  %v2652 = vpop.permute.xlu0 %2651
  %2653 = vrot.lane.b32.xlu0 %v2391, 64
  %v2654 = vpop.permute.xlu0 %2653
  %2655 = vrot.lane.b32.xlu0 %v2392, 64
  %v2656 = vpop.permute.xlu0 %2655
  %2657 = vrot.lane.b32.xlu0 %v2393, 64
  %v2658 = vpop.permute.xlu0 %2657
  %2659 = vrot.lane.b32.xlu0 %v2394, 64
  %v2660 = vpop.permute.xlu0 %2659
  %2661 = vrot.lane.b32.xlu0 %v2395, 64
  %v2662 = vpop.permute.xlu0 %2661
  %2663 = vrot.lane.b32.xlu0 %v2396, 64
  %v2664 = vpop.permute.xlu0 %2663
  %2665 = vrot.lane.b32.xlu0 %v2397, 64
  %v2666 = vpop.permute.xlu0 %2665
  %2667 = vrot.lane.b32.xlu0 %v2398, 64
  %v2668 = vpop.permute.xlu0 %2667
  %2669 = vrot.lane.b32.xlu0 %v2399, 64
  %v2670 = vpop.permute.xlu0 %2669
  %2671 = vrot.lane.b32.xlu0 %v2400, 64
  %v2672 = vpop.permute.xlu0 %2671
  %2673 = vrot.lane.b32.xlu0 %v2401, 64
  %v2674 = vpop.permute.xlu0 %2673
  %2675 = vrot.lane.b32.xlu0 %v2402, 64
  %v2676 = vpop.permute.xlu0 %2675
  %2677 = vrot.lane.b32.xlu0 %v2403, 64
  %v2678 = vpop.permute.xlu0 %2677
  %2679 = vrot.lane.b32.xlu0 %v2404, 64
  %v2680 = vpop.permute.xlu0 %2679
  %2681 = vrot.lane.b32.xlu0 %v2405, 64
  %v2682 = vpop.permute.xlu0 %2681
  %2683 = vrot.lane.b32.xlu0 %v2406, 64
  %v2684 = vpop.permute.xlu0 %2683
  %2685 = vrot.lane.b32.xlu0 %v2407, 64
  %v2686 = vpop.permute.xlu0 %2685
  %2687 = vrot.lane.b32.xlu0 %v2408, 64
  %v2688 = vpop.permute.xlu0 %2687
  %2689 = vrot.lane.b32.xlu0 %v2409, 64
  %v2690 = vpop.permute.xlu0 %2689
  %2691 = vrot.lane.b32.xlu0 %v2410, 64
  %v2692 = vpop.permute.xlu0 %2691
  %2693 = vrot.lane.b32.xlu0 %v2411, 64
  %v2694 = vpop.permute.xlu0 %2693
  %2695 = vrot.lane.b32.xlu0 %v2412, 64
  %v2696 = vpop.permute.xlu0 %2695
  %2697 = vrot.lane.b32.xlu0 %v2413, 64
  %v2698 = vpop.permute.xlu0 %2697
  %2699 = vrot.lane.b32.xlu0 %v2414, 64
  %v2700 = vpop.permute.xlu0 %2699
  %2701 = vrot.lane.b32.xlu0 %v2415, 64
  %v2702 = vpop.permute.xlu0 %2701
  %2703 = vrot.lane.b32.xlu0 %v2416, 64
  %v2704 = vpop.permute.xlu0 %2703
  %2705 = vrot.lane.b32.xlu0 %v2417, 64
  %v2706 = vpop.permute.xlu0 %2705
  %2707 = vrot.lane.b32.xlu0 %v2418, 64
  %v2708 = vpop.permute.xlu0 %2707
  %2709 = vrot.lane.b32.xlu0 %v2419, 64
  %v2710 = vpop.permute.xlu0 %2709
  %2711 = vrot.lane.b32.xlu0 %v2420, 64
  %v2712 = vpop.permute.xlu0 %2711
  %2713 = vrot.lane.b32.xlu0 %v2421, 64
  %v2714 = vpop.permute.xlu0 %2713
  %2715 = vrot.lane.b32.xlu0 %v2422, 64
  %v2716 = vpop.permute.xlu0 %2715
  %2717 = vrot.lane.b32.xlu0 %v2423, 64
  %v2718 = vpop.permute.xlu0 %2717
  %2719 = vrot.lane.b32.xlu0 %v2424, 64
  %v2720 = vpop.permute.xlu0 %2719
  %2721 = vrot.lane.b32.xlu0 %v2425, 64
  %v2722 = vpop.permute.xlu0 %2721
  %2723 = vrot.lane.b32.xlu0 %v2426, 64
  %v2724 = vpop.permute.xlu0 %2723
  %2725 = vrot.lane.b32.xlu0 %v2427, 64
  %v2726 = vpop.permute.xlu0 %2725
  %2727 = vrot.lane.b32.xlu0 %v2428, 64
  %v2728 = vpop.permute.xlu0 %2727
  %2729 = vrot.lane.b32.xlu0 %v2429, 64
  %v2730 = vpop.permute.xlu0 %2729
  %2731 = vrot.lane.b32.xlu0 %v2430, 64
  %v2732 = vpop.permute.xlu0 %2731
  %2733 = vrot.lane.b32.xlu0 %v2431, 64
  %v2734 = vpop.permute.xlu0 %2733
  %2735 = vrot.lane.b32.xlu0 %v2432, 64
  %v2736 = vpop.permute.xlu0 %2735
  %2737 = vrot.lane.b32.xlu0 %v2433, 64
  %v2738 = vpop.permute.xlu0 %2737
  %2739 = vrot.lane.b32.xlu0 %v2434, 64
  %v2740 = vpop.permute.xlu0 %2739
  %2741 = vrot.lane.b32.xlu0 %v2435, 64
  %v2742 = vpop.permute.xlu0 %2741
  %2743 = vrot.lane.b32.xlu0 %v2436, 64
  %v2744 = vpop.permute.xlu0 %2743
  %2745 = vrot.lane.b32.xlu0 %v2437, 64
  %v2746 = vpop.permute.xlu0 %2745
  %2747 = vrot.lane.b32.xlu0 %v2438, 64
  %v2748 = vpop.permute.xlu0 %2747
  %2749 = vrot.lane.b32.xlu0 %v2439, 64
  %v2750 = vpop.permute.xlu0 %2749
  %2751 = vrot.lane.b32.xlu0 %v2440, 64
  %v2752 = vpop.permute.xlu0 %2751
  %2753 = vrot.lane.b32.xlu0 %v2441, 64
  %v2754 = vpop.permute.xlu0 %2753
  %2755 = vrot.lane.b32.xlu0 %v2442, 64
  %v2756 = vpop.permute.xlu0 %2755
  %2757 = vrot.lane.b32.xlu0 %v2443, 64
  %v2758 = vpop.permute.xlu0 %2757
  %2759 = vrot.lane.b32.xlu0 %v2444, 64
  %v2760 = vpop.permute.xlu0 %2759
  %2761 = vrot.lane.b32.xlu0 %v2445, 64
  %v2762 = vpop.permute.xlu0 %2761
  %2763 = vrot.lane.b32.xlu0 %v2446, 64
  %v2764 = vpop.permute.xlu0 %2763
  %2765 = vrot.lane.b32.xlu0 %v2447, 64
  %v2766 = vpop.permute.xlu0 %2765
  %2767 = vrot.lane.b32.xlu0 %v2448, 64
  %v2768 = vpop.permute.xlu0 %2767
  %2769 = vrot.lane.b32.xlu0 %v2449, 64
  %v2770 = vpop.permute.xlu0 %2769
  %2771 = vrot.lane.b32.xlu0 %v2450, 64
  %v2772 = vpop.permute.xlu0 %2771
  %2773 = vrot.lane.b32.xlu0 %v2451, 64
  %v2774 = vpop.permute.xlu0 %2773
  %2775 = vrot.lane.b32.xlu0 %v2452, 64
  %v2776 = vpop.permute.xlu0 %2775
  %2777 = vrot.lane.b32.xlu0 %v2453, 64
  %v2778 = vpop.permute.xlu0 %2777
  %2779 = vrot.lane.b32.xlu0 %v2454, 64
  %v2780 = vpop.permute.xlu0 %2779
  %2781 = vrot.lane.b32.xlu0 %v2455, 64
  %v2782 = vpop.permute.xlu0 %2781
  %2783 = vrot.lane.b32.xlu0 %v2456, 64
  %v2784 = vpop.permute.xlu0 %2783
  %2785 = vrot.lane.b32.xlu0 %v2457, 64
  %v2786 = vpop.permute.xlu0 %2785
  %2787 = vrot.lane.b32.xlu0 %v2458, 64
  %v2788 = vpop.permute.xlu0 %2787
  %2789 = vrot.lane.b32.xlu0 %v2459, 64
  %v2790 = vpop.permute.xlu0 %2789
  %2791 = vrot.lane.b32.xlu0 %v2460, 64
  %v2792 = vpop.permute.xlu0 %2791
  %2793 = vrot.lane.b32.xlu0 %v2461, 64
  %v2794 = vpop.permute.xlu0 %2793
  %2795 = vrot.lane.b32.xlu0 %v2462, 64
  %v2796 = vpop.permute.xlu0 %2795
  %2797 = vrot.lane.b32.xlu0 %v2463, 64
  %v2798 = vpop.permute.xlu0 %2797
  %2799 = vrot.lane.b32.xlu0 %v2464, 64
  %v2800 = vpop.permute.xlu0 %2799
  %2801 = vrot.lane.b32.xlu0 %v2465, 64
  %v2802 = vpop.permute.xlu0 %2801
  %2803 = vrot.lane.b32.xlu0 %v2466, 64
  %v2804 = vpop.permute.xlu0 %2803
  %2805 = vrot.lane.b32.xlu0 %v2467, 64
  %v2806 = vpop.permute.xlu0 %2805
  %2807 = vrot.lane.b32.xlu0 %v2468, 64
  %v2808 = vpop.permute.xlu0 %2807
  %2809 = vrot.lane.b32.xlu0 %v2469, 64
  %v2810 = vpop.permute.xlu0 %2809
  %2811 = vrot.lane.b32.xlu0 %v2470, 64
  %v2812 = vpop.permute.xlu0 %2811
  %2813 = vrot.lane.b32.xlu0 %v2471, 64
  %v2814 = vpop.permute.xlu0 %2813
  %2815 = vrot.lane.b32.xlu0 %v2472, 64
  %v2816 = vpop.permute.xlu0 %2815
  %2817 = vrot.lane.b32.xlu0 %v2473, 64
  %v2818 = vpop.permute.xlu0 %2817
  %2819 = vrot.lane.b32.xlu0 %v2474, 64
  %v2820 = vpop.permute.xlu0 %2819
  %2821 = vrot.lane.b32.xlu0 %v2475, 64
  %v2822 = vpop.permute.xlu0 %2821
  %2823 = vrot.lane.b32.xlu0 %v2476, 64
  %v2824 = vpop.permute.xlu0 %2823
  %2825 = vrot.lane.b32.xlu0 %v2477, 64
  %v2826 = vpop.permute.xlu0 %2825
  %2827 = vrot.lane.b32.xlu0 %v2478, 64
  %v2828 = vpop.permute.xlu0 %2827
  %2829 = vrot.lane.b32.xlu0 %v2479, 64
  %v2830 = vpop.permute.xlu0 %2829
  %2831 = vrot.lane.b32.xlu0 %v2480, 64
  %v2832 = vpop.permute.xlu0 %2831
  %2833 = vrot.lane.b32.xlu0 %v2481, 64
  %v2834 = vpop.permute.xlu0 %2833
  %2835 = vrot.lane.b32.xlu0 %v2482, 64
  %v2836 = vpop.permute.xlu0 %2835
  %2837 = vrot.lane.b32.xlu0 %v2483, 64
  %v2838 = vpop.permute.xlu0 %2837
  %2839 = vrot.lane.b32.xlu0 %v2484, 64
  %v2840 = vpop.permute.xlu0 %2839
  %2841 = vrot.lane.b32.xlu0 %v2485, 64
  %v2842 = vpop.permute.xlu0 %2841
  %2843 = vrot.lane.b32.xlu0 %v2486, 64
  %v2844 = vpop.permute.xlu0 %2843
  %2845 = vrot.lane.b32.xlu0 %v2487, 64
  %v2846 = vpop.permute.xlu0 %2845
  %2847 = vrot.lane.b32.xlu0 %v2488, 64
  %v2848 = vpop.permute.xlu0 %2847
  %2849 = vrot.lane.b32.xlu0 %v2489, 64
  %v2850 = vpop.permute.xlu0 %2849
  %2851 = vrot.lane.b32.xlu0 %v2490, 64
  %v2852 = vpop.permute.xlu0 %2851
  %2853 = vrot.lane.b32.xlu0 %v2491, 64
  %v2854 = vpop.permute.xlu0 %2853
  %2855 = vrot.lane.b32.xlu0 %v2492, 64
  %v2856 = vpop.permute.xlu0 %2855
  %2857 = vrot.lane.b32.xlu0 %v2493, 64
  %v2858 = vpop.permute.xlu0 %2857
  %2859 = vrot.lane.b32.xlu0 %v2494, 64
  %v2860 = vpop.permute.xlu0 %2859
  %2861 = vrot.lane.b32.xlu0 %v2495, 64
  %v2862 = vpop.permute.xlu0 %2861
  %2863 = vrot.lane.b32.xlu0 %v2496, 64
  %v2864 = vpop.permute.xlu0 %2863
  %2865 = vrot.lane.b32.xlu0 %v2497, 64
  %v2866 = vpop.permute.xlu0 %2865
  %2867 = vrot.lane.b32.xlu0 %v2498, 64
  %v2868 = vpop.permute.xlu0 %2867
  %2869 = vrot.lane.b32.xlu0 %v2499, 64
  %v2870 = vpop.permute.xlu0 %2869
  %2871 = vrot.lane.b32.xlu0 %v2500, 64
  %v2872 = vpop.permute.xlu0 %2871
  %2873 = vrot.lane.b32.xlu0 %v2501, 64
  %v2874 = vpop.permute.xlu0 %2873
  %2875 = vrot.lane.b32.xlu0 %v2502, 64
  %v2876 = vpop.permute.xlu0 %2875
  %2877 = vrot.lane.b32.xlu0 %v2503, 64
  %v2878 = vpop.permute.xlu0 %2877
  %2879 = vrot.lane.b32.xlu0 %v2504, 64
  %v2880 = vpop.permute.xlu0 %2879
  %2881 = vrot.lane.b32.xlu0 %v2505, 64
  %v2882 = vpop.permute.xlu0 %2881
  %2883 = vrot.lane.b32.xlu0 %v2506, 64
  %v2884 = vpop.permute.xlu0 %2883
  %2885 = vrot.lane.b32.xlu0 %v2507, 64
  %v2886 = vpop.permute.xlu0 %2885
  %2887 = vrot.lane.b32.xlu0 %v2508, 64
  %v2888 = vpop.permute.xlu0 %2887
  %2889 = vrot.lane.b32.xlu0 %v2509, 64
  %v2890 = vpop.permute.xlu0 %2889
  %2891 = vrot.lane.b32.xlu0 %v2510, 64
  %v2892 = vpop.permute.xlu0 %2891
  %2893 = vrot.lane.b32.xlu0 %v2511, 64
  %v2894 = vpop.permute.xlu0 %2893
  %2895 = vrot.lane.b32.xlu0 %v2512, 64
  %v2896 = vpop.permute.xlu0 %2895
  %v3025 = vmax.f32 %v1995, %v2642
  %v3026 = vmax.f32 %v1996, %v2644
  %v3027 = vmax.f32 %v1997, %v2646
  %v3028 = vmax.f32 %v1998, %v2648
  %v3029 = vmax.f32 %v1999, %v2650
  %v3030 = vmax.f32 %v2000, %v2652
  %v3031 = vmax.f32 %v2001, %v2654
  %v3032 = vmax.f32 %v2002, %v2656
  %v3033 = vmax.f32 %v2003, %v2658
  %v3034 = vmax.f32 %v2004, %v2660
  %v3035 = vmax.f32 %v2005, %v2662
  %v3036 = vmax.f32 %v2006, %v2664
  %v3037 = vmax.f32 %v2007, %v2666
  %v3038 = vmax.f32 %v2008, %v2668
  %v3039 = vmax.f32 %v2009, %v2670
  %v3040 = vmax.f32 %v2010, %v2672
  %v3041 = vmax.f32 %v2011, %v2674
  %v3042 = vmax.f32 %v2012, %v2676
  %v3043 = vmax.f32 %v2013, %v2678
  %v3044 = vmax.f32 %v2014, %v2680
  %v3045 = vmax.f32 %v2015, %v2682
  %v3046 = vmax.f32 %v2016, %v2684
  %v3047 = vmax.f32 %v2017, %v2686
  %v3048 = vmax.f32 %v2018, %v2688
  %v3049 = vmax.f32 %v2019, %v2690
  %v3050 = vmax.f32 %v2020, %v2692
  %v3051 = vmax.f32 %v2021, %v2694
  %v3052 = vmax.f32 %v2022, %v2696
  %v3053 = vmax.f32 %v2023, %v2698
  %v3054 = vmax.f32 %v2024, %v2700
  %v3055 = vmax.f32 %v2025, %v2702
  %v3056 = vmax.f32 %v2026, %v2704
  %v3057 = vmax.f32 %v2027, %v2706
  %v3058 = vmax.f32 %v2028, %v2708
  %v3059 = vmax.f32 %v2029, %v2710
  %v3060 = vmax.f32 %v2030, %v2712
  %v3061 = vmax.f32 %v2031, %v2714
  %v3062 = vmax.f32 %v2032, %v2716
  %v3063 = vmax.f32 %v2033, %v2718
  %v3064 = vmax.f32 %v2034, %v2720
  %v3065 = vmax.f32 %v2035, %v2722
  %v3066 = vmax.f32 %v2036, %v2724
  %v3067 = vmax.f32 %v2037, %v2726
  %v3068 = vmax.f32 %v2038, %v2728
  %v3069 = vmax.f32 %v2039, %v2730
  %v3070 = vmax.f32 %v2040, %v2732
  %v3071 = vmax.f32 %v2041, %v2734
  %v3072 = vmax.f32 %v2042, %v2736
  %v3073 = vmax.f32 %v2043, %v2738
  %v3074 = vmax.f32 %v2044, %v2740
  %v3075 = vmax.f32 %v2045, %v2742
  %v3076 = vmax.f32 %v2046, %v2744
  %v3077 = vmax.f32 %v2047, %v2746
  %v3078 = vmax.f32 %v2048, %v2748
  %v3079 = vmax.f32 %v2049, %v2750
  %v3080 = vmax.f32 %v2050, %v2752
  %v3081 = vmax.f32 %v2051, %v2754
  %v3082 = vmax.f32 %v2052, %v2756
  %v3083 = vmax.f32 %v2053, %v2758
  %v3084 = vmax.f32 %v2054, %v2760
  %v3085 = vmax.f32 %v2055, %v2762
  %v3086 = vmax.f32 %v2056, %v2764
  %v3087 = vmax.f32 %v2057, %v2766
  %v3088 = vmax.f32 %v2058, %v2768
  %v3089 = vmax.f32 %v2059, %v2770
  %v3090 = vmax.f32 %v2060, %v2772
  %v3091 = vmax.f32 %v2061, %v2774
  %v3092 = vmax.f32 %v2062, %v2776
  %v3093 = vmax.f32 %v2063, %v2778
  %v3094 = vmax.f32 %v2064, %v2780
  %v3095 = vmax.f32 %v2065, %v2782
  %v3096 = vmax.f32 %v2066, %v2784
  %v3097 = vmax.f32 %v2067, %v2786
  %v3098 = vmax.f32 %v2068, %v2788
  %v3099 = vmax.f32 %v2069, %v2790
  %v3100 = vmax.f32 %v2070, %v2792
  %v3101 = vmax.f32 %v2071, %v2794
  %v3102 = vmax.f32 %v2072, %v2796
  %v3103 = vmax.f32 %v2073, %v2798
  %v3104 = vmax.f32 %v2074, %v2800
  %v3105 = vmax.f32 %v2075, %v2802
  %v3106 = vmax.f32 %v2076, %v2804
  %v3107 = vmax.f32 %v2077, %v2806
  %v3108 = vmax.f32 %v2078, %v2808
  %v3109 = vmax.f32 %v2079, %v2810
  %v3110 = vmax.f32 %v2080, %v2812
  %v3111 = vmax.f32 %v2081, %v2814
  %v3112 = vmax.f32 %v2082, %v2816
  %v3113 = vmax.f32 %v2083, %v2818
  %v3114 = vmax.f32 %v2084, %v2820
  %v3115 = vmax.f32 %v2085, %v2822
  %v3116 = vmax.f32 %v2086, %v2824
  %v3117 = vmax.f32 %v2087, %v2826
  %v3118 = vmax.f32 %v2088, %v2828
  %v3119 = vmax.f32 %v2089, %v2830
  %v3120 = vmax.f32 %v2090, %v2832
  %v3121 = vmax.f32 %v2091, %v2834
  %v3122 = vmax.f32 %v2092, %v2836
  %v3123 = vmax.f32 %v2093, %v2838
  %v3124 = vmax.f32 %v2094, %v2840
  %v3125 = vmax.f32 %v2095, %v2842
  %v3126 = vmax.f32 %v2096, %v2844
  %v3127 = vmax.f32 %v2097, %v2846
  %v3128 = vmax.f32 %v2098, %v2848
  %v3129 = vmax.f32 %v2099, %v2850
  %v3130 = vmax.f32 %v2100, %v2852
  %v3131 = vmax.f32 %v2101, %v2854
  %v3132 = vmax.f32 %v2102, %v2856
  %v3133 = vmax.f32 %v2103, %v2858
  %v3134 = vmax.f32 %v2104, %v2860
  %v3135 = vmax.f32 %v2105, %v2862
  %v3136 = vmax.f32 %v2106, %v2864
  %v3137 = vmax.f32 %v2107, %v2866
  %v3138 = vmax.f32 %v2108, %v2868
  %v3139 = vmax.f32 %v2109, %v2870
  %v3140 = vmax.f32 %v2110, %v2872
  %v3141 = vmax.f32 %v2111, %v2874
  %v3142 = vmax.f32 %v2112, %v2876
  %v3143 = vmax.f32 %v2113, %v2878
  %v3144 = vmax.f32 %v2114, %v2880
  %v3145 = vmax.f32 %v2115, %v2882
  %v3146 = vmax.f32 %v2116, %v2884
  %v3147 = vmax.f32 %v2117, %v2886
  %v3148 = vmax.f32 %v2118, %v2888
  %v3149 = vmax.f32 %v2119, %v2890
  %v3150 = vmax.f32 %v2120, %v2892
  %v3151 = vmax.f32 %v2121, %v2894
  %v3152 = vmax.f32 %v2122, %v2896
  %v3153 = vmax.f32 %v3025, %v3027
  %v3154 = vmax.f32 %v3026, %v3028
  %v3155 = vmax.f32 %v3089, %v3091
  %v3156 = vmax.f32 %v3090, %v3092
  %3157 = vst.msk [vmem:[%s3] sm:$0xff] %vm142, %v3153
  %3158 = vst.msk [vmem:[%s3 + $0x8] sm:$0xff] %vm142, %v3154
  %3159 = vst.msk [vmem:[%s3 + $0x100] sm:$0xff] %vm142, %v3155
  %3160 = vst.msk [vmem:[%s3 + $0x108] sm:$0xff] %vm142, %v3156
  %v3161 = vmax.f32 %v3029, %v3031
  %v3162 = vmax.f32 %v3030, %v3032
  %v3163 = vmax.f32 %v3093, %v3095
  %v3164 = vmax.f32 %v3094, %v3096
  %s3165 = scalar_lea.vmem %s3, 16
  %3166 = vst.msk [vmem:[%s3165] sm:$0xff] %vm142, %v3161
  %3167 = vst.msk [vmem:[%s3165 + $0x8] sm:$0xff] %vm142, %v3162
  %3168 = vst.msk [vmem:[%s3165 + $0x100] sm:$0xff] %vm142, %v3163
  %3169 = vst.msk [vmem:[%s3165 + $0x108] sm:$0xff] %vm142, %v3164
  %v3170 = vmax.f32 %v3033, %v3035
  %v3171 = vmax.f32 %v3034, %v3036
  %v3172 = vmax.f32 %v3097, %v3099
  %v3173 = vmax.f32 %v3098, %v3100
  %s3174 = scalar_lea.vmem %s3, 32
  %3175 = vst.msk [vmem:[%s3174] sm:$0xff] %vm142, %v3170
  %3176 = vst.msk [vmem:[%s3174 + $0x8] sm:$0xff] %vm142, %v3171
  %3177 = vst.msk [vmem:[%s3174 + $0x100] sm:$0xff] %vm142, %v3172
  %3178 = vst.msk [vmem:[%s3174 + $0x108] sm:$0xff] %vm142, %v3173
  %v3179 = vmax.f32 %v3037, %v3039
  %v3180 = vmax.f32 %v3038, %v3040
  %v3181 = vmax.f32 %v3101, %v3103
  %v3182 = vmax.f32 %v3102, %v3104
  %s3183 = scalar_lea.vmem %s3, 48
  %3184 = vst.msk [vmem:[%s3183] sm:$0xff] %vm142, %v3179
  %3185 = vst.msk [vmem:[%s3183 + $0x8] sm:$0xff] %vm142, %v3180
  %3186 = vst.msk [vmem:[%s3183 + $0x100] sm:$0xff] %vm142, %v3181
  %3187 = vst.msk [vmem:[%s3183 + $0x108] sm:$0xff] %vm142, %v3182
  %v3188 = vmax.f32 %v3041, %v3043
  %v3189 = vmax.f32 %v3042, %v3044
  %v3190 = vmax.f32 %v3105, %v3107
  %v3191 = vmax.f32 %v3106, %v3108
  %s3192 = scalar_lea.vmem %s3, 64
  %3193 = vst.msk [vmem:[%s3192] sm:$0xff] %vm142, %v3188
  %3194 = vst.msk [vmem:[%s3192 + $0x8] sm:$0xff] %vm142, %v3189
  %3195 = vst.msk [vmem:[%s3192 + $0x100] sm:$0xff] %vm142, %v3190
  %3196 = vst.msk [vmem:[%s3192 + $0x108] sm:$0xff] %vm142, %v3191
  %v3197 = vmax.f32 %v3045, %v3047
  %v3198 = vmax.f32 %v3046, %v3048
  %v3199 = vmax.f32 %v3109, %v3111
  %v3200 = vmax.f32 %v3110, %v3112
  %s3201 = scalar_lea.vmem %s3, 80
  %3202 = vst.msk [vmem:[%s3201] sm:$0xff] %vm142, %v3197
  %3203 = vst.msk [vmem:[%s3201 + $0x8] sm:$0xff] %vm142, %v3198
  %3204 = vst.msk [vmem:[%s3201 + $0x100] sm:$0xff] %vm142, %v3199
  %3205 = vst.msk [vmem:[%s3201 + $0x108] sm:$0xff] %vm142, %v3200
  %v3206 = vmax.f32 %v3049, %v3051
  %v3207 = vmax.f32 %v3050, %v3052
  %v3208 = vmax.f32 %v3113, %v3115
  %v3209 = vmax.f32 %v3114, %v3116
  %s3210 = scalar_lea.vmem %s3, 96
  %3211 = vst.msk [vmem:[%s3210] sm:$0xff] %vm142, %v3206
  %3212 = vst.msk [vmem:[%s3210 + $0x8] sm:$0xff] %vm142, %v3207
  %3213 = vst.msk [vmem:[%s3210 + $0x100] sm:$0xff] %vm142, %v3208
  %3214 = vst.msk [vmem:[%s3210 + $0x108] sm:$0xff] %vm142, %v3209
  %v3215 = vmax.f32 %v3053, %v3055
  %v3216 = vmax.f32 %v3054, %v3056
  %v3217 = vmax.f32 %v3117, %v3119
  %v3218 = vmax.f32 %v3118, %v3120
  %s3219 = scalar_lea.vmem %s3, 112
  %3220 = vst.msk [vmem:[%s3219] sm:$0xff] %vm142, %v3215
  %3221 = vst.msk [vmem:[%s3219 + $0x8] sm:$0xff] %vm142, %v3216
  %3222 = vst.msk [vmem:[%s3219 + $0x100] sm:$0xff] %vm142, %v3217
  %3223 = vst.msk [vmem:[%s3219 + $0x108] sm:$0xff] %vm142, %v3218
  %v3224 = vmax.f32 %v3057, %v3059
  %v3225 = vmax.f32 %v3058, %v3060
  %v3226 = vmax.f32 %v3121, %v3123
  %v3227 = vmax.f32 %v3122, %v3124
  %s3228 = scalar_lea.vmem %s3, 128
  %3229 = vst.msk [vmem:[%s3228] sm:$0xff] %vm142, %v3224
  %3230 = vst.msk [vmem:[%s3228 + $0x8] sm:$0xff] %vm142, %v3225
  %3231 = vst.msk [vmem:[%s3228 + $0x100] sm:$0xff] %vm142, %v3226
  %3232 = vst.msk [vmem:[%s3228 + $0x108] sm:$0xff] %vm142, %v3227
  %v3233 = vmax.f32 %v3061, %v3063
  %v3234 = vmax.f32 %v3062, %v3064
  %v3235 = vmax.f32 %v3125, %v3127
  %v3236 = vmax.f32 %v3126, %v3128
  %s3237 = scalar_lea.vmem %s3, 144
  %3238 = vst.msk [vmem:[%s3237] sm:$0xff] %vm142, %v3233
  %3239 = vst.msk [vmem:[%s3237 + $0x8] sm:$0xff] %vm142, %v3234
  %3240 = vst.msk [vmem:[%s3237 + $0x100] sm:$0xff] %vm142, %v3235
  %3241 = vst.msk [vmem:[%s3237 + $0x108] sm:$0xff] %vm142, %v3236
  %v3242 = vmax.f32 %v3065, %v3067
  %v3243 = vmax.f32 %v3066, %v3068
  %v3244 = vmax.f32 %v3129, %v3131
  %v3245 = vmax.f32 %v3130, %v3132
  %s3246 = scalar_lea.vmem %s3, 160
  %3247 = vst.msk [vmem:[%s3246] sm:$0xff] %vm142, %v3242
  %3248 = vst.msk [vmem:[%s3246 + $0x8] sm:$0xff] %vm142, %v3243
  %3249 = vst.msk [vmem:[%s3246 + $0x100] sm:$0xff] %vm142, %v3244
  %3250 = vst.msk [vmem:[%s3246 + $0x108] sm:$0xff] %vm142, %v3245
  %v3251 = vmax.f32 %v3069, %v3071
  %v3252 = vmax.f32 %v3070, %v3072
  %v3253 = vmax.f32 %v3133, %v3135
  %v3254 = vmax.f32 %v3134, %v3136
  %s3255 = scalar_lea.vmem %s3, 176
  %3256 = vst.msk [vmem:[%s3255] sm:$0xff] %vm142, %v3251
  %3257 = vst.msk [vmem:[%s3255 + $0x8] sm:$0xff] %vm142, %v3252
  %3258 = vst.msk [vmem:[%s3255 + $0x100] sm:$0xff] %vm142, %v3253
  %3259 = vst.msk [vmem:[%s3255 + $0x108] sm:$0xff] %vm142, %v3254
  %v3260 = vmax.f32 %v3073, %v3075
  %v3261 = vmax.f32 %v3074, %v3076
  %v3262 = vmax.f32 %v3137, %v3139
  %v3263 = vmax.f32 %v3138, %v3140
  %s3264 = scalar_lea.vmem %s3, 192
  %3265 = vst.msk [vmem:[%s3264] sm:$0xff] %vm142, %v3260
  %3266 = vst.msk [vmem:[%s3264 + $0x8] sm:$0xff] %vm142, %v3261
  %3267 = vst.msk [vmem:[%s3264 + $0x100] sm:$0xff] %vm142, %v3262
  %3268 = vst.msk [vmem:[%s3264 + $0x108] sm:$0xff] %vm142, %v3263
  %v3269 = vmax.f32 %v3077, %v3079
  %v3270 = vmax.f32 %v3078, %v3080
  %v3271 = vmax.f32 %v3141, %v3143
  %v3272 = vmax.f32 %v3142, %v3144
  %s3273 = scalar_lea.vmem %s3, 208
  %3274 = vst.msk [vmem:[%s3273] sm:$0xff] %vm142, %v3269
  %3275 = vst.msk [vmem:[%s3273 + $0x8] sm:$0xff] %vm142, %v3270
  %3276 = vst.msk [vmem:[%s3273 + $0x100] sm:$0xff] %vm142, %v3271
  %3277 = vst.msk [vmem:[%s3273 + $0x108] sm:$0xff] %vm142, %v3272
  %v3278 = vmax.f32 %v3081, %v3083
  %v3279 = vmax.f32 %v3082, %v3084
  %v3280 = vmax.f32 %v3145, %v3147
  %v3281 = vmax.f32 %v3146, %v3148
  %s3282 = scalar_lea.vmem %s3, 224
  %3283 = vst.msk [vmem:[%s3282] sm:$0xff] %vm142, %v3278
  %3284 = vst.msk [vmem:[%s3282 + $0x8] sm:$0xff] %vm142, %v3279
  %3285 = vst.msk [vmem:[%s3282 + $0x100] sm:$0xff] %vm142, %v3280
  %3286 = vst.msk [vmem:[%s3282 + $0x108] sm:$0xff] %vm142, %v3281
  %v3287 = vmax.f32 %v3085, %v3087
  %v3288 = vmax.f32 %v3086, %v3088
  %v3289 = vmax.f32 %v3149, %v3151
  %v3290 = vmax.f32 %v3150, %v3152
  %s3291 = scalar_lea.vmem %s3, 240
  %3292 = vst.msk [vmem:[%s3291] sm:$0xff] %vm142, %v3287
  %3293 = vst.msk [vmem:[%s3291 + $0x8] sm:$0xff] %vm142, %v3288
  %3294 = vst.msk [vmem:[%s3291 + $0x100] sm:$0xff] %vm142, %v3289
  %3295 = vst.msk [vmem:[%s3291 + $0x108] sm:$0xff] %vm142, %v3290
  // Predicated region
  $region14: #{cnn_cifar_forward.8} parent=0 // pred_check
    _
  $region15: #{cnn_cifar_forward.8} parent=0 // pred_check_branch
    %3297 = sbr.rel (0) target = $region17
  $region16: #{cnn_cifar_forward.8} parent=0 // pred_region
    _
  $region17: #{cnn_cifar_forward.8} parent=0 // pred_fallthru
    _
  // Predicated region
  $region18: #{cnn_cifar_forward.8} parent=0 // pred_check
    _
  $region19: #{cnn_cifar_forward.8} parent=0 // pred_check_branch
    %3299 = sbr.rel (0) target = $region21
  $region20: #{cnn_cifar_forward.8} parent=0 // pred_region
    _
  $region21: #{cnn_cifar_forward.8} parent=0 // pred_fallthru
    _

// kernel: cnn_cifar_forward.9
$region0: #{cnn_cifar_forward.9}
  #allocation0 [shape = 'u32[]', space=smem, size = 0x4, offset = 0x4, fixed_abs, tag = 'smem constant byte address 0x4 - core index']
  #allocation1 [shape = 'u32[72,128]{1,0:T(1,128)}', space=vmem, size = 0x9000, scoped, tag = 'internal scratch']
  %s0 = inlined_call_operand.vmem [shape: bf16[512,576], index: 0, kind: input, shape index: {}]
  %s1 = inlined_call_operand.vmem [shape: bf16[576,128], index: 1, kind: input, shape index: {}]
  %s2 = inlined_call_operand.vmem [shape: f32[1,128], index: 2, kind: input, shape index: {}]
  %s3 = inlined_call_operand.vmem [shape: f32[512,128], index: 3, kind: output, shape index: {}]
  %s4 = sld [smem:[#allocation0]]
  $region45: #{cnn_cifar_forward.9} parent=0
    _
  %s6 = ssub.s32 1, %s4
  %s7 = scalar_select 0, %s6, %s4
  loop: start=0, step=1, limit=4
  $region2: #{cnn_cifar_forward.9} parent=0 // loop_pre_header
    _
  $region3: #{cnn_cifar_forward.9} parent=0 // loop_header
    %s9 = sphi 0, %s13
    %p10 = scmp.ge.s32.totalorder %s9, 4
    %s19 = sphi 0, %s21
    %s22 = sphi 0, %s19
    %s23 = sphi 0, %s22
    %s39 = sphi 0, %s23
    %s43 = sphi 0, %s43
    %s45 = sphi 0, %s43
    %s46 = sphi 0, %s45
    %s60 = sphi 0, %s46
    %s64 = sphi 0, %s64
    %s66 = sphi 0, %s64
    %s67 = sphi 0, %s66
    %s81 = sphi 0, %s67
    %s87 = sphi 0, %s89
    %s90 = sphi 0, %s87
    %s91 = sphi 0, %s90
    %s107 = sphi 0, %s91
  $region4: #{cnn_cifar_forward.9} parent=0 // loop_header_branch
    %12 = sbr.rel (%p10) target = $region8
  $region5: #{cnn_cifar_forward.9} parent=0 // loop_body
    %s14 = ssub.s32 %s9, 1
    %s15 = ssub.s32 %s9, 2
    %s16 = sadd.s32 %s9, 1
    %s17 = ssub.s32 %s9, %s16
    %p18 = scmp.eq.s32.totalorder %s17, 0
    %s20 = sadd.s32 %s19, 1
    %s21 = scalar_select %p18, %s19, %s20
    %p24 = pneg %p18
    %p25 = scmp.eq.s32.totalorder %s9, 1
    %p26 = por %p24, %p25
    %p27 = scmp.ne.s32.totalorder %s19, %s22
    %p28 = scmp.eq.s32.totalorder %s9, 0
    %p29 = por %p27, %p28
    %p30 = scmp.ne.s32.totalorder %s19, %s22
    %p31 = scmp.eq.s32.totalorder %s14, 1
    %p32 = por %p30, %p31
    %p33 = scmp.ne.s32.totalorder %s22, %s23
    %p34 = scmp.eq.s32.totalorder %s14, 0
    %p35 = por %p33, %p34
    %p36 = scmp.ne.s32.totalorder %s22, %s23
    %p37 = scmp.eq.s32.totalorder %s15, 1
    %p38 = por %p36, %p37
    %p40 = scmp.ne.s32.totalorder %s23, %s39
    %p41 = scmp.eq.s32.totalorder %s15, 0
    %p42 = por %p40, %p41
    %s44 = sadd.s32 %s43, 1
    %p47 = scmp.eq.s32.totalorder %s9, 1
    %p48 = scmp.ne.s32.totalorder %s43, %s45
    %p49 = scmp.eq.s32.totalorder %s9, 0
    %p50 = por %p48, %p49
    %p51 = scmp.ne.s32.totalorder %s43, %s45
    %p52 = scmp.eq.s32.totalorder %s14, 1
    %p53 = por %p51, %p52
    %p54 = scmp.ne.s32.totalorder %s45, %s46
    %p55 = scmp.eq.s32.totalorder %s14, 0
    %p56 = por %p54, %p55
    %p57 = scmp.ne.s32.totalorder %s45, %s46
    %p58 = scmp.eq.s32.totalorder %s15, 1
    %p59 = por %p57, %p58
    %p61 = scmp.ne.s32.totalorder %s46, %s60
    %p62 = scmp.eq.s32.totalorder %s15, 0
    %p63 = por %p61, %p62
    %s65 = sadd.s32 %s64, 1
    %p68 = scmp.eq.s32.totalorder %s9, 1
    %p69 = scmp.ne.s32.totalorder %s64, %s66
    %p70 = scmp.eq.s32.totalorder %s9, 0
    %p71 = por %p69, %p70
    %p72 = scmp.ne.s32.totalorder %s64, %s66
    %p73 = scmp.eq.s32.totalorder %s14, 1
    %p74 = por %p72, %p73
    %p75 = scmp.ne.s32.totalorder %s66, %s67
    %p76 = scmp.eq.s32.totalorder %s14, 0
    %p77 = por %p75, %p76
    %p78 = scmp.ne.s32.totalorder %s66, %s67
    %p79 = scmp.eq.s32.totalorder %s15, 1
    %p80 = por %p78, %p79
    %p82 = scmp.ne.s32.totalorder %s67, %s81
    %p83 = scmp.eq.s32.totalorder %s15, 0
    %p84 = por %p82, %p83
    %s85 = ssub.s32 %s9, %s16
    %p86 = scmp.eq.s32.totalorder %s85, 0
    %s88 = sadd.s32 %s87, 1
    %s89 = scalar_select %p86, %s87, %s88
    %p92 = pneg %p86
    %p93 = scmp.eq.s32.totalorder %s9, 1
    %p94 = por %p92, %p93
    %p95 = scmp.ne.s32.totalorder %s87, %s90
    %p96 = scmp.eq.s32.totalorder %s9, 0
    %p97 = por %p95, %p96
    %p98 = scmp.ne.s32.totalorder %s87, %s90
    %p99 = scmp.eq.s32.totalorder %s14, 1
    %p100 = por %p98, %p99
    %p101 = scmp.ne.s32.totalorder %s90, %s91
    %p102 = scmp.eq.s32.totalorder %s14, 0
    %p103 = por %p101, %p102
    %p104 = scmp.ne.s32.totalorder %s90, %s91
    %p105 = scmp.eq.s32.totalorder %s15, 1
    %p106 = por %p104, %p105
    %p108 = scmp.ne.s32.totalorder %s91, %s107
    %p109 = scmp.eq.s32.totalorder %s15, 0
    %p110 = por %p108, %p109
    %p111 = scmp.le.s32.totalorder 1, %s9
    %p112 = scmp.lt.s32.totalorder %s9, 3
    %p113 = pnand %p111, %p112
    %p114 = pneg %p113
    // Predicated region
    $region9: #{cnn_cifar_forward.9} parent=5 // pred_check
      _
    $region10: #{cnn_cifar_forward.9} parent=5 // pred_check_branch
      %116 = sbr.rel (%p113) target = $region12
    $region11: #{cnn_cifar_forward.9} parent=5 // pred_region
      %s117 = ssub.s32 %s9, 1
      // Predicated region
      $region13: #{cnn_cifar_forward.9} parent=11 // pred_check
        %p118 = pneg %p56
      $region14: #{cnn_cifar_forward.9} parent=11 // pred_check_branch
        %120 = sbr.rel (%p118) target = $region16
      $region15: #{cnn_cifar_forward.9} parent=11 // pred_region
        _
      $region16: #{cnn_cifar_forward.9} parent=11 // pred_fallthru
        _
      // Predicated region
      $region17: #{cnn_cifar_forward.9} parent=11 // pred_check
        %p121 = pneg %p77
      $region18: #{cnn_cifar_forward.9} parent=11 // pred_check_branch
        %123 = sbr.rel (%p121) target = $region20
      $region19: #{cnn_cifar_forward.9} parent=11 // pred_region
        _
      $region20: #{cnn_cifar_forward.9} parent=11 // pred_fallthru
        _
    $region12: #{cnn_cifar_forward.9} parent=5 // pred_fallthru
      _
    %p124 = scmp.lt.s32.totalorder %s9, 2
    // Predicated region
    $region21: #{cnn_cifar_forward.9} parent=5 // pred_check
      %p125 = pneg %p124
    $region22: #{cnn_cifar_forward.9} parent=5 // pred_check_branch
      %127 = sbr.rel (%p125) target = $region24
    $region23: #{cnn_cifar_forward.9} parent=5 // pred_region
      // Predicated region
      $region25: #{cnn_cifar_forward.9} parent=23 // pred_check
        %p128 = pneg %p29
      $region26: #{cnn_cifar_forward.9} parent=23 // pred_check_branch
        %130 = sbr.rel (%p128) target = $region28
      $region27: #{cnn_cifar_forward.9} parent=23 // pred_region
        %s131 = smul.u32 32, %s9
        %p132 = scmp.lt.s32.totalorder %s131, 63
        %s133 = scalar_select %p132, %s131, 63
        %s134 = smul.addr %s133, 5
        %s135 = smul.addr %s134, 4
        %s136 = scalar_lea.vmem %s0, %s135
        %s137 = smul.u32 32, %s9
      $region28: #{cnn_cifar_forward.9} parent=23 // pred_fallthru
        _
    $region24: #{cnn_cifar_forward.9} parent=5 // pred_fallthru
      _
    %p138 = scmp.le.s32.totalorder 1, %s9
    %p139 = scmp.lt.s32.totalorder %s9, 3
    %p140 = pnand %p138, %p139
    %p141 = pneg %p140
    // Predicated region
    $region29: #{cnn_cifar_forward.9} parent=5 // pred_check
      _
    $region30: #{cnn_cifar_forward.9} parent=5 // pred_check_branch
      %143 = sbr.rel (%p140) target = $region32
    $region31: #{cnn_cifar_forward.9} parent=5 // pred_region
      %s144 = ssub.s32 %s9, 1
      %s145 = smul.u32 32, %s14
      %p146 = scmp.lt.s32.totalorder %s145, 63
      %s147 = scalar_select %p146, %s145, 63
      %s148 = smul.addr %s147, 5
      %s149 = smul.addr %s148, 4
      %s150 = scalar_lea.vmem %s0, %s149
      %p151 = pneg %p35
      %p152 = pneg %p32
      %p153 = pneg %p56
      %p154 = pneg %p53
      %p155 = pneg %p77
      %p156 = pneg %p74
      %p157 = pneg %p103
      %p158 = pneg %p100
      %s159 = smul.u32 32, %s14
      %p160 = scmp.lt.s32.totalorder %s159, 63
      %s161 = scalar_select %p160, %s159, 63
      %s162 = smul.addr %s161, 8
      %s163 = scalar_lea.vmem %s3, %s162
      %s164 = smul.u32 32, %s14
      %p165 = scmp.lt.s32.totalorder %s164, 63
      %s166 = scalar_select %p165, %s164, 63
      %s167 = smul.addr %s166, 5
      %s168 = smul.addr %s167, 4
      %s169 = scalar_lea.vmem %s0, %s168
      %s170 = smul.u32 32, %s14
      %s171 = smul.u32 32, %s14
      %p172 = scmp.lt.s32.totalorder %s171, 63
      %s173 = scalar_select %p172, %s171, 63
      %s174 = smul.addr %s173, 8
      %s175 = scalar_lea.vmem %s3, %s174
      %s176 = smul.u32 32, %s14
      %v178 = vld [vmem:[%s169] sm:$0xff]
      %v179 = vld [vmem:[%s169 + $0x8] sm:$0xff]
      %v180 = vld [vmem:[%s169 + $0x10] sm:$0xf]
      %v181 = vld [vmem:[%s169 + $0x14] sm:$0xff]
      %v182 = vld [vmem:[%s169 + $0x1c] sm:$0xff]
      %v183 = vld [vmem:[%s169 + $0x24] sm:$0xf]
      %v184 = vld [vmem:[%s169 + $0x28] sm:$0xff]
      %v185 = vld [vmem:[%s169 + $0x30] sm:$0xff]
      %v186 = vld [vmem:[%s169 + $0x38] sm:$0xf]
      %v187 = vld [vmem:[%s169 + $0x3c] sm:$0xff]
      %v188 = vld [vmem:[%s169 + $0x44] sm:$0xff]
      %v189 = vld [vmem:[%s169 + $0x4c] sm:$0xf]
      %v190 = vld [vmem:[%s169 + $0x50] sm:$0xff]
      %v191 = vld [vmem:[%s169 + $0x58] sm:$0xff]
      %v192 = vld [vmem:[%s169 + $0x60] sm:$0xf]
      %v193 = vld [vmem:[%s169 + $0x64] sm:$0xff]
      %v194 = vld [vmem:[%s169 + $0x6c] sm:$0xff]
      %v195 = vld [vmem:[%s169 + $0x74] sm:$0xf]
      %v196 = vld [vmem:[%s169 + $0x78] sm:$0xff]
      %v197 = vld [vmem:[%s169 + $0x80] sm:$0xff]
      %v198 = vld [vmem:[%s169 + $0x88] sm:$0xf]
      %v199 = vld [vmem:[%s169 + $0x8c] sm:$0xff]
      %v200 = vld [vmem:[%s169 + $0x94] sm:$0xff]
      %v201 = vld [vmem:[%s169 + $0x9c] sm:$0xf]
      %v202 = vld [vmem:[%s169 + $0xa0] sm:$0xff]
      %v203 = vld [vmem:[%s169 + $0xa8] sm:$0xff]
      %v204 = vld [vmem:[%s169 + $0xb0] sm:$0xf]
      %v205 = vld [vmem:[%s169 + $0xb4] sm:$0xff]
      %v206 = vld [vmem:[%s169 + $0xbc] sm:$0xff]
      %v207 = vld [vmem:[%s169 + $0xc4] sm:$0xf]
      %v208 = vld [vmem:[%s169 + $0xc8] sm:$0xff]
      %v209 = vld [vmem:[%s169 + $0xd0] sm:$0xff]
      %v210 = vld [vmem:[%s169 + $0xd8] sm:$0xf]
      %v211 = vld [vmem:[%s169 + $0xdc] sm:$0xff]
      %v212 = vld [vmem:[%s169 + $0xe4] sm:$0xff]
      %v213 = vld [vmem:[%s169 + $0xec] sm:$0xf]
      %v214 = vld [vmem:[%s169 + $0xf0] sm:$0xff]
      %v215 = vld [vmem:[%s169 + $0xf8] sm:$0xff]
      %v216 = vld [vmem:[%s169 + $0x100] sm:$0xf]
      %v217 = vld [vmem:[%s169 + $0x104] sm:$0xff]
      %v218 = vld [vmem:[%s169 + $0x10c] sm:$0xff]
      %v219 = vld [vmem:[%s169 + $0x114] sm:$0xf]
      %v220 = vld [vmem:[%s169 + $0x118] sm:$0xff]
      %v221 = vld [vmem:[%s169 + $0x120] sm:$0xff]
      %v222 = vld [vmem:[%s169 + $0x128] sm:$0xf]
      %v223 = vld [vmem:[%s169 + $0x12c] sm:$0xff]
      %v224 = vld [vmem:[%s169 + $0x134] sm:$0xff]
      %v225 = vld [vmem:[%s169 + $0x13c] sm:$0xf]
      %v226 = vld [vmem:[%s169 + $0x140] sm:$0xff]
      %v227 = vld [vmem:[%s169 + $0x148] sm:$0xff]
      %v228 = vld [vmem:[%s169 + $0x150] sm:$0xf]
      %v229 = vld [vmem:[%s169 + $0x154] sm:$0xff]
      %v230 = vld [vmem:[%s169 + $0x15c] sm:$0xff]
      %v231 = vld [vmem:[%s169 + $0x164] sm:$0xf]
      %v232 = vld [vmem:[%s169 + $0x168] sm:$0xff]
      %v233 = vld [vmem:[%s169 + $0x170] sm:$0xff]
      %v234 = vld [vmem:[%s169 + $0x178] sm:$0xf]
      %v235 = vld [vmem:[%s169 + $0x17c] sm:$0xff]
      %v236 = vld [vmem:[%s169 + $0x184] sm:$0xff]
      %v237 = vld [vmem:[%s169 + $0x18c] sm:$0xf]
      %v238 = vld [vmem:[%s169 + $0x190] sm:$0xff]
      %v239 = vld [vmem:[%s169 + $0x198] sm:$0xff]
      %v240 = vld [vmem:[%s169 + $0x1a0] sm:$0xf]
      %v241 = vld [vmem:[%s169 + $0x1a4] sm:$0xff]
      %v242 = vld [vmem:[%s169 + $0x1ac] sm:$0xff]
      %v243 = vld [vmem:[%s169 + $0x1b4] sm:$0xf]
      %v244 = vld [vmem:[%s169 + $0x1b8] sm:$0xff]
      %v245 = vld [vmem:[%s169 + $0x1c0] sm:$0xff]
      %v246 = vld [vmem:[%s169 + $0x1c8] sm:$0xf]
      %v247 = vld [vmem:[%s169 + $0x1cc] sm:$0xff]
      %v248 = vld [vmem:[%s169 + $0x1d4] sm:$0xff]
      %v249 = vld [vmem:[%s169 + $0x1dc] sm:$0xf]
      %v250 = vld [vmem:[%s169 + $0x1e0] sm:$0xff]
      %v251 = vld [vmem:[%s169 + $0x1e8] sm:$0xff]
      %v252 = vld [vmem:[%s169 + $0x1f0] sm:$0xf]
      %v253 = vld [vmem:[%s169 + $0x1f4] sm:$0xff]
      %v254 = vld [vmem:[%s169 + $0x1fc] sm:$0xff]
      %v255 = vld [vmem:[%s169 + $0x204] sm:$0xf]
      %v256 = vld [vmem:[%s169 + $0x208] sm:$0xff]
      %v257 = vld [vmem:[%s169 + $0x210] sm:$0xff]
      %v258 = vld [vmem:[%s169 + $0x218] sm:$0xf]
      %v259 = vld [vmem:[%s169 + $0x21c] sm:$0xff]
      %v260 = vld [vmem:[%s169 + $0x224] sm:$0xff]
      %v261 = vld [vmem:[%s169 + $0x22c] sm:$0xf]
      %v262 = vld [vmem:[%s169 + $0x230] sm:$0xff]
      %v263 = vld [vmem:[%s169 + $0x238] sm:$0xff]
      %v264 = vld [vmem:[%s169 + $0x240] sm:$0xf]
      %v265 = vld [vmem:[%s169 + $0x244] sm:$0xff]
      %v266 = vld [vmem:[%s169 + $0x24c] sm:$0xff]
      %v267 = vld [vmem:[%s169 + $0x254] sm:$0xf]
      %v268 = vld [vmem:[%s169 + $0x258] sm:$0xff]
      %v269 = vld [vmem:[%s169 + $0x260] sm:$0xff]
      %v270 = vld [vmem:[%s169 + $0x268] sm:$0xf]
      %v271 = vld [vmem:[%s169 + $0x26c] sm:$0xff]
      %v272 = vld [vmem:[%s169 + $0x274] sm:$0xff]
      %v273 = vld [vmem:[%s169 + $0x27c] sm:$0xf]
      %v274 = vld [vmem:[%s1] sm:$0xf]
      %v275 = vld [vmem:[%s1 + $0x4] sm:$0xf]
      %v276 = vld [vmem:[%s1 + $0x8] sm:$0xf]
      %v277 = vld [vmem:[%s1 + $0xc] sm:$0xf]
      %v278 = vld [vmem:[%s1 + $0x10] sm:$0xf]
      %v279 = vld [vmem:[%s1 + $0x14] sm:$0xf]
      %v280 = vld [vmem:[%s1 + $0x18] sm:$0xf]
      %v281 = vld [vmem:[%s1 + $0x1c] sm:$0xf]
      %v282 = vld [vmem:[%s1 + $0x20] sm:$0xf]
      %v283 = vld [vmem:[%s1 + $0x24] sm:$0xf]
      %v284 = vld [vmem:[%s1 + $0x28] sm:$0xf]
      %v285 = vld [vmem:[%s1 + $0x2c] sm:$0xf]
      %v286 = vld [vmem:[%s1 + $0x30] sm:$0xf]
      %v287 = vld [vmem:[%s1 + $0x34] sm:$0xf]
      %v288 = vld [vmem:[%s1 + $0x38] sm:$0xf]
      %v289 = vld [vmem:[%s1 + $0x3c] sm:$0xf]
      %v290 = vld [vmem:[%s1 + $0x40] sm:$0xf]
      %v291 = vld [vmem:[%s1 + $0x44] sm:$0xf]
      %v292 = vld [vmem:[%s1 + $0x48] sm:$0xf]
      %v293 = vld [vmem:[%s1 + $0x4c] sm:$0xf]
      %v294 = vld [vmem:[%s1 + $0x50] sm:$0xf]
      %v295 = vld [vmem:[%s1 + $0x54] sm:$0xf]
      %v296 = vld [vmem:[%s1 + $0x58] sm:$0xf]
      %v297 = vld [vmem:[%s1 + $0x5c] sm:$0xf]
      %v298 = vld [vmem:[%s1 + $0x60] sm:$0xf]
      %v299 = vld [vmem:[%s1 + $0x64] sm:$0xf]
      %v300 = vld [vmem:[%s1 + $0x68] sm:$0xf]
      %v301 = vld [vmem:[%s1 + $0x6c] sm:$0xf]
      %v302 = vld [vmem:[%s1 + $0x70] sm:$0xf]
      %v303 = vld [vmem:[%s1 + $0x74] sm:$0xf]
      %v304 = vld [vmem:[%s1 + $0x78] sm:$0xf]
      %v305 = vld [vmem:[%s1 + $0x7c] sm:$0xf]
      %v306 = vld [vmem:[%s1 + $0x80] sm:$0xf]
      %v307 = vld [vmem:[%s1 + $0x84] sm:$0xf]
      %v308 = vld [vmem:[%s1 + $0x88] sm:$0xf]
      %v309 = vld [vmem:[%s1 + $0x8c] sm:$0xf]
      %v310 = vld [vmem:[%s1 + $0x90] sm:$0xf]
      %v311 = vld [vmem:[%s1 + $0x94] sm:$0xf]
      %v312 = vld [vmem:[%s1 + $0x98] sm:$0xf]
      %v313 = vld [vmem:[%s1 + $0x9c] sm:$0xf]
      %v314 = vld [vmem:[%s1 + $0xa0] sm:$0xf]
      %v315 = vld [vmem:[%s1 + $0xa4] sm:$0xf]
      %v316 = vld [vmem:[%s1 + $0xa8] sm:$0xf]
      %v317 = vld [vmem:[%s1 + $0xac] sm:$0xf]
      %v318 = vld [vmem:[%s1 + $0xb0] sm:$0xf]
      %v319 = vld [vmem:[%s1 + $0xb4] sm:$0xf]
      %v320 = vld [vmem:[%s1 + $0xb8] sm:$0xf]
      %v321 = vld [vmem:[%s1 + $0xbc] sm:$0xf]
      %v322 = vld [vmem:[%s1 + $0xc0] sm:$0xf]
      %v323 = vld [vmem:[%s1 + $0xc4] sm:$0xf]
      %v324 = vld [vmem:[%s1 + $0xc8] sm:$0xf]
      %v325 = vld [vmem:[%s1 + $0xcc] sm:$0xf]
      %v326 = vld [vmem:[%s1 + $0xd0] sm:$0xf]
      %v327 = vld [vmem:[%s1 + $0xd4] sm:$0xf]
      %v328 = vld [vmem:[%s1 + $0xd8] sm:$0xf]
      %v329 = vld [vmem:[%s1 + $0xdc] sm:$0xf]
      %v330 = vld [vmem:[%s1 + $0xe0] sm:$0xf]
      %v331 = vld [vmem:[%s1 + $0xe4] sm:$0xf]
      %v332 = vld [vmem:[%s1 + $0xe8] sm:$0xf]
      %v333 = vld [vmem:[%s1 + $0xec] sm:$0xf]
      %v334 = vld [vmem:[%s1 + $0xf0] sm:$0xf]
      %v335 = vld [vmem:[%s1 + $0xf4] sm:$0xf]
      %v336 = vld [vmem:[%s1 + $0xf8] sm:$0xf]
      %v337 = vld [vmem:[%s1 + $0xfc] sm:$0xf]
      %v338 = vld [vmem:[%s1 + $0x100] sm:$0xf]
      %v339 = vld [vmem:[%s1 + $0x104] sm:$0xf]
      %v340 = vld [vmem:[%s1 + $0x108] sm:$0xf]
      %v341 = vld [vmem:[%s1 + $0x10c] sm:$0xf]
      %v342 = vld [vmem:[%s1 + $0x110] sm:$0xf]
      %v343 = vld [vmem:[%s1 + $0x114] sm:$0xf]
      %v344 = vld [vmem:[%s1 + $0x118] sm:$0xf]
      %v345 = vld [vmem:[%s1 + $0x11c] sm:$0xf]
      %v346 = vld [vmem:[%s2] sm:$0x1]
      %v348 = vperm.slane %v346, 0
      %v446 = vunpack.c.l.b16 %v178
      %v447 = vunpack.c.h.b16 %v178
      %v448 = vunpack.c.l.b16 %v179
      %v449 = vunpack.c.h.b16 %v179
      %v450 = vunpack.c.l.b16 %v180
      %v451 = vunpack.c.l.b16 %v181
      %v452 = vunpack.c.h.b16 %v181
      %v453 = vunpack.c.l.b16 %v182
      %v454 = vunpack.c.h.b16 %v182
      %v455 = vunpack.c.l.b16 %v183
      %v456 = vunpack.c.l.b16 %v184
      %v457 = vunpack.c.h.b16 %v184
      %v458 = vunpack.c.l.b16 %v185
      %v459 = vunpack.c.h.b16 %v185
      %v460 = vunpack.c.l.b16 %v186
      %v461 = vunpack.c.l.b16 %v187
      %v462 = vunpack.c.h.b16 %v187
      %v463 = vunpack.c.l.b16 %v188
      %v464 = vunpack.c.h.b16 %v188
      %v465 = vunpack.c.l.b16 %v189
      %v466 = vunpack.c.l.b16 %v190
      %v467 = vunpack.c.h.b16 %v190
      %v468 = vunpack.c.l.b16 %v191
      %v469 = vunpack.c.h.b16 %v191
      %v470 = vunpack.c.l.b16 %v192
      %v471 = vunpack.c.l.b16 %v193
      %v472 = vunpack.c.h.b16 %v193
      %v473 = vunpack.c.l.b16 %v194
      %v474 = vunpack.c.h.b16 %v194
      %v475 = vunpack.c.l.b16 %v195
      %v476 = vunpack.c.l.b16 %v196
      %v477 = vunpack.c.h.b16 %v196
      %v478 = vunpack.c.l.b16 %v197
      %v479 = vunpack.c.h.b16 %v197
      %v480 = vunpack.c.l.b16 %v198
      %v481 = vunpack.c.l.b16 %v199
      %v482 = vunpack.c.h.b16 %v199
      %v483 = vunpack.c.l.b16 %v200
      %v484 = vunpack.c.h.b16 %v200
      %v485 = vunpack.c.l.b16 %v201
      %v486 = vunpack.c.l.b16 %v202
      %v487 = vunpack.c.h.b16 %v202
      %v488 = vunpack.c.l.b16 %v203
      %v489 = vunpack.c.h.b16 %v203
      %v490 = vunpack.c.l.b16 %v204
      %v491 = vunpack.c.l.b16 %v205
      %v492 = vunpack.c.h.b16 %v205
      %v493 = vunpack.c.l.b16 %v206
      %v494 = vunpack.c.h.b16 %v206
      %v495 = vunpack.c.l.b16 %v207
      %v496 = vunpack.c.l.b16 %v208
      %v497 = vunpack.c.h.b16 %v208
      %v498 = vunpack.c.l.b16 %v209
      %v499 = vunpack.c.h.b16 %v209
      %v500 = vunpack.c.l.b16 %v210
      %v501 = vunpack.c.l.b16 %v211
      %v502 = vunpack.c.h.b16 %v211
      %v503 = vunpack.c.l.b16 %v212
      %v504 = vunpack.c.h.b16 %v212
      %v505 = vunpack.c.l.b16 %v213
      %v506 = vunpack.c.l.b16 %v214
      %v507 = vunpack.c.h.b16 %v214
      %v508 = vunpack.c.l.b16 %v215
      %v509 = vunpack.c.h.b16 %v215
      %v510 = vunpack.c.l.b16 %v216
      %v511 = vunpack.c.l.b16 %v217
      %v512 = vunpack.c.h.b16 %v217
      %v513 = vunpack.c.l.b16 %v218
      %v514 = vunpack.c.h.b16 %v218
      %v515 = vunpack.c.l.b16 %v219
      %v516 = vunpack.c.l.b16 %v220
      %v517 = vunpack.c.h.b16 %v220
      %v518 = vunpack.c.l.b16 %v221
      %v519 = vunpack.c.h.b16 %v221
      %v520 = vunpack.c.l.b16 %v222
      %v521 = vunpack.c.l.b16 %v223
      %v522 = vunpack.c.h.b16 %v223
      %v523 = vunpack.c.l.b16 %v224
      %v524 = vunpack.c.h.b16 %v224
      %v525 = vunpack.c.l.b16 %v225
      %v526 = vunpack.c.l.b16 %v226
      %v527 = vunpack.c.h.b16 %v226
      %v528 = vunpack.c.l.b16 %v227
      %v529 = vunpack.c.h.b16 %v227
      %v530 = vunpack.c.l.b16 %v228
      %v531 = vunpack.c.l.b16 %v229
      %v532 = vunpack.c.h.b16 %v229
      %v533 = vunpack.c.l.b16 %v230
      %v534 = vunpack.c.h.b16 %v230
      %v535 = vunpack.c.l.b16 %v231
      %v536 = vunpack.c.l.b16 %v232
      %v537 = vunpack.c.h.b16 %v232
      %v538 = vunpack.c.l.b16 %v233
      %v539 = vunpack.c.h.b16 %v233
      %v540 = vunpack.c.l.b16 %v234
      %v541 = vunpack.c.l.b16 %v235
      %v542 = vunpack.c.h.b16 %v235
      %v543 = vunpack.c.l.b16 %v236
      %v544 = vunpack.c.h.b16 %v236
      %v545 = vunpack.c.l.b16 %v237
      %v546 = vunpack.c.l.b16 %v238
      %v547 = vunpack.c.h.b16 %v238
      %v548 = vunpack.c.l.b16 %v239
      %v549 = vunpack.c.h.b16 %v239
      %v550 = vunpack.c.l.b16 %v240
      %v551 = vunpack.c.l.b16 %v241
      %v552 = vunpack.c.h.b16 %v241
      %v553 = vunpack.c.l.b16 %v242
      %v554 = vunpack.c.h.b16 %v242
      %v555 = vunpack.c.l.b16 %v243
      %v556 = vunpack.c.l.b16 %v244
      %v557 = vunpack.c.h.b16 %v244
      %v558 = vunpack.c.l.b16 %v245
      %v559 = vunpack.c.h.b16 %v245
      %v560 = vunpack.c.l.b16 %v246
      %v561 = vunpack.c.l.b16 %v247
      %v562 = vunpack.c.h.b16 %v247
      %v563 = vunpack.c.l.b16 %v248
      %v564 = vunpack.c.h.b16 %v248
      %v565 = vunpack.c.l.b16 %v249
      %v566 = vunpack.c.l.b16 %v250
      %v567 = vunpack.c.h.b16 %v250
      %v568 = vunpack.c.l.b16 %v251
      %v569 = vunpack.c.h.b16 %v251
      %v570 = vunpack.c.l.b16 %v252
      %v571 = vunpack.c.l.b16 %v253
      %v572 = vunpack.c.h.b16 %v253
      %v573 = vunpack.c.l.b16 %v254
      %v574 = vunpack.c.h.b16 %v254
      %v575 = vunpack.c.l.b16 %v255
      %v576 = vunpack.c.l.b16 %v256
      %v577 = vunpack.c.h.b16 %v256
      %v578 = vunpack.c.l.b16 %v257
      %v579 = vunpack.c.h.b16 %v257
      %v580 = vunpack.c.l.b16 %v258
      %v581 = vunpack.c.l.b16 %v259
      %v582 = vunpack.c.h.b16 %v259
      %v583 = vunpack.c.l.b16 %v260
      %v584 = vunpack.c.h.b16 %v260
      %v585 = vunpack.c.l.b16 %v261
      %v586 = vunpack.c.l.b16 %v262
      %v587 = vunpack.c.h.b16 %v262
      %v588 = vunpack.c.l.b16 %v263
      %v589 = vunpack.c.h.b16 %v263
      %v590 = vunpack.c.l.b16 %v264
      %v591 = vunpack.c.l.b16 %v265
      %v592 = vunpack.c.h.b16 %v265
      %v593 = vunpack.c.l.b16 %v266
      %v594 = vunpack.c.h.b16 %v266
      %v595 = vunpack.c.l.b16 %v267
      %v596 = vunpack.c.l.b16 %v268
      %v597 = vunpack.c.h.b16 %v268
      %v598 = vunpack.c.l.b16 %v269
      %v599 = vunpack.c.h.b16 %v269
      %v600 = vunpack.c.l.b16 %v270
      %v601 = vunpack.c.l.b16 %v271
      %v602 = vunpack.c.h.b16 %v271
      %v603 = vunpack.c.l.b16 %v272
      %v604 = vunpack.c.h.b16 %v272
      %v605 = vunpack.c.l.b16 %v273
      %v606 = vpack.c.b16 %v451, %v446
      %v607 = vpack.c.b16 %v452, %v447
      %v608 = vpack.c.b16 %v453, %v448
      %v609 = vpack.c.b16 %v454, %v449
      %v610 = vpack.c.b16 %v455, %v450
      %v611 = vpack.c.b16 %v461, %v456
      %v612 = vpack.c.b16 %v462, %v457
      %v613 = vpack.c.b16 %v463, %v458
      %v614 = vpack.c.b16 %v464, %v459
      %v615 = vpack.c.b16 %v465, %v460
      %v616 = vpack.c.b16 %v471, %v466
      %v617 = vpack.c.b16 %v472, %v467
      %v618 = vpack.c.b16 %v473, %v468
      %v619 = vpack.c.b16 %v474, %v469
      %v620 = vpack.c.b16 %v475, %v470
      %v621 = vpack.c.b16 %v481, %v476
      %v622 = vpack.c.b16 %v482, %v477
      %v623 = vpack.c.b16 %v483, %v478
      %v624 = vpack.c.b16 %v484, %v479
      %v625 = vpack.c.b16 %v485, %v480
      %v626 = vpack.c.b16 %v491, %v486
      %v627 = vpack.c.b16 %v492, %v487
      %v628 = vpack.c.b16 %v493, %v488
      %v629 = vpack.c.b16 %v494, %v489
      %v630 = vpack.c.b16 %v495, %v490
      %v631 = vpack.c.b16 %v501, %v496
      %v632 = vpack.c.b16 %v502, %v497
      %v633 = vpack.c.b16 %v503, %v498
      %v634 = vpack.c.b16 %v504, %v499
      %v635 = vpack.c.b16 %v505, %v500
      %v636 = vpack.c.b16 %v511, %v506
      %v637 = vpack.c.b16 %v512, %v507
      %v638 = vpack.c.b16 %v513, %v508
      %v639 = vpack.c.b16 %v514, %v509
      %v640 = vpack.c.b16 %v515, %v510
      %v641 = vpack.c.b16 %v521, %v516
      %v642 = vpack.c.b16 %v522, %v517
      %v643 = vpack.c.b16 %v523, %v518
      %v644 = vpack.c.b16 %v524, %v519
      %v645 = vpack.c.b16 %v525, %v520
      %v646 = vpack.c.b16 %v531, %v526
      %v647 = vpack.c.b16 %v532, %v527
      %v648 = vpack.c.b16 %v533, %v528
      %v649 = vpack.c.b16 %v534, %v529
      %v650 = vpack.c.b16 %v535, %v530
      %v651 = vpack.c.b16 %v541, %v536
      %v652 = vpack.c.b16 %v542, %v537
      %v653 = vpack.c.b16 %v543, %v538
      %v654 = vpack.c.b16 %v544, %v539
      %v655 = vpack.c.b16 %v545, %v540
      %v656 = vpack.c.b16 %v551, %v546
      %v657 = vpack.c.b16 %v552, %v547
      %v658 = vpack.c.b16 %v553, %v548
      %v659 = vpack.c.b16 %v554, %v549
      %v660 = vpack.c.b16 %v555, %v550
      %v661 = vpack.c.b16 %v561, %v556
      %v662 = vpack.c.b16 %v562, %v557
      %v663 = vpack.c.b16 %v563, %v558
      %v664 = vpack.c.b16 %v564, %v559
      %v665 = vpack.c.b16 %v565, %v560
      %v666 = vpack.c.b16 %v571, %v566
      %v667 = vpack.c.b16 %v572, %v567
      %v668 = vpack.c.b16 %v573, %v568
      %v669 = vpack.c.b16 %v574, %v569
      %v670 = vpack.c.b16 %v575, %v570
      %v671 = vpack.c.b16 %v581, %v576
      %v672 = vpack.c.b16 %v582, %v577
      %v673 = vpack.c.b16 %v583, %v578
      %v674 = vpack.c.b16 %v584, %v579
      %v675 = vpack.c.b16 %v585, %v580
      %v676 = vpack.c.b16 %v591, %v586
      %v677 = vpack.c.b16 %v592, %v587
      %v678 = vpack.c.b16 %v593, %v588
      %v679 = vpack.c.b16 %v594, %v589
      %v680 = vpack.c.b16 %v595, %v590
      %v681 = vpack.c.b16 %v601, %v596
      %v682 = vpack.c.b16 %v602, %v597
      %v683 = vpack.c.b16 %v603, %v598
      %v684 = vpack.c.b16 %v604, %v599
      %v685 = vpack.c.b16 %v605, %v600
      %v822 = vunpack.c.l.b16 %v274
      %v823 = vunpack.c.l.b16 %v275
      %v824 = vunpack.c.l.b16 %v276
      %v825 = vunpack.c.l.b16 %v277
      %v826 = vunpack.c.l.b16 %v278
      %v827 = vunpack.c.l.b16 %v279
      %v828 = vunpack.c.l.b16 %v280
      %v829 = vunpack.c.l.b16 %v281
      %v830 = vunpack.c.l.b16 %v282
      %v831 = vunpack.c.l.b16 %v283
      %v832 = vunpack.c.l.b16 %v284
      %v833 = vunpack.c.l.b16 %v285
      %v834 = vunpack.c.l.b16 %v286
      %v835 = vunpack.c.l.b16 %v287
      %v836 = vunpack.c.l.b16 %v288
      %v837 = vunpack.c.l.b16 %v289
      %v838 = vunpack.c.l.b16 %v290
      %v839 = vunpack.c.l.b16 %v291
      %v840 = vunpack.c.l.b16 %v292
      %v841 = vunpack.c.l.b16 %v293
      %v842 = vunpack.c.l.b16 %v294
      %v843 = vunpack.c.l.b16 %v295
      %v844 = vunpack.c.l.b16 %v296
      %v845 = vunpack.c.l.b16 %v297
      %v846 = vunpack.c.l.b16 %v298
      %v847 = vunpack.c.l.b16 %v299
      %v848 = vunpack.c.l.b16 %v300
      %v849 = vunpack.c.l.b16 %v301
      %v850 = vunpack.c.l.b16 %v302
      %v851 = vunpack.c.l.b16 %v303
      %v852 = vunpack.c.l.b16 %v304
      %v853 = vunpack.c.l.b16 %v305
      %v854 = vunpack.c.l.b16 %v306
      %v855 = vunpack.c.l.b16 %v307
      %v856 = vunpack.c.l.b16 %v308
      %v857 = vunpack.c.l.b16 %v309
      %v858 = vunpack.c.l.b16 %v310
      %v859 = vunpack.c.l.b16 %v311
      %v860 = vunpack.c.l.b16 %v312
      %v861 = vunpack.c.l.b16 %v313
      %v862 = vunpack.c.l.b16 %v314
      %v863 = vunpack.c.l.b16 %v315
      %v864 = vunpack.c.l.b16 %v316
      %v865 = vunpack.c.l.b16 %v317
      %v866 = vunpack.c.l.b16 %v318
      %v867 = vunpack.c.l.b16 %v319
      %v868 = vunpack.c.l.b16 %v320
      %v869 = vunpack.c.l.b16 %v321
      %v870 = vunpack.c.l.b16 %v322
      %v871 = vunpack.c.l.b16 %v323
      %v872 = vunpack.c.l.b16 %v324
      %v873 = vunpack.c.l.b16 %v325
      %v874 = vunpack.c.l.b16 %v326
      %v875 = vunpack.c.l.b16 %v327
      %v876 = vunpack.c.l.b16 %v328
      %v877 = vunpack.c.l.b16 %v329
      %v878 = vunpack.c.l.b16 %v330
      %v879 = vunpack.c.l.b16 %v331
      %v880 = vunpack.c.l.b16 %v332
      %v881 = vunpack.c.l.b16 %v333
      %v882 = vunpack.c.l.b16 %v334
      %v883 = vunpack.c.l.b16 %v335
      %v884 = vunpack.c.l.b16 %v336
      %v885 = vunpack.c.l.b16 %v337
      %v886 = vunpack.c.l.b16 %v338
      %v887 = vunpack.c.l.b16 %v339
      %v888 = vunpack.c.l.b16 %v340
      %v889 = vunpack.c.l.b16 %v341
      %v890 = vunpack.c.l.b16 %v342
      %v891 = vunpack.c.l.b16 %v343
      %v892 = vunpack.c.l.b16 %v344
      %v893 = vunpack.c.l.b16 %v345
      %v894 = vpack.c.b16 %v823, %v822
      %v895 = vpack.c.b16 %v825, %v824
      %v896 = vpack.c.b16 %v827, %v826
      %v897 = vpack.c.b16 %v829, %v828
      %v898 = vpack.c.b16 %v831, %v830
      %v899 = vpack.c.b16 %v833, %v832
      %v900 = vpack.c.b16 %v835, %v834
      %v901 = vpack.c.b16 %v837, %v836
      %v902 = vpack.c.b16 %v839, %v838
      %v903 = vpack.c.b16 %v841, %v840
      %v904 = vpack.c.b16 %v843, %v842
      %v905 = vpack.c.b16 %v845, %v844
      %v906 = vpack.c.b16 %v847, %v846
      %v907 = vpack.c.b16 %v849, %v848
      %v908 = vpack.c.b16 %v851, %v850
      %v909 = vpack.c.b16 %v853, %v852
      %v910 = vpack.c.b16 %v855, %v854
      %v911 = vpack.c.b16 %v857, %v856
      %v912 = vpack.c.b16 %v859, %v858
      %v913 = vpack.c.b16 %v861, %v860
      %v914 = vpack.c.b16 %v863, %v862
      %v915 = vpack.c.b16 %v865, %v864
      %v916 = vpack.c.b16 %v867, %v866
      %v917 = vpack.c.b16 %v869, %v868
      %v918 = vpack.c.b16 %v871, %v870
      %v919 = vpack.c.b16 %v873, %v872
      %v920 = vpack.c.b16 %v875, %v874
      %v921 = vpack.c.b16 %v877, %v876
      %v922 = vpack.c.b16 %v879, %v878
      %v923 = vpack.c.b16 %v881, %v880
      %v924 = vpack.c.b16 %v883, %v882
      %v925 = vpack.c.b16 %v885, %v884
      %v926 = vpack.c.b16 %v887, %v886
      %v927 = vpack.c.b16 %v889, %v888
      %v928 = vpack.c.b16 %v891, %v890
      %v929 = vpack.c.b16 %v893, %v892
      %vm966 = vcmask 523264
      %v968 = vsel %vm966, %v610, 0
      %v971 = vsel %vm966, %v615, 0
      %v974 = vsel %vm966, %v620, 0
      %v977 = vsel %vm966, %v625, 0
      %v980 = vsel %vm966, %v630, 0
      %v983 = vsel %vm966, %v635, 0
      %v986 = vsel %vm966, %v640, 0
      %v989 = vsel %vm966, %v645, 0
      %v992 = vsel %vm966, %v650, 0
      %v995 = vsel %vm966, %v655, 0
      %v998 = vsel %vm966, %v660, 0
      %v1001 = vsel %vm966, %v665, 0
      %v1004 = vsel %vm966, %v670, 0
      %v1007 = vsel %vm966, %v675, 0
      %v1010 = vsel %vm966, %v680, 0
      %v1013 = vsel %vm966, %v685, 0
      %1015 = vmatpush.bf16.msra.mxu0 %v901
      %1016 = vmatpush.bf16.msra.mxu0 %v900
      %1017 = vmatpush.bf16.msra.mxu0 %v899
      %1018 = vmatpush.bf16.msra.mxu0 %v898
      %1019 = vmatpush.bf16.msra.mxu0 %v897
      %1020 = vmatpush.bf16.msra.mxu0 %v896
      %1021 = vmatpush.bf16.msra.mxu0 %v895
      %1022 = vmatpush.bf16.msra.mxu0 %v894
      %1023 = vmatmul.bf16.gmra.mxu0 %v606
      %v1024 = vpop.f32.mrf.mxu0
      %v1025 = vadd.f32 %v348, %v1024
      %v1026 = vpop.f32.mrf.mxu0
      %v1027 = vadd.f32 %v348, %v1026
      %1028 = vmatmul.bf16.gmra.mxu0 %v611
      %v1029 = vpop.f32.mrf.mxu0
      %v1030 = vadd.f32 %v348, %v1029
      %v1031 = vpop.f32.mrf.mxu0
      %v1032 = vadd.f32 %v348, %v1031
      %1033 = vmatmul.bf16.gmra.mxu0 %v616
      %v1034 = vpop.f32.mrf.mxu0
      %v1035 = vadd.f32 %v348, %v1034
      %v1036 = vpop.f32.mrf.mxu0
      %v1037 = vadd.f32 %v348, %v1036
      %1038 = vmatmul.bf16.gmra.mxu0 %v621
      %v1039 = vpop.f32.mrf.mxu0
      %v1040 = vadd.f32 %v348, %v1039
      %v1041 = vpop.f32.mrf.mxu0
      %v1042 = vadd.f32 %v348, %v1041
      %1043 = vmatmul.bf16.gmra.mxu0 %v626
      %v1044 = vpop.f32.mrf.mxu0
      %v1045 = vadd.f32 %v348, %v1044
      %v1046 = vpop.f32.mrf.mxu0
      %v1047 = vadd.f32 %v348, %v1046
      %1048 = vmatmul.bf16.gmra.mxu0 %v631
      %v1049 = vpop.f32.mrf.mxu0
      %v1050 = vadd.f32 %v348, %v1049
      %v1051 = vpop.f32.mrf.mxu0
      %v1052 = vadd.f32 %v348, %v1051
      %1053 = vmatmul.bf16.gmra.mxu0 %v636
      %v1054 = vpop.f32.mrf.mxu0
      %v1055 = vadd.f32 %v348, %v1054
      %v1056 = vpop.f32.mrf.mxu0
      %v1057 = vadd.f32 %v348, %v1056
      %1058 = vmatmul.bf16.gmra.mxu0 %v641
      %v1059 = vpop.f32.mrf.mxu0
      %v1060 = vadd.f32 %v348, %v1059
      %v1061 = vpop.f32.mrf.mxu0
      %v1062 = vadd.f32 %v348, %v1061
      %1063 = vmatmul.bf16.gmra.mxu0 %v646
      %v1064 = vpop.f32.mrf.mxu0
      %v1065 = vadd.f32 %v348, %v1064
      %v1066 = vpop.f32.mrf.mxu0
      %v1067 = vadd.f32 %v348, %v1066
      %1068 = vmatmul.bf16.gmra.mxu0 %v651
      %v1069 = vpop.f32.mrf.mxu0
      %v1070 = vadd.f32 %v348, %v1069
      %v1071 = vpop.f32.mrf.mxu0
      %v1072 = vadd.f32 %v348, %v1071
      %1073 = vmatmul.bf16.gmra.mxu0 %v656
      %v1074 = vpop.f32.mrf.mxu0
      %v1075 = vadd.f32 %v348, %v1074
      %v1076 = vpop.f32.mrf.mxu0
      %v1077 = vadd.f32 %v348, %v1076
      %1078 = vmatmul.bf16.gmra.mxu0 %v661
      %v1079 = vpop.f32.mrf.mxu0
      %v1080 = vadd.f32 %v348, %v1079
      %v1081 = vpop.f32.mrf.mxu0
      %v1082 = vadd.f32 %v348, %v1081
      %1083 = vmatmul.bf16.gmra.mxu0 %v666
      %v1084 = vpop.f32.mrf.mxu0
      %v1085 = vadd.f32 %v348, %v1084
      %v1086 = vpop.f32.mrf.mxu0
      %v1087 = vadd.f32 %v348, %v1086
      %1088 = vmatmul.bf16.gmra.mxu0 %v671
      %v1089 = vpop.f32.mrf.mxu0
      %v1090 = vadd.f32 %v348, %v1089
      %v1091 = vpop.f32.mrf.mxu0
      %v1092 = vadd.f32 %v348, %v1091
      %1093 = vmatmul.bf16.gmra.mxu0 %v676
      %v1094 = vpop.f32.mrf.mxu0
      %v1095 = vadd.f32 %v348, %v1094
      %v1096 = vpop.f32.mrf.mxu0
      %v1097 = vadd.f32 %v348, %v1096
      %1098 = vmatmul.bf16.gmra.mxu0 %v681
      %v1099 = vpop.f32.mrf.mxu0
      %v1100 = vadd.f32 %v348, %v1099
      %v1101 = vpop.f32.mrf.mxu0
      %v1102 = vadd.f32 %v348, %v1101
      %1103 = vdwg.mxu0
      %1104 = vmatpush.bf16.msra.mxu0 %v909
      %1105 = vmatpush.bf16.msra.mxu0 %v908
      %1106 = vmatpush.bf16.msra.mxu0 %v907
      %1107 = vmatpush.bf16.msra.mxu0 %v906
      %1108 = vmatpush.bf16.msra.mxu0 %v905
      %1109 = vmatpush.bf16.msra.mxu0 %v904
      %1110 = vmatpush.bf16.msra.mxu0 %v903
      %1111 = vmatpush.bf16.msra.mxu0 %v902
      %1112 = vmatmul.bf16.gmra.mxu0 %v607
      %v1113 = vpop.f32.mrf.mxu0
      %v1114 = vadd.f32 %v1025, %v1113
      %v1115 = vpop.f32.mrf.mxu0
      %v1116 = vadd.f32 %v1027, %v1115
      %1117 = vmatmul.bf16.gmra.mxu0 %v612
      %v1118 = vpop.f32.mrf.mxu0
      %v1119 = vadd.f32 %v1030, %v1118
      %v1120 = vpop.f32.mrf.mxu0
      %v1121 = vadd.f32 %v1032, %v1120
      %1122 = vmatmul.bf16.gmra.mxu0 %v617
      %v1123 = vpop.f32.mrf.mxu0
      %v1124 = vadd.f32 %v1035, %v1123
      %v1125 = vpop.f32.mrf.mxu0
      %v1126 = vadd.f32 %v1037, %v1125
      %1127 = vmatmul.bf16.gmra.mxu0 %v622
      %v1128 = vpop.f32.mrf.mxu0
      %v1129 = vadd.f32 %v1040, %v1128
      %v1130 = vpop.f32.mrf.mxu0
      %v1131 = vadd.f32 %v1042, %v1130
      %1132 = vmatmul.bf16.gmra.mxu0 %v627
      %v1133 = vpop.f32.mrf.mxu0
      %v1134 = vadd.f32 %v1045, %v1133
      %v1135 = vpop.f32.mrf.mxu0
      %v1136 = vadd.f32 %v1047, %v1135
      %1137 = vmatmul.bf16.gmra.mxu0 %v632
      %v1138 = vpop.f32.mrf.mxu0
      %v1139 = vadd.f32 %v1050, %v1138
      %v1140 = vpop.f32.mrf.mxu0
      %v1141 = vadd.f32 %v1052, %v1140
      %1142 = vmatmul.bf16.gmra.mxu0 %v637
      %v1143 = vpop.f32.mrf.mxu0
      %v1144 = vadd.f32 %v1055, %v1143
      %v1145 = vpop.f32.mrf.mxu0
      %v1146 = vadd.f32 %v1057, %v1145
      %1147 = vmatmul.bf16.gmra.mxu0 %v642
      %v1148 = vpop.f32.mrf.mxu0
      %v1149 = vadd.f32 %v1060, %v1148
      %v1150 = vpop.f32.mrf.mxu0
      %v1151 = vadd.f32 %v1062, %v1150
      %1152 = vmatmul.bf16.gmra.mxu0 %v647
      %v1153 = vpop.f32.mrf.mxu0
      %v1154 = vadd.f32 %v1065, %v1153
      %v1155 = vpop.f32.mrf.mxu0
      %v1156 = vadd.f32 %v1067, %v1155
      %1157 = vmatmul.bf16.gmra.mxu0 %v652
      %v1158 = vpop.f32.mrf.mxu0
      %v1159 = vadd.f32 %v1070, %v1158
      %v1160 = vpop.f32.mrf.mxu0
      %v1161 = vadd.f32 %v1072, %v1160
      %1162 = vmatmul.bf16.gmra.mxu0 %v657
      %v1163 = vpop.f32.mrf.mxu0
      %v1164 = vadd.f32 %v1075, %v1163
      %v1165 = vpop.f32.mrf.mxu0
      %v1166 = vadd.f32 %v1077, %v1165
      %1167 = vmatmul.bf16.gmra.mxu0 %v662
      %v1168 = vpop.f32.mrf.mxu0
      %v1169 = vadd.f32 %v1080, %v1168
      %v1170 = vpop.f32.mrf.mxu0
      %v1171 = vadd.f32 %v1082, %v1170
      %1172 = vmatmul.bf16.gmra.mxu0 %v667
      %v1173 = vpop.f32.mrf.mxu0
      %v1174 = vadd.f32 %v1085, %v1173
      %v1175 = vpop.f32.mrf.mxu0
      %v1176 = vadd.f32 %v1087, %v1175
      %1177 = vmatmul.bf16.gmra.mxu0 %v672
      %v1178 = vpop.f32.mrf.mxu0
      %v1179 = vadd.f32 %v1090, %v1178
      %v1180 = vpop.f32.mrf.mxu0
      %v1181 = vadd.f32 %v1092, %v1180
      %1182 = vmatmul.bf16.gmra.mxu0 %v677
      %v1183 = vpop.f32.mrf.mxu0
      %v1184 = vadd.f32 %v1095, %v1183
      %v1185 = vpop.f32.mrf.mxu0
      %v1186 = vadd.f32 %v1097, %v1185
      %1187 = vmatmul.bf16.gmra.mxu0 %v682
      %v1188 = vpop.f32.mrf.mxu0
      %v1189 = vadd.f32 %v1100, %v1188
      %v1190 = vpop.f32.mrf.mxu0
      %v1191 = vadd.f32 %v1102, %v1190
      %1192 = vdwg.mxu0
      %1193 = vmatpush.bf16.msra.mxu0 %v917
      %1194 = vmatpush.bf16.msra.mxu0 %v916
      %1195 = vmatpush.bf16.msra.mxu0 %v915
      %1196 = vmatpush.bf16.msra.mxu0 %v914
      %1197 = vmatpush.bf16.msra.mxu0 %v913
      %1198 = vmatpush.bf16.msra.mxu0 %v912
      %1199 = vmatpush.bf16.msra.mxu0 %v911
      %1200 = vmatpush.bf16.msra.mxu0 %v910
      %1201 = vmatmul.bf16.gmra.mxu0 %v608
      %v1202 = vpop.f32.mrf.mxu0
      %v1203 = vadd.f32 %v1114, %v1202
      %v1204 = vpop.f32.mrf.mxu0
      %v1205 = vadd.f32 %v1116, %v1204
      %1206 = vmatmul.bf16.gmra.mxu0 %v613
      %v1207 = vpop.f32.mrf.mxu0
      %v1208 = vadd.f32 %v1119, %v1207
      %v1209 = vpop.f32.mrf.mxu0
      %v1210 = vadd.f32 %v1121, %v1209
      %1211 = vmatmul.bf16.gmra.mxu0 %v618
      %v1212 = vpop.f32.mrf.mxu0
      %v1213 = vadd.f32 %v1124, %v1212
      %v1214 = vpop.f32.mrf.mxu0
      %v1215 = vadd.f32 %v1126, %v1214
      %1216 = vmatmul.bf16.gmra.mxu0 %v623
      %v1217 = vpop.f32.mrf.mxu0
      %v1218 = vadd.f32 %v1129, %v1217
      %v1219 = vpop.f32.mrf.mxu0
      %v1220 = vadd.f32 %v1131, %v1219
      %1221 = vmatmul.bf16.gmra.mxu0 %v628
      %v1222 = vpop.f32.mrf.mxu0
      %v1223 = vadd.f32 %v1134, %v1222
      %v1224 = vpop.f32.mrf.mxu0
      %v1225 = vadd.f32 %v1136, %v1224
      %1226 = vmatmul.bf16.gmra.mxu0 %v633
      %v1227 = vpop.f32.mrf.mxu0
      %v1228 = vadd.f32 %v1139, %v1227
      %v1229 = vpop.f32.mrf.mxu0
      %v1230 = vadd.f32 %v1141, %v1229
      %1231 = vmatmul.bf16.gmra.mxu0 %v638
      %v1232 = vpop.f32.mrf.mxu0
      %v1233 = vadd.f32 %v1144, %v1232
      %v1234 = vpop.f32.mrf.mxu0
      %v1235 = vadd.f32 %v1146, %v1234
      %1236 = vmatmul.bf16.gmra.mxu0 %v643
      %v1237 = vpop.f32.mrf.mxu0
      %v1238 = vadd.f32 %v1149, %v1237
      %v1239 = vpop.f32.mrf.mxu0
      %v1240 = vadd.f32 %v1151, %v1239
      %1241 = vmatmul.bf16.gmra.mxu0 %v648
      %v1242 = vpop.f32.mrf.mxu0
      %v1243 = vadd.f32 %v1154, %v1242
      %v1244 = vpop.f32.mrf.mxu0
      %v1245 = vadd.f32 %v1156, %v1244
      %1246 = vmatmul.bf16.gmra.mxu0 %v653
      %v1247 = vpop.f32.mrf.mxu0
      %v1248 = vadd.f32 %v1159, %v1247
      %v1249 = vpop.f32.mrf.mxu0
      %v1250 = vadd.f32 %v1161, %v1249
      %1251 = vmatmul.bf16.gmra.mxu0 %v658
      %v1252 = vpop.f32.mrf.mxu0
      %v1253 = vadd.f32 %v1164, %v1252
      %v1254 = vpop.f32.mrf.mxu0
      %v1255 = vadd.f32 %v1166, %v1254
      %1256 = vmatmul.bf16.gmra.mxu0 %v663
      %v1257 = vpop.f32.mrf.mxu0
      %v1258 = vadd.f32 %v1169, %v1257
      %v1259 = vpop.f32.mrf.mxu0
      %v1260 = vadd.f32 %v1171, %v1259
      %1261 = vmatmul.bf16.gmra.mxu0 %v668
      %v1262 = vpop.f32.mrf.mxu0
      %v1263 = vadd.f32 %v1174, %v1262
      %v1264 = vpop.f32.mrf.mxu0
      %v1265 = vadd.f32 %v1176, %v1264
      %1266 = vmatmul.bf16.gmra.mxu0 %v673
      %v1267 = vpop.f32.mrf.mxu0
      %v1268 = vadd.f32 %v1179, %v1267
      %v1269 = vpop.f32.mrf.mxu0
      %v1270 = vadd.f32 %v1181, %v1269
      %1271 = vmatmul.bf16.gmra.mxu0 %v678
      %v1272 = vpop.f32.mrf.mxu0
      %v1273 = vadd.f32 %v1184, %v1272
      %v1274 = vpop.f32.mrf.mxu0
      %v1275 = vadd.f32 %v1186, %v1274
      %1276 = vmatmul.bf16.gmra.mxu0 %v683
      %v1277 = vpop.f32.mrf.mxu0
      %v1278 = vadd.f32 %v1189, %v1277
      %v1279 = vpop.f32.mrf.mxu0
      %v1280 = vadd.f32 %v1191, %v1279
      %1281 = vdwg.mxu0
      %1282 = vmatpush.bf16.msra.mxu0 %v925
      %1283 = vmatpush.bf16.msra.mxu0 %v924
      %1284 = vmatpush.bf16.msra.mxu0 %v923
      %1285 = vmatpush.bf16.msra.mxu0 %v922
      %1286 = vmatpush.bf16.msra.mxu0 %v921
      %1287 = vmatpush.bf16.msra.mxu0 %v920
      %1288 = vmatpush.bf16.msra.mxu0 %v919
      %1289 = vmatpush.bf16.msra.mxu0 %v918
      %1290 = vmatmul.bf16.gmra.mxu0 %v609
      %v1291 = vpop.f32.mrf.mxu0
      %v1292 = vadd.f32 %v1203, %v1291
      %v1293 = vpop.f32.mrf.mxu0
      %v1294 = vadd.f32 %v1205, %v1293
      %1295 = vmatmul.bf16.gmra.mxu0 %v614
      %v1296 = vpop.f32.mrf.mxu0
      %v1297 = vadd.f32 %v1208, %v1296
      %v1298 = vpop.f32.mrf.mxu0
      %v1299 = vadd.f32 %v1210, %v1298
      %1300 = vmatmul.bf16.gmra.mxu0 %v619
      %v1301 = vpop.f32.mrf.mxu0
      %v1302 = vadd.f32 %v1213, %v1301
      %v1303 = vpop.f32.mrf.mxu0
      %v1304 = vadd.f32 %v1215, %v1303
      %1305 = vmatmul.bf16.gmra.mxu0 %v624
      %v1306 = vpop.f32.mrf.mxu0
      %v1307 = vadd.f32 %v1218, %v1306
      %v1308 = vpop.f32.mrf.mxu0
      %v1309 = vadd.f32 %v1220, %v1308
      %1310 = vmatmul.bf16.gmra.mxu0 %v629
      %v1311 = vpop.f32.mrf.mxu0
      %v1312 = vadd.f32 %v1223, %v1311
      %v1313 = vpop.f32.mrf.mxu0
      %v1314 = vadd.f32 %v1225, %v1313
      %1315 = vmatmul.bf16.gmra.mxu0 %v634
      %v1316 = vpop.f32.mrf.mxu0
      %v1317 = vadd.f32 %v1228, %v1316
      %v1318 = vpop.f32.mrf.mxu0
      %v1319 = vadd.f32 %v1230, %v1318
      %1320 = vmatmul.bf16.gmra.mxu0 %v639
      %v1321 = vpop.f32.mrf.mxu0
      %v1322 = vadd.f32 %v1233, %v1321
      %v1323 = vpop.f32.mrf.mxu0
      %v1324 = vadd.f32 %v1235, %v1323
      %1325 = vmatmul.bf16.gmra.mxu0 %v644
      %v1326 = vpop.f32.mrf.mxu0
      %v1327 = vadd.f32 %v1238, %v1326
      %v1328 = vpop.f32.mrf.mxu0
      %v1329 = vadd.f32 %v1240, %v1328
      %1330 = vmatmul.bf16.gmra.mxu0 %v649
      %v1331 = vpop.f32.mrf.mxu0
      %v1332 = vadd.f32 %v1243, %v1331
      %v1333 = vpop.f32.mrf.mxu0
      %v1334 = vadd.f32 %v1245, %v1333
      %1335 = vmatmul.bf16.gmra.mxu0 %v654
      %v1336 = vpop.f32.mrf.mxu0
      %v1337 = vadd.f32 %v1248, %v1336
      %v1338 = vpop.f32.mrf.mxu0
      %v1339 = vadd.f32 %v1250, %v1338
      %1340 = vmatmul.bf16.gmra.mxu0 %v659
      %v1341 = vpop.f32.mrf.mxu0
      %v1342 = vadd.f32 %v1253, %v1341
      %v1343 = vpop.f32.mrf.mxu0
      %v1344 = vadd.f32 %v1255, %v1343
      %1345 = vmatmul.bf16.gmra.mxu0 %v664
      %v1346 = vpop.f32.mrf.mxu0
      %v1347 = vadd.f32 %v1258, %v1346
      %v1348 = vpop.f32.mrf.mxu0
      %v1349 = vadd.f32 %v1260, %v1348
      %1350 = vmatmul.bf16.gmra.mxu0 %v669
      %v1351 = vpop.f32.mrf.mxu0
      %v1352 = vadd.f32 %v1263, %v1351
      %v1353 = vpop.f32.mrf.mxu0
      %v1354 = vadd.f32 %v1265, %v1353
      %1355 = vmatmul.bf16.gmra.mxu0 %v674
      %v1356 = vpop.f32.mrf.mxu0
      %v1357 = vadd.f32 %v1268, %v1356
      %v1358 = vpop.f32.mrf.mxu0
      %v1359 = vadd.f32 %v1270, %v1358
      %1360 = vmatmul.bf16.gmra.mxu0 %v679
      %v1361 = vpop.f32.mrf.mxu0
      %v1362 = vadd.f32 %v1273, %v1361
      %v1363 = vpop.f32.mrf.mxu0
      %v1364 = vadd.f32 %v1275, %v1363
      %1365 = vmatmul.bf16.gmra.mxu0 %v684
      %v1366 = vpop.f32.mrf.mxu0
      %v1367 = vadd.f32 %v1278, %v1366
      %v1368 = vpop.f32.mrf.mxu0
      %v1369 = vadd.f32 %v1280, %v1368
      %1370 = vdwg.mxu0
      %1371 = vmatpush.bf16.msra.mxu0 0
      %1372 = vmatpush.bf16.msra.mxu0 0
      %1373 = vmatpush.bf16.msra.mxu0 0
      %1374 = vmatpush.bf16.msra.mxu0 0
      %1375 = vmatpush.bf16.msra.mxu0 %v929
      %1376 = vmatpush.bf16.msra.mxu0 %v928
      %1377 = vmatpush.bf16.msra.mxu0 %v927
      %1378 = vmatpush.bf16.msra.mxu0 %v926
      %1379 = vmatmul.bf16.gmra.mxu0 %v968
      %v1380 = vpop.f32.mrf.mxu0
      %v1381 = vadd.f32 %v1292, %v1380
      %v1382 = vpop.f32.mrf.mxu0
      %v1383 = vadd.f32 %v1294, %v1382
      %1384 = vmatmul.bf16.gmra.mxu0 %v971
      %v1385 = vpop.f32.mrf.mxu0
      %v1386 = vadd.f32 %v1297, %v1385
      %v1387 = vpop.f32.mrf.mxu0
      %v1388 = vadd.f32 %v1299, %v1387
      %1389 = vmatmul.bf16.gmra.mxu0 %v974
      %v1390 = vpop.f32.mrf.mxu0
      %v1391 = vadd.f32 %v1302, %v1390
      %v1392 = vpop.f32.mrf.mxu0
      %v1393 = vadd.f32 %v1304, %v1392
      %1394 = vmatmul.bf16.gmra.mxu0 %v977
      %v1395 = vpop.f32.mrf.mxu0
      %v1396 = vadd.f32 %v1307, %v1395
      %v1397 = vpop.f32.mrf.mxu0
      %v1398 = vadd.f32 %v1309, %v1397
      %1399 = vmatmul.bf16.gmra.mxu0 %v980
      %v1400 = vpop.f32.mrf.mxu0
      %v1401 = vadd.f32 %v1312, %v1400
      %v1402 = vpop.f32.mrf.mxu0
      %v1403 = vadd.f32 %v1314, %v1402
      %1404 = vmatmul.bf16.gmra.mxu0 %v983
      %v1405 = vpop.f32.mrf.mxu0
      %v1406 = vadd.f32 %v1317, %v1405
      %v1407 = vpop.f32.mrf.mxu0
      %v1408 = vadd.f32 %v1319, %v1407
      %1409 = vmatmul.bf16.gmra.mxu0 %v986
      %v1410 = vpop.f32.mrf.mxu0
      %v1411 = vadd.f32 %v1322, %v1410
      %v1412 = vpop.f32.mrf.mxu0
      %v1413 = vadd.f32 %v1324, %v1412
      %1414 = vmatmul.bf16.gmra.mxu0 %v989
      %v1415 = vpop.f32.mrf.mxu0
      %v1416 = vadd.f32 %v1327, %v1415
      %v1417 = vpop.f32.mrf.mxu0
      %v1418 = vadd.f32 %v1329, %v1417
      %1419 = vmatmul.bf16.gmra.mxu0 %v992
      %v1420 = vpop.f32.mrf.mxu0
      %v1421 = vadd.f32 %v1332, %v1420
      %v1422 = vpop.f32.mrf.mxu0
      %v1423 = vadd.f32 %v1334, %v1422
      %1424 = vmatmul.bf16.gmra.mxu0 %v995
      %v1425 = vpop.f32.mrf.mxu0
      %v1426 = vadd.f32 %v1337, %v1425
      %v1427 = vpop.f32.mrf.mxu0
      %v1428 = vadd.f32 %v1339, %v1427
      %1429 = vmatmul.bf16.gmra.mxu0 %v998
      %v1430 = vpop.f32.mrf.mxu0
      %v1431 = vadd.f32 %v1342, %v1430
      %v1432 = vpop.f32.mrf.mxu0
      %v1433 = vadd.f32 %v1344, %v1432
      %1434 = vmatmul.bf16.gmra.mxu0 %v1001
      %v1435 = vpop.f32.mrf.mxu0
      %v1436 = vadd.f32 %v1347, %v1435
      %v1437 = vpop.f32.mrf.mxu0
      %v1438 = vadd.f32 %v1349, %v1437
      %1439 = vmatmul.bf16.gmra.mxu0 %v1004
      %v1440 = vpop.f32.mrf.mxu0
      %v1441 = vadd.f32 %v1352, %v1440
      %v1442 = vpop.f32.mrf.mxu0
      %v1443 = vadd.f32 %v1354, %v1442
      %1444 = vmatmul.bf16.gmra.mxu0 %v1007
      %v1445 = vpop.f32.mrf.mxu0
      %v1446 = vadd.f32 %v1357, %v1445
      %v1447 = vpop.f32.mrf.mxu0
      %v1448 = vadd.f32 %v1359, %v1447
      %1449 = vmatmul.bf16.gmra.mxu0 %v1010
      %v1450 = vpop.f32.mrf.mxu0
      %v1451 = vadd.f32 %v1362, %v1450
      %v1452 = vpop.f32.mrf.mxu0
      %v1453 = vadd.f32 %v1364, %v1452
      %1454 = vmatmul.bf16.gmra.mxu0 %v1013
      %v1455 = vpop.f32.mrf.mxu0
      %v1456 = vadd.f32 %v1367, %v1455
      %v1457 = vpop.f32.mrf.mxu0
      %v1458 = vadd.f32 %v1369, %v1457
      %1459 = vdwg.mxu0
      %1460 = vst [vmem:[%s175] sm:$0xff] %v1381
      %1461 = vst [vmem:[%s175 + $0x8] sm:$0xff] %v1383
      %1462 = vst [vmem:[%s175 + $0x10] sm:$0xff] %v1386
      %1463 = vst [vmem:[%s175 + $0x18] sm:$0xff] %v1388
      %1464 = vst [vmem:[%s175 + $0x20] sm:$0xff] %v1391
      %1465 = vst [vmem:[%s175 + $0x28] sm:$0xff] %v1393
      %1466 = vst [vmem:[%s175 + $0x30] sm:$0xff] %v1396
      %1467 = vst [vmem:[%s175 + $0x38] sm:$0xff] %v1398
      %1468 = vst [vmem:[%s175 + $0x40] sm:$0xff] %v1401
      %1469 = vst [vmem:[%s175 + $0x48] sm:$0xff] %v1403
      %1470 = vst [vmem:[%s175 + $0x50] sm:$0xff] %v1406
      %1471 = vst [vmem:[%s175 + $0x58] sm:$0xff] %v1408
      %1472 = vst [vmem:[%s175 + $0x60] sm:$0xff] %v1411
      %1473 = vst [vmem:[%s175 + $0x68] sm:$0xff] %v1413
      %1474 = vst [vmem:[%s175 + $0x70] sm:$0xff] %v1416
      %1475 = vst [vmem:[%s175 + $0x78] sm:$0xff] %v1418
      %1476 = vst [vmem:[%s175 + $0x80] sm:$0xff] %v1421
      %1477 = vst [vmem:[%s175 + $0x88] sm:$0xff] %v1423
      %1478 = vst [vmem:[%s175 + $0x90] sm:$0xff] %v1426
      %1479 = vst [vmem:[%s175 + $0x98] sm:$0xff] %v1428
      %1480 = vst [vmem:[%s175 + $0xa0] sm:$0xff] %v1431
      %1481 = vst [vmem:[%s175 + $0xa8] sm:$0xff] %v1433
      %1482 = vst [vmem:[%s175 + $0xb0] sm:$0xff] %v1436
      %1483 = vst [vmem:[%s175 + $0xb8] sm:$0xff] %v1438
      %1484 = vst [vmem:[%s175 + $0xc0] sm:$0xff] %v1441
      %1485 = vst [vmem:[%s175 + $0xc8] sm:$0xff] %v1443
      %1486 = vst [vmem:[%s175 + $0xd0] sm:$0xff] %v1446
      %1487 = vst [vmem:[%s175 + $0xd8] sm:$0xff] %v1448
      %1488 = vst [vmem:[%s175 + $0xe0] sm:$0xff] %v1451
      %1489 = vst [vmem:[%s175 + $0xe8] sm:$0xff] %v1453
      %1490 = vst [vmem:[%s175 + $0xf0] sm:$0xff] %v1456
      %1491 = vst [vmem:[%s175 + $0xf8] sm:$0xff] %v1458
      %s1492 = smul.u32 32, %s14
      %p1493 = scmp.lt.s32.totalorder %s1492, 63
      %s1494 = scalar_select %p1493, %s1492, 63
      %s1495 = smul.addr %s1494, 8
      %s1496 = scalar_lea.vmem %s3, %s1495
      // Predicated region
      $region33: #{cnn_cifar_forward.9} parent=31 // pred_check
        %p1497 = pneg %p100
      $region34: #{cnn_cifar_forward.9} parent=31 // pred_check_branch
        %1499 = sbr.rel (%p1497) target = $region36
      $region35: #{cnn_cifar_forward.9} parent=31 // pred_region
        %s1500 = smul.u32 32, %s14
      $region36: #{cnn_cifar_forward.9} parent=31 // pred_fallthru
        _
    $region32: #{cnn_cifar_forward.9} parent=5 // pred_fallthru
      _
    %p1501 = scmp.le.s32.totalorder 2, %s9
    // Predicated region
    $region37: #{cnn_cifar_forward.9} parent=5 // pred_check
      %p1502 = pneg %p1501
    $region38: #{cnn_cifar_forward.9} parent=5 // pred_check_branch
      %1504 = sbr.rel (%p1502) target = $region40
    $region39: #{cnn_cifar_forward.9} parent=5 // pred_region
      %s1505 = ssub.s32 %s9, 2
      // Predicated region
      $region41: #{cnn_cifar_forward.9} parent=39 // pred_check
        %p1506 = pneg %p106
      $region42: #{cnn_cifar_forward.9} parent=39 // pred_check_branch
        %1508 = sbr.rel (%p1506) target = $region44
      $region43: #{cnn_cifar_forward.9} parent=39 // pred_region
        %s1509 = smul.u32 32, %s15
        %p1510 = scmp.lt.s32.totalorder %s1509, 63
        %s1511 = scalar_select %p1510, %s1509, 63
        %s1512 = smul.addr %s1511, 8
        %s1513 = scalar_lea.vmem %s3, %s1512
      $region44: #{cnn_cifar_forward.9} parent=39 // pred_fallthru
        _
    $region40: #{cnn_cifar_forward.9} parent=5 // pred_fallthru
      _
  $region6: #{cnn_cifar_forward.9} parent=0 // loop_footer
    %s13 = sadd.s32 1, %s9
  $region7: #{cnn_cifar_forward.9} parent=0 // loop_footer_branch
    %8 = sbr.rel target = $region3
  $region8: #{cnn_cifar_forward.9} parent=0 // loop_exit
    _

// kernel: cnn_cifar_forward.10
$region0: #{cnn_cifar_forward.10}
  #allocation0 [shape = 'u32[]', space=smem, size = 0x4, offset = 0x4, fixed_abs, tag = 'smem constant byte address 0x4 - core index']
  #allocation1 [shape = 'u32[72,128]{1,0:T(1,128)}', space=vmem, size = 0x9000, scoped, tag = 'internal scratch']
  %s0 = inlined_call_operand.vmem [shape: f32[2,16,8,256], index: 0, kind: input, shape index: {}]
  %s1 = inlined_call_operand.vmem [shape: f32[1,1,1,128], index: 1, kind: input, shape index: {}]
  %s2 = inlined_call_operand.vmem [shape: f32[1,1,1,128], index: 2, kind: input, shape index: {}]
  %s3 = inlined_call_operand.vmem [shape: f32[2,8,8,128], index: 3, kind: output, shape index: {}]
  %s4 = sld [smem:[#allocation0]]
  $region22: #{cnn_cifar_forward.10} parent=0
    _
  %s6 = ssub.s32 1, %s4
  %s7 = scalar_select 0, %s6, %s4
  // Predicated region
  $region2: #{cnn_cifar_forward.10} parent=0 // pred_check
    _
  $region3: #{cnn_cifar_forward.10} parent=0 // pred_check_branch
    %9 = sbr.rel (0) target = $region5
  $region4: #{cnn_cifar_forward.10} parent=0 // pred_region
    _
  $region5: #{cnn_cifar_forward.10} parent=0 // pred_fallthru
    _
  // Predicated region
  $region6: #{cnn_cifar_forward.10} parent=0 // pred_check
    _
  $region7: #{cnn_cifar_forward.10} parent=0 // pred_check_branch
    %11 = sbr.rel (0) target = $region9
  $region8: #{cnn_cifar_forward.10} parent=0 // pred_region
    _
  $region9: #{cnn_cifar_forward.10} parent=0 // pred_fallthru
    _
  // Predicated region
  $region10: #{cnn_cifar_forward.10} parent=0 // pred_check
    _
  $region11: #{cnn_cifar_forward.10} parent=0 // pred_check_branch
    %13 = sbr.rel (0) target = $region13
  $region12: #{cnn_cifar_forward.10} parent=0 // pred_region
    _
  $region13: #{cnn_cifar_forward.10} parent=0 // pred_fallthru
    _
  %v14 = vld [vmem:[%s0] sm:$0xff]
  %v15 = vld [vmem:[%s0 + $0x8] sm:$0xff]
  %v16 = vld [vmem:[%s0 + $0x10] sm:$0xff]
  %v17 = vld [vmem:[%s0 + $0x18] sm:$0xff]
  %v18 = vld [vmem:[%s0 + $0x20] sm:$0xff]
  %v19 = vld [vmem:[%s0 + $0x28] sm:$0xff]
  %v20 = vld [vmem:[%s0 + $0x30] sm:$0xff]
  %v21 = vld [vmem:[%s0 + $0x38] sm:$0xff]
  %v22 = vld [vmem:[%s0 + $0x40] sm:$0xff]
  %v23 = vld [vmem:[%s0 + $0x48] sm:$0xff]
  %v24 = vld [vmem:[%s0 + $0x50] sm:$0xff]
  %v25 = vld [vmem:[%s0 + $0x58] sm:$0xff]
  %v26 = vld [vmem:[%s0 + $0x60] sm:$0xff]
  %v27 = vld [vmem:[%s0 + $0x68] sm:$0xff]
  %v28 = vld [vmem:[%s0 + $0x70] sm:$0xff]
  %v29 = vld [vmem:[%s0 + $0x78] sm:$0xff]
  %v30 = vld [vmem:[%s0 + $0x80] sm:$0xff]
  %v31 = vld [vmem:[%s0 + $0x88] sm:$0xff]
  %v32 = vld [vmem:[%s0 + $0x90] sm:$0xff]
  %v33 = vld [vmem:[%s0 + $0x98] sm:$0xff]
  %v34 = vld [vmem:[%s0 + $0xa0] sm:$0xff]
  %v35 = vld [vmem:[%s0 + $0xa8] sm:$0xff]
  %v36 = vld [vmem:[%s0 + $0xb0] sm:$0xff]
  %v37 = vld [vmem:[%s0 + $0xb8] sm:$0xff]
  %v38 = vld [vmem:[%s0 + $0xc0] sm:$0xff]
  %v39 = vld [vmem:[%s0 + $0xc8] sm:$0xff]
  %v40 = vld [vmem:[%s0 + $0xd0] sm:$0xff]
  %v41 = vld [vmem:[%s0 + $0xd8] sm:$0xff]
  %v42 = vld [vmem:[%s0 + $0xe0] sm:$0xff]
  %v43 = vld [vmem:[%s0 + $0xe8] sm:$0xff]
  %v44 = vld [vmem:[%s0 + $0xf0] sm:$0xff]
  %v45 = vld [vmem:[%s0 + $0xf8] sm:$0xff]
  %v46 = vld [vmem:[%s0 + $0x100] sm:$0xff]
  %v47 = vld [vmem:[%s0 + $0x108] sm:$0xff]
  %v48 = vld [vmem:[%s0 + $0x110] sm:$0xff]
  %v49 = vld [vmem:[%s0 + $0x118] sm:$0xff]
  %v50 = vld [vmem:[%s0 + $0x120] sm:$0xff]
  %v51 = vld [vmem:[%s0 + $0x128] sm:$0xff]
  %v52 = vld [vmem:[%s0 + $0x130] sm:$0xff]
  %v53 = vld [vmem:[%s0 + $0x138] sm:$0xff]
  %v54 = vld [vmem:[%s0 + $0x140] sm:$0xff]
  %v55 = vld [vmem:[%s0 + $0x148] sm:$0xff]
  %v56 = vld [vmem:[%s0 + $0x150] sm:$0xff]
  %v57 = vld [vmem:[%s0 + $0x158] sm:$0xff]
  %v58 = vld [vmem:[%s0 + $0x160] sm:$0xff]
  %v59 = vld [vmem:[%s0 + $0x168] sm:$0xff]
  %v60 = vld [vmem:[%s0 + $0x170] sm:$0xff]
  %v61 = vld [vmem:[%s0 + $0x178] sm:$0xff]
  %v62 = vld [vmem:[%s0 + $0x180] sm:$0xff]
  %v63 = vld [vmem:[%s0 + $0x188] sm:$0xff]
  %v64 = vld [vmem:[%s0 + $0x190] sm:$0xff]
  %v65 = vld [vmem:[%s0 + $0x198] sm:$0xff]
  %v66 = vld [vmem:[%s0 + $0x1a0] sm:$0xff]
  %v67 = vld [vmem:[%s0 + $0x1a8] sm:$0xff]
  %v68 = vld [vmem:[%s0 + $0x1b0] sm:$0xff]
  %v69 = vld [vmem:[%s0 + $0x1b8] sm:$0xff]
  %v70 = vld [vmem:[%s0 + $0x1c0] sm:$0xff]
  %v71 = vld [vmem:[%s0 + $0x1c8] sm:$0xff]
  %v72 = vld [vmem:[%s0 + $0x1d0] sm:$0xff]
  %v73 = vld [vmem:[%s0 + $0x1d8] sm:$0xff]
  %v74 = vld [vmem:[%s0 + $0x1e0] sm:$0xff]
  %v75 = vld [vmem:[%s0 + $0x1e8] sm:$0xff]
  %v76 = vld [vmem:[%s0 + $0x1f0] sm:$0xff]
  %v77 = vld [vmem:[%s0 + $0x1f8] sm:$0xff]
  %v78 = vadd.f32 %v14, %v16
  %v79 = vadd.f32 %v78, %v18
  %v80 = vadd.f32 %v79, %v20
  %v81 = vadd.f32 %v80, %v22
  %v82 = vadd.f32 %v81, %v24
  %v83 = vadd.f32 %v82, %v26
  %v84 = vadd.f32 %v83, %v28
  %v85 = vadd.f32 %v84, %v30
  %v86 = vadd.f32 %v85, %v32
  %v87 = vadd.f32 %v86, %v34
  %v88 = vadd.f32 %v87, %v36
  %v89 = vadd.f32 %v88, %v38
  %v90 = vadd.f32 %v89, %v40
  %v91 = vadd.f32 %v90, %v42
  %v92 = vadd.f32 %v91, %v44
  %v93 = vadd.f32 %v92, %v46
  %v94 = vadd.f32 %v93, %v48
  %v95 = vadd.f32 %v94, %v50
  %v96 = vadd.f32 %v95, %v52
  %v97 = vadd.f32 %v96, %v54
  %v98 = vadd.f32 %v97, %v56
  %v99 = vadd.f32 %v98, %v58
  %v100 = vadd.f32 %v99, %v60
  %v101 = vadd.f32 %v100, %v62
  %v102 = vadd.f32 %v101, %v64
  %v103 = vadd.f32 %v102, %v66
  %v104 = vadd.f32 %v103, %v68
  %v105 = vadd.f32 %v104, %v70
  %v106 = vadd.f32 %v105, %v72
  %v107 = vadd.f32 %v106, %v74
  %v108 = vadd.f32 %v107, %v76
  %v109 = vrot.slane %v108, 4
  %v110 = vadd.f32 %v108, %v109
  %v111 = vrot.slane %v110, 2
  %v112 = vadd.f32 %v110, %v111
  %v113 = vrot.slane %v112, 1
  %v114 = vadd.f32 %v112, %v113
  %v115 = vadd.f32 %v15, %v17
  %v116 = vadd.f32 %v115, %v19
  %v117 = vadd.f32 %v116, %v21
  %v118 = vadd.f32 %v117, %v23
  %v119 = vadd.f32 %v118, %v25
  %v120 = vadd.f32 %v119, %v27
  %v121 = vadd.f32 %v120, %v29
  %v122 = vadd.f32 %v121, %v31
  %v123 = vadd.f32 %v122, %v33
  %v124 = vadd.f32 %v123, %v35
  %v125 = vadd.f32 %v124, %v37
  %v126 = vadd.f32 %v125, %v39
  %v127 = vadd.f32 %v126, %v41
  %v128 = vadd.f32 %v127, %v43
  %v129 = vadd.f32 %v128, %v45
  %v130 = vadd.f32 %v129, %v47
  %v131 = vadd.f32 %v130, %v49
  %v132 = vadd.f32 %v131, %v51
  %v133 = vadd.f32 %v132, %v53
  %v134 = vadd.f32 %v133, %v55
  %v135 = vadd.f32 %v134, %v57
  %v136 = vadd.f32 %v135, %v59
  %v137 = vadd.f32 %v136, %v61
  %v138 = vadd.f32 %v137, %v63
  %v139 = vadd.f32 %v138, %v65
  %v140 = vadd.f32 %v139, %v67
  %v141 = vadd.f32 %v140, %v69
  %v142 = vadd.f32 %v141, %v71
  %v143 = vadd.f32 %v142, %v73
  %v144 = vadd.f32 %v143, %v75
  %v145 = vadd.f32 %v144, %v77
  %v146 = vrot.slane %v145, 4
  %v147 = vadd.f32 %v145, %v146
  %v148 = vrot.slane %v147, 2
  %v149 = vadd.f32 %v147, %v148
  %v150 = vrot.slane %v149, 1
  %v151 = vadd.f32 %v149, %v150
  %v152 = vadd.f32 %v114, %v151
  %v153 = vmul.f32 %v152, 0.001953125
  %v154 = vsub.f32 %v14, %v153
  %v155 = vsub.f32 %v16, %v153
  %v156 = vsub.f32 %v18, %v153
  %v157 = vsub.f32 %v20, %v153
  %v158 = vsub.f32 %v22, %v153
  %v159 = vsub.f32 %v24, %v153
  %v160 = vsub.f32 %v26, %v153
  %v161 = vsub.f32 %v28, %v153
  %v162 = vsub.f32 %v30, %v153
  %v163 = vsub.f32 %v32, %v153
  %v164 = vsub.f32 %v34, %v153
  %v165 = vsub.f32 %v36, %v153
  %v166 = vsub.f32 %v38, %v153
  %v167 = vsub.f32 %v40, %v153
  %v168 = vsub.f32 %v42, %v153
  %v169 = vsub.f32 %v44, %v153
  %v170 = vsub.f32 %v46, %v153
  %v171 = vsub.f32 %v48, %v153
  %v172 = vsub.f32 %v50, %v153
  %v173 = vsub.f32 %v52, %v153
  %v174 = vsub.f32 %v54, %v153
  %v175 = vsub.f32 %v56, %v153
  %v176 = vsub.f32 %v58, %v153
  %v177 = vsub.f32 %v60, %v153
  %v178 = vsub.f32 %v62, %v153
  %v179 = vsub.f32 %v64, %v153
  %v180 = vsub.f32 %v66, %v153
  %v181 = vsub.f32 %v68, %v153
  %v182 = vsub.f32 %v70, %v153
  %v183 = vsub.f32 %v72, %v153
  %v184 = vsub.f32 %v74, %v153
  %v185 = vsub.f32 %v76, %v153
  %v186 = vsub.f32 %v15, %v153
  %v187 = vsub.f32 %v17, %v153
  %v188 = vsub.f32 %v19, %v153
  %v189 = vsub.f32 %v21, %v153
  %v190 = vsub.f32 %v23, %v153
  %v191 = vsub.f32 %v25, %v153
  %v192 = vsub.f32 %v27, %v153
  %v193 = vsub.f32 %v29, %v153
  %v194 = vsub.f32 %v31, %v153
  %v195 = vsub.f32 %v33, %v153
  %v196 = vsub.f32 %v35, %v153
  %v197 = vsub.f32 %v37, %v153
  %v198 = vsub.f32 %v39, %v153
  %v199 = vsub.f32 %v41, %v153
  %v200 = vsub.f32 %v43, %v153
  %v201 = vsub.f32 %v45, %v153
  %v202 = vsub.f32 %v47, %v153
  %v203 = vsub.f32 %v49, %v153
  %v204 = vsub.f32 %v51, %v153
  %v205 = vsub.f32 %v53, %v153
  %v206 = vsub.f32 %v55, %v153
  %v207 = vsub.f32 %v57, %v153
  %v208 = vsub.f32 %v59, %v153
  %v209 = vsub.f32 %v61, %v153
  %v210 = vsub.f32 %v63, %v153
  %v211 = vsub.f32 %v65, %v153
  %v212 = vsub.f32 %v67, %v153
  %v213 = vsub.f32 %v69, %v153
  %v214 = vsub.f32 %v71, %v153
  %v215 = vsub.f32 %v73, %v153
  %v216 = vsub.f32 %v75, %v153
  %v217 = vsub.f32 %v77, %v153
  %v218 = vmul.f32 %v154, %v154
  %v219 = vmul.f32 %v155, %v155
  %v220 = vmul.f32 %v156, %v156
  %v221 = vmul.f32 %v157, %v157
  %v222 = vmul.f32 %v158, %v158
  %v223 = vmul.f32 %v159, %v159
  %v224 = vmul.f32 %v160, %v160
  %v225 = vmul.f32 %v161, %v161
  %v226 = vmul.f32 %v162, %v162
  %v227 = vmul.f32 %v163, %v163
  %v228 = vmul.f32 %v164, %v164
  %v229 = vmul.f32 %v165, %v165
  %v230 = vmul.f32 %v166, %v166
  %v231 = vmul.f32 %v167, %v167
  %v232 = vmul.f32 %v168, %v168
  %v233 = vmul.f32 %v169, %v169
  %v234 = vmul.f32 %v170, %v170
  %v235 = vmul.f32 %v171, %v171
  %v236 = vmul.f32 %v172, %v172
  %v237 = vmul.f32 %v173, %v173
  %v238 = vmul.f32 %v174, %v174
  %v239 = vmul.f32 %v175, %v175
  %v240 = vmul.f32 %v176, %v176
  %v241 = vmul.f32 %v177, %v177
  %v242 = vmul.f32 %v178, %v178
  %v243 = vmul.f32 %v179, %v179
  %v244 = vmul.f32 %v180, %v180
  %v245 = vmul.f32 %v181, %v181
  %v246 = vmul.f32 %v182, %v182
  %v247 = vmul.f32 %v183, %v183
  %v248 = vmul.f32 %v184, %v184
  %v249 = vmul.f32 %v185, %v185
  %v250 = vadd.f32 %v218, %v219
  %v251 = vadd.f32 %v250, %v220
  %v252 = vadd.f32 %v251, %v221
  %v253 = vadd.f32 %v252, %v222
  %v254 = vadd.f32 %v253, %v223
  %v255 = vadd.f32 %v254, %v224
  %v256 = vadd.f32 %v255, %v225
  %v257 = vadd.f32 %v256, %v226
  %v258 = vadd.f32 %v257, %v227
  %v259 = vadd.f32 %v258, %v228
  %v260 = vadd.f32 %v259, %v229
  %v261 = vadd.f32 %v260, %v230
  %v262 = vadd.f32 %v261, %v231
  %v263 = vadd.f32 %v262, %v232
  %v264 = vadd.f32 %v263, %v233
  %v265 = vadd.f32 %v264, %v234
  %v266 = vadd.f32 %v265, %v235
  %v267 = vadd.f32 %v266, %v236
  %v268 = vadd.f32 %v267, %v237
  %v269 = vadd.f32 %v268, %v238
  %v270 = vadd.f32 %v269, %v239
  %v271 = vadd.f32 %v270, %v240
  %v272 = vadd.f32 %v271, %v241
  %v273 = vadd.f32 %v272, %v242
  %v274 = vadd.f32 %v273, %v243
  %v275 = vadd.f32 %v274, %v244
  %v276 = vadd.f32 %v275, %v245
  %v277 = vadd.f32 %v276, %v246
  %v278 = vadd.f32 %v277, %v247
  %v279 = vadd.f32 %v278, %v248
  %v280 = vadd.f32 %v279, %v249
  %v281 = vrot.slane %v280, 4
  %v282 = vadd.f32 %v280, %v281
  %v283 = vrot.slane %v282, 2
  %v284 = vadd.f32 %v282, %v283
  %v285 = vrot.slane %v284, 1
  %v286 = vadd.f32 %v284, %v285
  %v287 = vmul.f32 %v186, %v186
  %v288 = vmul.f32 %v187, %v187
  %v289 = vmul.f32 %v188, %v188
  %v290 = vmul.f32 %v189, %v189
  %v291 = vmul.f32 %v190, %v190
  %v292 = vmul.f32 %v191, %v191
  %v293 = vmul.f32 %v192, %v192
  %v294 = vmul.f32 %v193, %v193
  %v295 = vmul.f32 %v194, %v194
  %v296 = vmul.f32 %v195, %v195
  %v297 = vmul.f32 %v196, %v196
  %v298 = vmul.f32 %v197, %v197
  %v299 = vmul.f32 %v198, %v198
  %v300 = vmul.f32 %v199, %v199
  %v301 = vmul.f32 %v200, %v200
  %v302 = vmul.f32 %v201, %v201
  %v303 = vmul.f32 %v202, %v202
  %v304 = vmul.f32 %v203, %v203
  %v305 = vmul.f32 %v204, %v204
  %v306 = vmul.f32 %v205, %v205
  %v307 = vmul.f32 %v206, %v206
  %v308 = vmul.f32 %v207, %v207
  %v309 = vmul.f32 %v208, %v208
  %v310 = vmul.f32 %v209, %v209
  %v311 = vmul.f32 %v210, %v210
  %v312 = vmul.f32 %v211, %v211
  %v313 = vmul.f32 %v212, %v212
  %v314 = vmul.f32 %v213, %v213
  %v315 = vmul.f32 %v214, %v214
  %v316 = vmul.f32 %v215, %v215
  %v317 = vmul.f32 %v216, %v216
  %v318 = vmul.f32 %v217, %v217
  %v319 = vadd.f32 %v287, %v288
  %v320 = vadd.f32 %v319, %v289
  %v321 = vadd.f32 %v320, %v290
  %v322 = vadd.f32 %v321, %v291
  %v323 = vadd.f32 %v322, %v292
  %v324 = vadd.f32 %v323, %v293
  %v325 = vadd.f32 %v324, %v294
  %v326 = vadd.f32 %v325, %v295
  %v327 = vadd.f32 %v326, %v296
  %v328 = vadd.f32 %v327, %v297
  %v329 = vadd.f32 %v328, %v298
  %v330 = vadd.f32 %v329, %v299
  %v331 = vadd.f32 %v330, %v300
  %v332 = vadd.f32 %v331, %v301
  %v333 = vadd.f32 %v332, %v302
  %v334 = vadd.f32 %v333, %v303
  %v335 = vadd.f32 %v334, %v304
  %v336 = vadd.f32 %v335, %v305
  %v337 = vadd.f32 %v336, %v306
  %v338 = vadd.f32 %v337, %v307
  %v339 = vadd.f32 %v338, %v308
  %v340 = vadd.f32 %v339, %v309
  %v341 = vadd.f32 %v340, %v310
  %v342 = vadd.f32 %v341, %v311
  %v343 = vadd.f32 %v342, %v312
  %v344 = vadd.f32 %v343, %v313
  %v345 = vadd.f32 %v344, %v314
  %v346 = vadd.f32 %v345, %v315
  %v347 = vadd.f32 %v346, %v316
  %v348 = vadd.f32 %v347, %v317
  %v349 = vadd.f32 %v348, %v318
  %v350 = vrot.slane %v349, 4
  %v351 = vadd.f32 %v349, %v350
  %v352 = vrot.slane %v351, 2
  %v353 = vadd.f32 %v351, %v352
  %v354 = vrot.slane %v353, 1
  %v355 = vadd.f32 %v353, %v354
  %v356 = vadd.f32 %v286, %v355
  %v357 = vmul.f32 %v356, 0.001953125
  %v358 = vld [vmem:[%s1] sm:$0x1]
  %v359 = vadd.f32 %v357, 1e-05
  %v360 = vrsqrt.pop %v359
  %v361 = vmul.f32 %v360, %v359
  %v362 = vmul.f32 %v361, %v360
  %v363 = vmul.f32 0.5, %v362
  %v364 = vsub.f32 1.5, %v363
  %v365 = vmul.f32 %v360, %v364
  %vm366 = vweird.f32 %v359
  %vm367 = vweird.f32 %v360
  %vm368 = vmor %vm366, %vm367
  %v369 = vsel %vm368, %v360, %v365
  %v370 = vmul.f32 %v358, %v369
  %v371 = vld [vmem:[%s2] sm:$0x1]
  %v372 = vmul.f32 %v153, %v370
  %v373 = vsub.f32 %v371, %v372
  %v375 = vperm.slane %v370, 0
  %v377 = vmul.f32 %v14, %v375
  %v378 = vmul.f32 %v16, %v375
  %v379 = vmul.f32 %v18, %v375
  %v380 = vmul.f32 %v20, %v375
  %v381 = vmul.f32 %v22, %v375
  %v382 = vmul.f32 %v24, %v375
  %v383 = vmul.f32 %v26, %v375
  %v384 = vmul.f32 %v28, %v375
  %v385 = vmul.f32 %v30, %v375
  %v386 = vmul.f32 %v32, %v375
  %v387 = vmul.f32 %v34, %v375
  %v388 = vmul.f32 %v36, %v375
  %v389 = vmul.f32 %v38, %v375
  %v390 = vmul.f32 %v40, %v375
  %v391 = vmul.f32 %v42, %v375
  %v392 = vmul.f32 %v44, %v375
  %v393 = vmul.f32 %v46, %v375
  %v394 = vmul.f32 %v48, %v375
  %v395 = vmul.f32 %v50, %v375
  %v396 = vmul.f32 %v52, %v375
  %v397 = vmul.f32 %v54, %v375
  %v398 = vmul.f32 %v56, %v375
  %v399 = vmul.f32 %v58, %v375
  %v400 = vmul.f32 %v60, %v375
  %v401 = vmul.f32 %v62, %v375
  %v402 = vmul.f32 %v64, %v375
  %v403 = vmul.f32 %v66, %v375
  %v404 = vmul.f32 %v68, %v375
  %v405 = vmul.f32 %v70, %v375
  %v406 = vmul.f32 %v72, %v375
  %v407 = vmul.f32 %v74, %v375
  %v408 = vmul.f32 %v76, %v375
  %v410 = vperm.slane %v373, 0
  %v412 = vadd.f32 %v377, %v410
  %v413 = vadd.f32 %v378, %v410
  %v414 = vadd.f32 %v379, %v410
  %v415 = vadd.f32 %v380, %v410
  %v416 = vadd.f32 %v381, %v410
  %v417 = vadd.f32 %v382, %v410
  %v418 = vadd.f32 %v383, %v410
  %v419 = vadd.f32 %v384, %v410
  %v420 = vadd.f32 %v385, %v410
  %v421 = vadd.f32 %v386, %v410
  %v422 = vadd.f32 %v387, %v410
  %v423 = vadd.f32 %v388, %v410
  %v424 = vadd.f32 %v389, %v410
  %v425 = vadd.f32 %v390, %v410
  %v426 = vadd.f32 %v391, %v410
  %v427 = vadd.f32 %v392, %v410
  %v428 = vadd.f32 %v393, %v410
  %v429 = vadd.f32 %v394, %v410
  %v430 = vadd.f32 %v395, %v410
  %v431 = vadd.f32 %v396, %v410
  %v432 = vadd.f32 %v397, %v410
  %v433 = vadd.f32 %v398, %v410
  %v434 = vadd.f32 %v399, %v410
  %v435 = vadd.f32 %v400, %v410
  %v436 = vadd.f32 %v401, %v410
  %v437 = vadd.f32 %v402, %v410
  %v438 = vadd.f32 %v403, %v410
  %v439 = vadd.f32 %v404, %v410
  %v440 = vadd.f32 %v405, %v410
  %v441 = vadd.f32 %v406, %v410
  %v442 = vadd.f32 %v407, %v410
  %v443 = vadd.f32 %v408, %v410
  %v444 = vmax.f32 %v412, 0.0
  %v445 = vmax.f32 %v413, 0.0
  %v446 = vmax.f32 %v414, 0.0
  %v447 = vmax.f32 %v415, 0.0
  %v448 = vmax.f32 %v416, 0.0
  %v449 = vmax.f32 %v417, 0.0
  %v450 = vmax.f32 %v418, 0.0
  %v451 = vmax.f32 %v419, 0.0
  %v452 = vmax.f32 %v420, 0.0
  %v453 = vmax.f32 %v421, 0.0
  %v454 = vmax.f32 %v422, 0.0
  %v455 = vmax.f32 %v423, 0.0
  %v456 = vmax.f32 %v424, 0.0
  %v457 = vmax.f32 %v425, 0.0
  %v458 = vmax.f32 %v426, 0.0
  %v459 = vmax.f32 %v427, 0.0
  %v460 = vmax.f32 %v428, 0.0
  %v461 = vmax.f32 %v429, 0.0
  %v462 = vmax.f32 %v430, 0.0
  %v463 = vmax.f32 %v431, 0.0
  %v464 = vmax.f32 %v432, 0.0
  %v465 = vmax.f32 %v433, 0.0
  %v466 = vmax.f32 %v434, 0.0
  %v467 = vmax.f32 %v435, 0.0
  %v468 = vmax.f32 %v436, 0.0
  %v469 = vmax.f32 %v437, 0.0
  %v470 = vmax.f32 %v438, 0.0
  %v471 = vmax.f32 %v439, 0.0
  %v472 = vmax.f32 %v440, 0.0
  %v473 = vmax.f32 %v441, 0.0
  %v474 = vmax.f32 %v442, 0.0
  %v475 = vmax.f32 %v443, 0.0
  %v476 = vmul.f32 %v15, %v375
  %v477 = vmul.f32 %v17, %v375
  %v478 = vmul.f32 %v19, %v375
  %v479 = vmul.f32 %v21, %v375
  %v480 = vmul.f32 %v23, %v375
  %v481 = vmul.f32 %v25, %v375
  %v482 = vmul.f32 %v27, %v375
  %v483 = vmul.f32 %v29, %v375
  %v484 = vmul.f32 %v31, %v375
  %v485 = vmul.f32 %v33, %v375
  %v486 = vmul.f32 %v35, %v375
  %v487 = vmul.f32 %v37, %v375
  %v488 = vmul.f32 %v39, %v375
  %v489 = vmul.f32 %v41, %v375
  %v490 = vmul.f32 %v43, %v375
  %v491 = vmul.f32 %v45, %v375
  %v492 = vmul.f32 %v47, %v375
  %v493 = vmul.f32 %v49, %v375
  %v494 = vmul.f32 %v51, %v375
  %v495 = vmul.f32 %v53, %v375
  %v496 = vmul.f32 %v55, %v375
  %v497 = vmul.f32 %v57, %v375
  %v498 = vmul.f32 %v59, %v375
  %v499 = vmul.f32 %v61, %v375
  %v500 = vmul.f32 %v63, %v375
  %v501 = vmul.f32 %v65, %v375
  %v502 = vmul.f32 %v67, %v375
  %v503 = vmul.f32 %v69, %v375
  %v504 = vmul.f32 %v71, %v375
  %v505 = vmul.f32 %v73, %v375
  %v506 = vmul.f32 %v75, %v375
  %v507 = vmul.f32 %v77, %v375
  %v508 = vadd.f32 %v476, %v410
  %v509 = vadd.f32 %v477, %v410
  %v510 = vadd.f32 %v478, %v410
  %v511 = vadd.f32 %v479, %v410
  %v512 = vadd.f32 %v480, %v410
  %v513 = vadd.f32 %v481, %v410
  %v514 = vadd.f32 %v482, %v410
  %v515 = vadd.f32 %v483, %v410
  %v516 = vadd.f32 %v484, %v410
  %v517 = vadd.f32 %v485, %v410
  %v518 = vadd.f32 %v486, %v410
  %v519 = vadd.f32 %v487, %v410
  %v520 = vadd.f32 %v488, %v410
  %v521 = vadd.f32 %v489, %v410
  %v522 = vadd.f32 %v490, %v410
  %v523 = vadd.f32 %v491, %v410
  %v524 = vadd.f32 %v492, %v410
  %v525 = vadd.f32 %v493, %v410
  %v526 = vadd.f32 %v494, %v410
  %v527 = vadd.f32 %v495, %v410
  %v528 = vadd.f32 %v496, %v410
  %v529 = vadd.f32 %v497, %v410
  %v530 = vadd.f32 %v498, %v410
  %v531 = vadd.f32 %v499, %v410
  %v532 = vadd.f32 %v500, %v410
  %v533 = vadd.f32 %v501, %v410
  %v534 = vadd.f32 %v502, %v410
  %v535 = vadd.f32 %v503, %v410
  %v536 = vadd.f32 %v504, %v410
  %v537 = vadd.f32 %v505, %v410
  %v538 = vadd.f32 %v506, %v410
  %v539 = vadd.f32 %v507, %v410
  %v540 = vmax.f32 %v508, 0.0
  %v541 = vmax.f32 %v509, 0.0
  %v542 = vmax.f32 %v510, 0.0
  %v543 = vmax.f32 %v511, 0.0
  %v544 = vmax.f32 %v512, 0.0
  %v545 = vmax.f32 %v513, 0.0
  %v546 = vmax.f32 %v514, 0.0
  %v547 = vmax.f32 %v515, 0.0
  %v548 = vmax.f32 %v516, 0.0
  %v549 = vmax.f32 %v517, 0.0
  %v550 = vmax.f32 %v518, 0.0
  %v551 = vmax.f32 %v519, 0.0
  %v552 = vmax.f32 %v520, 0.0
  %v553 = vmax.f32 %v521, 0.0
  %v554 = vmax.f32 %v522, 0.0
  %v555 = vmax.f32 %v523, 0.0
  %v556 = vmax.f32 %v524, 0.0
  %v557 = vmax.f32 %v525, 0.0
  %v558 = vmax.f32 %v526, 0.0
  %v559 = vmax.f32 %v527, 0.0
  %v560 = vmax.f32 %v528, 0.0
  %v561 = vmax.f32 %v529, 0.0
  %v562 = vmax.f32 %v530, 0.0
  %v563 = vmax.f32 %v531, 0.0
  %v564 = vmax.f32 %v532, 0.0
  %v565 = vmax.f32 %v533, 0.0
  %v566 = vmax.f32 %v534, 0.0
  %v567 = vmax.f32 %v535, 0.0
  %v568 = vmax.f32 %v536, 0.0
  %v569 = vmax.f32 %v537, 0.0
  %v570 = vmax.f32 %v538, 0.0
  %v571 = vmax.f32 %v539, 0.0
  %v572 = vmax.f32 %v444, %v540
  %v573 = vmax.f32 %v445, %v541
  %v574 = vmax.f32 %v446, %v542
  %v575 = vmax.f32 %v447, %v543
  %v576 = vmax.f32 %v448, %v544
  %v577 = vmax.f32 %v449, %v545
  %v578 = vmax.f32 %v450, %v546
  %v579 = vmax.f32 %v451, %v547
  %v580 = vmax.f32 %v452, %v548
  %v581 = vmax.f32 %v453, %v549
  %v582 = vmax.f32 %v454, %v550
  %v583 = vmax.f32 %v455, %v551
  %v584 = vmax.f32 %v456, %v552
  %v585 = vmax.f32 %v457, %v553
  %v586 = vmax.f32 %v458, %v554
  %v587 = vmax.f32 %v459, %v555
  %v588 = vmax.f32 %v460, %v556
  %v589 = vmax.f32 %v461, %v557
  %v590 = vmax.f32 %v462, %v558
  %v591 = vmax.f32 %v463, %v559
  %v592 = vmax.f32 %v464, %v560
  %v593 = vmax.f32 %v465, %v561
  %v594 = vmax.f32 %v466, %v562
  %v595 = vmax.f32 %v467, %v563
  %v596 = vmax.f32 %v468, %v564
  %v597 = vmax.f32 %v469, %v565
  %v598 = vmax.f32 %v470, %v566
  %v599 = vmax.f32 %v471, %v567
  %v600 = vmax.f32 %v472, %v568
  %v601 = vmax.f32 %v473, %v569
  %v602 = vmax.f32 %v474, %v570
  %v603 = vmax.f32 %v475, %v571
  %v604 = vmax.f32 %v572, %v573
  %v605 = vmax.f32 %v588, %v589
  %606 = vst [vmem:[%s3] sm:$0xff] %v604
  %607 = vst [vmem:[%s3 + $0x40] sm:$0xff] %v605
  %v608 = vmax.f32 %v574, %v575
  %v609 = vmax.f32 %v590, %v591
  %s610 = scalar_lea.vmem %s3, 8
  %611 = vst [vmem:[%s610] sm:$0xff] %v608
  %612 = vst [vmem:[%s610 + $0x40] sm:$0xff] %v609
  %v613 = vmax.f32 %v576, %v577
  %v614 = vmax.f32 %v592, %v593
  %s615 = scalar_lea.vmem %s3, 16
  %616 = vst [vmem:[%s615] sm:$0xff] %v613
  %617 = vst [vmem:[%s615 + $0x40] sm:$0xff] %v614
  %v618 = vmax.f32 %v578, %v579
  %v619 = vmax.f32 %v594, %v595
  %s620 = scalar_lea.vmem %s3, 24
  %621 = vst [vmem:[%s620] sm:$0xff] %v618
  %622 = vst [vmem:[%s620 + $0x40] sm:$0xff] %v619
  %v623 = vmax.f32 %v580, %v581
  %v624 = vmax.f32 %v596, %v597
  %s625 = scalar_lea.vmem %s3, 32
  %626 = vst [vmem:[%s625] sm:$0xff] %v623
  %627 = vst [vmem:[%s625 + $0x40] sm:$0xff] %v624
  %v628 = vmax.f32 %v582, %v583
  %v629 = vmax.f32 %v598, %v599
  %s630 = scalar_lea.vmem %s3, 40
  %631 = vst [vmem:[%s630] sm:$0xff] %v628
  %632 = vst [vmem:[%s630 + $0x40] sm:$0xff] %v629
  %v633 = vmax.f32 %v584, %v585
  %v634 = vmax.f32 %v600, %v601
  %s635 = scalar_lea.vmem %s3, 48
  %636 = vst [vmem:[%s635] sm:$0xff] %v633
  %637 = vst [vmem:[%s635 + $0x40] sm:$0xff] %v634
  %v638 = vmax.f32 %v586, %v587
  %v639 = vmax.f32 %v602, %v603
  %s640 = scalar_lea.vmem %s3, 56
  %641 = vst [vmem:[%s640] sm:$0xff] %v638
  %642 = vst [vmem:[%s640 + $0x40] sm:$0xff] %v639
  // Predicated region
  $region14: #{cnn_cifar_forward.10} parent=0 // pred_check
    _
  $region15: #{cnn_cifar_forward.10} parent=0 // pred_check_branch
    %644 = sbr.rel (0) target = $region17
  $region16: #{cnn_cifar_forward.10} parent=0 // pred_region
    _
  $region17: #{cnn_cifar_forward.10} parent=0 // pred_fallthru
    _
  // Predicated region
  $region18: #{cnn_cifar_forward.10} parent=0 // pred_check
    _
  $region19: #{cnn_cifar_forward.10} parent=0 // pred_check_branch
    %646 = sbr.rel (0) target = $region21
  $region20: #{cnn_cifar_forward.10} parent=0 // pred_region
    _
  $region21: #{cnn_cifar_forward.10} parent=0 // pred_fallthru
    _

// kernel: cnn_cifar_forward.11
$region0: #{cnn_cifar_forward.11}
  #allocation0 [shape = 'u32[]', space=smem, size = 0x4, offset = 0x4, fixed_abs, tag = 'smem constant byte address 0x4 - core index']
  #allocation1 [shape = 'u32[72,128]{1,0:T(1,128)}', space=vmem, size = 0x9000, scoped, tag = 'internal scratch']
  %s0 = inlined_call_operand.vmem [shape: bf16[128,1152], index: 0, kind: input, shape index: {}]
  %s1 = inlined_call_operand.vmem [shape: bf16[1152,256], index: 1, kind: input, shape index: {}]
  %s2 = inlined_call_operand.vmem [shape: f32[1,256], index: 2, kind: input, shape index: {}]
  %s3 = inlined_call_operand.vmem [shape: f32[128,256], index: 3, kind: output, shape index: {}]
  %s4 = sld [smem:[#allocation0]]
  $region45: #{cnn_cifar_forward.11} parent=0
    _
  %s6 = ssub.s32 1, %s4
  %s7 = scalar_select 0, %s6, %s4
  loop: start=0, step=1, limit=4
  $region2: #{cnn_cifar_forward.11} parent=0 // loop_pre_header
    _
  $region3: #{cnn_cifar_forward.11} parent=0 // loop_header
    %s9 = sphi 0, %s13
    %p10 = scmp.ge.s32.totalorder %s9, 4
    %s19 = sphi 0, %s21
    %s22 = sphi 0, %s19
    %s23 = sphi 0, %s22
    %s39 = sphi 0, %s23
    %s43 = sphi 0, %s43
    %s45 = sphi 0, %s43
    %s46 = sphi 0, %s45
    %s60 = sphi 0, %s46
    %s64 = sphi 0, %s64
    %s66 = sphi 0, %s64
    %s67 = sphi 0, %s66
    %s81 = sphi 0, %s67
    %s87 = sphi 0, %s89
    %s90 = sphi 0, %s87
    %s91 = sphi 0, %s90
    %s107 = sphi 0, %s91
  $region4: #{cnn_cifar_forward.11} parent=0 // loop_header_branch
    %12 = sbr.rel (%p10) target = $region8
  $region5: #{cnn_cifar_forward.11} parent=0 // loop_body
    %s14 = ssub.s32 %s9, 1
    %s15 = ssub.s32 %s9, 2
    %s16 = sadd.s32 %s9, 1
    %s17 = ssub.s32 %s9, %s16
    %p18 = scmp.eq.s32.totalorder %s17, 0
    %s20 = sadd.s32 %s19, 1
    %s21 = scalar_select %p18, %s19, %s20
    %p24 = pneg %p18
    %p25 = scmp.eq.s32.totalorder %s9, 1
    %p26 = por %p24, %p25
    %p27 = scmp.ne.s32.totalorder %s19, %s22
    %p28 = scmp.eq.s32.totalorder %s9, 0
    %p29 = por %p27, %p28
    %p30 = scmp.ne.s32.totalorder %s19, %s22
    %p31 = scmp.eq.s32.totalorder %s14, 1
    %p32 = por %p30, %p31
    %p33 = scmp.ne.s32.totalorder %s22, %s23
    %p34 = scmp.eq.s32.totalorder %s14, 0
    %p35 = por %p33, %p34
    %p36 = scmp.ne.s32.totalorder %s22, %s23
    %p37 = scmp.eq.s32.totalorder %s15, 1
    %p38 = por %p36, %p37
    %p40 = scmp.ne.s32.totalorder %s23, %s39
    %p41 = scmp.eq.s32.totalorder %s15, 0
    %p42 = por %p40, %p41
    %s44 = sadd.s32 %s43, 1
    %p47 = scmp.eq.s32.totalorder %s9, 1
    %p48 = scmp.ne.s32.totalorder %s43, %s45
    %p49 = scmp.eq.s32.totalorder %s9, 0
    %p50 = por %p48, %p49
    %p51 = scmp.ne.s32.totalorder %s43, %s45
    %p52 = scmp.eq.s32.totalorder %s14, 1
    %p53 = por %p51, %p52
    %p54 = scmp.ne.s32.totalorder %s45, %s46
    %p55 = scmp.eq.s32.totalorder %s14, 0
    %p56 = por %p54, %p55
    %p57 = scmp.ne.s32.totalorder %s45, %s46
    %p58 = scmp.eq.s32.totalorder %s15, 1
    %p59 = por %p57, %p58
    %p61 = scmp.ne.s32.totalorder %s46, %s60
    %p62 = scmp.eq.s32.totalorder %s15, 0
    %p63 = por %p61, %p62
    %s65 = sadd.s32 %s64, 1
    %p68 = scmp.eq.s32.totalorder %s9, 1
    %p69 = scmp.ne.s32.totalorder %s64, %s66
    %p70 = scmp.eq.s32.totalorder %s9, 0
    %p71 = por %p69, %p70
    %p72 = scmp.ne.s32.totalorder %s64, %s66
    %p73 = scmp.eq.s32.totalorder %s14, 1
    %p74 = por %p72, %p73
    %p75 = scmp.ne.s32.totalorder %s66, %s67
    %p76 = scmp.eq.s32.totalorder %s14, 0
    %p77 = por %p75, %p76
    %p78 = scmp.ne.s32.totalorder %s66, %s67
    %p79 = scmp.eq.s32.totalorder %s15, 1
    %p80 = por %p78, %p79
    %p82 = scmp.ne.s32.totalorder %s67, %s81
    %p83 = scmp.eq.s32.totalorder %s15, 0
    %p84 = por %p82, %p83
    %s85 = ssub.s32 %s9, %s16
    %p86 = scmp.eq.s32.totalorder %s85, 0
    %s88 = sadd.s32 %s87, 1
    %s89 = scalar_select %p86, %s87, %s88
    %p92 = pneg %p86
    %p93 = scmp.eq.s32.totalorder %s9, 1
    %p94 = por %p92, %p93
    %p95 = scmp.ne.s32.totalorder %s87, %s90
    %p96 = scmp.eq.s32.totalorder %s9, 0
    %p97 = por %p95, %p96
    %p98 = scmp.ne.s32.totalorder %s87, %s90
    %p99 = scmp.eq.s32.totalorder %s14, 1
    %p100 = por %p98, %p99
    %p101 = scmp.ne.s32.totalorder %s90, %s91
    %p102 = scmp.eq.s32.totalorder %s14, 0
    %p103 = por %p101, %p102
    %p104 = scmp.ne.s32.totalorder %s90, %s91
    %p105 = scmp.eq.s32.totalorder %s15, 1
    %p106 = por %p104, %p105
    %p108 = scmp.ne.s32.totalorder %s91, %s107
    %p109 = scmp.eq.s32.totalorder %s15, 0
    %p110 = por %p108, %p109
    %p111 = scmp.le.s32.totalorder 1, %s9
    %p112 = scmp.lt.s32.totalorder %s9, 3
    %p113 = pnand %p111, %p112
    %p114 = pneg %p113
    // Predicated region
    $region9: #{cnn_cifar_forward.11} parent=5 // pred_check
      _
    $region10: #{cnn_cifar_forward.11} parent=5 // pred_check_branch
      %116 = sbr.rel (%p113) target = $region12
    $region11: #{cnn_cifar_forward.11} parent=5 // pred_region
      %s117 = ssub.s32 %s9, 1
      // Predicated region
      $region13: #{cnn_cifar_forward.11} parent=11 // pred_check
        %p118 = pneg %p56
      $region14: #{cnn_cifar_forward.11} parent=11 // pred_check_branch
        %120 = sbr.rel (%p118) target = $region16
      $region15: #{cnn_cifar_forward.11} parent=11 // pred_region
        _
      $region16: #{cnn_cifar_forward.11} parent=11 // pred_fallthru
        _
      // Predicated region
      $region17: #{cnn_cifar_forward.11} parent=11 // pred_check
        %p121 = pneg %p77
      $region18: #{cnn_cifar_forward.11} parent=11 // pred_check_branch
        %123 = sbr.rel (%p121) target = $region20
      $region19: #{cnn_cifar_forward.11} parent=11 // pred_region
        _
      $region20: #{cnn_cifar_forward.11} parent=11 // pred_fallthru
        _
    $region12: #{cnn_cifar_forward.11} parent=5 // pred_fallthru
      _
    %p124 = scmp.lt.s32.totalorder %s9, 2
    // Predicated region
    $region21: #{cnn_cifar_forward.11} parent=5 // pred_check
      %p125 = pneg %p124
    $region22: #{cnn_cifar_forward.11} parent=5 // pred_check_branch
      %127 = sbr.rel (%p125) target = $region24
    $region23: #{cnn_cifar_forward.11} parent=5 // pred_region
      // Predicated region
      $region25: #{cnn_cifar_forward.11} parent=23 // pred_check
        %p128 = pneg %p29
      $region26: #{cnn_cifar_forward.11} parent=23 // pred_check_branch
        %130 = sbr.rel (%p128) target = $region28
      $region27: #{cnn_cifar_forward.11} parent=23 // pred_region
        %s131 = smul.u32 8, %s9
        %p132 = scmp.lt.s32.totalorder %s131, 15
        %s133 = scalar_select %p132, %s131, 15
        %s134 = smul.addr %s133, 9
        %s135 = smul.addr %s134, 4
        %s136 = scalar_lea.vmem %s0, %s135
        %s137 = smul.u32 8, %s9
      $region28: #{cnn_cifar_forward.11} parent=23 // pred_fallthru
        _
    $region24: #{cnn_cifar_forward.11} parent=5 // pred_fallthru
      _
    %p138 = scmp.le.s32.totalorder 1, %s9
    %p139 = scmp.lt.s32.totalorder %s9, 3
    %p140 = pnand %p138, %p139
    %p141 = pneg %p140
    // Predicated region
    $region29: #{cnn_cifar_forward.11} parent=5 // pred_check
      _
    $region30: #{cnn_cifar_forward.11} parent=5 // pred_check_branch
      %143 = sbr.rel (%p140) target = $region32
    $region31: #{cnn_cifar_forward.11} parent=5 // pred_region
      %s144 = ssub.s32 %s9, 1
      %s145 = smul.u32 8, %s14
      %p146 = scmp.lt.s32.totalorder %s145, 15
      %s147 = scalar_select %p146, %s145, 15
      %s148 = smul.addr %s147, 9
      %s149 = smul.addr %s148, 4
      %s150 = scalar_lea.vmem %s0, %s149
      %p151 = pneg %p35
      %p152 = pneg %p32
      %p153 = pneg %p56
      %p154 = pneg %p53
      %p155 = pneg %p77
      %p156 = pneg %p74
      %p157 = pneg %p103
      %p158 = pneg %p100
      %s159 = smul.u32 8, %s14
      %p160 = scmp.lt.s32.totalorder %s159, 15
      %s161 = scalar_select %p160, %s159, 15
      %s162 = smul.addr %s161, 2
      %s163 = smul.addr %s162, 8
      %s164 = scalar_lea.vmem %s3, %s163
      %s165 = smul.u32 8, %s14
      %p166 = scmp.lt.s32.totalorder %s165, 15
      %s167 = scalar_select %p166, %s165, 15
      %s168 = smul.addr %s167, 9
      %s169 = smul.addr %s168, 4
      %s170 = scalar_lea.vmem %s0, %s169
      %s171 = smul.u32 8, %s14
      %s172 = smul.u32 8, %s14
      %p173 = scmp.lt.s32.totalorder %s172, 15
      %s174 = scalar_select %p173, %s172, 15
      %s175 = smul.addr %s174, 2
      %s176 = smul.addr %s175, 8
      %s177 = scalar_lea.vmem %s3, %s176
      %s178 = smul.u32 8, %s14
      %v179 = vld [vmem:[%s170] sm:$0xff]
      %v180 = vld [vmem:[%s170 + $0x8] sm:$0xff]
      %v181 = vld [vmem:[%s170 + $0x10] sm:$0xff]
      %v182 = vld [vmem:[%s170 + $0x18] sm:$0xff]
      %v183 = vld [vmem:[%s170 + $0x20] sm:$0xf]
      %v184 = vld [vmem:[%s170 + $0x24] sm:$0xff]
      %v185 = vld [vmem:[%s170 + $0x2c] sm:$0xff]
      %v186 = vld [vmem:[%s170 + $0x34] sm:$0xff]
      %v187 = vld [vmem:[%s170 + $0x3c] sm:$0xff]
      %v188 = vld [vmem:[%s170 + $0x44] sm:$0xf]
      %v189 = vld [vmem:[%s170 + $0x48] sm:$0xff]
      %v190 = vld [vmem:[%s170 + $0x50] sm:$0xff]
      %v191 = vld [vmem:[%s170 + $0x58] sm:$0xff]
      %v192 = vld [vmem:[%s170 + $0x60] sm:$0xff]
      %v193 = vld [vmem:[%s170 + $0x68] sm:$0xf]
      %v194 = vld [vmem:[%s170 + $0x6c] sm:$0xff]
      %v195 = vld [vmem:[%s170 + $0x74] sm:$0xff]
      %v196 = vld [vmem:[%s170 + $0x7c] sm:$0xff]
      %v197 = vld [vmem:[%s170 + $0x84] sm:$0xff]
      %v198 = vld [vmem:[%s170 + $0x8c] sm:$0xf]
      %v199 = vld [vmem:[%s170 + $0x90] sm:$0xff]
      %v200 = vld [vmem:[%s170 + $0x98] sm:$0xff]
      %v201 = vld [vmem:[%s170 + $0xa0] sm:$0xff]
      %v202 = vld [vmem:[%s170 + $0xa8] sm:$0xff]
      %v203 = vld [vmem:[%s170 + $0xb0] sm:$0xf]
      %v204 = vld [vmem:[%s170 + $0xb4] sm:$0xff]
      %v205 = vld [vmem:[%s170 + $0xbc] sm:$0xff]
      %v206 = vld [vmem:[%s170 + $0xc4] sm:$0xff]
      %v207 = vld [vmem:[%s170 + $0xcc] sm:$0xff]
      %v208 = vld [vmem:[%s170 + $0xd4] sm:$0xf]
      %v209 = vld [vmem:[%s170 + $0xd8] sm:$0xff]
      %v210 = vld [vmem:[%s170 + $0xe0] sm:$0xff]
      %v211 = vld [vmem:[%s170 + $0xe8] sm:$0xff]
      %v212 = vld [vmem:[%s170 + $0xf0] sm:$0xff]
      %v213 = vld [vmem:[%s170 + $0xf8] sm:$0xf]
      %v214 = vld [vmem:[%s170 + $0xfc] sm:$0xff]
      %v215 = vld [vmem:[%s170 + $0x104] sm:$0xff]
      %v216 = vld [vmem:[%s170 + $0x10c] sm:$0xff]
      %v217 = vld [vmem:[%s170 + $0x114] sm:$0xff]
      %v218 = vld [vmem:[%s170 + $0x11c] sm:$0xf]
      %v219 = vld [vmem:[%s1] sm:$0xff]
      %v220 = vld [vmem:[%s1 + $0x8] sm:$0xff]
      %v221 = vld [vmem:[%s1 + $0x10] sm:$0xff]
      %v222 = vld [vmem:[%s1 + $0x18] sm:$0xff]
      %v223 = vld [vmem:[%s1 + $0x20] sm:$0xff]
      %v224 = vld [vmem:[%s1 + $0x28] sm:$0xff]
      %v225 = vld [vmem:[%s1 + $0x30] sm:$0xff]
      %v226 = vld [vmem:[%s1 + $0x38] sm:$0xff]
      %v227 = vld [vmem:[%s1 + $0x40] sm:$0xff]
      %v228 = vld [vmem:[%s1 + $0x48] sm:$0xff]
      %v229 = vld [vmem:[%s1 + $0x50] sm:$0xff]
      %v230 = vld [vmem:[%s1 + $0x58] sm:$0xff]
      %v231 = vld [vmem:[%s1 + $0x60] sm:$0xff]
      %v232 = vld [vmem:[%s1 + $0x68] sm:$0xff]
      %v233 = vld [vmem:[%s1 + $0x70] sm:$0xff]
      %v234 = vld [vmem:[%s1 + $0x78] sm:$0xff]
      %v235 = vld [vmem:[%s1 + $0x80] sm:$0xff]
      %v236 = vld [vmem:[%s1 + $0x88] sm:$0xff]
      %v237 = vld [vmem:[%s1 + $0x90] sm:$0xff]
      %v238 = vld [vmem:[%s1 + $0x98] sm:$0xff]
      %v239 = vld [vmem:[%s1 + $0xa0] sm:$0xff]
      %v240 = vld [vmem:[%s1 + $0xa8] sm:$0xff]
      %v241 = vld [vmem:[%s1 + $0xb0] sm:$0xff]
      %v242 = vld [vmem:[%s1 + $0xb8] sm:$0xff]
      %v243 = vld [vmem:[%s1 + $0xc0] sm:$0xff]
      %v244 = vld [vmem:[%s1 + $0xc8] sm:$0xff]
      %v245 = vld [vmem:[%s1 + $0xd0] sm:$0xff]
      %v246 = vld [vmem:[%s1 + $0xd8] sm:$0xff]
      %v247 = vld [vmem:[%s1 + $0xe0] sm:$0xff]
      %v248 = vld [vmem:[%s1 + $0xe8] sm:$0xff]
      %v249 = vld [vmem:[%s1 + $0xf0] sm:$0xff]
      %v250 = vld [vmem:[%s1 + $0xf8] sm:$0xff]
      %v251 = vld [vmem:[%s1 + $0x100] sm:$0xff]
      %v252 = vld [vmem:[%s1 + $0x108] sm:$0xff]
      %v253 = vld [vmem:[%s1 + $0x110] sm:$0xff]
      %v254 = vld [vmem:[%s1 + $0x118] sm:$0xff]
      %v255 = vld [vmem:[%s1 + $0x120] sm:$0xff]
      %v256 = vld [vmem:[%s1 + $0x128] sm:$0xff]
      %v257 = vld [vmem:[%s1 + $0x130] sm:$0xff]
      %v258 = vld [vmem:[%s1 + $0x138] sm:$0xff]
      %v259 = vld [vmem:[%s1 + $0x140] sm:$0xff]
      %v260 = vld [vmem:[%s1 + $0x148] sm:$0xff]
      %v261 = vld [vmem:[%s1 + $0x150] sm:$0xff]
      %v262 = vld [vmem:[%s1 + $0x158] sm:$0xff]
      %v263 = vld [vmem:[%s1 + $0x160] sm:$0xff]
      %v264 = vld [vmem:[%s1 + $0x168] sm:$0xff]
      %v265 = vld [vmem:[%s1 + $0x170] sm:$0xff]
      %v266 = vld [vmem:[%s1 + $0x178] sm:$0xff]
      %v267 = vld [vmem:[%s1 + $0x180] sm:$0xff]
      %v268 = vld [vmem:[%s1 + $0x188] sm:$0xff]
      %v269 = vld [vmem:[%s1 + $0x190] sm:$0xff]
      %v270 = vld [vmem:[%s1 + $0x198] sm:$0xff]
      %v271 = vld [vmem:[%s1 + $0x1a0] sm:$0xff]
      %v272 = vld [vmem:[%s1 + $0x1a8] sm:$0xff]
      %v273 = vld [vmem:[%s1 + $0x1b0] sm:$0xff]
      %v274 = vld [vmem:[%s1 + $0x1b8] sm:$0xff]
      %v275 = vld [vmem:[%s1 + $0x1c0] sm:$0xff]
      %v276 = vld [vmem:[%s1 + $0x1c8] sm:$0xff]
      %v277 = vld [vmem:[%s1 + $0x1d0] sm:$0xff]
      %v278 = vld [vmem:[%s1 + $0x1d8] sm:$0xff]
      %v279 = vld [vmem:[%s1 + $0x1e0] sm:$0xff]
      %v280 = vld [vmem:[%s1 + $0x1e8] sm:$0xff]
      %v281 = vld [vmem:[%s1 + $0x1f0] sm:$0xff]
      %v282 = vld [vmem:[%s1 + $0x1f8] sm:$0xff]
      %v283 = vld [vmem:[%s1 + $0x200] sm:$0xff]
      %v284 = vld [vmem:[%s1 + $0x208] sm:$0xff]
      %v285 = vld [vmem:[%s1 + $0x210] sm:$0xff]
      %v286 = vld [vmem:[%s1 + $0x218] sm:$0xff]
      %v287 = vld [vmem:[%s1 + $0x220] sm:$0xff]
      %v288 = vld [vmem:[%s1 + $0x228] sm:$0xff]
      %v289 = vld [vmem:[%s1 + $0x230] sm:$0xff]
      %v290 = vld [vmem:[%s1 + $0x238] sm:$0xff]
      %v291 = vld [vmem:[%s1 + $0x240] sm:$0xff]
      %v292 = vld [vmem:[%s1 + $0x248] sm:$0xff]
      %v293 = vld [vmem:[%s1 + $0x250] sm:$0xff]
      %v294 = vld [vmem:[%s1 + $0x258] sm:$0xff]
      %v295 = vld [vmem:[%s1 + $0x260] sm:$0xff]
      %v296 = vld [vmem:[%s1 + $0x268] sm:$0xff]
      %v297 = vld [vmem:[%s1 + $0x270] sm:$0xff]
      %v298 = vld [vmem:[%s1 + $0x278] sm:$0xff]
      %v299 = vld [vmem:[%s1 + $0x280] sm:$0xff]
      %v300 = vld [vmem:[%s1 + $0x288] sm:$0xff]
      %v301 = vld [vmem:[%s1 + $0x290] sm:$0xff]
      %v302 = vld [vmem:[%s1 + $0x298] sm:$0xff]
      %v303 = vld [vmem:[%s1 + $0x2a0] sm:$0xff]
      %v304 = vld [vmem:[%s1 + $0x2a8] sm:$0xff]
      %v305 = vld [vmem:[%s1 + $0x2b0] sm:$0xff]
      %v306 = vld [vmem:[%s1 + $0x2b8] sm:$0xff]
      %v307 = vld [vmem:[%s1 + $0x2c0] sm:$0xff]
      %v308 = vld [vmem:[%s1 + $0x2c8] sm:$0xff]
      %v309 = vld [vmem:[%s1 + $0x2d0] sm:$0xff]
      %v310 = vld [vmem:[%s1 + $0x2d8] sm:$0xff]
      %v311 = vld [vmem:[%s1 + $0x2e0] sm:$0xff]
      %v312 = vld [vmem:[%s1 + $0x2e8] sm:$0xff]
      %v313 = vld [vmem:[%s1 + $0x2f0] sm:$0xff]
      %v314 = vld [vmem:[%s1 + $0x2f8] sm:$0xff]
      %v315 = vld [vmem:[%s1 + $0x300] sm:$0xff]
      %v316 = vld [vmem:[%s1 + $0x308] sm:$0xff]
      %v317 = vld [vmem:[%s1 + $0x310] sm:$0xff]
      %v318 = vld [vmem:[%s1 + $0x318] sm:$0xff]
      %v319 = vld [vmem:[%s1 + $0x320] sm:$0xff]
      %v320 = vld [vmem:[%s1 + $0x328] sm:$0xff]
      %v321 = vld [vmem:[%s1 + $0x330] sm:$0xff]
      %v322 = vld [vmem:[%s1 + $0x338] sm:$0xff]
      %v323 = vld [vmem:[%s1 + $0x340] sm:$0xff]
      %v324 = vld [vmem:[%s1 + $0x348] sm:$0xff]
      %v325 = vld [vmem:[%s1 + $0x350] sm:$0xff]
      %v326 = vld [vmem:[%s1 + $0x358] sm:$0xff]
      %v327 = vld [vmem:[%s1 + $0x360] sm:$0xff]
      %v328 = vld [vmem:[%s1 + $0x368] sm:$0xff]
      %v329 = vld [vmem:[%s1 + $0x370] sm:$0xff]
      %v330 = vld [vmem:[%s1 + $0x378] sm:$0xff]
      %v331 = vld [vmem:[%s1 + $0x380] sm:$0xff]
      %v332 = vld [vmem:[%s1 + $0x388] sm:$0xff]
      %v333 = vld [vmem:[%s1 + $0x390] sm:$0xff]
      %v334 = vld [vmem:[%s1 + $0x398] sm:$0xff]
      %v335 = vld [vmem:[%s1 + $0x3a0] sm:$0xff]
      %v336 = vld [vmem:[%s1 + $0x3a8] sm:$0xff]
      %v337 = vld [vmem:[%s1 + $0x3b0] sm:$0xff]
      %v338 = vld [vmem:[%s1 + $0x3b8] sm:$0xff]
      %v339 = vld [vmem:[%s1 + $0x3c0] sm:$0xff]
      %v340 = vld [vmem:[%s1 + $0x3c8] sm:$0xff]
      %v341 = vld [vmem:[%s1 + $0x3d0] sm:$0xff]
      %v342 = vld [vmem:[%s1 + $0x3d8] sm:$0xff]
      %v343 = vld [vmem:[%s1 + $0x3e0] sm:$0xff]
      %v344 = vld [vmem:[%s1 + $0x3e8] sm:$0xff]
      %v345 = vld [vmem:[%s1 + $0x3f0] sm:$0xff]
      %v346 = vld [vmem:[%s1 + $0x3f8] sm:$0xff]
      %v347 = vld [vmem:[%s1 + $0x400] sm:$0xff]
      %v348 = vld [vmem:[%s1 + $0x408] sm:$0xff]
      %v349 = vld [vmem:[%s1 + $0x410] sm:$0xff]
      %v350 = vld [vmem:[%s1 + $0x418] sm:$0xff]
      %v351 = vld [vmem:[%s1 + $0x420] sm:$0xff]
      %v352 = vld [vmem:[%s1 + $0x428] sm:$0xff]
      %v353 = vld [vmem:[%s1 + $0x430] sm:$0xff]
      %v354 = vld [vmem:[%s1 + $0x438] sm:$0xff]
      %v355 = vld [vmem:[%s1 + $0x440] sm:$0xff]
      %v356 = vld [vmem:[%s1 + $0x448] sm:$0xff]
      %v357 = vld [vmem:[%s1 + $0x450] sm:$0xff]
      %v358 = vld [vmem:[%s1 + $0x458] sm:$0xff]
      %v359 = vld [vmem:[%s1 + $0x460] sm:$0xff]
      %v360 = vld [vmem:[%s1 + $0x468] sm:$0xff]
      %v361 = vld [vmem:[%s1 + $0x470] sm:$0xff]
      %v362 = vld [vmem:[%s1 + $0x478] sm:$0xff]
      %v363 = vld [vmem:[%s2] sm:$0x3]
      %v365 = vperm.slane %v363, 0
      %v366 = vperm.slane %v363, 1
      %v409 = vunpack.c.l.b16 %v179
      %v410 = vunpack.c.h.b16 %v179
      %v411 = vunpack.c.l.b16 %v180
      %v412 = vunpack.c.h.b16 %v180
      %v413 = vunpack.c.l.b16 %v181
      %v414 = vunpack.c.h.b16 %v181
      %v415 = vunpack.c.l.b16 %v182
      %v416 = vunpack.c.h.b16 %v182
      %v417 = vunpack.c.l.b16 %v183
      %v418 = vunpack.c.l.b16 %v184
      %v419 = vunpack.c.h.b16 %v184
      %v420 = vunpack.c.l.b16 %v185
      %v421 = vunpack.c.h.b16 %v185
      %v422 = vunpack.c.l.b16 %v186
      %v423 = vunpack.c.h.b16 %v186
      %v424 = vunpack.c.l.b16 %v187
      %v425 = vunpack.c.h.b16 %v187
      %v426 = vunpack.c.l.b16 %v188
      %v427 = vunpack.c.l.b16 %v189
      %v428 = vunpack.c.h.b16 %v189
      %v429 = vunpack.c.l.b16 %v190
      %v430 = vunpack.c.h.b16 %v190
      %v431 = vunpack.c.l.b16 %v191
      %v432 = vunpack.c.h.b16 %v191
      %v433 = vunpack.c.l.b16 %v192
      %v434 = vunpack.c.h.b16 %v192
      %v435 = vunpack.c.l.b16 %v193
      %v436 = vunpack.c.l.b16 %v194
      %v437 = vunpack.c.h.b16 %v194
      %v438 = vunpack.c.l.b16 %v195
      %v439 = vunpack.c.h.b16 %v195
      %v440 = vunpack.c.l.b16 %v196
      %v441 = vunpack.c.h.b16 %v196
      %v442 = vunpack.c.l.b16 %v197
      %v443 = vunpack.c.h.b16 %v197
      %v444 = vunpack.c.l.b16 %v198
      %v445 = vunpack.c.l.b16 %v199
      %v446 = vunpack.c.h.b16 %v199
      %v447 = vunpack.c.l.b16 %v200
      %v448 = vunpack.c.h.b16 %v200
      %v449 = vunpack.c.l.b16 %v201
      %v450 = vunpack.c.h.b16 %v201
      %v451 = vunpack.c.l.b16 %v202
      %v452 = vunpack.c.h.b16 %v202
      %v453 = vunpack.c.l.b16 %v203
      %v454 = vunpack.c.l.b16 %v204
      %v455 = vunpack.c.h.b16 %v204
      %v456 = vunpack.c.l.b16 %v205
      %v457 = vunpack.c.h.b16 %v205
      %v458 = vunpack.c.l.b16 %v206
      %v459 = vunpack.c.h.b16 %v206
      %v460 = vunpack.c.l.b16 %v207
      %v461 = vunpack.c.h.b16 %v207
      %v462 = vunpack.c.l.b16 %v208
      %v463 = vunpack.c.l.b16 %v209
      %v464 = vunpack.c.h.b16 %v209
      %v465 = vunpack.c.l.b16 %v210
      %v466 = vunpack.c.h.b16 %v210
      %v467 = vunpack.c.l.b16 %v211
      %v468 = vunpack.c.h.b16 %v211
      %v469 = vunpack.c.l.b16 %v212
      %v470 = vunpack.c.h.b16 %v212
      %v471 = vunpack.c.l.b16 %v213
      %v472 = vunpack.c.l.b16 %v214
      %v473 = vunpack.c.h.b16 %v214
      %v474 = vunpack.c.l.b16 %v215
      %v475 = vunpack.c.h.b16 %v215
      %v476 = vunpack.c.l.b16 %v216
      %v477 = vunpack.c.h.b16 %v216
      %v478 = vunpack.c.l.b16 %v217
      %v479 = vunpack.c.h.b16 %v217
      %v480 = vunpack.c.l.b16 %v218
      %v481 = vpack.c.b16 %v418, %v409
      %v482 = vpack.c.b16 %v419, %v410
      %v483 = vpack.c.b16 %v420, %v411
      %v484 = vpack.c.b16 %v421, %v412
      %v485 = vpack.c.b16 %v422, %v413
      %v486 = vpack.c.b16 %v423, %v414
      %v487 = vpack.c.b16 %v424, %v415
      %v488 = vpack.c.b16 %v425, %v416
      %v489 = vpack.c.b16 %v426, %v417
      %v490 = vpack.c.b16 %v436, %v427
      %v491 = vpack.c.b16 %v437, %v428
      %v492 = vpack.c.b16 %v438, %v429
      %v493 = vpack.c.b16 %v439, %v430
      %v494 = vpack.c.b16 %v440, %v431
      %v495 = vpack.c.b16 %v441, %v432
      %v496 = vpack.c.b16 %v442, %v433
      %v497 = vpack.c.b16 %v443, %v434
      %v498 = vpack.c.b16 %v444, %v435
      %v499 = vpack.c.b16 %v454, %v445
      %v500 = vpack.c.b16 %v455, %v446
      %v501 = vpack.c.b16 %v456, %v447
      %v502 = vpack.c.b16 %v457, %v448
      %v503 = vpack.c.b16 %v458, %v449
      %v504 = vpack.c.b16 %v459, %v450
      %v505 = vpack.c.b16 %v460, %v451
      %v506 = vpack.c.b16 %v461, %v452
      %v507 = vpack.c.b16 %v462, %v453
      %v508 = vpack.c.b16 %v472, %v463
      %v509 = vpack.c.b16 %v473, %v464
      %v510 = vpack.c.b16 %v474, %v465
      %v511 = vpack.c.b16 %v475, %v466
      %v512 = vpack.c.b16 %v476, %v467
      %v513 = vpack.c.b16 %v477, %v468
      %v514 = vpack.c.b16 %v478, %v469
      %v515 = vpack.c.b16 %v479, %v470
      %v516 = vpack.c.b16 %v480, %v471
      %v697 = vunpack.c.l.b16 %v219
      %v698 = vunpack.c.h.b16 %v219
      %v699 = vunpack.c.l.b16 %v220
      %v700 = vunpack.c.h.b16 %v220
      %v701 = vunpack.c.l.b16 %v221
      %v702 = vunpack.c.h.b16 %v221
      %v703 = vunpack.c.l.b16 %v222
      %v704 = vunpack.c.h.b16 %v222
      %v705 = vunpack.c.l.b16 %v223
      %v706 = vunpack.c.h.b16 %v223
      %v707 = vunpack.c.l.b16 %v224
      %v708 = vunpack.c.h.b16 %v224
      %v709 = vunpack.c.l.b16 %v225
      %v710 = vunpack.c.h.b16 %v225
      %v711 = vunpack.c.l.b16 %v226
      %v712 = vunpack.c.h.b16 %v226
      %v713 = vunpack.c.l.b16 %v227
      %v714 = vunpack.c.h.b16 %v227
      %v715 = vunpack.c.l.b16 %v228
      %v716 = vunpack.c.h.b16 %v228
      %v717 = vunpack.c.l.b16 %v229
      %v718 = vunpack.c.h.b16 %v229
      %v719 = vunpack.c.l.b16 %v230
      %v720 = vunpack.c.h.b16 %v230
      %v721 = vunpack.c.l.b16 %v231
      %v722 = vunpack.c.h.b16 %v231
      %v723 = vunpack.c.l.b16 %v232
      %v724 = vunpack.c.h.b16 %v232
      %v725 = vunpack.c.l.b16 %v233
      %v726 = vunpack.c.h.b16 %v233
      %v727 = vunpack.c.l.b16 %v234
      %v728 = vunpack.c.h.b16 %v234
      %v729 = vunpack.c.l.b16 %v235
      %v730 = vunpack.c.h.b16 %v235
      %v731 = vunpack.c.l.b16 %v236
      %v732 = vunpack.c.h.b16 %v236
      %v733 = vunpack.c.l.b16 %v237
      %v734 = vunpack.c.h.b16 %v237
      %v735 = vunpack.c.l.b16 %v238
      %v736 = vunpack.c.h.b16 %v238
      %v737 = vunpack.c.l.b16 %v239
      %v738 = vunpack.c.h.b16 %v239
      %v739 = vunpack.c.l.b16 %v240
      %v740 = vunpack.c.h.b16 %v240
      %v741 = vunpack.c.l.b16 %v241
      %v742 = vunpack.c.h.b16 %v241
      %v743 = vunpack.c.l.b16 %v242
      %v744 = vunpack.c.h.b16 %v242
      %v745 = vunpack.c.l.b16 %v243
      %v746 = vunpack.c.h.b16 %v243
      %v747 = vunpack.c.l.b16 %v244
      %v748 = vunpack.c.h.b16 %v244
      %v749 = vunpack.c.l.b16 %v245
      %v750 = vunpack.c.h.b16 %v245
      %v751 = vunpack.c.l.b16 %v246
      %v752 = vunpack.c.h.b16 %v246
      %v753 = vunpack.c.l.b16 %v247
      %v754 = vunpack.c.h.b16 %v247
      %v755 = vunpack.c.l.b16 %v248
      %v756 = vunpack.c.h.b16 %v248
      %v757 = vunpack.c.l.b16 %v249
      %v758 = vunpack.c.h.b16 %v249
      %v759 = vunpack.c.l.b16 %v250
      %v760 = vunpack.c.h.b16 %v250
      %v761 = vunpack.c.l.b16 %v251
      %v762 = vunpack.c.h.b16 %v251
      %v763 = vunpack.c.l.b16 %v252
      %v764 = vunpack.c.h.b16 %v252
      %v765 = vunpack.c.l.b16 %v253
      %v766 = vunpack.c.h.b16 %v253
      %v767 = vunpack.c.l.b16 %v254
      %v768 = vunpack.c.h.b16 %v254
      %v769 = vunpack.c.l.b16 %v255
      %v770 = vunpack.c.h.b16 %v255
      %v771 = vunpack.c.l.b16 %v256
      %v772 = vunpack.c.h.b16 %v256
      %v773 = vunpack.c.l.b16 %v257
      %v774 = vunpack.c.h.b16 %v257
      %v775 = vunpack.c.l.b16 %v258
      %v776 = vunpack.c.h.b16 %v258
      %v777 = vunpack.c.l.b16 %v259
      %v778 = vunpack.c.h.b16 %v259
      %v779 = vunpack.c.l.b16 %v260
      %v780 = vunpack.c.h.b16 %v260
      %v781 = vunpack.c.l.b16 %v261
      %v782 = vunpack.c.h.b16 %v261
      %v783 = vunpack.c.l.b16 %v262
      %v784 = vunpack.c.h.b16 %v262
      %v785 = vunpack.c.l.b16 %v263
      %v786 = vunpack.c.h.b16 %v263
      %v787 = vunpack.c.l.b16 %v264
      %v788 = vunpack.c.h.b16 %v264
      %v789 = vunpack.c.l.b16 %v265
      %v790 = vunpack.c.h.b16 %v265
      %v791 = vunpack.c.l.b16 %v266
      %v792 = vunpack.c.h.b16 %v266
      %v793 = vunpack.c.l.b16 %v267
      %v794 = vunpack.c.h.b16 %v267
      %v795 = vunpack.c.l.b16 %v268
      %v796 = vunpack.c.h.b16 %v268
      %v797 = vunpack.c.l.b16 %v269
      %v798 = vunpack.c.h.b16 %v269
      %v799 = vunpack.c.l.b16 %v270
      %v800 = vunpack.c.h.b16 %v270
      %v801 = vunpack.c.l.b16 %v271
      %v802 = vunpack.c.h.b16 %v271
      %v803 = vunpack.c.l.b16 %v272
      %v804 = vunpack.c.h.b16 %v272
      %v805 = vunpack.c.l.b16 %v273
      %v806 = vunpack.c.h.b16 %v273
      %v807 = vunpack.c.l.b16 %v274
      %v808 = vunpack.c.h.b16 %v274
      %v809 = vunpack.c.l.b16 %v275
      %v810 = vunpack.c.h.b16 %v275
      %v811 = vunpack.c.l.b16 %v276
      %v812 = vunpack.c.h.b16 %v276
      %v813 = vunpack.c.l.b16 %v277
      %v814 = vunpack.c.h.b16 %v277
      %v815 = vunpack.c.l.b16 %v278
      %v816 = vunpack.c.h.b16 %v278
      %v817 = vunpack.c.l.b16 %v279
      %v818 = vunpack.c.h.b16 %v279
      %v819 = vunpack.c.l.b16 %v280
      %v820 = vunpack.c.h.b16 %v280
      %v821 = vunpack.c.l.b16 %v281
      %v822 = vunpack.c.h.b16 %v281
      %v823 = vunpack.c.l.b16 %v282
      %v824 = vunpack.c.h.b16 %v282
      %v825 = vunpack.c.l.b16 %v283
      %v826 = vunpack.c.h.b16 %v283
      %v827 = vunpack.c.l.b16 %v284
      %v828 = vunpack.c.h.b16 %v284
      %v829 = vunpack.c.l.b16 %v285
      %v830 = vunpack.c.h.b16 %v285
      %v831 = vunpack.c.l.b16 %v286
      %v832 = vunpack.c.h.b16 %v286
      %v833 = vunpack.c.l.b16 %v287
      %v834 = vunpack.c.h.b16 %v287
      %v835 = vunpack.c.l.b16 %v288
      %v836 = vunpack.c.h.b16 %v288
      %v837 = vunpack.c.l.b16 %v289
      %v838 = vunpack.c.h.b16 %v289
      %v839 = vunpack.c.l.b16 %v290
      %v840 = vunpack.c.h.b16 %v290
      %v841 = vunpack.c.l.b16 %v291
      %v842 = vunpack.c.h.b16 %v291
      %v843 = vunpack.c.l.b16 %v292
      %v844 = vunpack.c.h.b16 %v292
      %v845 = vunpack.c.l.b16 %v293
      %v846 = vunpack.c.h.b16 %v293
      %v847 = vunpack.c.l.b16 %v294
      %v848 = vunpack.c.h.b16 %v294
      %v849 = vunpack.c.l.b16 %v295
      %v850 = vunpack.c.h.b16 %v295
      %v851 = vunpack.c.l.b16 %v296
      %v852 = vunpack.c.h.b16 %v296
      %v853 = vunpack.c.l.b16 %v297
      %v854 = vunpack.c.h.b16 %v297
      %v855 = vunpack.c.l.b16 %v298
      %v856 = vunpack.c.h.b16 %v298
      %v857 = vunpack.c.l.b16 %v299
      %v858 = vunpack.c.h.b16 %v299
      %v859 = vunpack.c.l.b16 %v300
      %v860 = vunpack.c.h.b16 %v300
      %v861 = vunpack.c.l.b16 %v301
      %v862 = vunpack.c.h.b16 %v301
      %v863 = vunpack.c.l.b16 %v302
      %v864 = vunpack.c.h.b16 %v302
      %v865 = vunpack.c.l.b16 %v303
      %v866 = vunpack.c.h.b16 %v303
      %v867 = vunpack.c.l.b16 %v304
      %v868 = vunpack.c.h.b16 %v304
      %v869 = vunpack.c.l.b16 %v305
      %v870 = vunpack.c.h.b16 %v305
      %v871 = vunpack.c.l.b16 %v306
      %v872 = vunpack.c.h.b16 %v306
      %v873 = vunpack.c.l.b16 %v307
      %v874 = vunpack.c.h.b16 %v307
      %v875 = vunpack.c.l.b16 %v308
      %v876 = vunpack.c.h.b16 %v308
      %v877 = vunpack.c.l.b16 %v309
      %v878 = vunpack.c.h.b16 %v309
      %v879 = vunpack.c.l.b16 %v310
      %v880 = vunpack.c.h.b16 %v310
      %v881 = vunpack.c.l.b16 %v311
      %v882 = vunpack.c.h.b16 %v311
      %v883 = vunpack.c.l.b16 %v312
      %v884 = vunpack.c.h.b16 %v312
      %v885 = vunpack.c.l.b16 %v313
      %v886 = vunpack.c.h.b16 %v313
      %v887 = vunpack.c.l.b16 %v314
      %v888 = vunpack.c.h.b16 %v314
      %v889 = vunpack.c.l.b16 %v315
      %v890 = vunpack.c.h.b16 %v315
      %v891 = vunpack.c.l.b16 %v316
      %v892 = vunpack.c.h.b16 %v316
      %v893 = vunpack.c.l.b16 %v317
      %v894 = vunpack.c.h.b16 %v317
      %v895 = vunpack.c.l.b16 %v318
      %v896 = vunpack.c.h.b16 %v318
      %v897 = vunpack.c.l.b16 %v319
      %v898 = vunpack.c.h.b16 %v319
      %v899 = vunpack.c.l.b16 %v320
      %v900 = vunpack.c.h.b16 %v320
      %v901 = vunpack.c.l.b16 %v321
      %v902 = vunpack.c.h.b16 %v321
      %v903 = vunpack.c.l.b16 %v322
      %v904 = vunpack.c.h.b16 %v322
      %v905 = vunpack.c.l.b16 %v323
      %v906 = vunpack.c.h.b16 %v323
      %v907 = vunpack.c.l.b16 %v324
      %v908 = vunpack.c.h.b16 %v324
      %v909 = vunpack.c.l.b16 %v325
      %v910 = vunpack.c.h.b16 %v325
      %v911 = vunpack.c.l.b16 %v326
      %v912 = vunpack.c.h.b16 %v326
      %v913 = vunpack.c.l.b16 %v327
      %v914 = vunpack.c.h.b16 %v327
      %v915 = vunpack.c.l.b16 %v328
      %v916 = vunpack.c.h.b16 %v328
      %v917 = vunpack.c.l.b16 %v329
      %v918 = vunpack.c.h.b16 %v329
      %v919 = vunpack.c.l.b16 %v330
      %v920 = vunpack.c.h.b16 %v330
      %v921 = vunpack.c.l.b16 %v331
      %v922 = vunpack.c.h.b16 %v331
      %v923 = vunpack.c.l.b16 %v332
      %v924 = vunpack.c.h.b16 %v332
      %v925 = vunpack.c.l.b16 %v333
      %v926 = vunpack.c.h.b16 %v333
      %v927 = vunpack.c.l.b16 %v334
      %v928 = vunpack.c.h.b16 %v334
      %v929 = vunpack.c.l.b16 %v335
      %v930 = vunpack.c.h.b16 %v335
      %v931 = vunpack.c.l.b16 %v336
      %v932 = vunpack.c.h.b16 %v336
      %v933 = vunpack.c.l.b16 %v337
      %v934 = vunpack.c.h.b16 %v337
      %v935 = vunpack.c.l.b16 %v338
      %v936 = vunpack.c.h.b16 %v338
      %v937 = vunpack.c.l.b16 %v339
      %v938 = vunpack.c.h.b16 %v339
      %v939 = vunpack.c.l.b16 %v340
      %v940 = vunpack.c.h.b16 %v340
      %v941 = vunpack.c.l.b16 %v341
      %v942 = vunpack.c.h.b16 %v341
      %v943 = vunpack.c.l.b16 %v342
      %v944 = vunpack.c.h.b16 %v342
      %v945 = vunpack.c.l.b16 %v343
      %v946 = vunpack.c.h.b16 %v343
      %v947 = vunpack.c.l.b16 %v344
      %v948 = vunpack.c.h.b16 %v344
      %v949 = vunpack.c.l.b16 %v345
      %v950 = vunpack.c.h.b16 %v345
      %v951 = vunpack.c.l.b16 %v346
      %v952 = vunpack.c.h.b16 %v346
      %v953 = vunpack.c.l.b16 %v347
      %v954 = vunpack.c.h.b16 %v347
      %v955 = vunpack.c.l.b16 %v348
      %v956 = vunpack.c.h.b16 %v348
      %v957 = vunpack.c.l.b16 %v349
      %v958 = vunpack.c.h.b16 %v349
      %v959 = vunpack.c.l.b16 %v350
      %v960 = vunpack.c.h.b16 %v350
      %v961 = vunpack.c.l.b16 %v351
      %v962 = vunpack.c.h.b16 %v351
      %v963 = vunpack.c.l.b16 %v352
      %v964 = vunpack.c.h.b16 %v352
      %v965 = vunpack.c.l.b16 %v353
      %v966 = vunpack.c.h.b16 %v353
      %v967 = vunpack.c.l.b16 %v354
      %v968 = vunpack.c.h.b16 %v354
      %v969 = vunpack.c.l.b16 %v355
      %v970 = vunpack.c.h.b16 %v355
      %v971 = vunpack.c.l.b16 %v356
      %v972 = vunpack.c.h.b16 %v356
      %v973 = vunpack.c.l.b16 %v357
      %v974 = vunpack.c.h.b16 %v357
      %v975 = vunpack.c.l.b16 %v358
      %v976 = vunpack.c.h.b16 %v358
      %v977 = vunpack.c.l.b16 %v359
      %v978 = vunpack.c.h.b16 %v359
      %v979 = vunpack.c.l.b16 %v360
      %v980 = vunpack.c.h.b16 %v360
      %v981 = vunpack.c.l.b16 %v361
      %v982 = vunpack.c.h.b16 %v361
      %v983 = vunpack.c.l.b16 %v362
      %v984 = vunpack.c.h.b16 %v362
      %v985 = vpack.c.b16 %v699, %v697
      %v986 = vpack.c.b16 %v700, %v698
      %v987 = vpack.c.b16 %v703, %v701
      %v988 = vpack.c.b16 %v704, %v702
      %v989 = vpack.c.b16 %v707, %v705
      %v990 = vpack.c.b16 %v708, %v706
      %v991 = vpack.c.b16 %v711, %v709
      %v992 = vpack.c.b16 %v712, %v710
      %v993 = vpack.c.b16 %v715, %v713
      %v994 = vpack.c.b16 %v716, %v714
      %v995 = vpack.c.b16 %v719, %v717
      %v996 = vpack.c.b16 %v720, %v718
      %v997 = vpack.c.b16 %v723, %v721
      %v998 = vpack.c.b16 %v724, %v722
      %v999 = vpack.c.b16 %v727, %v725
      %v1000 = vpack.c.b16 %v728, %v726
      %v1001 = vpack.c.b16 %v731, %v729
      %v1002 = vpack.c.b16 %v732, %v730
      %v1003 = vpack.c.b16 %v735, %v733
      %v1004 = vpack.c.b16 %v736, %v734
      %v1005 = vpack.c.b16 %v739, %v737
      %v1006 = vpack.c.b16 %v740, %v738
      %v1007 = vpack.c.b16 %v743, %v741
      %v1008 = vpack.c.b16 %v744, %v742
      %v1009 = vpack.c.b16 %v747, %v745
      %v1010 = vpack.c.b16 %v748, %v746
      %v1011 = vpack.c.b16 %v751, %v749
      %v1012 = vpack.c.b16 %v752, %v750
      %v1013 = vpack.c.b16 %v755, %v753
      %v1014 = vpack.c.b16 %v756, %v754
      %v1015 = vpack.c.b16 %v759, %v757
      %v1016 = vpack.c.b16 %v760, %v758
      %v1017 = vpack.c.b16 %v763, %v761
      %v1018 = vpack.c.b16 %v764, %v762
      %v1019 = vpack.c.b16 %v767, %v765
      %v1020 = vpack.c.b16 %v768, %v766
      %v1021 = vpack.c.b16 %v771, %v769
      %v1022 = vpack.c.b16 %v772, %v770
      %v1023 = vpack.c.b16 %v775, %v773
      %v1024 = vpack.c.b16 %v776, %v774
      %v1025 = vpack.c.b16 %v779, %v777
      %v1026 = vpack.c.b16 %v780, %v778
      %v1027 = vpack.c.b16 %v783, %v781
      %v1028 = vpack.c.b16 %v784, %v782
      %v1029 = vpack.c.b16 %v787, %v785
      %v1030 = vpack.c.b16 %v788, %v786
      %v1031 = vpack.c.b16 %v791, %v789
      %v1032 = vpack.c.b16 %v792, %v790
      %v1033 = vpack.c.b16 %v795, %v793
      %v1034 = vpack.c.b16 %v796, %v794
      %v1035 = vpack.c.b16 %v799, %v797
      %v1036 = vpack.c.b16 %v800, %v798
      %v1037 = vpack.c.b16 %v803, %v801
      %v1038 = vpack.c.b16 %v804, %v802
      %v1039 = vpack.c.b16 %v807, %v805
      %v1040 = vpack.c.b16 %v808, %v806
      %v1041 = vpack.c.b16 %v811, %v809
      %v1042 = vpack.c.b16 %v812, %v810
      %v1043 = vpack.c.b16 %v815, %v813
      %v1044 = vpack.c.b16 %v816, %v814
      %v1045 = vpack.c.b16 %v819, %v817
      %v1046 = vpack.c.b16 %v820, %v818
      %v1047 = vpack.c.b16 %v823, %v821
      %v1048 = vpack.c.b16 %v824, %v822
      %v1049 = vpack.c.b16 %v827, %v825
      %v1050 = vpack.c.b16 %v828, %v826
      %v1051 = vpack.c.b16 %v831, %v829
      %v1052 = vpack.c.b16 %v832, %v830
      %v1053 = vpack.c.b16 %v835, %v833
      %v1054 = vpack.c.b16 %v836, %v834
      %v1055 = vpack.c.b16 %v839, %v837
      %v1056 = vpack.c.b16 %v840, %v838
      %v1057 = vpack.c.b16 %v843, %v841
      %v1058 = vpack.c.b16 %v844, %v842
      %v1059 = vpack.c.b16 %v847, %v845
      %v1060 = vpack.c.b16 %v848, %v846
      %v1061 = vpack.c.b16 %v851, %v849
      %v1062 = vpack.c.b16 %v852, %v850
      %v1063 = vpack.c.b16 %v855, %v853
      %v1064 = vpack.c.b16 %v856, %v854
      %v1065 = vpack.c.b16 %v859, %v857
      %v1066 = vpack.c.b16 %v860, %v858
      %v1067 = vpack.c.b16 %v863, %v861
      %v1068 = vpack.c.b16 %v864, %v862
      %v1069 = vpack.c.b16 %v867, %v865
      %v1070 = vpack.c.b16 %v868, %v866
      %v1071 = vpack.c.b16 %v871, %v869
      %v1072 = vpack.c.b16 %v872, %v870
      %v1073 = vpack.c.b16 %v875, %v873
      %v1074 = vpack.c.b16 %v876, %v874
      %v1075 = vpack.c.b16 %v879, %v877
      %v1076 = vpack.c.b16 %v880, %v878
      %v1077 = vpack.c.b16 %v883, %v881
      %v1078 = vpack.c.b16 %v884, %v882
      %v1079 = vpack.c.b16 %v887, %v885
      %v1080 = vpack.c.b16 %v888, %v886
      %v1081 = vpack.c.b16 %v891, %v889
      %v1082 = vpack.c.b16 %v892, %v890
      %v1083 = vpack.c.b16 %v895, %v893
      %v1084 = vpack.c.b16 %v896, %v894
      %v1085 = vpack.c.b16 %v899, %v897
      %v1086 = vpack.c.b16 %v900, %v898
      %v1087 = vpack.c.b16 %v903, %v901
      %v1088 = vpack.c.b16 %v904, %v902
      %v1089 = vpack.c.b16 %v907, %v905
      %v1090 = vpack.c.b16 %v908, %v906
      %v1091 = vpack.c.b16 %v911, %v909
      %v1092 = vpack.c.b16 %v912, %v910
      %v1093 = vpack.c.b16 %v915, %v913
      %v1094 = vpack.c.b16 %v916, %v914
      %v1095 = vpack.c.b16 %v919, %v917
      %v1096 = vpack.c.b16 %v920, %v918
      %v1097 = vpack.c.b16 %v923, %v921
      %v1098 = vpack.c.b16 %v924, %v922
      %v1099 = vpack.c.b16 %v927, %v925
      %v1100 = vpack.c.b16 %v928, %v926
      %v1101 = vpack.c.b16 %v931, %v929
      %v1102 = vpack.c.b16 %v932, %v930
      %v1103 = vpack.c.b16 %v935, %v933
      %v1104 = vpack.c.b16 %v936, %v934
      %v1105 = vpack.c.b16 %v939, %v937
      %v1106 = vpack.c.b16 %v940, %v938
      %v1107 = vpack.c.b16 %v943, %v941
      %v1108 = vpack.c.b16 %v944, %v942
      %v1109 = vpack.c.b16 %v947, %v945
      %v1110 = vpack.c.b16 %v948, %v946
      %v1111 = vpack.c.b16 %v951, %v949
      %v1112 = vpack.c.b16 %v952, %v950
      %v1113 = vpack.c.b16 %v955, %v953
      %v1114 = vpack.c.b16 %v956, %v954
      %v1115 = vpack.c.b16 %v959, %v957
      %v1116 = vpack.c.b16 %v960, %v958
      %v1117 = vpack.c.b16 %v963, %v961
      %v1118 = vpack.c.b16 %v964, %v962
      %v1119 = vpack.c.b16 %v967, %v965
      %v1120 = vpack.c.b16 %v968, %v966
      %v1121 = vpack.c.b16 %v971, %v969
      %v1122 = vpack.c.b16 %v972, %v970
      %v1123 = vpack.c.b16 %v975, %v973
      %v1124 = vpack.c.b16 %v976, %v974
      %v1125 = vpack.c.b16 %v979, %v977
      %v1126 = vpack.c.b16 %v980, %v978
      %v1127 = vpack.c.b16 %v983, %v981
      %v1128 = vpack.c.b16 %v984, %v982
      %1273 = vmatpush.bf16.msra.mxu0 %v999
      %1274 = vmatpush.bf16.msra.mxu0 %v997
      %1275 = vmatpush.bf16.msra.mxu0 %v995
      %1276 = vmatpush.bf16.msra.mxu0 %v993
      %1277 = vmatpush.bf16.msra.mxu0 %v991
      %1278 = vmatpush.bf16.msra.mxu0 %v989
      %1279 = vmatpush.bf16.msra.mxu0 %v987
      %1280 = vmatpush.bf16.msra.mxu0 %v985
      %1281 = vmatmul.bf16.gmra.mxu0 %v481
      %v1282 = vpop.f32.mrf.mxu0
      %v1283 = vadd.f32 %v365, %v1282
      %v1284 = vpop.f32.mrf.mxu0
      %v1285 = vadd.f32 %v365, %v1284
      %1286 = vmatmul.bf16.gmra.mxu0 %v490
      %v1287 = vpop.f32.mrf.mxu0
      %v1288 = vadd.f32 %v365, %v1287
      %v1289 = vpop.f32.mrf.mxu0
      %v1290 = vadd.f32 %v365, %v1289
      %1291 = vmatmul.bf16.gmra.mxu0 %v499
      %v1292 = vpop.f32.mrf.mxu0
      %v1293 = vadd.f32 %v365, %v1292
      %v1294 = vpop.f32.mrf.mxu0
      %v1295 = vadd.f32 %v365, %v1294
      %1296 = vmatmul.bf16.gmra.mxu0 %v508
      %v1297 = vpop.f32.mrf.mxu0
      %v1298 = vadd.f32 %v365, %v1297
      %v1299 = vpop.f32.mrf.mxu0
      %v1300 = vadd.f32 %v365, %v1299
      %1301 = vdwg.mxu0
      %1302 = vmatpush.bf16.msra.mxu0 %v1015
      %1303 = vmatpush.bf16.msra.mxu0 %v1013
      %1304 = vmatpush.bf16.msra.mxu0 %v1011
      %1305 = vmatpush.bf16.msra.mxu0 %v1009
      %1306 = vmatpush.bf16.msra.mxu0 %v1007
      %1307 = vmatpush.bf16.msra.mxu0 %v1005
      %1308 = vmatpush.bf16.msra.mxu0 %v1003
      %1309 = vmatpush.bf16.msra.mxu0 %v1001
      %1310 = vmatmul.bf16.gmra.mxu0 %v482
      %v1311 = vpop.f32.mrf.mxu0
      %v1312 = vadd.f32 %v1283, %v1311
      %v1313 = vpop.f32.mrf.mxu0
      %v1314 = vadd.f32 %v1285, %v1313
      %1315 = vmatmul.bf16.gmra.mxu0 %v491
      %v1316 = vpop.f32.mrf.mxu0
      %v1317 = vadd.f32 %v1288, %v1316
      %v1318 = vpop.f32.mrf.mxu0
      %v1319 = vadd.f32 %v1290, %v1318
      %1320 = vmatmul.bf16.gmra.mxu0 %v500
      %v1321 = vpop.f32.mrf.mxu0
      %v1322 = vadd.f32 %v1293, %v1321
      %v1323 = vpop.f32.mrf.mxu0
      %v1324 = vadd.f32 %v1295, %v1323
      %1325 = vmatmul.bf16.gmra.mxu0 %v509
      %v1326 = vpop.f32.mrf.mxu0
      %v1327 = vadd.f32 %v1298, %v1326
      %v1328 = vpop.f32.mrf.mxu0
      %v1329 = vadd.f32 %v1300, %v1328
      %1330 = vdwg.mxu0
      %1331 = vmatpush.bf16.msra.mxu0 %v1031
      %1332 = vmatpush.bf16.msra.mxu0 %v1029
      %1333 = vmatpush.bf16.msra.mxu0 %v1027
      %1334 = vmatpush.bf16.msra.mxu0 %v1025
      %1335 = vmatpush.bf16.msra.mxu0 %v1023
      %1336 = vmatpush.bf16.msra.mxu0 %v1021
      %1337 = vmatpush.bf16.msra.mxu0 %v1019
      %1338 = vmatpush.bf16.msra.mxu0 %v1017
      %1339 = vmatmul.bf16.gmra.mxu0 %v483
      %v1340 = vpop.f32.mrf.mxu0
      %v1341 = vadd.f32 %v1312, %v1340
      %v1342 = vpop.f32.mrf.mxu0
      %v1343 = vadd.f32 %v1314, %v1342
      %1344 = vmatmul.bf16.gmra.mxu0 %v492
      %v1345 = vpop.f32.mrf.mxu0
      %v1346 = vadd.f32 %v1317, %v1345
      %v1347 = vpop.f32.mrf.mxu0
      %v1348 = vadd.f32 %v1319, %v1347
      %1349 = vmatmul.bf16.gmra.mxu0 %v501
      %v1350 = vpop.f32.mrf.mxu0
      %v1351 = vadd.f32 %v1322, %v1350
      %v1352 = vpop.f32.mrf.mxu0
      %v1353 = vadd.f32 %v1324, %v1352
      %1354 = vmatmul.bf16.gmra.mxu0 %v510
      %v1355 = vpop.f32.mrf.mxu0
      %v1356 = vadd.f32 %v1327, %v1355
      %v1357 = vpop.f32.mrf.mxu0
      %v1358 = vadd.f32 %v1329, %v1357
      %1359 = vdwg.mxu0
      %1360 = vmatpush.bf16.msra.mxu0 %v1047
      %1361 = vmatpush.bf16.msra.mxu0 %v1045
      %1362 = vmatpush.bf16.msra.mxu0 %v1043
      %1363 = vmatpush.bf16.msra.mxu0 %v1041
      %1364 = vmatpush.bf16.msra.mxu0 %v1039
      %1365 = vmatpush.bf16.msra.mxu0 %v1037
      %1366 = vmatpush.bf16.msra.mxu0 %v1035
      %1367 = vmatpush.bf16.msra.mxu0 %v1033
      %1368 = vmatmul.bf16.gmra.mxu0 %v484
      %v1369 = vpop.f32.mrf.mxu0
      %v1370 = vadd.f32 %v1341, %v1369
      %v1371 = vpop.f32.mrf.mxu0
      %v1372 = vadd.f32 %v1343, %v1371
      %1373 = vmatmul.bf16.gmra.mxu0 %v493
      %v1374 = vpop.f32.mrf.mxu0
      %v1375 = vadd.f32 %v1346, %v1374
      %v1376 = vpop.f32.mrf.mxu0
      %v1377 = vadd.f32 %v1348, %v1376
      %1378 = vmatmul.bf16.gmra.mxu0 %v502
      %v1379 = vpop.f32.mrf.mxu0
      %v1380 = vadd.f32 %v1351, %v1379
      %v1381 = vpop.f32.mrf.mxu0
      %v1382 = vadd.f32 %v1353, %v1381
      %1383 = vmatmul.bf16.gmra.mxu0 %v511
      %v1384 = vpop.f32.mrf.mxu0
      %v1385 = vadd.f32 %v1356, %v1384
      %v1386 = vpop.f32.mrf.mxu0
      %v1387 = vadd.f32 %v1358, %v1386
      %1388 = vdwg.mxu0
      %1389 = vmatpush.bf16.msra.mxu0 %v1063
      %1390 = vmatpush.bf16.msra.mxu0 %v1061
      %1391 = vmatpush.bf16.msra.mxu0 %v1059
      %1392 = vmatpush.bf16.msra.mxu0 %v1057
      %1393 = vmatpush.bf16.msra.mxu0 %v1055
      %1394 = vmatpush.bf16.msra.mxu0 %v1053
      %1395 = vmatpush.bf16.msra.mxu0 %v1051
      %1396 = vmatpush.bf16.msra.mxu0 %v1049
      %1397 = vmatmul.bf16.gmra.mxu0 %v485
      %v1398 = vpop.f32.mrf.mxu0
      %v1399 = vadd.f32 %v1370, %v1398
      %v1400 = vpop.f32.mrf.mxu0
      %v1401 = vadd.f32 %v1372, %v1400
      %1402 = vmatmul.bf16.gmra.mxu0 %v494
      %v1403 = vpop.f32.mrf.mxu0
      %v1404 = vadd.f32 %v1375, %v1403
      %v1405 = vpop.f32.mrf.mxu0
      %v1406 = vadd.f32 %v1377, %v1405
      %1407 = vmatmul.bf16.gmra.mxu0 %v503
      %v1408 = vpop.f32.mrf.mxu0
      %v1409 = vadd.f32 %v1380, %v1408
      %v1410 = vpop.f32.mrf.mxu0
      %v1411 = vadd.f32 %v1382, %v1410
      %1412 = vmatmul.bf16.gmra.mxu0 %v512
      %v1413 = vpop.f32.mrf.mxu0
      %v1414 = vadd.f32 %v1385, %v1413
      %v1415 = vpop.f32.mrf.mxu0
      %v1416 = vadd.f32 %v1387, %v1415
      %1417 = vdwg.mxu0
      %1418 = vmatpush.bf16.msra.mxu0 %v1079
      %1419 = vmatpush.bf16.msra.mxu0 %v1077
      %1420 = vmatpush.bf16.msra.mxu0 %v1075
      %1421 = vmatpush.bf16.msra.mxu0 %v1073
      %1422 = vmatpush.bf16.msra.mxu0 %v1071
      %1423 = vmatpush.bf16.msra.mxu0 %v1069
      %1424 = vmatpush.bf16.msra.mxu0 %v1067
      %1425 = vmatpush.bf16.msra.mxu0 %v1065
      %1426 = vmatmul.bf16.gmra.mxu0 %v486
      %v1427 = vpop.f32.mrf.mxu0
      %v1428 = vadd.f32 %v1399, %v1427
      %v1429 = vpop.f32.mrf.mxu0
      %v1430 = vadd.f32 %v1401, %v1429
      %1431 = vmatmul.bf16.gmra.mxu0 %v495
      %v1432 = vpop.f32.mrf.mxu0
      %v1433 = vadd.f32 %v1404, %v1432
      %v1434 = vpop.f32.mrf.mxu0
      %v1435 = vadd.f32 %v1406, %v1434
      %1436 = vmatmul.bf16.gmra.mxu0 %v504
      %v1437 = vpop.f32.mrf.mxu0
      %v1438 = vadd.f32 %v1409, %v1437
      %v1439 = vpop.f32.mrf.mxu0
      %v1440 = vadd.f32 %v1411, %v1439
      %1441 = vmatmul.bf16.gmra.mxu0 %v513
      %v1442 = vpop.f32.mrf.mxu0
      %v1443 = vadd.f32 %v1414, %v1442
      %v1444 = vpop.f32.mrf.mxu0
      %v1445 = vadd.f32 %v1416, %v1444
      %1446 = vdwg.mxu0
      %1447 = vmatpush.bf16.msra.mxu0 %v1095
      %1448 = vmatpush.bf16.msra.mxu0 %v1093
      %1449 = vmatpush.bf16.msra.mxu0 %v1091
      %1450 = vmatpush.bf16.msra.mxu0 %v1089
      %1451 = vmatpush.bf16.msra.mxu0 %v1087
      %1452 = vmatpush.bf16.msra.mxu0 %v1085
      %1453 = vmatpush.bf16.msra.mxu0 %v1083
      %1454 = vmatpush.bf16.msra.mxu0 %v1081
      %1455 = vmatmul.bf16.gmra.mxu0 %v487
      %v1456 = vpop.f32.mrf.mxu0
      %v1457 = vadd.f32 %v1428, %v1456
      %v1458 = vpop.f32.mrf.mxu0
      %v1459 = vadd.f32 %v1430, %v1458
      %1460 = vmatmul.bf16.gmra.mxu0 %v496
      %v1461 = vpop.f32.mrf.mxu0
      %v1462 = vadd.f32 %v1433, %v1461
      %v1463 = vpop.f32.mrf.mxu0
      %v1464 = vadd.f32 %v1435, %v1463
      %1465 = vmatmul.bf16.gmra.mxu0 %v505
      %v1466 = vpop.f32.mrf.mxu0
      %v1467 = vadd.f32 %v1438, %v1466
      %v1468 = vpop.f32.mrf.mxu0
      %v1469 = vadd.f32 %v1440, %v1468
      %1470 = vmatmul.bf16.gmra.mxu0 %v514
      %v1471 = vpop.f32.mrf.mxu0
      %v1472 = vadd.f32 %v1443, %v1471
      %v1473 = vpop.f32.mrf.mxu0
      %v1474 = vadd.f32 %v1445, %v1473
      %1475 = vdwg.mxu0
      %1476 = vmatpush.bf16.msra.mxu0 %v1111
      %1477 = vmatpush.bf16.msra.mxu0 %v1109
      %1478 = vmatpush.bf16.msra.mxu0 %v1107
      %1479 = vmatpush.bf16.msra.mxu0 %v1105
      %1480 = vmatpush.bf16.msra.mxu0 %v1103
      %1481 = vmatpush.bf16.msra.mxu0 %v1101
      %1482 = vmatpush.bf16.msra.mxu0 %v1099
      %1483 = vmatpush.bf16.msra.mxu0 %v1097
      %1484 = vmatmul.bf16.gmra.mxu0 %v488
      %v1485 = vpop.f32.mrf.mxu0
      %v1486 = vadd.f32 %v1457, %v1485
      %v1487 = vpop.f32.mrf.mxu0
      %v1488 = vadd.f32 %v1459, %v1487
      %1489 = vmatmul.bf16.gmra.mxu0 %v497
      %v1490 = vpop.f32.mrf.mxu0
      %v1491 = vadd.f32 %v1462, %v1490
      %v1492 = vpop.f32.mrf.mxu0
      %v1493 = vadd.f32 %v1464, %v1492
      %1494 = vmatmul.bf16.gmra.mxu0 %v506
      %v1495 = vpop.f32.mrf.mxu0
      %v1496 = vadd.f32 %v1467, %v1495
      %v1497 = vpop.f32.mrf.mxu0
      %v1498 = vadd.f32 %v1469, %v1497
      %1499 = vmatmul.bf16.gmra.mxu0 %v515
      %v1500 = vpop.f32.mrf.mxu0
      %v1501 = vadd.f32 %v1472, %v1500
      %v1502 = vpop.f32.mrf.mxu0
      %v1503 = vadd.f32 %v1474, %v1502
      %1504 = vdwg.mxu0
      %1505 = vmatpush.bf16.msra.mxu0 %v1127
      %1506 = vmatpush.bf16.msra.mxu0 %v1125
      %1507 = vmatpush.bf16.msra.mxu0 %v1123
      %1508 = vmatpush.bf16.msra.mxu0 %v1121
      %1509 = vmatpush.bf16.msra.mxu0 %v1119
      %1510 = vmatpush.bf16.msra.mxu0 %v1117
      %1511 = vmatpush.bf16.msra.mxu0 %v1115
      %1512 = vmatpush.bf16.msra.mxu0 %v1113
      %1513 = vmatmul.bf16.gmra.mxu0 %v489
      %v1514 = vpop.f32.mrf.mxu0
      %v1515 = vadd.f32 %v1486, %v1514
      %v1516 = vpop.f32.mrf.mxu0
      %v1517 = vadd.f32 %v1488, %v1516
      %1518 = vmatmul.bf16.gmra.mxu0 %v498
      %v1519 = vpop.f32.mrf.mxu0
      %v1520 = vadd.f32 %v1491, %v1519
      %v1521 = vpop.f32.mrf.mxu0
      %v1522 = vadd.f32 %v1493, %v1521
      %1523 = vmatmul.bf16.gmra.mxu0 %v507
      %v1524 = vpop.f32.mrf.mxu0
      %v1525 = vadd.f32 %v1496, %v1524
      %v1526 = vpop.f32.mrf.mxu0
      %v1527 = vadd.f32 %v1498, %v1526
      %1528 = vmatmul.bf16.gmra.mxu0 %v516
      %v1529 = vpop.f32.mrf.mxu0
      %v1530 = vadd.f32 %v1501, %v1529
      %v1531 = vpop.f32.mrf.mxu0
      %v1532 = vadd.f32 %v1503, %v1531
      %1533 = vdwg.mxu0
      %1534 = vmatpush.bf16.msra.mxu0 %v1000
      %1535 = vmatpush.bf16.msra.mxu0 %v998
      %1536 = vmatpush.bf16.msra.mxu0 %v996
      %1537 = vmatpush.bf16.msra.mxu0 %v994
      %1538 = vmatpush.bf16.msra.mxu0 %v992
      %1539 = vmatpush.bf16.msra.mxu0 %v990
      %1540 = vmatpush.bf16.msra.mxu0 %v988
      %1541 = vmatpush.bf16.msra.mxu0 %v986
      %1542 = vmatmul.bf16.gmra.mxu0 %v481
      %v1543 = vpop.f32.mrf.mxu0
      %v1544 = vadd.f32 %v366, %v1543
      %v1545 = vpop.f32.mrf.mxu0
      %v1546 = vadd.f32 %v366, %v1545
      %1547 = vmatmul.bf16.gmra.mxu0 %v490
      %v1548 = vpop.f32.mrf.mxu0
      %v1549 = vadd.f32 %v366, %v1548
      %v1550 = vpop.f32.mrf.mxu0
      %v1551 = vadd.f32 %v366, %v1550
      %1552 = vmatmul.bf16.gmra.mxu0 %v499
      %v1553 = vpop.f32.mrf.mxu0
      %v1554 = vadd.f32 %v366, %v1553
      %v1555 = vpop.f32.mrf.mxu0
      %v1556 = vadd.f32 %v366, %v1555
      %1557 = vmatmul.bf16.gmra.mxu0 %v508
      %v1558 = vpop.f32.mrf.mxu0
      %v1559 = vadd.f32 %v366, %v1558
      %v1560 = vpop.f32.mrf.mxu0
      %v1561 = vadd.f32 %v366, %v1560
      %1562 = vdwg.mxu0
      %1563 = vmatpush.bf16.msra.mxu0 %v1016
      %1564 = vmatpush.bf16.msra.mxu0 %v1014
      %1565 = vmatpush.bf16.msra.mxu0 %v1012
      %1566 = vmatpush.bf16.msra.mxu0 %v1010
      %1567 = vmatpush.bf16.msra.mxu0 %v1008
      %1568 = vmatpush.bf16.msra.mxu0 %v1006
      %1569 = vmatpush.bf16.msra.mxu0 %v1004
      %1570 = vmatpush.bf16.msra.mxu0 %v1002
      %1571 = vmatmul.bf16.gmra.mxu0 %v482
      %v1572 = vpop.f32.mrf.mxu0
      %v1573 = vadd.f32 %v1544, %v1572
      %v1574 = vpop.f32.mrf.mxu0
      %v1575 = vadd.f32 %v1546, %v1574
      %1576 = vmatmul.bf16.gmra.mxu0 %v491
      %v1577 = vpop.f32.mrf.mxu0
      %v1578 = vadd.f32 %v1549, %v1577
      %v1579 = vpop.f32.mrf.mxu0
      %v1580 = vadd.f32 %v1551, %v1579
      %1581 = vmatmul.bf16.gmra.mxu0 %v500
      %v1582 = vpop.f32.mrf.mxu0
      %v1583 = vadd.f32 %v1554, %v1582
      %v1584 = vpop.f32.mrf.mxu0
      %v1585 = vadd.f32 %v1556, %v1584
      %1586 = vmatmul.bf16.gmra.mxu0 %v509
      %v1587 = vpop.f32.mrf.mxu0
      %v1588 = vadd.f32 %v1559, %v1587
      %v1589 = vpop.f32.mrf.mxu0
      %v1590 = vadd.f32 %v1561, %v1589
      %1591 = vdwg.mxu0
      %1592 = vmatpush.bf16.msra.mxu0 %v1032
      %1593 = vmatpush.bf16.msra.mxu0 %v1030
      %1594 = vmatpush.bf16.msra.mxu0 %v1028
      %1595 = vmatpush.bf16.msra.mxu0 %v1026
      %1596 = vmatpush.bf16.msra.mxu0 %v1024
      %1597 = vmatpush.bf16.msra.mxu0 %v1022
      %1598 = vmatpush.bf16.msra.mxu0 %v1020
      %1599 = vmatpush.bf16.msra.mxu0 %v1018
      %1600 = vmatmul.bf16.gmra.mxu0 %v483
      %v1601 = vpop.f32.mrf.mxu0
      %v1602 = vadd.f32 %v1573, %v1601
      %v1603 = vpop.f32.mrf.mxu0
      %v1604 = vadd.f32 %v1575, %v1603
      %1605 = vmatmul.bf16.gmra.mxu0 %v492
      %v1606 = vpop.f32.mrf.mxu0
      %v1607 = vadd.f32 %v1578, %v1606
      %v1608 = vpop.f32.mrf.mxu0
      %v1609 = vadd.f32 %v1580, %v1608
      %1610 = vmatmul.bf16.gmra.mxu0 %v501
      %v1611 = vpop.f32.mrf.mxu0
      %v1612 = vadd.f32 %v1583, %v1611
      %v1613 = vpop.f32.mrf.mxu0
      %v1614 = vadd.f32 %v1585, %v1613
      %1615 = vmatmul.bf16.gmra.mxu0 %v510
      %v1616 = vpop.f32.mrf.mxu0
      %v1617 = vadd.f32 %v1588, %v1616
      %v1618 = vpop.f32.mrf.mxu0
      %v1619 = vadd.f32 %v1590, %v1618
      %1620 = vdwg.mxu0
      %1621 = vmatpush.bf16.msra.mxu0 %v1048
      %1622 = vmatpush.bf16.msra.mxu0 %v1046
      %1623 = vmatpush.bf16.msra.mxu0 %v1044
      %1624 = vmatpush.bf16.msra.mxu0 %v1042
      %1625 = vmatpush.bf16.msra.mxu0 %v1040
      %1626 = vmatpush.bf16.msra.mxu0 %v1038
      %1627 = vmatpush.bf16.msra.mxu0 %v1036
      %1628 = vmatpush.bf16.msra.mxu0 %v1034
      %1629 = vmatmul.bf16.gmra.mxu0 %v484
      %v1630 = vpop.f32.mrf.mxu0
      %v1631 = vadd.f32 %v1602, %v1630
      %v1632 = vpop.f32.mrf.mxu0
      %v1633 = vadd.f32 %v1604, %v1632
      %1634 = vmatmul.bf16.gmra.mxu0 %v493
      %v1635 = vpop.f32.mrf.mxu0
      %v1636 = vadd.f32 %v1607, %v1635
      %v1637 = vpop.f32.mrf.mxu0
      %v1638 = vadd.f32 %v1609, %v1637
      %1639 = vmatmul.bf16.gmra.mxu0 %v502
      %v1640 = vpop.f32.mrf.mxu0
      %v1641 = vadd.f32 %v1612, %v1640
      %v1642 = vpop.f32.mrf.mxu0
      %v1643 = vadd.f32 %v1614, %v1642
      %1644 = vmatmul.bf16.gmra.mxu0 %v511
      %v1645 = vpop.f32.mrf.mxu0
      %v1646 = vadd.f32 %v1617, %v1645
      %v1647 = vpop.f32.mrf.mxu0
      %v1648 = vadd.f32 %v1619, %v1647
      %1649 = vdwg.mxu0
      %1650 = vmatpush.bf16.msra.mxu0 %v1064
      %1651 = vmatpush.bf16.msra.mxu0 %v1062
      %1652 = vmatpush.bf16.msra.mxu0 %v1060
      %1653 = vmatpush.bf16.msra.mxu0 %v1058
      %1654 = vmatpush.bf16.msra.mxu0 %v1056
      %1655 = vmatpush.bf16.msra.mxu0 %v1054
      %1656 = vmatpush.bf16.msra.mxu0 %v1052
      %1657 = vmatpush.bf16.msra.mxu0 %v1050
      %1658 = vmatmul.bf16.gmra.mxu0 %v485
      %v1659 = vpop.f32.mrf.mxu0
      %v1660 = vadd.f32 %v1631, %v1659
      %v1661 = vpop.f32.mrf.mxu0
      %v1662 = vadd.f32 %v1633, %v1661
      %1663 = vmatmul.bf16.gmra.mxu0 %v494
      %v1664 = vpop.f32.mrf.mxu0
      %v1665 = vadd.f32 %v1636, %v1664
      %v1666 = vpop.f32.mrf.mxu0
      %v1667 = vadd.f32 %v1638, %v1666
      %1668 = vmatmul.bf16.gmra.mxu0 %v503
      %v1669 = vpop.f32.mrf.mxu0
      %v1670 = vadd.f32 %v1641, %v1669
      %v1671 = vpop.f32.mrf.mxu0
      %v1672 = vadd.f32 %v1643, %v1671
      %1673 = vmatmul.bf16.gmra.mxu0 %v512
      %v1674 = vpop.f32.mrf.mxu0
      %v1675 = vadd.f32 %v1646, %v1674
      %v1676 = vpop.f32.mrf.mxu0
      %v1677 = vadd.f32 %v1648, %v1676
      %1678 = vdwg.mxu0
      %1679 = vmatpush.bf16.msra.mxu0 %v1080
      %1680 = vmatpush.bf16.msra.mxu0 %v1078
      %1681 = vmatpush.bf16.msra.mxu0 %v1076
      %1682 = vmatpush.bf16.msra.mxu0 %v1074
      %1683 = vmatpush.bf16.msra.mxu0 %v1072
      %1684 = vmatpush.bf16.msra.mxu0 %v1070
      %1685 = vmatpush.bf16.msra.mxu0 %v1068
      %1686 = vmatpush.bf16.msra.mxu0 %v1066
      %1687 = vmatmul.bf16.gmra.mxu0 %v486
      %v1688 = vpop.f32.mrf.mxu0
      %v1689 = vadd.f32 %v1660, %v1688
      %v1690 = vpop.f32.mrf.mxu0
      %v1691 = vadd.f32 %v1662, %v1690
      %1692 = vmatmul.bf16.gmra.mxu0 %v495
      %v1693 = vpop.f32.mrf.mxu0
      %v1694 = vadd.f32 %v1665, %v1693
      %v1695 = vpop.f32.mrf.mxu0
      %v1696 = vadd.f32 %v1667, %v1695
      %1697 = vmatmul.bf16.gmra.mxu0 %v504
      %v1698 = vpop.f32.mrf.mxu0
      %v1699 = vadd.f32 %v1670, %v1698
      %v1700 = vpop.f32.mrf.mxu0
      %v1701 = vadd.f32 %v1672, %v1700
      %1702 = vmatmul.bf16.gmra.mxu0 %v513
      %v1703 = vpop.f32.mrf.mxu0
      %v1704 = vadd.f32 %v1675, %v1703
      %v1705 = vpop.f32.mrf.mxu0
      %v1706 = vadd.f32 %v1677, %v1705
      %1707 = vdwg.mxu0
      %1708 = vmatpush.bf16.msra.mxu0 %v1096
      %1709 = vmatpush.bf16.msra.mxu0 %v1094
      %1710 = vmatpush.bf16.msra.mxu0 %v1092
      %1711 = vmatpush.bf16.msra.mxu0 %v1090
      %1712 = vmatpush.bf16.msra.mxu0 %v1088
      %1713 = vmatpush.bf16.msra.mxu0 %v1086
      %1714 = vmatpush.bf16.msra.mxu0 %v1084
      %1715 = vmatpush.bf16.msra.mxu0 %v1082
      %1716 = vmatmul.bf16.gmra.mxu0 %v487
      %v1717 = vpop.f32.mrf.mxu0
      %v1718 = vadd.f32 %v1689, %v1717
      %v1719 = vpop.f32.mrf.mxu0
      %v1720 = vadd.f32 %v1691, %v1719
      %1721 = vmatmul.bf16.gmra.mxu0 %v496
      %v1722 = vpop.f32.mrf.mxu0
      %v1723 = vadd.f32 %v1694, %v1722
      %v1724 = vpop.f32.mrf.mxu0
      %v1725 = vadd.f32 %v1696, %v1724
      %1726 = vmatmul.bf16.gmra.mxu0 %v505
      %v1727 = vpop.f32.mrf.mxu0
      %v1728 = vadd.f32 %v1699, %v1727
      %v1729 = vpop.f32.mrf.mxu0
      %v1730 = vadd.f32 %v1701, %v1729
      %1731 = vmatmul.bf16.gmra.mxu0 %v514
      %v1732 = vpop.f32.mrf.mxu0
      %v1733 = vadd.f32 %v1704, %v1732
      %v1734 = vpop.f32.mrf.mxu0
      %v1735 = vadd.f32 %v1706, %v1734
      %1736 = vdwg.mxu0
      %1737 = vmatpush.bf16.msra.mxu0 %v1112
      %1738 = vmatpush.bf16.msra.mxu0 %v1110
      %1739 = vmatpush.bf16.msra.mxu0 %v1108
      %1740 = vmatpush.bf16.msra.mxu0 %v1106
      %1741 = vmatpush.bf16.msra.mxu0 %v1104
      %1742 = vmatpush.bf16.msra.mxu0 %v1102
      %1743 = vmatpush.bf16.msra.mxu0 %v1100
      %1744 = vmatpush.bf16.msra.mxu0 %v1098
      %1745 = vmatmul.bf16.gmra.mxu0 %v488
      %v1746 = vpop.f32.mrf.mxu0
      %v1747 = vadd.f32 %v1718, %v1746
      %v1748 = vpop.f32.mrf.mxu0
      %v1749 = vadd.f32 %v1720, %v1748
      %1750 = vmatmul.bf16.gmra.mxu0 %v497
      %v1751 = vpop.f32.mrf.mxu0
      %v1752 = vadd.f32 %v1723, %v1751
      %v1753 = vpop.f32.mrf.mxu0
      %v1754 = vadd.f32 %v1725, %v1753
      %1755 = vmatmul.bf16.gmra.mxu0 %v506
      %v1756 = vpop.f32.mrf.mxu0
      %v1757 = vadd.f32 %v1728, %v1756
      %v1758 = vpop.f32.mrf.mxu0
      %v1759 = vadd.f32 %v1730, %v1758
      %1760 = vmatmul.bf16.gmra.mxu0 %v515
      %v1761 = vpop.f32.mrf.mxu0
      %v1762 = vadd.f32 %v1733, %v1761
      %v1763 = vpop.f32.mrf.mxu0
      %v1764 = vadd.f32 %v1735, %v1763
      %1765 = vdwg.mxu0
      %1766 = vmatpush.bf16.msra.mxu0 %v1128
      %1767 = vmatpush.bf16.msra.mxu0 %v1126
      %1768 = vmatpush.bf16.msra.mxu0 %v1124
      %1769 = vmatpush.bf16.msra.mxu0 %v1122
      %1770 = vmatpush.bf16.msra.mxu0 %v1120
      %1771 = vmatpush.bf16.msra.mxu0 %v1118
      %1772 = vmatpush.bf16.msra.mxu0 %v1116
      %1773 = vmatpush.bf16.msra.mxu0 %v1114
      %1774 = vmatmul.bf16.gmra.mxu0 %v489
      %v1775 = vpop.f32.mrf.mxu0
      %v1776 = vadd.f32 %v1747, %v1775
      %v1777 = vpop.f32.mrf.mxu0
      %v1778 = vadd.f32 %v1749, %v1777
      %1779 = vmatmul.bf16.gmra.mxu0 %v498
      %v1780 = vpop.f32.mrf.mxu0
      %v1781 = vadd.f32 %v1752, %v1780
      %v1782 = vpop.f32.mrf.mxu0
      %v1783 = vadd.f32 %v1754, %v1782
      %1784 = vmatmul.bf16.gmra.mxu0 %v507
      %v1785 = vpop.f32.mrf.mxu0
      %v1786 = vadd.f32 %v1757, %v1785
      %v1787 = vpop.f32.mrf.mxu0
      %v1788 = vadd.f32 %v1759, %v1787
      %1789 = vmatmul.bf16.gmra.mxu0 %v516
      %v1790 = vpop.f32.mrf.mxu0
      %v1791 = vadd.f32 %v1762, %v1790
      %v1792 = vpop.f32.mrf.mxu0
      %v1793 = vadd.f32 %v1764, %v1792
      %1794 = vdwg.mxu0
      %1795 = vst [vmem:[%s177] sm:$0xff] %v1515
      %1796 = vst [vmem:[%s177 + $0x8] sm:$0xff] %v1776
      %1797 = vst [vmem:[%s177 + $0x10] sm:$0xff] %v1517
      %1798 = vst [vmem:[%s177 + $0x18] sm:$0xff] %v1778
      %1799 = vst [vmem:[%s177 + $0x20] sm:$0xff] %v1520
      %1800 = vst [vmem:[%s177 + $0x28] sm:$0xff] %v1781
      %1801 = vst [vmem:[%s177 + $0x30] sm:$0xff] %v1522
      %1802 = vst [vmem:[%s177 + $0x38] sm:$0xff] %v1783
      %1803 = vst [vmem:[%s177 + $0x40] sm:$0xff] %v1525
      %1804 = vst [vmem:[%s177 + $0x48] sm:$0xff] %v1786
      %1805 = vst [vmem:[%s177 + $0x50] sm:$0xff] %v1527
      %1806 = vst [vmem:[%s177 + $0x58] sm:$0xff] %v1788
      %1807 = vst [vmem:[%s177 + $0x60] sm:$0xff] %v1530
      %1808 = vst [vmem:[%s177 + $0x68] sm:$0xff] %v1791
      %1809 = vst [vmem:[%s177 + $0x70] sm:$0xff] %v1532
      %1810 = vst [vmem:[%s177 + $0x78] sm:$0xff] %v1793
      %s1811 = smul.u32 8, %s14
      %p1812 = scmp.lt.s32.totalorder %s1811, 15
      %s1813 = scalar_select %p1812, %s1811, 15
      %s1814 = smul.addr %s1813, 2
      %s1815 = smul.addr %s1814, 8
      %s1816 = scalar_lea.vmem %s3, %s1815
      // Predicated region
      $region33: #{cnn_cifar_forward.11} parent=31 // pred_check
        %p1817 = pneg %p100
      $region34: #{cnn_cifar_forward.11} parent=31 // pred_check_branch
        %1819 = sbr.rel (%p1817) target = $region36
      $region35: #{cnn_cifar_forward.11} parent=31 // pred_region
        %s1820 = smul.u32 8, %s14
      $region36: #{cnn_cifar_forward.11} parent=31 // pred_fallthru
        _
    $region32: #{cnn_cifar_forward.11} parent=5 // pred_fallthru
      _
    %p1821 = scmp.le.s32.totalorder 2, %s9
    // Predicated region
    $region37: #{cnn_cifar_forward.11} parent=5 // pred_check
      %p1822 = pneg %p1821
    $region38: #{cnn_cifar_forward.11} parent=5 // pred_check_branch
      %1824 = sbr.rel (%p1822) target = $region40
    $region39: #{cnn_cifar_forward.11} parent=5 // pred_region
      %s1825 = ssub.s32 %s9, 2
      // Predicated region
      $region41: #{cnn_cifar_forward.11} parent=39 // pred_check
        %p1826 = pneg %p106
      $region42: #{cnn_cifar_forward.11} parent=39 // pred_check_branch
        %1828 = sbr.rel (%p1826) target = $region44
      $region43: #{cnn_cifar_forward.11} parent=39 // pred_region
        %s1829 = smul.u32 8, %s15
        %p1830 = scmp.lt.s32.totalorder %s1829, 15
        %s1831 = scalar_select %p1830, %s1829, 15
        %s1832 = smul.addr %s1831, 2
        %s1833 = smul.addr %s1832, 8
        %s1834 = scalar_lea.vmem %s3, %s1833
      $region44: #{cnn_cifar_forward.11} parent=39 // pred_fallthru
        _
    $region40: #{cnn_cifar_forward.11} parent=5 // pred_fallthru
      _
  $region6: #{cnn_cifar_forward.11} parent=0 // loop_footer
    %s13 = sadd.s32 1, %s9
  $region7: #{cnn_cifar_forward.11} parent=0 // loop_footer_branch
    %8 = sbr.rel target = $region3
  $region8: #{cnn_cifar_forward.11} parent=0 // loop_exit
    _

// kernel: cnn_cifar_forward.12
$region0: #{cnn_cifar_forward.12}
  #allocation0 [shape = 'u32[]', space=smem, size = 0x4, offset = 0x4, fixed_abs, tag = 'smem constant byte address 0x4 - core index']
  #allocation1 [shape = 'u32[72,128]{1,0:T(1,128)}', space=vmem, size = 0x9000, scoped, tag = 'internal scratch']
  %s0 = inlined_call_operand.vmem [shape: f32[2,8,4,512], index: 0, kind: input, shape index: {}]
  %s1 = inlined_call_operand.vmem [shape: f32[1,1,1,256], index: 1, kind: input, shape index: {}]
  %s2 = inlined_call_operand.vmem [shape: f32[1,1,1,256], index: 2, kind: input, shape index: {}]
  %s3 = inlined_call_operand.vmem [shape: f32[2,4,4,256], index: 3, kind: output, shape index: {}]
  %s4 = sld [smem:[#allocation0]]
  $region22: #{cnn_cifar_forward.12} parent=0
    _
  %s6 = ssub.s32 1, %s4
  %s7 = scalar_select 0, %s6, %s4
  // Predicated region
  $region2: #{cnn_cifar_forward.12} parent=0 // pred_check
    _
  $region3: #{cnn_cifar_forward.12} parent=0 // pred_check_branch
    %9 = sbr.rel (0) target = $region5
  $region4: #{cnn_cifar_forward.12} parent=0 // pred_region
    _
  $region5: #{cnn_cifar_forward.12} parent=0 // pred_fallthru
    _
  // Predicated region
  $region6: #{cnn_cifar_forward.12} parent=0 // pred_check
    _
  $region7: #{cnn_cifar_forward.12} parent=0 // pred_check_branch
    %11 = sbr.rel (0) target = $region9
  $region8: #{cnn_cifar_forward.12} parent=0 // pred_region
    _
  $region9: #{cnn_cifar_forward.12} parent=0 // pred_fallthru
    _
  // Predicated region
  $region10: #{cnn_cifar_forward.12} parent=0 // pred_check
    _
  $region11: #{cnn_cifar_forward.12} parent=0 // pred_check_branch
    %13 = sbr.rel (0) target = $region13
  $region12: #{cnn_cifar_forward.12} parent=0 // pred_region
    _
  $region13: #{cnn_cifar_forward.12} parent=0 // pred_fallthru
    _
  %v14 = vld [vmem:[%s0] sm:$0xff]
  %v15 = vld [vmem:[%s0 + $0x8] sm:$0xff]
  %v16 = vld [vmem:[%s0 + $0x10] sm:$0xff]
  %v17 = vld [vmem:[%s0 + $0x18] sm:$0xff]
  %v18 = vld [vmem:[%s0 + $0x20] sm:$0xff]
  %v19 = vld [vmem:[%s0 + $0x28] sm:$0xff]
  %v20 = vld [vmem:[%s0 + $0x30] sm:$0xff]
  %v21 = vld [vmem:[%s0 + $0x38] sm:$0xff]
  %v22 = vld [vmem:[%s0 + $0x40] sm:$0xff]
  %v23 = vld [vmem:[%s0 + $0x48] sm:$0xff]
  %v24 = vld [vmem:[%s0 + $0x50] sm:$0xff]
  %v25 = vld [vmem:[%s0 + $0x58] sm:$0xff]
  %v26 = vld [vmem:[%s0 + $0x60] sm:$0xff]
  %v27 = vld [vmem:[%s0 + $0x68] sm:$0xff]
  %v28 = vld [vmem:[%s0 + $0x70] sm:$0xff]
  %v29 = vld [vmem:[%s0 + $0x78] sm:$0xff]
  %v30 = vld [vmem:[%s0 + $0x80] sm:$0xff]
  %v31 = vld [vmem:[%s0 + $0x88] sm:$0xff]
  %v32 = vld [vmem:[%s0 + $0x90] sm:$0xff]
  %v33 = vld [vmem:[%s0 + $0x98] sm:$0xff]
  %v34 = vld [vmem:[%s0 + $0xa0] sm:$0xff]
  %v35 = vld [vmem:[%s0 + $0xa8] sm:$0xff]
  %v36 = vld [vmem:[%s0 + $0xb0] sm:$0xff]
  %v37 = vld [vmem:[%s0 + $0xb8] sm:$0xff]
  %v38 = vld [vmem:[%s0 + $0xc0] sm:$0xff]
  %v39 = vld [vmem:[%s0 + $0xc8] sm:$0xff]
  %v40 = vld [vmem:[%s0 + $0xd0] sm:$0xff]
  %v41 = vld [vmem:[%s0 + $0xd8] sm:$0xff]
  %v42 = vld [vmem:[%s0 + $0xe0] sm:$0xff]
  %v43 = vld [vmem:[%s0 + $0xe8] sm:$0xff]
  %v44 = vld [vmem:[%s0 + $0xf0] sm:$0xff]
  %v45 = vld [vmem:[%s0 + $0xf8] sm:$0xff]
  %62 = vst [vmem:[#allocation1] ss:$2 sm:$0xff] %v14
  %v63 = vld.sshfl [vmem:[#allocation1] sm:$0xff pattern:$0x75316420]
  %v64 = vld.sshfl [vmem:[#allocation1 + $0x8] sm:$0xff pattern:$0x75316420]
  %s65 = scalar_lea.vmem [#allocation1], 16
  %66 = vst [vmem:[%s65] ss:$2 sm:$0xff] %v16
  %v67 = vld.sshfl [vmem:[#allocation1 + $0x10] sm:$0xff pattern:$0x75316420]
  %v68 = vld.sshfl [vmem:[#allocation1 + $0x18] sm:$0xff pattern:$0x75316420]
  %s69 = scalar_lea.vmem [#allocation1], 32
  %70 = vst [vmem:[%s69] ss:$2 sm:$0xff] %v18
  %v71 = vld.sshfl [vmem:[#allocation1 + $0x20] sm:$0xff pattern:$0x75316420]
  %v72 = vld.sshfl [vmem:[#allocation1 + $0x28] sm:$0xff pattern:$0x75316420]
  %s73 = scalar_lea.vmem [#allocation1], 48
  %74 = vst [vmem:[%s73] ss:$2 sm:$0xff] %v20
  %v75 = vld.sshfl [vmem:[#allocation1 + $0x30] sm:$0xff pattern:$0x75316420]
  %v76 = vld.sshfl [vmem:[#allocation1 + $0x38] sm:$0xff pattern:$0x75316420]
  %77 = vst [vmem:[#allocation1] ss:$2 sm:$0xff] %v22
  %v78 = vld.sshfl [vmem:[#allocation1] sm:$0xff pattern:$0x75316420]
  %v79 = vld.sshfl [vmem:[#allocation1 + $0x8] sm:$0xff pattern:$0x75316420]
  %80 = vst [vmem:[%s65] ss:$2 sm:$0xff] %v24
  %v81 = vld.sshfl [vmem:[#allocation1 + $0x10] sm:$0xff pattern:$0x75316420]
  %v82 = vld.sshfl [vmem:[#allocation1 + $0x18] sm:$0xff pattern:$0x75316420]
  %83 = vst [vmem:[%s69] ss:$2 sm:$0xff] %v26
  %v84 = vld.sshfl [vmem:[#allocation1 + $0x20] sm:$0xff pattern:$0x75316420]
  %v85 = vld.sshfl [vmem:[#allocation1 + $0x28] sm:$0xff pattern:$0x75316420]
  %86 = vst [vmem:[%s73] ss:$2 sm:$0xff] %v28
  %v87 = vld.sshfl [vmem:[#allocation1 + $0x30] sm:$0xff pattern:$0x75316420]
  %v88 = vld.sshfl [vmem:[#allocation1 + $0x38] sm:$0xff pattern:$0x75316420]
  %89 = vst [vmem:[#allocation1] ss:$2 sm:$0xff] %v30
  %v90 = vld.sshfl [vmem:[#allocation1] sm:$0xff pattern:$0x75316420]
  %v91 = vld.sshfl [vmem:[#allocation1 + $0x8] sm:$0xff pattern:$0x75316420]
  %92 = vst [vmem:[%s65] ss:$2 sm:$0xff] %v32
  %v93 = vld.sshfl [vmem:[#allocation1 + $0x10] sm:$0xff pattern:$0x75316420]
  %v94 = vld.sshfl [vmem:[#allocation1 + $0x18] sm:$0xff pattern:$0x75316420]
  %95 = vst [vmem:[%s69] ss:$2 sm:$0xff] %v34
  %v96 = vld.sshfl [vmem:[#allocation1 + $0x20] sm:$0xff pattern:$0x75316420]
  %v97 = vld.sshfl [vmem:[#allocation1 + $0x28] sm:$0xff pattern:$0x75316420]
  %98 = vst [vmem:[%s73] ss:$2 sm:$0xff] %v36
  %v99 = vld.sshfl [vmem:[#allocation1 + $0x30] sm:$0xff pattern:$0x75316420]
  %v100 = vld.sshfl [vmem:[#allocation1 + $0x38] sm:$0xff pattern:$0x75316420]
  %101 = vst [vmem:[#allocation1] ss:$2 sm:$0xff] %v38
  %v102 = vld.sshfl [vmem:[#allocation1] sm:$0xff pattern:$0x75316420]
  %v103 = vld.sshfl [vmem:[#allocation1 + $0x8] sm:$0xff pattern:$0x75316420]
  %104 = vst [vmem:[%s65] ss:$2 sm:$0xff] %v40
  %v105 = vld.sshfl [vmem:[#allocation1 + $0x10] sm:$0xff pattern:$0x75316420]
  %v106 = vld.sshfl [vmem:[#allocation1 + $0x18] sm:$0xff pattern:$0x75316420]
  %107 = vst [vmem:[%s69] ss:$2 sm:$0xff] %v42
  %v108 = vld.sshfl [vmem:[#allocation1 + $0x20] sm:$0xff pattern:$0x75316420]
  %v109 = vld.sshfl [vmem:[#allocation1 + $0x28] sm:$0xff pattern:$0x75316420]
  %110 = vst [vmem:[%s73] ss:$2 sm:$0xff] %v44
  %v111 = vld.sshfl [vmem:[#allocation1 + $0x30] sm:$0xff pattern:$0x75316420]
  %v112 = vld.sshfl [vmem:[#allocation1 + $0x38] sm:$0xff pattern:$0x75316420]
  %vm145 = vcmask 1043456
  %v146 = vsel %vm145, %v63, 0.0
  %v147 = vsel %vm145, %v67, 0.0
  %v148 = vadd.f32 %v146, %v147
  %v149 = vsel %vm145, %v71, 0.0
  %v150 = vadd.f32 %v148, %v149
  %v151 = vsel %vm145, %v75, 0.0
  %v152 = vadd.f32 %v150, %v151
  %v153 = vsel %vm145, %v78, 0.0
  %v154 = vadd.f32 %v152, %v153
  %v155 = vsel %vm145, %v81, 0.0
  %v156 = vadd.f32 %v154, %v155
  %v157 = vsel %vm145, %v84, 0.0
  %v158 = vadd.f32 %v156, %v157
  %v159 = vsel %vm145, %v87, 0.0
  %v160 = vadd.f32 %v158, %v159
  %v161 = vsel %vm145, %v90, 0.0
  %v162 = vadd.f32 %v160, %v161
  %v163 = vsel %vm145, %v93, 0.0
  %v164 = vadd.f32 %v162, %v163
  %v165 = vsel %vm145, %v96, 0.0
  %v166 = vadd.f32 %v164, %v165
  %v167 = vsel %vm145, %v99, 0.0
  %v168 = vadd.f32 %v166, %v167
  %v169 = vsel %vm145, %v102, 0.0
  %v170 = vadd.f32 %v168, %v169
  %v171 = vsel %vm145, %v105, 0.0
  %v172 = vadd.f32 %v170, %v171
  %v173 = vsel %vm145, %v108, 0.0
  %v174 = vadd.f32 %v172, %v173
  %v175 = vsel %vm145, %v111, 0.0
  %v176 = vadd.f32 %v174, %v175
  %v177 = vrot.slane %v176, 4
  %v178 = vadd.f32 %v176, %v177
  %v179 = vrot.slane %v178, 2
  %v180 = vadd.f32 %v178, %v179
  %v181 = vrot.slane %v180, 1
  %v182 = vadd.f32 %v180, %v181
  %v183 = vsel %vm145, %v64, 0.0
  %v184 = vsel %vm145, %v68, 0.0
  %v185 = vadd.f32 %v183, %v184
  %v186 = vsel %vm145, %v72, 0.0
  %v187 = vadd.f32 %v185, %v186
  %v188 = vsel %vm145, %v76, 0.0
  %v189 = vadd.f32 %v187, %v188
  %v190 = vsel %vm145, %v79, 0.0
  %v191 = vadd.f32 %v189, %v190
  %v192 = vsel %vm145, %v82, 0.0
  %v193 = vadd.f32 %v191, %v192
  %v194 = vsel %vm145, %v85, 0.0
  %v195 = vadd.f32 %v193, %v194
  %v196 = vsel %vm145, %v88, 0.0
  %v197 = vadd.f32 %v195, %v196
  %v198 = vsel %vm145, %v91, 0.0
  %v199 = vadd.f32 %v197, %v198
  %v200 = vsel %vm145, %v94, 0.0
  %v201 = vadd.f32 %v199, %v200
  %v202 = vsel %vm145, %v97, 0.0
  %v203 = vadd.f32 %v201, %v202
  %v204 = vsel %vm145, %v100, 0.0
  %v205 = vadd.f32 %v203, %v204
  %v206 = vsel %vm145, %v103, 0.0
  %v207 = vadd.f32 %v205, %v206
  %v208 = vsel %vm145, %v106, 0.0
  %v209 = vadd.f32 %v207, %v208
  %v210 = vsel %vm145, %v109, 0.0
  %v211 = vadd.f32 %v209, %v210
  %v212 = vsel %vm145, %v112, 0.0
  %v213 = vadd.f32 %v211, %v212
  %v214 = vrot.slane %v213, 4
  %v215 = vadd.f32 %v213, %v214
  %v216 = vrot.slane %v215, 2
  %v217 = vadd.f32 %v215, %v216
  %v218 = vrot.slane %v217, 1
  %v219 = vadd.f32 %v217, %v218
  %236 = vst [vmem:[#allocation1] ss:$2 sm:$0xff] %v15
  %v237 = vld.sshfl [vmem:[#allocation1] sm:$0xff pattern:$0x75316420]
  %v238 = vld.sshfl [vmem:[#allocation1 + $0x8] sm:$0xff pattern:$0x75316420]
  %s239 = scalar_lea.vmem [#allocation1], 16
  %240 = vst [vmem:[%s239] ss:$2 sm:$0xff] %v17
  %v241 = vld.sshfl [vmem:[#allocation1 + $0x10] sm:$0xff pattern:$0x75316420]
  %v242 = vld.sshfl [vmem:[#allocation1 + $0x18] sm:$0xff pattern:$0x75316420]
  %s243 = scalar_lea.vmem [#allocation1], 32
  %244 = vst [vmem:[%s243] ss:$2 sm:$0xff] %v19
  %v245 = vld.sshfl [vmem:[#allocation1 + $0x20] sm:$0xff pattern:$0x75316420]
  %v246 = vld.sshfl [vmem:[#allocation1 + $0x28] sm:$0xff pattern:$0x75316420]
  %s247 = scalar_lea.vmem [#allocation1], 48
  %248 = vst [vmem:[%s247] ss:$2 sm:$0xff] %v21
  %v249 = vld.sshfl [vmem:[#allocation1 + $0x30] sm:$0xff pattern:$0x75316420]
  %v250 = vld.sshfl [vmem:[#allocation1 + $0x38] sm:$0xff pattern:$0x75316420]
  %251 = vst [vmem:[#allocation1] ss:$2 sm:$0xff] %v23
  %v252 = vld.sshfl [vmem:[#allocation1] sm:$0xff pattern:$0x75316420]
  %v253 = vld.sshfl [vmem:[#allocation1 + $0x8] sm:$0xff pattern:$0x75316420]
  %254 = vst [vmem:[%s239] ss:$2 sm:$0xff] %v25
  %v255 = vld.sshfl [vmem:[#allocation1 + $0x10] sm:$0xff pattern:$0x75316420]
  %v256 = vld.sshfl [vmem:[#allocation1 + $0x18] sm:$0xff pattern:$0x75316420]
  %257 = vst [vmem:[%s243] ss:$2 sm:$0xff] %v27
  %v258 = vld.sshfl [vmem:[#allocation1 + $0x20] sm:$0xff pattern:$0x75316420]
  %v259 = vld.sshfl [vmem:[#allocation1 + $0x28] sm:$0xff pattern:$0x75316420]
  %260 = vst [vmem:[%s247] ss:$2 sm:$0xff] %v29
  %v261 = vld.sshfl [vmem:[#allocation1 + $0x30] sm:$0xff pattern:$0x75316420]
  %v262 = vld.sshfl [vmem:[#allocation1 + $0x38] sm:$0xff pattern:$0x75316420]
  %263 = vst [vmem:[#allocation1] ss:$2 sm:$0xff] %v31
  %v264 = vld.sshfl [vmem:[#allocation1] sm:$0xff pattern:$0x75316420]
  %v265 = vld.sshfl [vmem:[#allocation1 + $0x8] sm:$0xff pattern:$0x75316420]
  %266 = vst [vmem:[%s239] ss:$2 sm:$0xff] %v33
  %v267 = vld.sshfl [vmem:[#allocation1 + $0x10] sm:$0xff pattern:$0x75316420]
  %v268 = vld.sshfl [vmem:[#allocation1 + $0x18] sm:$0xff pattern:$0x75316420]
  %269 = vst [vmem:[%s243] ss:$2 sm:$0xff] %v35
  %v270 = vld.sshfl [vmem:[#allocation1 + $0x20] sm:$0xff pattern:$0x75316420]
  %v271 = vld.sshfl [vmem:[#allocation1 + $0x28] sm:$0xff pattern:$0x75316420]
  %272 = vst [vmem:[%s247] ss:$2 sm:$0xff] %v37
  %v273 = vld.sshfl [vmem:[#allocation1 + $0x30] sm:$0xff pattern:$0x75316420]
  %v274 = vld.sshfl [vmem:[#allocation1 + $0x38] sm:$0xff pattern:$0x75316420]
  %275 = vst [vmem:[#allocation1] ss:$2 sm:$0xff] %v39
  %v276 = vld.sshfl [vmem:[#allocation1] sm:$0xff pattern:$0x75316420]
  %v277 = vld.sshfl [vmem:[#allocation1 + $0x8] sm:$0xff pattern:$0x75316420]
  %278 = vst [vmem:[%s239] ss:$2 sm:$0xff] %v41
  %v279 = vld.sshfl [vmem:[#allocation1 + $0x10] sm:$0xff pattern:$0x75316420]
  %v280 = vld.sshfl [vmem:[#allocation1 + $0x18] sm:$0xff pattern:$0x75316420]
  %281 = vst [vmem:[%s243] ss:$2 sm:$0xff] %v43
  %v282 = vld.sshfl [vmem:[#allocation1 + $0x20] sm:$0xff pattern:$0x75316420]
  %v283 = vld.sshfl [vmem:[#allocation1 + $0x28] sm:$0xff pattern:$0x75316420]
  %284 = vst [vmem:[%s247] ss:$2 sm:$0xff] %v45
  %v285 = vld.sshfl [vmem:[#allocation1 + $0x30] sm:$0xff pattern:$0x75316420]
  %v286 = vld.sshfl [vmem:[#allocation1 + $0x38] sm:$0xff pattern:$0x75316420]
  %v319 = vsel %vm145, %v237, 0.0
  %v320 = vsel %vm145, %v241, 0.0
  %v321 = vadd.f32 %v319, %v320
  %v322 = vsel %vm145, %v245, 0.0
  %v323 = vadd.f32 %v321, %v322
  %v324 = vsel %vm145, %v249, 0.0
  %v325 = vadd.f32 %v323, %v324
  %v326 = vsel %vm145, %v252, 0.0
  %v327 = vadd.f32 %v325, %v326
  %v328 = vsel %vm145, %v255, 0.0
  %v329 = vadd.f32 %v327, %v328
  %v330 = vsel %vm145, %v258, 0.0
  %v331 = vadd.f32 %v329, %v330
  %v332 = vsel %vm145, %v261, 0.0
  %v333 = vadd.f32 %v331, %v332
  %v334 = vsel %vm145, %v264, 0.0
  %v335 = vadd.f32 %v333, %v334
  %v336 = vsel %vm145, %v267, 0.0
  %v337 = vadd.f32 %v335, %v336
  %v338 = vsel %vm145, %v270, 0.0
  %v339 = vadd.f32 %v337, %v338
  %v340 = vsel %vm145, %v273, 0.0
  %v341 = vadd.f32 %v339, %v340
  %v342 = vsel %vm145, %v276, 0.0
  %v343 = vadd.f32 %v341, %v342
  %v344 = vsel %vm145, %v279, 0.0
  %v345 = vadd.f32 %v343, %v344
  %v346 = vsel %vm145, %v282, 0.0
  %v347 = vadd.f32 %v345, %v346
  %v348 = vsel %vm145, %v285, 0.0
  %v349 = vadd.f32 %v347, %v348
  %v350 = vrot.slane %v349, 4
  %v351 = vadd.f32 %v349, %v350
  %v352 = vrot.slane %v351, 2
  %v353 = vadd.f32 %v351, %v352
  %v354 = vrot.slane %v353, 1
  %v355 = vadd.f32 %v353, %v354
  %v356 = vsel %vm145, %v238, 0.0
  %v357 = vsel %vm145, %v242, 0.0
  %v358 = vadd.f32 %v356, %v357
  %v359 = vsel %vm145, %v246, 0.0
  %v360 = vadd.f32 %v358, %v359
  %v361 = vsel %vm145, %v250, 0.0
  %v362 = vadd.f32 %v360, %v361
  %v363 = vsel %vm145, %v253, 0.0
  %v364 = vadd.f32 %v362, %v363
  %v365 = vsel %vm145, %v256, 0.0
  %v366 = vadd.f32 %v364, %v365
  %v367 = vsel %vm145, %v259, 0.0
  %v368 = vadd.f32 %v366, %v367
  %v369 = vsel %vm145, %v262, 0.0
  %v370 = vadd.f32 %v368, %v369
  %v371 = vsel %vm145, %v265, 0.0
  %v372 = vadd.f32 %v370, %v371
  %v373 = vsel %vm145, %v268, 0.0
  %v374 = vadd.f32 %v372, %v373
  %v375 = vsel %vm145, %v271, 0.0
  %v376 = vadd.f32 %v374, %v375
  %v377 = vsel %vm145, %v274, 0.0
  %v378 = vadd.f32 %v376, %v377
  %v379 = vsel %vm145, %v277, 0.0
  %v380 = vadd.f32 %v378, %v379
  %v381 = vsel %vm145, %v280, 0.0
  %v382 = vadd.f32 %v380, %v381
  %v383 = vsel %vm145, %v283, 0.0
  %v384 = vadd.f32 %v382, %v383
  %v385 = vsel %vm145, %v286, 0.0
  %v386 = vadd.f32 %v384, %v385
  %v387 = vrot.slane %v386, 4
  %v388 = vadd.f32 %v386, %v387
  %v389 = vrot.slane %v388, 2
  %v390 = vadd.f32 %v388, %v389
  %v391 = vrot.slane %v390, 1
  %v392 = vadd.f32 %v390, %v391
  %v393 = vadd.f32 %v182, %v355
  %v394 = vadd.f32 %v219, %v392
  %v395 = vmul.f32 %v393, 0.0078125
  %v396 = vmul.f32 %v394, 0.0078125
  %v399 = vrot.slane %v396, 4
  %v400 = vsel %vm145, %v395, %v399
  %v402 = vsub.f32 %v14, %v400
  %v403 = vsub.f32 %v16, %v400
  %v404 = vsub.f32 %v18, %v400
  %v405 = vsub.f32 %v20, %v400
  %v406 = vsub.f32 %v22, %v400
  %v407 = vsub.f32 %v24, %v400
  %v408 = vsub.f32 %v26, %v400
  %v409 = vsub.f32 %v28, %v400
  %v410 = vsub.f32 %v30, %v400
  %v411 = vsub.f32 %v32, %v400
  %v412 = vsub.f32 %v34, %v400
  %v413 = vsub.f32 %v36, %v400
  %v414 = vsub.f32 %v38, %v400
  %v415 = vsub.f32 %v40, %v400
  %v416 = vsub.f32 %v42, %v400
  %v417 = vsub.f32 %v44, %v400
  %v418 = vsub.f32 %v15, %v400
  %v419 = vsub.f32 %v17, %v400
  %v420 = vsub.f32 %v19, %v400
  %v421 = vsub.f32 %v21, %v400
  %v422 = vsub.f32 %v23, %v400
  %v423 = vsub.f32 %v25, %v400
  %v424 = vsub.f32 %v27, %v400
  %v425 = vsub.f32 %v29, %v400
  %v426 = vsub.f32 %v31, %v400
  %v427 = vsub.f32 %v33, %v400
  %v428 = vsub.f32 %v35, %v400
  %v429 = vsub.f32 %v37, %v400
  %v430 = vsub.f32 %v39, %v400
  %v431 = vsub.f32 %v41, %v400
  %v432 = vsub.f32 %v43, %v400
  %v433 = vsub.f32 %v45, %v400
  %v434 = vmul.f32 %v402, %v402
  %v435 = vmul.f32 %v403, %v403
  %v436 = vmul.f32 %v404, %v404
  %v437 = vmul.f32 %v405, %v405
  %v438 = vmul.f32 %v406, %v406
  %v439 = vmul.f32 %v407, %v407
  %v440 = vmul.f32 %v408, %v408
  %v441 = vmul.f32 %v409, %v409
  %v442 = vmul.f32 %v410, %v410
  %v443 = vmul.f32 %v411, %v411
  %v444 = vmul.f32 %v412, %v412
  %v445 = vmul.f32 %v413, %v413
  %v446 = vmul.f32 %v414, %v414
  %v447 = vmul.f32 %v415, %v415
  %v448 = vmul.f32 %v416, %v416
  %v449 = vmul.f32 %v417, %v417
  %466 = vst [vmem:[#allocation1] ss:$2 sm:$0xff] %v434
  %v467 = vld.sshfl [vmem:[#allocation1] sm:$0xff pattern:$0x75316420]
  %v468 = vld.sshfl [vmem:[#allocation1 + $0x8] sm:$0xff pattern:$0x75316420]
  %s469 = scalar_lea.vmem [#allocation1], 16
  %470 = vst [vmem:[%s469] ss:$2 sm:$0xff] %v435
  %v471 = vld.sshfl [vmem:[#allocation1 + $0x10] sm:$0xff pattern:$0x75316420]
  %v472 = vld.sshfl [vmem:[#allocation1 + $0x18] sm:$0xff pattern:$0x75316420]
  %s473 = scalar_lea.vmem [#allocation1], 32
  %474 = vst [vmem:[%s473] ss:$2 sm:$0xff] %v436
  %v475 = vld.sshfl [vmem:[#allocation1 + $0x20] sm:$0xff pattern:$0x75316420]
  %v476 = vld.sshfl [vmem:[#allocation1 + $0x28] sm:$0xff pattern:$0x75316420]
  %s477 = scalar_lea.vmem [#allocation1], 48
  %478 = vst [vmem:[%s477] ss:$2 sm:$0xff] %v437
  %v479 = vld.sshfl [vmem:[#allocation1 + $0x30] sm:$0xff pattern:$0x75316420]
  %v480 = vld.sshfl [vmem:[#allocation1 + $0x38] sm:$0xff pattern:$0x75316420]
  %481 = vst [vmem:[#allocation1] ss:$2 sm:$0xff] %v438
  %v482 = vld.sshfl [vmem:[#allocation1] sm:$0xff pattern:$0x75316420]
  %v483 = vld.sshfl [vmem:[#allocation1 + $0x8] sm:$0xff pattern:$0x75316420]
  %484 = vst [vmem:[%s469] ss:$2 sm:$0xff] %v439
  %v485 = vld.sshfl [vmem:[#allocation1 + $0x10] sm:$0xff pattern:$0x75316420]
  %v486 = vld.sshfl [vmem:[#allocation1 + $0x18] sm:$0xff pattern:$0x75316420]
  %487 = vst [vmem:[%s473] ss:$2 sm:$0xff] %v440
  %v488 = vld.sshfl [vmem:[#allocation1 + $0x20] sm:$0xff pattern:$0x75316420]
  %v489 = vld.sshfl [vmem:[#allocation1 + $0x28] sm:$0xff pattern:$0x75316420]
  %490 = vst [vmem:[%s477] ss:$2 sm:$0xff] %v441
  %v491 = vld.sshfl [vmem:[#allocation1 + $0x30] sm:$0xff pattern:$0x75316420]
  %v492 = vld.sshfl [vmem:[#allocation1 + $0x38] sm:$0xff pattern:$0x75316420]
  %493 = vst [vmem:[#allocation1] ss:$2 sm:$0xff] %v442
  %v494 = vld.sshfl [vmem:[#allocation1] sm:$0xff pattern:$0x75316420]
  %v495 = vld.sshfl [vmem:[#allocation1 + $0x8] sm:$0xff pattern:$0x75316420]
  %496 = vst [vmem:[%s469] ss:$2 sm:$0xff] %v443
  %v497 = vld.sshfl [vmem:[#allocation1 + $0x10] sm:$0xff pattern:$0x75316420]
  %v498 = vld.sshfl [vmem:[#allocation1 + $0x18] sm:$0xff pattern:$0x75316420]
  %499 = vst [vmem:[%s473] ss:$2 sm:$0xff] %v444
  %v500 = vld.sshfl [vmem:[#allocation1 + $0x20] sm:$0xff pattern:$0x75316420]
  %v501 = vld.sshfl [vmem:[#allocation1 + $0x28] sm:$0xff pattern:$0x75316420]
  %502 = vst [vmem:[%s477] ss:$2 sm:$0xff] %v445
  %v503 = vld.sshfl [vmem:[#allocation1 + $0x30] sm:$0xff pattern:$0x75316420]
  %v504 = vld.sshfl [vmem:[#allocation1 + $0x38] sm:$0xff pattern:$0x75316420]
  %505 = vst [vmem:[#allocation1] ss:$2 sm:$0xff] %v446
  %v506 = vld.sshfl [vmem:[#allocation1] sm:$0xff pattern:$0x75316420]
  %v507 = vld.sshfl [vmem:[#allocation1 + $0x8] sm:$0xff pattern:$0x75316420]
  %508 = vst [vmem:[%s469] ss:$2 sm:$0xff] %v447
  %v509 = vld.sshfl [vmem:[#allocation1 + $0x10] sm:$0xff pattern:$0x75316420]
  %v510 = vld.sshfl [vmem:[#allocation1 + $0x18] sm:$0xff pattern:$0x75316420]
  %511 = vst [vmem:[%s473] ss:$2 sm:$0xff] %v448
  %v512 = vld.sshfl [vmem:[#allocation1 + $0x20] sm:$0xff pattern:$0x75316420]
  %v513 = vld.sshfl [vmem:[#allocation1 + $0x28] sm:$0xff pattern:$0x75316420]
  %514 = vst [vmem:[%s477] ss:$2 sm:$0xff] %v449
  %v515 = vld.sshfl [vmem:[#allocation1 + $0x30] sm:$0xff pattern:$0x75316420]
  %v516 = vld.sshfl [vmem:[#allocation1 + $0x38] sm:$0xff pattern:$0x75316420]
  %v549 = vsel %vm145, %v467, 0.0
  %v550 = vsel %vm145, %v471, 0.0
  %v551 = vadd.f32 %v549, %v550
  %v552 = vsel %vm145, %v475, 0.0
  %v553 = vadd.f32 %v551, %v552
  %v554 = vsel %vm145, %v479, 0.0
  %v555 = vadd.f32 %v553, %v554
  %v556 = vsel %vm145, %v482, 0.0
  %v557 = vadd.f32 %v555, %v556
  %v558 = vsel %vm145, %v485, 0.0
  %v559 = vadd.f32 %v557, %v558
  %v560 = vsel %vm145, %v488, 0.0
  %v561 = vadd.f32 %v559, %v560
  %v562 = vsel %vm145, %v491, 0.0
  %v563 = vadd.f32 %v561, %v562
  %v564 = vsel %vm145, %v494, 0.0
  %v565 = vadd.f32 %v563, %v564
  %v566 = vsel %vm145, %v497, 0.0
  %v567 = vadd.f32 %v565, %v566
  %v568 = vsel %vm145, %v500, 0.0
  %v569 = vadd.f32 %v567, %v568
  %v570 = vsel %vm145, %v503, 0.0
  %v571 = vadd.f32 %v569, %v570
  %v572 = vsel %vm145, %v506, 0.0
  %v573 = vadd.f32 %v571, %v572
  %v574 = vsel %vm145, %v509, 0.0
  %v575 = vadd.f32 %v573, %v574
  %v576 = vsel %vm145, %v512, 0.0
  %v577 = vadd.f32 %v575, %v576
  %v578 = vsel %vm145, %v515, 0.0
  %v579 = vadd.f32 %v577, %v578
  %v580 = vrot.slane %v579, 4
  %v581 = vadd.f32 %v579, %v580
  %v582 = vrot.slane %v581, 2
  %v583 = vadd.f32 %v581, %v582
  %v584 = vrot.slane %v583, 1
  %v585 = vadd.f32 %v583, %v584
  %v586 = vsel %vm145, %v468, 0.0
  %v587 = vsel %vm145, %v472, 0.0
  %v588 = vadd.f32 %v586, %v587
  %v589 = vsel %vm145, %v476, 0.0
  %v590 = vadd.f32 %v588, %v589
  %v591 = vsel %vm145, %v480, 0.0
  %v592 = vadd.f32 %v590, %v591
  %v593 = vsel %vm145, %v483, 0.0
  %v594 = vadd.f32 %v592, %v593
  %v595 = vsel %vm145, %v486, 0.0
  %v596 = vadd.f32 %v594, %v595
  %v597 = vsel %vm145, %v489, 0.0
  %v598 = vadd.f32 %v596, %v597
  %v599 = vsel %vm145, %v492, 0.0
  %v600 = vadd.f32 %v598, %v599
  %v601 = vsel %vm145, %v495, 0.0
  %v602 = vadd.f32 %v600, %v601
  %v603 = vsel %vm145, %v498, 0.0
  %v604 = vadd.f32 %v602, %v603
  %v605 = vsel %vm145, %v501, 0.0
  %v606 = vadd.f32 %v604, %v605
  %v607 = vsel %vm145, %v504, 0.0
  %v608 = vadd.f32 %v606, %v607
  %v609 = vsel %vm145, %v507, 0.0
  %v610 = vadd.f32 %v608, %v609
  %v611 = vsel %vm145, %v510, 0.0
  %v612 = vadd.f32 %v610, %v611
  %v613 = vsel %vm145, %v513, 0.0
  %v614 = vadd.f32 %v612, %v613
  %v615 = vsel %vm145, %v516, 0.0
  %v616 = vadd.f32 %v614, %v615
  %v617 = vrot.slane %v616, 4
  %v618 = vadd.f32 %v616, %v617
  %v619 = vrot.slane %v618, 2
  %v620 = vadd.f32 %v618, %v619
  %v621 = vrot.slane %v620, 1
  %v622 = vadd.f32 %v620, %v621
  %v623 = vmul.f32 %v418, %v418
  %v624 = vmul.f32 %v419, %v419
  %v625 = vmul.f32 %v420, %v420
  %v626 = vmul.f32 %v421, %v421
  %v627 = vmul.f32 %v422, %v422
  %v628 = vmul.f32 %v423, %v423
  %v629 = vmul.f32 %v424, %v424
  %v630 = vmul.f32 %v425, %v425
  %v631 = vmul.f32 %v426, %v426
  %v632 = vmul.f32 %v427, %v427
  %v633 = vmul.f32 %v428, %v428
  %v634 = vmul.f32 %v429, %v429
  %v635 = vmul.f32 %v430, %v430
  %v636 = vmul.f32 %v431, %v431
  %v637 = vmul.f32 %v432, %v432
  %v638 = vmul.f32 %v433, %v433
  %655 = vst [vmem:[#allocation1] ss:$2 sm:$0xff] %v623
  %v656 = vld.sshfl [vmem:[#allocation1] sm:$0xff pattern:$0x75316420]
  %v657 = vld.sshfl [vmem:[#allocation1 + $0x8] sm:$0xff pattern:$0x75316420]
  %s658 = scalar_lea.vmem [#allocation1], 16
  %659 = vst [vmem:[%s658] ss:$2 sm:$0xff] %v624
  %v660 = vld.sshfl [vmem:[#allocation1 + $0x10] sm:$0xff pattern:$0x75316420]
  %v661 = vld.sshfl [vmem:[#allocation1 + $0x18] sm:$0xff pattern:$0x75316420]
  %s662 = scalar_lea.vmem [#allocation1], 32
  %663 = vst [vmem:[%s662] ss:$2 sm:$0xff] %v625
  %v664 = vld.sshfl [vmem:[#allocation1 + $0x20] sm:$0xff pattern:$0x75316420]
  %v665 = vld.sshfl [vmem:[#allocation1 + $0x28] sm:$0xff pattern:$0x75316420]
  %s666 = scalar_lea.vmem [#allocation1], 48
  %667 = vst [vmem:[%s666] ss:$2 sm:$0xff] %v626
  %v668 = vld.sshfl [vmem:[#allocation1 + $0x30] sm:$0xff pattern:$0x75316420]
  %v669 = vld.sshfl [vmem:[#allocation1 + $0x38] sm:$0xff pattern:$0x75316420]
  %670 = vst [vmem:[#allocation1] ss:$2 sm:$0xff] %v627
  %v671 = vld.sshfl [vmem:[#allocation1] sm:$0xff pattern:$0x75316420]
  %v672 = vld.sshfl [vmem:[#allocation1 + $0x8] sm:$0xff pattern:$0x75316420]
  %673 = vst [vmem:[%s658] ss:$2 sm:$0xff] %v628
  %v674 = vld.sshfl [vmem:[#allocation1 + $0x10] sm:$0xff pattern:$0x75316420]
  %v675 = vld.sshfl [vmem:[#allocation1 + $0x18] sm:$0xff pattern:$0x75316420]
  %676 = vst [vmem:[%s662] ss:$2 sm:$0xff] %v629
  %v677 = vld.sshfl [vmem:[#allocation1 + $0x20] sm:$0xff pattern:$0x75316420]
  %v678 = vld.sshfl [vmem:[#allocation1 + $0x28] sm:$0xff pattern:$0x75316420]
  %679 = vst [vmem:[%s666] ss:$2 sm:$0xff] %v630
  %v680 = vld.sshfl [vmem:[#allocation1 + $0x30] sm:$0xff pattern:$0x75316420]
  %v681 = vld.sshfl [vmem:[#allocation1 + $0x38] sm:$0xff pattern:$0x75316420]
  %682 = vst [vmem:[#allocation1] ss:$2 sm:$0xff] %v631
  %v683 = vld.sshfl [vmem:[#allocation1] sm:$0xff pattern:$0x75316420]
  %v684 = vld.sshfl [vmem:[#allocation1 + $0x8] sm:$0xff pattern:$0x75316420]
  %685 = vst [vmem:[%s658] ss:$2 sm:$0xff] %v632
  %v686 = vld.sshfl [vmem:[#allocation1 + $0x10] sm:$0xff pattern:$0x75316420]
  %v687 = vld.sshfl [vmem:[#allocation1 + $0x18] sm:$0xff pattern:$0x75316420]
  %688 = vst [vmem:[%s662] ss:$2 sm:$0xff] %v633
  %v689 = vld.sshfl [vmem:[#allocation1 + $0x20] sm:$0xff pattern:$0x75316420]
  %v690 = vld.sshfl [vmem:[#allocation1 + $0x28] sm:$0xff pattern:$0x75316420]
  %691 = vst [vmem:[%s666] ss:$2 sm:$0xff] %v634
  %v692 = vld.sshfl [vmem:[#allocation1 + $0x30] sm:$0xff pattern:$0x75316420]
  %v693 = vld.sshfl [vmem:[#allocation1 + $0x38] sm:$0xff pattern:$0x75316420]
  %694 = vst [vmem:[#allocation1] ss:$2 sm:$0xff] %v635
  %v695 = vld.sshfl [vmem:[#allocation1] sm:$0xff pattern:$0x75316420]
  %v696 = vld.sshfl [vmem:[#allocation1 + $0x8] sm:$0xff pattern:$0x75316420]
  %697 = vst [vmem:[%s658] ss:$2 sm:$0xff] %v636
  %v698 = vld.sshfl [vmem:[#allocation1 + $0x10] sm:$0xff pattern:$0x75316420]
  %v699 = vld.sshfl [vmem:[#allocation1 + $0x18] sm:$0xff pattern:$0x75316420]
  %700 = vst [vmem:[%s662] ss:$2 sm:$0xff] %v637
  %v701 = vld.sshfl [vmem:[#allocation1 + $0x20] sm:$0xff pattern:$0x75316420]
  %v702 = vld.sshfl [vmem:[#allocation1 + $0x28] sm:$0xff pattern:$0x75316420]
  %703 = vst [vmem:[%s666] ss:$2 sm:$0xff] %v638
  %v704 = vld.sshfl [vmem:[#allocation1 + $0x30] sm:$0xff pattern:$0x75316420]
  %v705 = vld.sshfl [vmem:[#allocation1 + $0x38] sm:$0xff pattern:$0x75316420]
  %v738 = vsel %vm145, %v656, 0.0
  %v739 = vsel %vm145, %v660, 0.0
  %v740 = vadd.f32 %v738, %v739
  %v741 = vsel %vm145, %v664, 0.0
  %v742 = vadd.f32 %v740, %v741
  %v743 = vsel %vm145, %v668, 0.0
  %v744 = vadd.f32 %v742, %v743
  %v745 = vsel %vm145, %v671, 0.0
  %v746 = vadd.f32 %v744, %v745
  %v747 = vsel %vm145, %v674, 0.0
  %v748 = vadd.f32 %v746, %v747
  %v749 = vsel %vm145, %v677, 0.0
  %v750 = vadd.f32 %v748, %v749
  %v751 = vsel %vm145, %v680, 0.0
  %v752 = vadd.f32 %v750, %v751
  %v753 = vsel %vm145, %v683, 0.0
  %v754 = vadd.f32 %v752, %v753
  %v755 = vsel %vm145, %v686, 0.0
  %v756 = vadd.f32 %v754, %v755
  %v757 = vsel %vm145, %v689, 0.0
  %v758 = vadd.f32 %v756, %v757
  %v759 = vsel %vm145, %v692, 0.0
  %v760 = vadd.f32 %v758, %v759
  %v761 = vsel %vm145, %v695, 0.0
  %v762 = vadd.f32 %v760, %v761
  %v763 = vsel %vm145, %v698, 0.0
  %v764 = vadd.f32 %v762, %v763
  %v765 = vsel %vm145, %v701, 0.0
  %v766 = vadd.f32 %v764, %v765
  %v767 = vsel %vm145, %v704, 0.0
  %v768 = vadd.f32 %v766, %v767
  %v769 = vrot.slane %v768, 4
  %v770 = vadd.f32 %v768, %v769
  %v771 = vrot.slane %v770, 2
  %v772 = vadd.f32 %v770, %v771
  %v773 = vrot.slane %v772, 1
  %v774 = vadd.f32 %v772, %v773
  %v775 = vsel %vm145, %v657, 0.0
  %v776 = vsel %vm145, %v661, 0.0
  %v777 = vadd.f32 %v775, %v776
  %v778 = vsel %vm145, %v665, 0.0
  %v779 = vadd.f32 %v777, %v778
  %v780 = vsel %vm145, %v669, 0.0
  %v781 = vadd.f32 %v779, %v780
  %v782 = vsel %vm145, %v672, 0.0
  %v783 = vadd.f32 %v781, %v782
  %v784 = vsel %vm145, %v675, 0.0
  %v785 = vadd.f32 %v783, %v784
  %v786 = vsel %vm145, %v678, 0.0
  %v787 = vadd.f32 %v785, %v786
  %v788 = vsel %vm145, %v681, 0.0
  %v789 = vadd.f32 %v787, %v788
  %v790 = vsel %vm145, %v684, 0.0
  %v791 = vadd.f32 %v789, %v790
  %v792 = vsel %vm145, %v687, 0.0
  %v793 = vadd.f32 %v791, %v792
  %v794 = vsel %vm145, %v690, 0.0
  %v795 = vadd.f32 %v793, %v794
  %v796 = vsel %vm145, %v693, 0.0
  %v797 = vadd.f32 %v795, %v796
  %v798 = vsel %vm145, %v696, 0.0
  %v799 = vadd.f32 %v797, %v798
  %v800 = vsel %vm145, %v699, 0.0
  %v801 = vadd.f32 %v799, %v800
  %v802 = vsel %vm145, %v702, 0.0
  %v803 = vadd.f32 %v801, %v802
  %v804 = vsel %vm145, %v705, 0.0
  %v805 = vadd.f32 %v803, %v804
  %v806 = vrot.slane %v805, 4
  %v807 = vadd.f32 %v805, %v806
  %v808 = vrot.slane %v807, 2
  %v809 = vadd.f32 %v807, %v808
  %v810 = vrot.slane %v809, 1
  %v811 = vadd.f32 %v809, %v810
  %v812 = vadd.f32 %v585, %v774
  %v813 = vadd.f32 %v622, %v811
  %v814 = vmul.f32 %v812, 0.0078125
  %v815 = vmul.f32 %v813, 0.0078125
  %v816 = vld [vmem:[%s1] sm:$0x3]
  %v817 = vadd.f32 %v814, 1e-05
  %v818 = vadd.f32 %v815, 1e-05
  %v819 = vrsqrt.pop %v817
  %v820 = vmul.f32 %v819, %v817
  %v821 = vmul.f32 %v820, %v819
  %v822 = vmul.f32 0.5, %v821
  %v823 = vsub.f32 1.5, %v822
  %v824 = vmul.f32 %v819, %v823
  %vm825 = vweird.f32 %v817
  %vm826 = vweird.f32 %v819
  %vm827 = vmor %vm825, %vm826
  %v828 = vsel %vm827, %v819, %v824
  %v829 = vrsqrt.pop %v818
  %v830 = vmul.f32 %v829, %v818
  %v831 = vmul.f32 %v830, %v829
  %v832 = vmul.f32 0.5, %v831
  %v833 = vsub.f32 1.5, %v832
  %v834 = vmul.f32 %v829, %v833
  %vm835 = vweird.f32 %v818
  %vm836 = vweird.f32 %v829
  %vm837 = vmor %vm835, %vm836
  %v838 = vsel %vm837, %v829, %v834
  %v841 = vrot.slane %v838, 7
  %vm842 = vcmask 1040384
  %v843 = vsel %vm842, %v828, %v841
  %v845 = vmul.f32 %v816, %v843
  %v846 = vld [vmem:[%s2] sm:$0x3]
  %v848 = vperm.slane %v845, 0
  %v849 = vperm.slane %v845, 1
  %v852 = vmul.f32 %v395, %v848
  %v853 = vmul.f32 %v396, %v849
  %v856 = vrot.slane %v853, 7
  %v857 = vsel %vm842, %v852, %v856
  %v859 = vsub.f32 %v846, %v857
  %v860 = vrot.slane %v849, 4
  %v861 = vsel %vm145, %v848, %v860
  %v863 = vmul.f32 %v14, %v861
  %v864 = vmul.f32 %v16, %v861
  %v865 = vmul.f32 %v18, %v861
  %v866 = vmul.f32 %v20, %v861
  %v867 = vmul.f32 %v22, %v861
  %v868 = vmul.f32 %v24, %v861
  %v869 = vmul.f32 %v26, %v861
  %v870 = vmul.f32 %v28, %v861
  %v871 = vmul.f32 %v30, %v861
  %v872 = vmul.f32 %v32, %v861
  %v873 = vmul.f32 %v34, %v861
  %v874 = vmul.f32 %v36, %v861
  %v875 = vmul.f32 %v38, %v861
  %v876 = vmul.f32 %v40, %v861
  %v877 = vmul.f32 %v42, %v861
  %v878 = vmul.f32 %v44, %v861
  %v880 = vperm.slane %v859, 0
  %v881 = vperm.slane %v859, 1
  %v882 = vrot.slane %v881, 4
  %v883 = vsel %vm145, %v880, %v882
  %v885 = vadd.f32 %v863, %v883
  %v886 = vadd.f32 %v864, %v883
  %v887 = vadd.f32 %v865, %v883
  %v888 = vadd.f32 %v866, %v883
  %v889 = vadd.f32 %v867, %v883
  %v890 = vadd.f32 %v868, %v883
  %v891 = vadd.f32 %v869, %v883
  %v892 = vadd.f32 %v870, %v883
  %v893 = vadd.f32 %v871, %v883
  %v894 = vadd.f32 %v872, %v883
  %v895 = vadd.f32 %v873, %v883
  %v896 = vadd.f32 %v874, %v883
  %v897 = vadd.f32 %v875, %v883
  %v898 = vadd.f32 %v876, %v883
  %v899 = vadd.f32 %v877, %v883
  %v900 = vadd.f32 %v878, %v883
  %v901 = vmax.f32 %v885, 0.0
  %v902 = vmax.f32 %v886, 0.0
  %v903 = vmax.f32 %v887, 0.0
  %v904 = vmax.f32 %v888, 0.0
  %v905 = vmax.f32 %v889, 0.0
  %v906 = vmax.f32 %v890, 0.0
  %v907 = vmax.f32 %v891, 0.0
  %v908 = vmax.f32 %v892, 0.0
  %v909 = vmax.f32 %v893, 0.0
  %v910 = vmax.f32 %v894, 0.0
  %v911 = vmax.f32 %v895, 0.0
  %v912 = vmax.f32 %v896, 0.0
  %v913 = vmax.f32 %v897, 0.0
  %v914 = vmax.f32 %v898, 0.0
  %v915 = vmax.f32 %v899, 0.0
  %v916 = vmax.f32 %v900, 0.0
  %v917 = vmul.f32 %v15, %v861
  %v918 = vmul.f32 %v17, %v861
  %v919 = vmul.f32 %v19, %v861
  %v920 = vmul.f32 %v21, %v861
  %v921 = vmul.f32 %v23, %v861
  %v922 = vmul.f32 %v25, %v861
  %v923 = vmul.f32 %v27, %v861
  %v924 = vmul.f32 %v29, %v861
  %v925 = vmul.f32 %v31, %v861
  %v926 = vmul.f32 %v33, %v861
  %v927 = vmul.f32 %v35, %v861
  %v928 = vmul.f32 %v37, %v861
  %v929 = vmul.f32 %v39, %v861
  %v930 = vmul.f32 %v41, %v861
  %v931 = vmul.f32 %v43, %v861
  %v932 = vmul.f32 %v45, %v861
  %v933 = vadd.f32 %v917, %v883
  %v934 = vadd.f32 %v918, %v883
  %v935 = vadd.f32 %v919, %v883
  %v936 = vadd.f32 %v920, %v883
  %v937 = vadd.f32 %v921, %v883
  %v938 = vadd.f32 %v922, %v883
  %v939 = vadd.f32 %v923, %v883
  %v940 = vadd.f32 %v924, %v883
  %v941 = vadd.f32 %v925, %v883
  %v942 = vadd.f32 %v926, %v883
  %v943 = vadd.f32 %v927, %v883
  %v944 = vadd.f32 %v928, %v883
  %v945 = vadd.f32 %v929, %v883
  %v946 = vadd.f32 %v930, %v883
  %v947 = vadd.f32 %v931, %v883
  %v948 = vadd.f32 %v932, %v883
  %v949 = vmax.f32 %v933, 0.0
  %v950 = vmax.f32 %v934, 0.0
  %v951 = vmax.f32 %v935, 0.0
  %v952 = vmax.f32 %v936, 0.0
  %v953 = vmax.f32 %v937, 0.0
  %v954 = vmax.f32 %v938, 0.0
  %v955 = vmax.f32 %v939, 0.0
  %v956 = vmax.f32 %v940, 0.0
  %v957 = vmax.f32 %v941, 0.0
  %v958 = vmax.f32 %v942, 0.0
  %v959 = vmax.f32 %v943, 0.0
  %v960 = vmax.f32 %v944, 0.0
  %v961 = vmax.f32 %v945, 0.0
  %v962 = vmax.f32 %v946, 0.0
  %v963 = vmax.f32 %v947, 0.0
  %v964 = vmax.f32 %v948, 0.0
  %v965 = vmax.f32 %v901, %v949
  %v966 = vmax.f32 %v902, %v950
  %v967 = vmax.f32 %v903, %v951
  %v968 = vmax.f32 %v904, %v952
  %v969 = vmax.f32 %v905, %v953
  %v970 = vmax.f32 %v906, %v954
  %v971 = vmax.f32 %v907, %v955
  %v972 = vmax.f32 %v908, %v956
  %v973 = vmax.f32 %v909, %v957
  %v974 = vmax.f32 %v910, %v958
  %v975 = vmax.f32 %v911, %v959
  %v976 = vmax.f32 %v912, %v960
  %v977 = vmax.f32 %v913, %v961
  %v978 = vmax.f32 %v914, %v962
  %v979 = vmax.f32 %v915, %v963
  %v980 = vmax.f32 %v916, %v964
  %v981 = vmax.f32 %v965, %v966
  %v982 = vmax.f32 %v973, %v974
  %983 = vst [vmem:[%s3] sm:$0xff] %v981
  %984 = vst [vmem:[%s3 + $0x20] sm:$0xff] %v982
  %v985 = vmax.f32 %v967, %v968
  %v986 = vmax.f32 %v975, %v976
  %s987 = scalar_lea.vmem %s3, 8
  %988 = vst [vmem:[%s987] sm:$0xff] %v985
  %989 = vst [vmem:[%s987 + $0x20] sm:$0xff] %v986
  %v990 = vmax.f32 %v969, %v970
  %v991 = vmax.f32 %v977, %v978
  %s992 = scalar_lea.vmem %s3, 16
  %993 = vst [vmem:[%s992] sm:$0xff] %v990
  %994 = vst [vmem:[%s992 + $0x20] sm:$0xff] %v991
  %v995 = vmax.f32 %v971, %v972
  %v996 = vmax.f32 %v979, %v980
  %s997 = scalar_lea.vmem %s3, 24
  %998 = vst [vmem:[%s997] sm:$0xff] %v995
  %999 = vst [vmem:[%s997 + $0x20] sm:$0xff] %v996
  // Predicated region
  $region14: #{cnn_cifar_forward.12} parent=0 // pred_check
    _
  $region15: #{cnn_cifar_forward.12} parent=0 // pred_check_branch
    %1001 = sbr.rel (0) target = $region17
  $region16: #{cnn_cifar_forward.12} parent=0 // pred_region
    _
  $region17: #{cnn_cifar_forward.12} parent=0 // pred_fallthru
    _
  // Predicated region
  $region18: #{cnn_cifar_forward.12} parent=0 // pred_check
    _
  $region19: #{cnn_cifar_forward.12} parent=0 // pred_check_branch
    %1003 = sbr.rel (0) target = $region21
  $region20: #{cnn_cifar_forward.12} parent=0 // pred_region
    _
  $region21: #{cnn_cifar_forward.12} parent=0 // pred_fallthru
    _

// kernel: cnn_cifar_forward.13
$region0: #{cnn_cifar_forward.13}
  #allocation0 [shape = 'u32[]', space=smem, size = 0x4, offset = 0x4, fixed_abs, tag = 'smem constant byte address 0x4 - core index']
  #allocation1 [shape = 'u32[72,128]{1,0:T(1,128)}', space=vmem, size = 0x9000, scoped, tag = 'internal scratch']
  %s0 = inlined_call_operand.vmem [shape: bf16[2,4096], index: 0, kind: input, shape index: {}]
  %s1 = inlined_call_operand.vmem [shape: bf16[4096,10], index: 1, kind: input, shape index: {}]
  %s2 = inlined_call_operand.vmem [shape: f32[1,10], index: 2, kind: input, shape index: {}]
  %s3 = inlined_call_operand.hbm [shape: f32[2,10], index: 3, kind: output, shape index: {}]
  %s4 = sld [smem:[#allocation0]]
  $region22: #{cnn_cifar_forward.13} parent=0
    _
  %s6 = ssub.s32 1, %s4
  %s7 = scalar_select 0, %s6, %s4
  $region1: #{cnn_cifar_forward.13} parent=0
    #allocation2 [shape = 'u8[1024]{0}', space=vmem, size = 0x400, scoped, tag = 'output window, operand 0, single buffered']
    #allocation3 [shape = 's32[1]{0}', space=sflag, size = 0x4, scoped, tag = 'scoped memory for cnn_cifar_forward.13']
    %8 = vsyncpa [#allocation3], 0
    // Predicated region
    $region2: #{cnn_cifar_forward.13} parent=1 // pred_check
      _
    $region3: #{cnn_cifar_forward.13} parent=1 // pred_check_branch
      %10 = sbr.rel (0) target = $region5
    $region4: #{cnn_cifar_forward.13} parent=1 // pred_region
      _
    $region5: #{cnn_cifar_forward.13} parent=1 // pred_fallthru
      _
    // Predicated region
    $region6: #{cnn_cifar_forward.13} parent=1 // pred_check
      _
    $region7: #{cnn_cifar_forward.13} parent=1 // pred_check_branch
      %12 = sbr.rel (0) target = $region9
    $region8: #{cnn_cifar_forward.13} parent=1 // pred_region
      _
    $region9: #{cnn_cifar_forward.13} parent=1 // pred_fallthru
      _
    // Predicated region
    $region10: #{cnn_cifar_forward.13} parent=1 // pred_check
      _
    $region11: #{cnn_cifar_forward.13} parent=1 // pred_check_branch
      %14 = sbr.rel (0) target = $region13
    $region12: #{cnn_cifar_forward.13} parent=1 // pred_region
      _
    $region13: #{cnn_cifar_forward.13} parent=1 // pred_fallthru
      _
    %v15 = vld [vmem:[%s0] sm:$0xff]
    %v16 = vld [vmem:[%s0 + $0x8] sm:$0xff]
    %v17 = vld [vmem:[%s0 + $0x10] sm:$0xff]
    %v18 = vld [vmem:[%s0 + $0x18] sm:$0xff]
    %v19 = vld [vmem:[%s1] sm:$0xf]
    %v20 = vld [vmem:[%s1 + $0x4] sm:$0xf]
    %v21 = vld [vmem:[%s1 + $0x8] sm:$0xf]
    %v22 = vld [vmem:[%s1 + $0xc] sm:$0xf]
    %v23 = vld [vmem:[%s1 + $0x10] sm:$0xf]
    %v24 = vld [vmem:[%s1 + $0x14] sm:$0xf]
    %v25 = vld [vmem:[%s1 + $0x18] sm:$0xf]
    %v26 = vld [vmem:[%s1 + $0x1c] sm:$0xf]
    %v27 = vld [vmem:[%s1 + $0x20] sm:$0xf]
    %v28 = vld [vmem:[%s1 + $0x24] sm:$0xf]
    %v29 = vld [vmem:[%s1 + $0x28] sm:$0xf]
    %v30 = vld [vmem:[%s1 + $0x2c] sm:$0xf]
    %v31 = vld [vmem:[%s1 + $0x30] sm:$0xf]
    %v32 = vld [vmem:[%s1 + $0x34] sm:$0xf]
    %v33 = vld [vmem:[%s1 + $0x38] sm:$0xf]
    %v34 = vld [vmem:[%s1 + $0x3c] sm:$0xf]
    %v35 = vld [vmem:[%s1 + $0x40] sm:$0xf]
    %v36 = vld [vmem:[%s1 + $0x44] sm:$0xf]
    %v37 = vld [vmem:[%s1 + $0x48] sm:$0xf]
    %v38 = vld [vmem:[%s1 + $0x4c] sm:$0xf]
    %v39 = vld [vmem:[%s1 + $0x50] sm:$0xf]
    %v40 = vld [vmem:[%s1 + $0x54] sm:$0xf]
    %v41 = vld [vmem:[%s1 + $0x58] sm:$0xf]
    %v42 = vld [vmem:[%s1 + $0x5c] sm:$0xf]
    %v43 = vld [vmem:[%s1 + $0x60] sm:$0xf]
    %v44 = vld [vmem:[%s1 + $0x64] sm:$0xf]
    %v45 = vld [vmem:[%s1 + $0x68] sm:$0xf]
    %v46 = vld [vmem:[%s1 + $0x6c] sm:$0xf]
    %v47 = vld [vmem:[%s1 + $0x70] sm:$0xf]
    %v48 = vld [vmem:[%s1 + $0x74] sm:$0xf]
    %v49 = vld [vmem:[%s1 + $0x78] sm:$0xf]
    %v50 = vld [vmem:[%s1 + $0x7c] sm:$0xf]
    %v51 = vld [vmem:[%s1 + $0x80] sm:$0xf]
    %v52 = vld [vmem:[%s1 + $0x84] sm:$0xf]
    %v53 = vld [vmem:[%s1 + $0x88] sm:$0xf]
    %v54 = vld [vmem:[%s1 + $0x8c] sm:$0xf]
    %v55 = vld [vmem:[%s1 + $0x90] sm:$0xf]
    %v56 = vld [vmem:[%s1 + $0x94] sm:$0xf]
    %v57 = vld [vmem:[%s1 + $0x98] sm:$0xf]
    %v58 = vld [vmem:[%s1 + $0x9c] sm:$0xf]
    %v59 = vld [vmem:[%s1 + $0xa0] sm:$0xf]
    %v60 = vld [vmem:[%s1 + $0xa4] sm:$0xf]
    %v61 = vld [vmem:[%s1 + $0xa8] sm:$0xf]
    %v62 = vld [vmem:[%s1 + $0xac] sm:$0xf]
    %v63 = vld [vmem:[%s1 + $0xb0] sm:$0xf]
    %v64 = vld [vmem:[%s1 + $0xb4] sm:$0xf]
    %v65 = vld [vmem:[%s1 + $0xb8] sm:$0xf]
    %v66 = vld [vmem:[%s1 + $0xbc] sm:$0xf]
    %v67 = vld [vmem:[%s1 + $0xc0] sm:$0xf]
    %v68 = vld [vmem:[%s1 + $0xc4] sm:$0xf]
    %v69 = vld [vmem:[%s1 + $0xc8] sm:$0xf]
    %v70 = vld [vmem:[%s1 + $0xcc] sm:$0xf]
    %v71 = vld [vmem:[%s1 + $0xd0] sm:$0xf]
    %v72 = vld [vmem:[%s1 + $0xd4] sm:$0xf]
    %v73 = vld [vmem:[%s1 + $0xd8] sm:$0xf]
    %v74 = vld [vmem:[%s1 + $0xdc] sm:$0xf]
    %v75 = vld [vmem:[%s1 + $0xe0] sm:$0xf]
    %v76 = vld [vmem:[%s1 + $0xe4] sm:$0xf]
    %v77 = vld [vmem:[%s1 + $0xe8] sm:$0xf]
    %v78 = vld [vmem:[%s1 + $0xec] sm:$0xf]
    %v79 = vld [vmem:[%s1 + $0xf0] sm:$0xf]
    %v80 = vld [vmem:[%s1 + $0xf4] sm:$0xf]
    %v81 = vld [vmem:[%s1 + $0xf8] sm:$0xf]
    %v82 = vld [vmem:[%s1 + $0xfc] sm:$0xf]
    %v83 = vld [vmem:[%s1 + $0x100] sm:$0xf]
    %v84 = vld [vmem:[%s1 + $0x104] sm:$0xf]
    %v85 = vld [vmem:[%s1 + $0x108] sm:$0xf]
    %v86 = vld [vmem:[%s1 + $0x10c] sm:$0xf]
    %v87 = vld [vmem:[%s1 + $0x110] sm:$0xf]
    %v88 = vld [vmem:[%s1 + $0x114] sm:$0xf]
    %v89 = vld [vmem:[%s1 + $0x118] sm:$0xf]
    %v90 = vld [vmem:[%s1 + $0x11c] sm:$0xf]
    %v91 = vld [vmem:[%s1 + $0x120] sm:$0xf]
    %v92 = vld [vmem:[%s1 + $0x124] sm:$0xf]
    %v93 = vld [vmem:[%s1 + $0x128] sm:$0xf]
    %v94 = vld [vmem:[%s1 + $0x12c] sm:$0xf]
    %v95 = vld [vmem:[%s1 + $0x130] sm:$0xf]
    %v96 = vld [vmem:[%s1 + $0x134] sm:$0xf]
    %v97 = vld [vmem:[%s1 + $0x138] sm:$0xf]
    %v98 = vld [vmem:[%s1 + $0x13c] sm:$0xf]
    %v99 = vld [vmem:[%s1 + $0x140] sm:$0xf]
    %v100 = vld [vmem:[%s1 + $0x144] sm:$0xf]
    %v101 = vld [vmem:[%s1 + $0x148] sm:$0xf]
    %v102 = vld [vmem:[%s1 + $0x14c] sm:$0xf]
    %v103 = vld [vmem:[%s1 + $0x150] sm:$0xf]
    %v104 = vld [vmem:[%s1 + $0x154] sm:$0xf]
    %v105 = vld [vmem:[%s1 + $0x158] sm:$0xf]
    %v106 = vld [vmem:[%s1 + $0x15c] sm:$0xf]
    %v107 = vld [vmem:[%s1 + $0x160] sm:$0xf]
    %v108 = vld [vmem:[%s1 + $0x164] sm:$0xf]
    %v109 = vld [vmem:[%s1 + $0x168] sm:$0xf]
    %v110 = vld [vmem:[%s1 + $0x16c] sm:$0xf]
    %v111 = vld [vmem:[%s1 + $0x170] sm:$0xf]
    %v112 = vld [vmem:[%s1 + $0x174] sm:$0xf]
    %v113 = vld [vmem:[%s1 + $0x178] sm:$0xf]
    %v114 = vld [vmem:[%s1 + $0x17c] sm:$0xf]
    %v115 = vld [vmem:[%s1 + $0x180] sm:$0xf]
    %v116 = vld [vmem:[%s1 + $0x184] sm:$0xf]
    %v117 = vld [vmem:[%s1 + $0x188] sm:$0xf]
    %v118 = vld [vmem:[%s1 + $0x18c] sm:$0xf]
    %v119 = vld [vmem:[%s1 + $0x190] sm:$0xf]
    %v120 = vld [vmem:[%s1 + $0x194] sm:$0xf]
    %v121 = vld [vmem:[%s1 + $0x198] sm:$0xf]
    %v122 = vld [vmem:[%s1 + $0x19c] sm:$0xf]
    %v123 = vld [vmem:[%s1 + $0x1a0] sm:$0xf]
    %v124 = vld [vmem:[%s1 + $0x1a4] sm:$0xf]
    %v125 = vld [vmem:[%s1 + $0x1a8] sm:$0xf]
    %v126 = vld [vmem:[%s1 + $0x1ac] sm:$0xf]
    %v127 = vld [vmem:[%s1 + $0x1b0] sm:$0xf]
    %v128 = vld [vmem:[%s1 + $0x1b4] sm:$0xf]
    %v129 = vld [vmem:[%s1 + $0x1b8] sm:$0xf]
    %v130 = vld [vmem:[%s1 + $0x1bc] sm:$0xf]
    %v131 = vld [vmem:[%s1 + $0x1c0] sm:$0xf]
    %v132 = vld [vmem:[%s1 + $0x1c4] sm:$0xf]
    %v133 = vld [vmem:[%s1 + $0x1c8] sm:$0xf]
    %v134 = vld [vmem:[%s1 + $0x1cc] sm:$0xf]
    %v135 = vld [vmem:[%s1 + $0x1d0] sm:$0xf]
    %v136 = vld [vmem:[%s1 + $0x1d4] sm:$0xf]
    %v137 = vld [vmem:[%s1 + $0x1d8] sm:$0xf]
    %v138 = vld [vmem:[%s1 + $0x1dc] sm:$0xf]
    %v139 = vld [vmem:[%s1 + $0x1e0] sm:$0xf]
    %v140 = vld [vmem:[%s1 + $0x1e4] sm:$0xf]
    %v141 = vld [vmem:[%s1 + $0x1e8] sm:$0xf]
    %v142 = vld [vmem:[%s1 + $0x1ec] sm:$0xf]
    %v143 = vld [vmem:[%s1 + $0x1f0] sm:$0xf]
    %v144 = vld [vmem:[%s1 + $0x1f4] sm:$0xf]
    %v145 = vld [vmem:[%s1 + $0x1f8] sm:$0xf]
    %v146 = vld [vmem:[%s1 + $0x1fc] sm:$0xf]
    %v147 = vld [vmem:[%s1 + $0x200] sm:$0xf]
    %v148 = vld [vmem:[%s1 + $0x204] sm:$0xf]
    %v149 = vld [vmem:[%s1 + $0x208] sm:$0xf]
    %v150 = vld [vmem:[%s1 + $0x20c] sm:$0xf]
    %v151 = vld [vmem:[%s1 + $0x210] sm:$0xf]
    %v152 = vld [vmem:[%s1 + $0x214] sm:$0xf]
    %v153 = vld [vmem:[%s1 + $0x218] sm:$0xf]
    %v154 = vld [vmem:[%s1 + $0x21c] sm:$0xf]
    %v155 = vld [vmem:[%s1 + $0x220] sm:$0xf]
    %v156 = vld [vmem:[%s1 + $0x224] sm:$0xf]
    %v157 = vld [vmem:[%s1 + $0x228] sm:$0xf]
    %v158 = vld [vmem:[%s1 + $0x22c] sm:$0xf]
    %v159 = vld [vmem:[%s1 + $0x230] sm:$0xf]
    %v160 = vld [vmem:[%s1 + $0x234] sm:$0xf]
    %v161 = vld [vmem:[%s1 + $0x238] sm:$0xf]
    %v162 = vld [vmem:[%s1 + $0x23c] sm:$0xf]
    %v163 = vld [vmem:[%s1 + $0x240] sm:$0xf]
    %v164 = vld [vmem:[%s1 + $0x244] sm:$0xf]
    %v165 = vld [vmem:[%s1 + $0x248] sm:$0xf]
    %v166 = vld [vmem:[%s1 + $0x24c] sm:$0xf]
    %v167 = vld [vmem:[%s1 + $0x250] sm:$0xf]
    %v168 = vld [vmem:[%s1 + $0x254] sm:$0xf]
    %v169 = vld [vmem:[%s1 + $0x258] sm:$0xf]
    %v170 = vld [vmem:[%s1 + $0x25c] sm:$0xf]
    %v171 = vld [vmem:[%s1 + $0x260] sm:$0xf]
    %v172 = vld [vmem:[%s1 + $0x264] sm:$0xf]
    %v173 = vld [vmem:[%s1 + $0x268] sm:$0xf]
    %v174 = vld [vmem:[%s1 + $0x26c] sm:$0xf]
    %v175 = vld [vmem:[%s1 + $0x270] sm:$0xf]
    %v176 = vld [vmem:[%s1 + $0x274] sm:$0xf]
    %v177 = vld [vmem:[%s1 + $0x278] sm:$0xf]
    %v178 = vld [vmem:[%s1 + $0x27c] sm:$0xf]
    %v179 = vld [vmem:[%s1 + $0x280] sm:$0xf]
    %v180 = vld [vmem:[%s1 + $0x284] sm:$0xf]
    %v181 = vld [vmem:[%s1 + $0x288] sm:$0xf]
    %v182 = vld [vmem:[%s1 + $0x28c] sm:$0xf]
    %v183 = vld [vmem:[%s1 + $0x290] sm:$0xf]
    %v184 = vld [vmem:[%s1 + $0x294] sm:$0xf]
    %v185 = vld [vmem:[%s1 + $0x298] sm:$0xf]
    %v186 = vld [vmem:[%s1 + $0x29c] sm:$0xf]
    %v187 = vld [vmem:[%s1 + $0x2a0] sm:$0xf]
    %v188 = vld [vmem:[%s1 + $0x2a4] sm:$0xf]
    %v189 = vld [vmem:[%s1 + $0x2a8] sm:$0xf]
    %v190 = vld [vmem:[%s1 + $0x2ac] sm:$0xf]
    %v191 = vld [vmem:[%s1 + $0x2b0] sm:$0xf]
    %v192 = vld [vmem:[%s1 + $0x2b4] sm:$0xf]
    %v193 = vld [vmem:[%s1 + $0x2b8] sm:$0xf]
    %v194 = vld [vmem:[%s1 + $0x2bc] sm:$0xf]
    %v195 = vld [vmem:[%s1 + $0x2c0] sm:$0xf]
    %v196 = vld [vmem:[%s1 + $0x2c4] sm:$0xf]
    %v197 = vld [vmem:[%s1 + $0x2c8] sm:$0xf]
    %v198 = vld [vmem:[%s1 + $0x2cc] sm:$0xf]
    %v199 = vld [vmem:[%s1 + $0x2d0] sm:$0xf]
    %v200 = vld [vmem:[%s1 + $0x2d4] sm:$0xf]
    %v201 = vld [vmem:[%s1 + $0x2d8] sm:$0xf]
    %v202 = vld [vmem:[%s1 + $0x2dc] sm:$0xf]
    %v203 = vld [vmem:[%s1 + $0x2e0] sm:$0xf]
    %v204 = vld [vmem:[%s1 + $0x2e4] sm:$0xf]
    %v205 = vld [vmem:[%s1 + $0x2e8] sm:$0xf]
    %v206 = vld [vmem:[%s1 + $0x2ec] sm:$0xf]
    %v207 = vld [vmem:[%s1 + $0x2f0] sm:$0xf]
    %v208 = vld [vmem:[%s1 + $0x2f4] sm:$0xf]
    %v209 = vld [vmem:[%s1 + $0x2f8] sm:$0xf]
    %v210 = vld [vmem:[%s1 + $0x2fc] sm:$0xf]
    %v211 = vld [vmem:[%s1 + $0x300] sm:$0xf]
    %v212 = vld [vmem:[%s1 + $0x304] sm:$0xf]
    %v213 = vld [vmem:[%s1 + $0x308] sm:$0xf]
    %v214 = vld [vmem:[%s1 + $0x30c] sm:$0xf]
    %v215 = vld [vmem:[%s1 + $0x310] sm:$0xf]
    %v216 = vld [vmem:[%s1 + $0x314] sm:$0xf]
    %v217 = vld [vmem:[%s1 + $0x318] sm:$0xf]
    %v218 = vld [vmem:[%s1 + $0x31c] sm:$0xf]
    %v219 = vld [vmem:[%s1 + $0x320] sm:$0xf]
    %v220 = vld [vmem:[%s1 + $0x324] sm:$0xf]
    %v221 = vld [vmem:[%s1 + $0x328] sm:$0xf]
    %v222 = vld [vmem:[%s1 + $0x32c] sm:$0xf]
    %v223 = vld [vmem:[%s1 + $0x330] sm:$0xf]
    %v224 = vld [vmem:[%s1 + $0x334] sm:$0xf]
    %v225 = vld [vmem:[%s1 + $0x338] sm:$0xf]
    %v226 = vld [vmem:[%s1 + $0x33c] sm:$0xf]
    %v227 = vld [vmem:[%s1 + $0x340] sm:$0xf]
    %v228 = vld [vmem:[%s1 + $0x344] sm:$0xf]
    %v229 = vld [vmem:[%s1 + $0x348] sm:$0xf]
    %v230 = vld [vmem:[%s1 + $0x34c] sm:$0xf]
    %v231 = vld [vmem:[%s1 + $0x350] sm:$0xf]
    %v232 = vld [vmem:[%s1 + $0x354] sm:$0xf]
    %v233 = vld [vmem:[%s1 + $0x358] sm:$0xf]
    %v234 = vld [vmem:[%s1 + $0x35c] sm:$0xf]
    %v235 = vld [vmem:[%s1 + $0x360] sm:$0xf]
    %v236 = vld [vmem:[%s1 + $0x364] sm:$0xf]
    %v237 = vld [vmem:[%s1 + $0x368] sm:$0xf]
    %v238 = vld [vmem:[%s1 + $0x36c] sm:$0xf]
    %v239 = vld [vmem:[%s1 + $0x370] sm:$0xf]
    %v240 = vld [vmem:[%s1 + $0x374] sm:$0xf]
    %v241 = vld [vmem:[%s1 + $0x378] sm:$0xf]
    %v242 = vld [vmem:[%s1 + $0x37c] sm:$0xf]
    %v243 = vld [vmem:[%s1 + $0x380] sm:$0xf]
    %v244 = vld [vmem:[%s1 + $0x384] sm:$0xf]
    %v245 = vld [vmem:[%s1 + $0x388] sm:$0xf]
    %v246 = vld [vmem:[%s1 + $0x38c] sm:$0xf]
    %v247 = vld [vmem:[%s1 + $0x390] sm:$0xf]
    %v248 = vld [vmem:[%s1 + $0x394] sm:$0xf]
    %v249 = vld [vmem:[%s1 + $0x398] sm:$0xf]
    %v250 = vld [vmem:[%s1 + $0x39c] sm:$0xf]
    %v251 = vld [vmem:[%s1 + $0x3a0] sm:$0xf]
    %v252 = vld [vmem:[%s1 + $0x3a4] sm:$0xf]
    %v253 = vld [vmem:[%s1 + $0x3a8] sm:$0xf]
    %v254 = vld [vmem:[%s1 + $0x3ac] sm:$0xf]
    %v255 = vld [vmem:[%s1 + $0x3b0] sm:$0xf]
    %v256 = vld [vmem:[%s1 + $0x3b4] sm:$0xf]
    %v257 = vld [vmem:[%s1 + $0x3b8] sm:$0xf]
    %v258 = vld [vmem:[%s1 + $0x3bc] sm:$0xf]
    %v259 = vld [vmem:[%s1 + $0x3c0] sm:$0xf]
    %v260 = vld [vmem:[%s1 + $0x3c4] sm:$0xf]
    %v261 = vld [vmem:[%s1 + $0x3c8] sm:$0xf]
    %v262 = vld [vmem:[%s1 + $0x3cc] sm:$0xf]
    %v263 = vld [vmem:[%s1 + $0x3d0] sm:$0xf]
    %v264 = vld [vmem:[%s1 + $0x3d4] sm:$0xf]
    %v265 = vld [vmem:[%s1 + $0x3d8] sm:$0xf]
    %v266 = vld [vmem:[%s1 + $0x3dc] sm:$0xf]
    %v267 = vld [vmem:[%s1 + $0x3e0] sm:$0xf]
    %v268 = vld [vmem:[%s1 + $0x3e4] sm:$0xf]
    %v269 = vld [vmem:[%s1 + $0x3e8] sm:$0xf]
    %v270 = vld [vmem:[%s1 + $0x3ec] sm:$0xf]
    %v271 = vld [vmem:[%s1 + $0x3f0] sm:$0xf]
    %v272 = vld [vmem:[%s1 + $0x3f4] sm:$0xf]
    %v273 = vld [vmem:[%s1 + $0x3f8] sm:$0xf]
    %v274 = vld [vmem:[%s1 + $0x3fc] sm:$0xf]
    %v275 = vld [vmem:[%s1 + $0x400] sm:$0xf]
    %v276 = vld [vmem:[%s1 + $0x404] sm:$0xf]
    %v277 = vld [vmem:[%s1 + $0x408] sm:$0xf]
    %v278 = vld [vmem:[%s1 + $0x40c] sm:$0xf]
    %v279 = vld [vmem:[%s1 + $0x410] sm:$0xf]
    %v280 = vld [vmem:[%s1 + $0x414] sm:$0xf]
    %v281 = vld [vmem:[%s1 + $0x418] sm:$0xf]
    %v282 = vld [vmem:[%s1 + $0x41c] sm:$0xf]
    %v283 = vld [vmem:[%s1 + $0x420] sm:$0xf]
    %v284 = vld [vmem:[%s1 + $0x424] sm:$0xf]
    %v285 = vld [vmem:[%s1 + $0x428] sm:$0xf]
    %v286 = vld [vmem:[%s1 + $0x42c] sm:$0xf]
    %v287 = vld [vmem:[%s1 + $0x430] sm:$0xf]
    %v288 = vld [vmem:[%s1 + $0x434] sm:$0xf]
    %v289 = vld [vmem:[%s1 + $0x438] sm:$0xf]
    %v290 = vld [vmem:[%s1 + $0x43c] sm:$0xf]
    %v291 = vld [vmem:[%s1 + $0x440] sm:$0xf]
    %v292 = vld [vmem:[%s1 + $0x444] sm:$0xf]
    %v293 = vld [vmem:[%s1 + $0x448] sm:$0xf]
    %v294 = vld [vmem:[%s1 + $0x44c] sm:$0xf]
    %v295 = vld [vmem:[%s1 + $0x450] sm:$0xf]
    %v296 = vld [vmem:[%s1 + $0x454] sm:$0xf]
    %v297 = vld [vmem:[%s1 + $0x458] sm:$0xf]
    %v298 = vld [vmem:[%s1 + $0x45c] sm:$0xf]
    %v299 = vld [vmem:[%s1 + $0x460] sm:$0xf]
    %v300 = vld [vmem:[%s1 + $0x464] sm:$0xf]
    %v301 = vld [vmem:[%s1 + $0x468] sm:$0xf]
    %v302 = vld [vmem:[%s1 + $0x46c] sm:$0xf]
    %v303 = vld [vmem:[%s1 + $0x470] sm:$0xf]
    %v304 = vld [vmem:[%s1 + $0x474] sm:$0xf]
    %v305 = vld [vmem:[%s1 + $0x478] sm:$0xf]
    %v306 = vld [vmem:[%s1 + $0x47c] sm:$0xf]
    %v307 = vld [vmem:[%s1 + $0x480] sm:$0xf]
    %v308 = vld [vmem:[%s1 + $0x484] sm:$0xf]
    %v309 = vld [vmem:[%s1 + $0x488] sm:$0xf]
    %v310 = vld [vmem:[%s1 + $0x48c] sm:$0xf]
    %v311 = vld [vmem:[%s1 + $0x490] sm:$0xf]
    %v312 = vld [vmem:[%s1 + $0x494] sm:$0xf]
    %v313 = vld [vmem:[%s1 + $0x498] sm:$0xf]
    %v314 = vld [vmem:[%s1 + $0x49c] sm:$0xf]
    %v315 = vld [vmem:[%s1 + $0x4a0] sm:$0xf]
    %v316 = vld [vmem:[%s1 + $0x4a4] sm:$0xf]
    %v317 = vld [vmem:[%s1 + $0x4a8] sm:$0xf]
    %v318 = vld [vmem:[%s1 + $0x4ac] sm:$0xf]
    %v319 = vld [vmem:[%s1 + $0x4b0] sm:$0xf]
    %v320 = vld [vmem:[%s1 + $0x4b4] sm:$0xf]
    %v321 = vld [vmem:[%s1 + $0x4b8] sm:$0xf]
    %v322 = vld [vmem:[%s1 + $0x4bc] sm:$0xf]
    %v323 = vld [vmem:[%s1 + $0x4c0] sm:$0xf]
    %v324 = vld [vmem:[%s1 + $0x4c4] sm:$0xf]
    %v325 = vld [vmem:[%s1 + $0x4c8] sm:$0xf]
    %v326 = vld [vmem:[%s1 + $0x4cc] sm:$0xf]
    %v327 = vld [vmem:[%s1 + $0x4d0] sm:$0xf]
    %v328 = vld [vmem:[%s1 + $0x4d4] sm:$0xf]
    %v329 = vld [vmem:[%s1 + $0x4d8] sm:$0xf]
    %v330 = vld [vmem:[%s1 + $0x4dc] sm:$0xf]
    %v331 = vld [vmem:[%s1 + $0x4e0] sm:$0xf]
    %v332 = vld [vmem:[%s1 + $0x4e4] sm:$0xf]
    %v333 = vld [vmem:[%s1 + $0x4e8] sm:$0xf]
    %v334 = vld [vmem:[%s1 + $0x4ec] sm:$0xf]
    %v335 = vld [vmem:[%s1 + $0x4f0] sm:$0xf]
    %v336 = vld [vmem:[%s1 + $0x4f4] sm:$0xf]
    %v337 = vld [vmem:[%s1 + $0x4f8] sm:$0xf]
    %v338 = vld [vmem:[%s1 + $0x4fc] sm:$0xf]
    %v339 = vld [vmem:[%s1 + $0x500] sm:$0xf]
    %v340 = vld [vmem:[%s1 + $0x504] sm:$0xf]
    %v341 = vld [vmem:[%s1 + $0x508] sm:$0xf]
    %v342 = vld [vmem:[%s1 + $0x50c] sm:$0xf]
    %v343 = vld [vmem:[%s1 + $0x510] sm:$0xf]
    %v344 = vld [vmem:[%s1 + $0x514] sm:$0xf]
    %v345 = vld [vmem:[%s1 + $0x518] sm:$0xf]
    %v346 = vld [vmem:[%s1 + $0x51c] sm:$0xf]
    %v347 = vld [vmem:[%s1 + $0x520] sm:$0xf]
    %v348 = vld [vmem:[%s1 + $0x524] sm:$0xf]
    %v349 = vld [vmem:[%s1 + $0x528] sm:$0xf]
    %v350 = vld [vmem:[%s1 + $0x52c] sm:$0xf]
    %v351 = vld [vmem:[%s1 + $0x530] sm:$0xf]
    %v352 = vld [vmem:[%s1 + $0x534] sm:$0xf]
    %v353 = vld [vmem:[%s1 + $0x538] sm:$0xf]
    %v354 = vld [vmem:[%s1 + $0x53c] sm:$0xf]
    %v355 = vld [vmem:[%s1 + $0x540] sm:$0xf]
    %v356 = vld [vmem:[%s1 + $0x544] sm:$0xf]
    %v357 = vld [vmem:[%s1 + $0x548] sm:$0xf]
    %v358 = vld [vmem:[%s1 + $0x54c] sm:$0xf]
    %v359 = vld [vmem:[%s1 + $0x550] sm:$0xf]
    %v360 = vld [vmem:[%s1 + $0x554] sm:$0xf]
    %v361 = vld [vmem:[%s1 + $0x558] sm:$0xf]
    %v362 = vld [vmem:[%s1 + $0x55c] sm:$0xf]
    %v363 = vld [vmem:[%s1 + $0x560] sm:$0xf]
    %v364 = vld [vmem:[%s1 + $0x564] sm:$0xf]
    %v365 = vld [vmem:[%s1 + $0x568] sm:$0xf]
    %v366 = vld [vmem:[%s1 + $0x56c] sm:$0xf]
    %v367 = vld [vmem:[%s1 + $0x570] sm:$0xf]
    %v368 = vld [vmem:[%s1 + $0x574] sm:$0xf]
    %v369 = vld [vmem:[%s1 + $0x578] sm:$0xf]
    %v370 = vld [vmem:[%s1 + $0x57c] sm:$0xf]
    %v371 = vld [vmem:[%s1 + $0x580] sm:$0xf]
    %v372 = vld [vmem:[%s1 + $0x584] sm:$0xf]
    %v373 = vld [vmem:[%s1 + $0x588] sm:$0xf]
    %v374 = vld [vmem:[%s1 + $0x58c] sm:$0xf]
    %v375 = vld [vmem:[%s1 + $0x590] sm:$0xf]
    %v376 = vld [vmem:[%s1 + $0x594] sm:$0xf]
    %v377 = vld [vmem:[%s1 + $0x598] sm:$0xf]
    %v378 = vld [vmem:[%s1 + $0x59c] sm:$0xf]
    %v379 = vld [vmem:[%s1 + $0x5a0] sm:$0xf]
    %v380 = vld [vmem:[%s1 + $0x5a4] sm:$0xf]
    %v381 = vld [vmem:[%s1 + $0x5a8] sm:$0xf]
    %v382 = vld [vmem:[%s1 + $0x5ac] sm:$0xf]
    %v383 = vld [vmem:[%s1 + $0x5b0] sm:$0xf]
    %v384 = vld [vmem:[%s1 + $0x5b4] sm:$0xf]
    %v385 = vld [vmem:[%s1 + $0x5b8] sm:$0xf]
    %v386 = vld [vmem:[%s1 + $0x5bc] sm:$0xf]
    %v387 = vld [vmem:[%s1 + $0x5c0] sm:$0xf]
    %v388 = vld [vmem:[%s1 + $0x5c4] sm:$0xf]
    %v389 = vld [vmem:[%s1 + $0x5c8] sm:$0xf]
    %v390 = vld [vmem:[%s1 + $0x5cc] sm:$0xf]
    %v391 = vld [vmem:[%s1 + $0x5d0] sm:$0xf]
    %v392 = vld [vmem:[%s1 + $0x5d4] sm:$0xf]
    %v393 = vld [vmem:[%s1 + $0x5d8] sm:$0xf]
    %v394 = vld [vmem:[%s1 + $0x5dc] sm:$0xf]
    %v395 = vld [vmem:[%s1 + $0x5e0] sm:$0xf]
    %v396 = vld [vmem:[%s1 + $0x5e4] sm:$0xf]
    %v397 = vld [vmem:[%s1 + $0x5e8] sm:$0xf]
    %v398 = vld [vmem:[%s1 + $0x5ec] sm:$0xf]
    %v399 = vld [vmem:[%s1 + $0x5f0] sm:$0xf]
    %v400 = vld [vmem:[%s1 + $0x5f4] sm:$0xf]
    %v401 = vld [vmem:[%s1 + $0x5f8] sm:$0xf]
    %v402 = vld [vmem:[%s1 + $0x5fc] sm:$0xf]
    %v403 = vld [vmem:[%s1 + $0x600] sm:$0xf]
    %v404 = vld [vmem:[%s1 + $0x604] sm:$0xf]
    %v405 = vld [vmem:[%s1 + $0x608] sm:$0xf]
    %v406 = vld [vmem:[%s1 + $0x60c] sm:$0xf]
    %v407 = vld [vmem:[%s1 + $0x610] sm:$0xf]
    %v408 = vld [vmem:[%s1 + $0x614] sm:$0xf]
    %v409 = vld [vmem:[%s1 + $0x618] sm:$0xf]
    %v410 = vld [vmem:[%s1 + $0x61c] sm:$0xf]
    %v411 = vld [vmem:[%s1 + $0x620] sm:$0xf]
    %v412 = vld [vmem:[%s1 + $0x624] sm:$0xf]
    %v413 = vld [vmem:[%s1 + $0x628] sm:$0xf]
    %v414 = vld [vmem:[%s1 + $0x62c] sm:$0xf]
    %v415 = vld [vmem:[%s1 + $0x630] sm:$0xf]
    %v416 = vld [vmem:[%s1 + $0x634] sm:$0xf]
    %v417 = vld [vmem:[%s1 + $0x638] sm:$0xf]
    %v418 = vld [vmem:[%s1 + $0x63c] sm:$0xf]
    %v419 = vld [vmem:[%s1 + $0x640] sm:$0xf]
    %v420 = vld [vmem:[%s1 + $0x644] sm:$0xf]
    %v421 = vld [vmem:[%s1 + $0x648] sm:$0xf]
    %v422 = vld [vmem:[%s1 + $0x64c] sm:$0xf]
    %v423 = vld [vmem:[%s1 + $0x650] sm:$0xf]
    %v424 = vld [vmem:[%s1 + $0x654] sm:$0xf]
    %v425 = vld [vmem:[%s1 + $0x658] sm:$0xf]
    %v426 = vld [vmem:[%s1 + $0x65c] sm:$0xf]
    %v427 = vld [vmem:[%s1 + $0x660] sm:$0xf]
    %v428 = vld [vmem:[%s1 + $0x664] sm:$0xf]
    %v429 = vld [vmem:[%s1 + $0x668] sm:$0xf]
    %v430 = vld [vmem:[%s1 + $0x66c] sm:$0xf]
    %v431 = vld [vmem:[%s1 + $0x670] sm:$0xf]
    %v432 = vld [vmem:[%s1 + $0x674] sm:$0xf]
    %v433 = vld [vmem:[%s1 + $0x678] sm:$0xf]
    %v434 = vld [vmem:[%s1 + $0x67c] sm:$0xf]
    %v435 = vld [vmem:[%s1 + $0x680] sm:$0xf]
    %v436 = vld [vmem:[%s1 + $0x684] sm:$0xf]
    %v437 = vld [vmem:[%s1 + $0x688] sm:$0xf]
    %v438 = vld [vmem:[%s1 + $0x68c] sm:$0xf]
    %v439 = vld [vmem:[%s1 + $0x690] sm:$0xf]
    %v440 = vld [vmem:[%s1 + $0x694] sm:$0xf]
    %v441 = vld [vmem:[%s1 + $0x698] sm:$0xf]
    %v442 = vld [vmem:[%s1 + $0x69c] sm:$0xf]
    %v443 = vld [vmem:[%s1 + $0x6a0] sm:$0xf]
    %v444 = vld [vmem:[%s1 + $0x6a4] sm:$0xf]
    %v445 = vld [vmem:[%s1 + $0x6a8] sm:$0xf]
    %v446 = vld [vmem:[%s1 + $0x6ac] sm:$0xf]
    %v447 = vld [vmem:[%s1 + $0x6b0] sm:$0xf]
    %v448 = vld [vmem:[%s1 + $0x6b4] sm:$0xf]
    %v449 = vld [vmem:[%s1 + $0x6b8] sm:$0xf]
    %v450 = vld [vmem:[%s1 + $0x6bc] sm:$0xf]
    %v451 = vld [vmem:[%s1 + $0x6c0] sm:$0xf]
    %v452 = vld [vmem:[%s1 + $0x6c4] sm:$0xf]
    %v453 = vld [vmem:[%s1 + $0x6c8] sm:$0xf]
    %v454 = vld [vmem:[%s1 + $0x6cc] sm:$0xf]
    %v455 = vld [vmem:[%s1 + $0x6d0] sm:$0xf]
    %v456 = vld [vmem:[%s1 + $0x6d4] sm:$0xf]
    %v457 = vld [vmem:[%s1 + $0x6d8] sm:$0xf]
    %v458 = vld [vmem:[%s1 + $0x6dc] sm:$0xf]
    %v459 = vld [vmem:[%s1 + $0x6e0] sm:$0xf]
    %v460 = vld [vmem:[%s1 + $0x6e4] sm:$0xf]
    %v461 = vld [vmem:[%s1 + $0x6e8] sm:$0xf]
    %v462 = vld [vmem:[%s1 + $0x6ec] sm:$0xf]
    %v463 = vld [vmem:[%s1 + $0x6f0] sm:$0xf]
    %v464 = vld [vmem:[%s1 + $0x6f4] sm:$0xf]
    %v465 = vld [vmem:[%s1 + $0x6f8] sm:$0xf]
    %v466 = vld [vmem:[%s1 + $0x6fc] sm:$0xf]
    %v467 = vld [vmem:[%s1 + $0x700] sm:$0xf]
    %v468 = vld [vmem:[%s1 + $0x704] sm:$0xf]
    %v469 = vld [vmem:[%s1 + $0x708] sm:$0xf]
    %v470 = vld [vmem:[%s1 + $0x70c] sm:$0xf]
    %v471 = vld [vmem:[%s1 + $0x710] sm:$0xf]
    %v472 = vld [vmem:[%s1 + $0x714] sm:$0xf]
    %v473 = vld [vmem:[%s1 + $0x718] sm:$0xf]
    %v474 = vld [vmem:[%s1 + $0x71c] sm:$0xf]
    %v475 = vld [vmem:[%s1 + $0x720] sm:$0xf]
    %v476 = vld [vmem:[%s1 + $0x724] sm:$0xf]
    %v477 = vld [vmem:[%s1 + $0x728] sm:$0xf]
    %v478 = vld [vmem:[%s1 + $0x72c] sm:$0xf]
    %v479 = vld [vmem:[%s1 + $0x730] sm:$0xf]
    %v480 = vld [vmem:[%s1 + $0x734] sm:$0xf]
    %v481 = vld [vmem:[%s1 + $0x738] sm:$0xf]
    %v482 = vld [vmem:[%s1 + $0x73c] sm:$0xf]
    %v483 = vld [vmem:[%s1 + $0x740] sm:$0xf]
    %v484 = vld [vmem:[%s1 + $0x744] sm:$0xf]
    %v485 = vld [vmem:[%s1 + $0x748] sm:$0xf]
    %v486 = vld [vmem:[%s1 + $0x74c] sm:$0xf]
    %v487 = vld [vmem:[%s1 + $0x750] sm:$0xf]
    %v488 = vld [vmem:[%s1 + $0x754] sm:$0xf]
    %v489 = vld [vmem:[%s1 + $0x758] sm:$0xf]
    %v490 = vld [vmem:[%s1 + $0x75c] sm:$0xf]
    %v491 = vld [vmem:[%s1 + $0x760] sm:$0xf]
    %v492 = vld [vmem:[%s1 + $0x764] sm:$0xf]
    %v493 = vld [vmem:[%s1 + $0x768] sm:$0xf]
    %v494 = vld [vmem:[%s1 + $0x76c] sm:$0xf]
    %v495 = vld [vmem:[%s1 + $0x770] sm:$0xf]
    %v496 = vld [vmem:[%s1 + $0x774] sm:$0xf]
    %v497 = vld [vmem:[%s1 + $0x778] sm:$0xf]
    %v498 = vld [vmem:[%s1 + $0x77c] sm:$0xf]
    %v499 = vld [vmem:[%s1 + $0x780] sm:$0xf]
    %v500 = vld [vmem:[%s1 + $0x784] sm:$0xf]
    %v501 = vld [vmem:[%s1 + $0x788] sm:$0xf]
    %v502 = vld [vmem:[%s1 + $0x78c] sm:$0xf]
    %v503 = vld [vmem:[%s1 + $0x790] sm:$0xf]
    %v504 = vld [vmem:[%s1 + $0x794] sm:$0xf]
    %v505 = vld [vmem:[%s1 + $0x798] sm:$0xf]
    %v506 = vld [vmem:[%s1 + $0x79c] sm:$0xf]
    %v507 = vld [vmem:[%s1 + $0x7a0] sm:$0xf]
    %v508 = vld [vmem:[%s1 + $0x7a4] sm:$0xf]
    %v509 = vld [vmem:[%s1 + $0x7a8] sm:$0xf]
    %v510 = vld [vmem:[%s1 + $0x7ac] sm:$0xf]
    %v511 = vld [vmem:[%s1 + $0x7b0] sm:$0xf]
    %v512 = vld [vmem:[%s1 + $0x7b4] sm:$0xf]
    %v513 = vld [vmem:[%s1 + $0x7b8] sm:$0xf]
    %v514 = vld [vmem:[%s1 + $0x7bc] sm:$0xf]
    %v515 = vld [vmem:[%s1 + $0x7c0] sm:$0xf]
    %v516 = vld [vmem:[%s1 + $0x7c4] sm:$0xf]
    %v517 = vld [vmem:[%s1 + $0x7c8] sm:$0xf]
    %v518 = vld [vmem:[%s1 + $0x7cc] sm:$0xf]
    %v519 = vld [vmem:[%s1 + $0x7d0] sm:$0xf]
    %v520 = vld [vmem:[%s1 + $0x7d4] sm:$0xf]
    %v521 = vld [vmem:[%s1 + $0x7d8] sm:$0xf]
    %v522 = vld [vmem:[%s1 + $0x7dc] sm:$0xf]
    %v523 = vld [vmem:[%s1 + $0x7e0] sm:$0xf]
    %v524 = vld [vmem:[%s1 + $0x7e4] sm:$0xf]
    %v525 = vld [vmem:[%s1 + $0x7e8] sm:$0xf]
    %v526 = vld [vmem:[%s1 + $0x7ec] sm:$0xf]
    %v527 = vld [vmem:[%s1 + $0x7f0] sm:$0xf]
    %v528 = vld [vmem:[%s1 + $0x7f4] sm:$0xf]
    %v529 = vld [vmem:[%s1 + $0x7f8] sm:$0xf]
    %v530 = vld [vmem:[%s1 + $0x7fc] sm:$0xf]
    %v531 = vld [vmem:[%s2] sm:$0x1]
    %v533 = vperm.slane %v531, 0
    %536 = vst [vmem:[#allocation1] ss:$9 sm:$0xff] %v15
    %v537 = vld [vmem:[#allocation1] sm:$0xff]
    %v538 = vld [vmem:[#allocation1 + $0x9] sm:$0xff]
    %v539 = vld [vmem:[#allocation1 + $0x12] sm:$0xff]
    %v540 = vld [vmem:[#allocation1 + $0x1b] sm:$0xff]
    %v541 = vld [vmem:[#allocation1 + $0x24] sm:$0xff]
    %v542 = vld [vmem:[#allocation1 + $0x2d] sm:$0xff]
    %v543 = vld [vmem:[#allocation1 + $0x36] sm:$0xff]
    %v544 = vld [vmem:[#allocation1 + $0x3f] sm:$0xff]
    %546 = vst [vmem:[#allocation1] ss:$9 sm:$0xff] %v16
    %v547 = vld [vmem:[#allocation1] sm:$0xff]
    %v548 = vld [vmem:[#allocation1 + $0x9] sm:$0xff]
    %v549 = vld [vmem:[#allocation1 + $0x12] sm:$0xff]
    %v550 = vld [vmem:[#allocation1 + $0x1b] sm:$0xff]
    %v551 = vld [vmem:[#allocation1 + $0x24] sm:$0xff]
    %v552 = vld [vmem:[#allocation1 + $0x2d] sm:$0xff]
    %v553 = vld [vmem:[#allocation1 + $0x36] sm:$0xff]
    %v554 = vld [vmem:[#allocation1 + $0x3f] sm:$0xff]
    %556 = vst [vmem:[#allocation1] ss:$9 sm:$0xff] %v17
    %v557 = vld [vmem:[#allocation1] sm:$0xff]
    %v558 = vld [vmem:[#allocation1 + $0x9] sm:$0xff]
    %v559 = vld [vmem:[#allocation1 + $0x12] sm:$0xff]
    %v560 = vld [vmem:[#allocation1 + $0x1b] sm:$0xff]
    %v561 = vld [vmem:[#allocation1 + $0x24] sm:$0xff]
    %v562 = vld [vmem:[#allocation1 + $0x2d] sm:$0xff]
    %v563 = vld [vmem:[#allocation1 + $0x36] sm:$0xff]
    %v564 = vld [vmem:[#allocation1 + $0x3f] sm:$0xff]
    %566 = vst [vmem:[#allocation1] ss:$9 sm:$0xff] %v18
    %v567 = vld [vmem:[#allocation1] sm:$0xff]
    %v568 = vld [vmem:[#allocation1 + $0x9] sm:$0xff]
    %v569 = vld [vmem:[#allocation1 + $0x12] sm:$0xff]
    %v570 = vld [vmem:[#allocation1 + $0x1b] sm:$0xff]
    %v571 = vld [vmem:[#allocation1 + $0x24] sm:$0xff]
    %v572 = vld [vmem:[#allocation1 + $0x2d] sm:$0xff]
    %v573 = vld [vmem:[#allocation1 + $0x36] sm:$0xff]
    %v574 = vld [vmem:[#allocation1 + $0x3f] sm:$0xff]
    %v1119 = vunpack.c.l.b16 %v19
    %v1120 = vunpack.c.l.b16 %v20
    %v1121 = vunpack.c.l.b16 %v21
    %v1122 = vunpack.c.l.b16 %v22
    %v1123 = vunpack.c.l.b16 %v23
    %v1124 = vunpack.c.l.b16 %v24
    %v1125 = vunpack.c.l.b16 %v25
    %v1126 = vunpack.c.l.b16 %v26
    %v1127 = vunpack.c.l.b16 %v27
    %v1128 = vunpack.c.l.b16 %v28
    %v1129 = vunpack.c.l.b16 %v29
    %v1130 = vunpack.c.l.b16 %v30
    %v1131 = vunpack.c.l.b16 %v31
    %v1132 = vunpack.c.l.b16 %v32
    %v1133 = vunpack.c.l.b16 %v33
    %v1134 = vunpack.c.l.b16 %v34
    %v1135 = vunpack.c.l.b16 %v35
    %v1136 = vunpack.c.l.b16 %v36
    %v1137 = vunpack.c.l.b16 %v37
    %v1138 = vunpack.c.l.b16 %v38
    %v1139 = vunpack.c.l.b16 %v39
    %v1140 = vunpack.c.l.b16 %v40
    %v1141 = vunpack.c.l.b16 %v41
    %v1142 = vunpack.c.l.b16 %v42
    %v1143 = vunpack.c.l.b16 %v43
    %v1144 = vunpack.c.l.b16 %v44
    %v1145 = vunpack.c.l.b16 %v45
    %v1146 = vunpack.c.l.b16 %v46
    %v1147 = vunpack.c.l.b16 %v47
    %v1148 = vunpack.c.l.b16 %v48
    %v1149 = vunpack.c.l.b16 %v49
    %v1150 = vunpack.c.l.b16 %v50
    %v1151 = vunpack.c.l.b16 %v51
    %v1152 = vunpack.c.l.b16 %v52
    %v1153 = vunpack.c.l.b16 %v53
    %v1154 = vunpack.c.l.b16 %v54
    %v1155 = vunpack.c.l.b16 %v55
    %v1156 = vunpack.c.l.b16 %v56
    %v1157 = vunpack.c.l.b16 %v57
    %v1158 = vunpack.c.l.b16 %v58
    %v1159 = vunpack.c.l.b16 %v59
    %v1160 = vunpack.c.l.b16 %v60
    %v1161 = vunpack.c.l.b16 %v61
    %v1162 = vunpack.c.l.b16 %v62
    %v1163 = vunpack.c.l.b16 %v63
    %v1164 = vunpack.c.l.b16 %v64
    %v1165 = vunpack.c.l.b16 %v65
    %v1166 = vunpack.c.l.b16 %v66
    %v1167 = vunpack.c.l.b16 %v67
    %v1168 = vunpack.c.l.b16 %v68
    %v1169 = vunpack.c.l.b16 %v69
    %v1170 = vunpack.c.l.b16 %v70
    %v1171 = vunpack.c.l.b16 %v71
    %v1172 = vunpack.c.l.b16 %v72
    %v1173 = vunpack.c.l.b16 %v73
    %v1174 = vunpack.c.l.b16 %v74
    %v1175 = vunpack.c.l.b16 %v75
    %v1176 = vunpack.c.l.b16 %v76
    %v1177 = vunpack.c.l.b16 %v77
    %v1178 = vunpack.c.l.b16 %v78
    %v1179 = vunpack.c.l.b16 %v79
    %v1180 = vunpack.c.l.b16 %v80
    %v1181 = vunpack.c.l.b16 %v81
    %v1182 = vunpack.c.l.b16 %v82
    %v1183 = vunpack.c.l.b16 %v83
    %v1184 = vunpack.c.l.b16 %v84
    %v1185 = vunpack.c.l.b16 %v85
    %v1186 = vunpack.c.l.b16 %v86
    %v1187 = vunpack.c.l.b16 %v87
    %v1188 = vunpack.c.l.b16 %v88
    %v1189 = vunpack.c.l.b16 %v89
    %v1190 = vunpack.c.l.b16 %v90
    %v1191 = vunpack.c.l.b16 %v91
    %v1192 = vunpack.c.l.b16 %v92
    %v1193 = vunpack.c.l.b16 %v93
    %v1194 = vunpack.c.l.b16 %v94
    %v1195 = vunpack.c.l.b16 %v95
    %v1196 = vunpack.c.l.b16 %v96
    %v1197 = vunpack.c.l.b16 %v97
    %v1198 = vunpack.c.l.b16 %v98
    %v1199 = vunpack.c.l.b16 %v99
    %v1200 = vunpack.c.l.b16 %v100
    %v1201 = vunpack.c.l.b16 %v101
    %v1202 = vunpack.c.l.b16 %v102
    %v1203 = vunpack.c.l.b16 %v103
    %v1204 = vunpack.c.l.b16 %v104
    %v1205 = vunpack.c.l.b16 %v105
    %v1206 = vunpack.c.l.b16 %v106
    %v1207 = vunpack.c.l.b16 %v107
    %v1208 = vunpack.c.l.b16 %v108
    %v1209 = vunpack.c.l.b16 %v109
    %v1210 = vunpack.c.l.b16 %v110
    %v1211 = vunpack.c.l.b16 %v111
    %v1212 = vunpack.c.l.b16 %v112
    %v1213 = vunpack.c.l.b16 %v113
    %v1214 = vunpack.c.l.b16 %v114
    %v1215 = vunpack.c.l.b16 %v115
    %v1216 = vunpack.c.l.b16 %v116
    %v1217 = vunpack.c.l.b16 %v117
    %v1218 = vunpack.c.l.b16 %v118
    %v1219 = vunpack.c.l.b16 %v119
    %v1220 = vunpack.c.l.b16 %v120
    %v1221 = vunpack.c.l.b16 %v121
    %v1222 = vunpack.c.l.b16 %v122
    %v1223 = vunpack.c.l.b16 %v123
    %v1224 = vunpack.c.l.b16 %v124
    %v1225 = vunpack.c.l.b16 %v125
    %v1226 = vunpack.c.l.b16 %v126
    %v1227 = vunpack.c.l.b16 %v127
    %v1228 = vunpack.c.l.b16 %v128
    %v1229 = vunpack.c.l.b16 %v129
    %v1230 = vunpack.c.l.b16 %v130
    %v1231 = vunpack.c.l.b16 %v131
    %v1232 = vunpack.c.l.b16 %v132
    %v1233 = vunpack.c.l.b16 %v133
    %v1234 = vunpack.c.l.b16 %v134
    %v1235 = vunpack.c.l.b16 %v135
    %v1236 = vunpack.c.l.b16 %v136
    %v1237 = vunpack.c.l.b16 %v137
    %v1238 = vunpack.c.l.b16 %v138
    %v1239 = vunpack.c.l.b16 %v139
    %v1240 = vunpack.c.l.b16 %v140
    %v1241 = vunpack.c.l.b16 %v141
    %v1242 = vunpack.c.l.b16 %v142
    %v1243 = vunpack.c.l.b16 %v143
    %v1244 = vunpack.c.l.b16 %v144
    %v1245 = vunpack.c.l.b16 %v145
    %v1246 = vunpack.c.l.b16 %v146
    %v1247 = vunpack.c.l.b16 %v147
    %v1248 = vunpack.c.l.b16 %v148
    %v1249 = vunpack.c.l.b16 %v149
    %v1250 = vunpack.c.l.b16 %v150
    %v1251 = vunpack.c.l.b16 %v151
    %v1252 = vunpack.c.l.b16 %v152
    %v1253 = vunpack.c.l.b16 %v153
    %v1254 = vunpack.c.l.b16 %v154
    %v1255 = vunpack.c.l.b16 %v155
    %v1256 = vunpack.c.l.b16 %v156
    %v1257 = vunpack.c.l.b16 %v157
    %v1258 = vunpack.c.l.b16 %v158
    %v1259 = vunpack.c.l.b16 %v159
    %v1260 = vunpack.c.l.b16 %v160
    %v1261 = vunpack.c.l.b16 %v161
    %v1262 = vunpack.c.l.b16 %v162
    %v1263 = vunpack.c.l.b16 %v163
    %v1264 = vunpack.c.l.b16 %v164
    %v1265 = vunpack.c.l.b16 %v165
    %v1266 = vunpack.c.l.b16 %v166
    %v1267 = vunpack.c.l.b16 %v167
    %v1268 = vunpack.c.l.b16 %v168
    %v1269 = vunpack.c.l.b16 %v169
    %v1270 = vunpack.c.l.b16 %v170
    %v1271 = vunpack.c.l.b16 %v171
    %v1272 = vunpack.c.l.b16 %v172
    %v1273 = vunpack.c.l.b16 %v173
    %v1274 = vunpack.c.l.b16 %v174
    %v1275 = vunpack.c.l.b16 %v175
    %v1276 = vunpack.c.l.b16 %v176
    %v1277 = vunpack.c.l.b16 %v177
    %v1278 = vunpack.c.l.b16 %v178
    %v1279 = vunpack.c.l.b16 %v179
    %v1280 = vunpack.c.l.b16 %v180
    %v1281 = vunpack.c.l.b16 %v181
    %v1282 = vunpack.c.l.b16 %v182
    %v1283 = vunpack.c.l.b16 %v183
    %v1284 = vunpack.c.l.b16 %v184
    %v1285 = vunpack.c.l.b16 %v185
    %v1286 = vunpack.c.l.b16 %v186
    %v1287 = vunpack.c.l.b16 %v187
    %v1288 = vunpack.c.l.b16 %v188
    %v1289 = vunpack.c.l.b16 %v189
    %v1290 = vunpack.c.l.b16 %v190
    %v1291 = vunpack.c.l.b16 %v191
    %v1292 = vunpack.c.l.b16 %v192
    %v1293 = vunpack.c.l.b16 %v193
    %v1294 = vunpack.c.l.b16 %v194
    %v1295 = vunpack.c.l.b16 %v195
    %v1296 = vunpack.c.l.b16 %v196
    %v1297 = vunpack.c.l.b16 %v197
    %v1298 = vunpack.c.l.b16 %v198
    %v1299 = vunpack.c.l.b16 %v199
    %v1300 = vunpack.c.l.b16 %v200
    %v1301 = vunpack.c.l.b16 %v201
    %v1302 = vunpack.c.l.b16 %v202
    %v1303 = vunpack.c.l.b16 %v203
    %v1304 = vunpack.c.l.b16 %v204
    %v1305 = vunpack.c.l.b16 %v205
    %v1306 = vunpack.c.l.b16 %v206
    %v1307 = vunpack.c.l.b16 %v207
    %v1308 = vunpack.c.l.b16 %v208
    %v1309 = vunpack.c.l.b16 %v209
    %v1310 = vunpack.c.l.b16 %v210
    %v1311 = vunpack.c.l.b16 %v211
    %v1312 = vunpack.c.l.b16 %v212
    %v1313 = vunpack.c.l.b16 %v213
    %v1314 = vunpack.c.l.b16 %v214
    %v1315 = vunpack.c.l.b16 %v215
    %v1316 = vunpack.c.l.b16 %v216
    %v1317 = vunpack.c.l.b16 %v217
    %v1318 = vunpack.c.l.b16 %v218
    %v1319 = vunpack.c.l.b16 %v219
    %v1320 = vunpack.c.l.b16 %v220
    %v1321 = vunpack.c.l.b16 %v221
    %v1322 = vunpack.c.l.b16 %v222
    %v1323 = vunpack.c.l.b16 %v223
    %v1324 = vunpack.c.l.b16 %v224
    %v1325 = vunpack.c.l.b16 %v225
    %v1326 = vunpack.c.l.b16 %v226
    %v1327 = vunpack.c.l.b16 %v227
    %v1328 = vunpack.c.l.b16 %v228
    %v1329 = vunpack.c.l.b16 %v229
    %v1330 = vunpack.c.l.b16 %v230
    %v1331 = vunpack.c.l.b16 %v231
    %v1332 = vunpack.c.l.b16 %v232
    %v1333 = vunpack.c.l.b16 %v233
    %v1334 = vunpack.c.l.b16 %v234
    %v1335 = vunpack.c.l.b16 %v235
    %v1336 = vunpack.c.l.b16 %v236
    %v1337 = vunpack.c.l.b16 %v237
    %v1338 = vunpack.c.l.b16 %v238
    %v1339 = vunpack.c.l.b16 %v239
    %v1340 = vunpack.c.l.b16 %v240
    %v1341 = vunpack.c.l.b16 %v241
    %v1342 = vunpack.c.l.b16 %v242
    %v1343 = vunpack.c.l.b16 %v243
    %v1344 = vunpack.c.l.b16 %v244
    %v1345 = vunpack.c.l.b16 %v245
    %v1346 = vunpack.c.l.b16 %v246
    %v1347 = vunpack.c.l.b16 %v247
    %v1348 = vunpack.c.l.b16 %v248
    %v1349 = vunpack.c.l.b16 %v249
    %v1350 = vunpack.c.l.b16 %v250
    %v1351 = vunpack.c.l.b16 %v251
    %v1352 = vunpack.c.l.b16 %v252
    %v1353 = vunpack.c.l.b16 %v253
    %v1354 = vunpack.c.l.b16 %v254
    %v1355 = vunpack.c.l.b16 %v255
    %v1356 = vunpack.c.l.b16 %v256
    %v1357 = vunpack.c.l.b16 %v257
    %v1358 = vunpack.c.l.b16 %v258
    %v1359 = vunpack.c.l.b16 %v259
    %v1360 = vunpack.c.l.b16 %v260
    %v1361 = vunpack.c.l.b16 %v261
    %v1362 = vunpack.c.l.b16 %v262
    %v1363 = vunpack.c.l.b16 %v263
    %v1364 = vunpack.c.l.b16 %v264
    %v1365 = vunpack.c.l.b16 %v265
    %v1366 = vunpack.c.l.b16 %v266
    %v1367 = vunpack.c.l.b16 %v267
    %v1368 = vunpack.c.l.b16 %v268
    %v1369 = vunpack.c.l.b16 %v269
    %v1370 = vunpack.c.l.b16 %v270
    %v1371 = vunpack.c.l.b16 %v271
    %v1372 = vunpack.c.l.b16 %v272
    %v1373 = vunpack.c.l.b16 %v273
    %v1374 = vunpack.c.l.b16 %v274
    %v1375 = vunpack.c.l.b16 %v275
    %v1376 = vunpack.c.l.b16 %v276
    %v1377 = vunpack.c.l.b16 %v277
    %v1378 = vunpack.c.l.b16 %v278
    %v1379 = vunpack.c.l.b16 %v279
    %v1380 = vunpack.c.l.b16 %v280
    %v1381 = vunpack.c.l.b16 %v281
    %v1382 = vunpack.c.l.b16 %v282
    %v1383 = vunpack.c.l.b16 %v283
    %v1384 = vunpack.c.l.b16 %v284
    %v1385 = vunpack.c.l.b16 %v285
    %v1386 = vunpack.c.l.b16 %v286
    %v1387 = vunpack.c.l.b16 %v287
    %v1388 = vunpack.c.l.b16 %v288
    %v1389 = vunpack.c.l.b16 %v289
    %v1390 = vunpack.c.l.b16 %v290
    %v1391 = vunpack.c.l.b16 %v291
    %v1392 = vunpack.c.l.b16 %v292
    %v1393 = vunpack.c.l.b16 %v293
    %v1394 = vunpack.c.l.b16 %v294
    %v1395 = vunpack.c.l.b16 %v295
    %v1396 = vunpack.c.l.b16 %v296
    %v1397 = vunpack.c.l.b16 %v297
    %v1398 = vunpack.c.l.b16 %v298
    %v1399 = vunpack.c.l.b16 %v299
    %v1400 = vunpack.c.l.b16 %v300
    %v1401 = vunpack.c.l.b16 %v301
    %v1402 = vunpack.c.l.b16 %v302
    %v1403 = vunpack.c.l.b16 %v303
    %v1404 = vunpack.c.l.b16 %v304
    %v1405 = vunpack.c.l.b16 %v305
    %v1406 = vunpack.c.l.b16 %v306
    %v1407 = vunpack.c.l.b16 %v307
    %v1408 = vunpack.c.l.b16 %v308
    %v1409 = vunpack.c.l.b16 %v309
    %v1410 = vunpack.c.l.b16 %v310
    %v1411 = vunpack.c.l.b16 %v311
    %v1412 = vunpack.c.l.b16 %v312
    %v1413 = vunpack.c.l.b16 %v313
    %v1414 = vunpack.c.l.b16 %v314
    %v1415 = vunpack.c.l.b16 %v315
    %v1416 = vunpack.c.l.b16 %v316
    %v1417 = vunpack.c.l.b16 %v317
    %v1418 = vunpack.c.l.b16 %v318
    %v1419 = vunpack.c.l.b16 %v319
    %v1420 = vunpack.c.l.b16 %v320
    %v1421 = vunpack.c.l.b16 %v321
    %v1422 = vunpack.c.l.b16 %v322
    %v1423 = vunpack.c.l.b16 %v323
    %v1424 = vunpack.c.l.b16 %v324
    %v1425 = vunpack.c.l.b16 %v325
    %v1426 = vunpack.c.l.b16 %v326
    %v1427 = vunpack.c.l.b16 %v327
    %v1428 = vunpack.c.l.b16 %v328
    %v1429 = vunpack.c.l.b16 %v329
    %v1430 = vunpack.c.l.b16 %v330
    %v1431 = vunpack.c.l.b16 %v331
    %v1432 = vunpack.c.l.b16 %v332
    %v1433 = vunpack.c.l.b16 %v333
    %v1434 = vunpack.c.l.b16 %v334
    %v1435 = vunpack.c.l.b16 %v335
    %v1436 = vunpack.c.l.b16 %v336
    %v1437 = vunpack.c.l.b16 %v337
    %v1438 = vunpack.c.l.b16 %v338
    %v1439 = vunpack.c.l.b16 %v339
    %v1440 = vunpack.c.l.b16 %v340
    %v1441 = vunpack.c.l.b16 %v341
    %v1442 = vunpack.c.l.b16 %v342
    %v1443 = vunpack.c.l.b16 %v343
    %v1444 = vunpack.c.l.b16 %v344
    %v1445 = vunpack.c.l.b16 %v345
    %v1446 = vunpack.c.l.b16 %v346
    %v1447 = vunpack.c.l.b16 %v347
    %v1448 = vunpack.c.l.b16 %v348
    %v1449 = vunpack.c.l.b16 %v349
    %v1450 = vunpack.c.l.b16 %v350
    %v1451 = vunpack.c.l.b16 %v351
    %v1452 = vunpack.c.l.b16 %v352
    %v1453 = vunpack.c.l.b16 %v353
    %v1454 = vunpack.c.l.b16 %v354
    %v1455 = vunpack.c.l.b16 %v355
    %v1456 = vunpack.c.l.b16 %v356
    %v1457 = vunpack.c.l.b16 %v357
    %v1458 = vunpack.c.l.b16 %v358
    %v1459 = vunpack.c.l.b16 %v359
    %v1460 = vunpack.c.l.b16 %v360
    %v1461 = vunpack.c.l.b16 %v361
    %v1462 = vunpack.c.l.b16 %v362
    %v1463 = vunpack.c.l.b16 %v363
    %v1464 = vunpack.c.l.b16 %v364
    %v1465 = vunpack.c.l.b16 %v365
    %v1466 = vunpack.c.l.b16 %v366
    %v1467 = vunpack.c.l.b16 %v367
    %v1468 = vunpack.c.l.b16 %v368
    %v1469 = vunpack.c.l.b16 %v369
    %v1470 = vunpack.c.l.b16 %v370
    %v1471 = vunpack.c.l.b16 %v371
    %v1472 = vunpack.c.l.b16 %v372
    %v1473 = vunpack.c.l.b16 %v373
    %v1474 = vunpack.c.l.b16 %v374
    %v1475 = vunpack.c.l.b16 %v375
    %v1476 = vunpack.c.l.b16 %v376
    %v1477 = vunpack.c.l.b16 %v377
    %v1478 = vunpack.c.l.b16 %v378
    %v1479 = vunpack.c.l.b16 %v379
    %v1480 = vunpack.c.l.b16 %v380
    %v1481 = vunpack.c.l.b16 %v381
    %v1482 = vunpack.c.l.b16 %v382
    %v1483 = vunpack.c.l.b16 %v383
    %v1484 = vunpack.c.l.b16 %v384
    %v1485 = vunpack.c.l.b16 %v385
    %v1486 = vunpack.c.l.b16 %v386
    %v1487 = vunpack.c.l.b16 %v387
    %v1488 = vunpack.c.l.b16 %v388
    %v1489 = vunpack.c.l.b16 %v389
    %v1490 = vunpack.c.l.b16 %v390
    %v1491 = vunpack.c.l.b16 %v391
    %v1492 = vunpack.c.l.b16 %v392
    %v1493 = vunpack.c.l.b16 %v393
    %v1494 = vunpack.c.l.b16 %v394
    %v1495 = vunpack.c.l.b16 %v395
    %v1496 = vunpack.c.l.b16 %v396
    %v1497 = vunpack.c.l.b16 %v397
    %v1498 = vunpack.c.l.b16 %v398
    %v1499 = vunpack.c.l.b16 %v399
    %v1500 = vunpack.c.l.b16 %v400
    %v1501 = vunpack.c.l.b16 %v401
    %v1502 = vunpack.c.l.b16 %v402
    %v1503 = vunpack.c.l.b16 %v403
    %v1504 = vunpack.c.l.b16 %v404
    %v1505 = vunpack.c.l.b16 %v405
    %v1506 = vunpack.c.l.b16 %v406
    %v1507 = vunpack.c.l.b16 %v407
    %v1508 = vunpack.c.l.b16 %v408
    %v1509 = vunpack.c.l.b16 %v409
    %v1510 = vunpack.c.l.b16 %v410
    %v1511 = vunpack.c.l.b16 %v411
    %v1512 = vunpack.c.l.b16 %v412
    %v1513 = vunpack.c.l.b16 %v413
    %v1514 = vunpack.c.l.b16 %v414
    %v1515 = vunpack.c.l.b16 %v415
    %v1516 = vunpack.c.l.b16 %v416
    %v1517 = vunpack.c.l.b16 %v417
    %v1518 = vunpack.c.l.b16 %v418
    %v1519 = vunpack.c.l.b16 %v419
    %v1520 = vunpack.c.l.b16 %v420
    %v1521 = vunpack.c.l.b16 %v421
    %v1522 = vunpack.c.l.b16 %v422
    %v1523 = vunpack.c.l.b16 %v423
    %v1524 = vunpack.c.l.b16 %v424
    %v1525 = vunpack.c.l.b16 %v425
    %v1526 = vunpack.c.l.b16 %v426
    %v1527 = vunpack.c.l.b16 %v427
    %v1528 = vunpack.c.l.b16 %v428
    %v1529 = vunpack.c.l.b16 %v429
    %v1530 = vunpack.c.l.b16 %v430
    %v1531 = vunpack.c.l.b16 %v431
    %v1532 = vunpack.c.l.b16 %v432
    %v1533 = vunpack.c.l.b16 %v433
    %v1534 = vunpack.c.l.b16 %v434
    %v1535 = vunpack.c.l.b16 %v435
    %v1536 = vunpack.c.l.b16 %v436
    %v1537 = vunpack.c.l.b16 %v437
    %v1538 = vunpack.c.l.b16 %v438
    %v1539 = vunpack.c.l.b16 %v439
    %v1540 = vunpack.c.l.b16 %v440
    %v1541 = vunpack.c.l.b16 %v441
    %v1542 = vunpack.c.l.b16 %v442
    %v1543 = vunpack.c.l.b16 %v443
    %v1544 = vunpack.c.l.b16 %v444
    %v1545 = vunpack.c.l.b16 %v445
    %v1546 = vunpack.c.l.b16 %v446
    %v1547 = vunpack.c.l.b16 %v447
    %v1548 = vunpack.c.l.b16 %v448
    %v1549 = vunpack.c.l.b16 %v449
    %v1550 = vunpack.c.l.b16 %v450
    %v1551 = vunpack.c.l.b16 %v451
    %v1552 = vunpack.c.l.b16 %v452
    %v1553 = vunpack.c.l.b16 %v453
    %v1554 = vunpack.c.l.b16 %v454
    %v1555 = vunpack.c.l.b16 %v455
    %v1556 = vunpack.c.l.b16 %v456
    %v1557 = vunpack.c.l.b16 %v457
    %v1558 = vunpack.c.l.b16 %v458
    %v1559 = vunpack.c.l.b16 %v459
    %v1560 = vunpack.c.l.b16 %v460
    %v1561 = vunpack.c.l.b16 %v461
    %v1562 = vunpack.c.l.b16 %v462
    %v1563 = vunpack.c.l.b16 %v463
    %v1564 = vunpack.c.l.b16 %v464
    %v1565 = vunpack.c.l.b16 %v465
    %v1566 = vunpack.c.l.b16 %v466
    %v1567 = vunpack.c.l.b16 %v467
    %v1568 = vunpack.c.l.b16 %v468
    %v1569 = vunpack.c.l.b16 %v469
    %v1570 = vunpack.c.l.b16 %v470
    %v1571 = vunpack.c.l.b16 %v471
    %v1572 = vunpack.c.l.b16 %v472
    %v1573 = vunpack.c.l.b16 %v473
    %v1574 = vunpack.c.l.b16 %v474
    %v1575 = vunpack.c.l.b16 %v475
    %v1576 = vunpack.c.l.b16 %v476
    %v1577 = vunpack.c.l.b16 %v477
    %v1578 = vunpack.c.l.b16 %v478
    %v1579 = vunpack.c.l.b16 %v479
    %v1580 = vunpack.c.l.b16 %v480
    %v1581 = vunpack.c.l.b16 %v481
    %v1582 = vunpack.c.l.b16 %v482
    %v1583 = vunpack.c.l.b16 %v483
    %v1584 = vunpack.c.l.b16 %v484
    %v1585 = vunpack.c.l.b16 %v485
    %v1586 = vunpack.c.l.b16 %v486
    %v1587 = vunpack.c.l.b16 %v487
    %v1588 = vunpack.c.l.b16 %v488
    %v1589 = vunpack.c.l.b16 %v489
    %v1590 = vunpack.c.l.b16 %v490
    %v1591 = vunpack.c.l.b16 %v491
    %v1592 = vunpack.c.l.b16 %v492
    %v1593 = vunpack.c.l.b16 %v493
    %v1594 = vunpack.c.l.b16 %v494
    %v1595 = vunpack.c.l.b16 %v495
    %v1596 = vunpack.c.l.b16 %v496
    %v1597 = vunpack.c.l.b16 %v497
    %v1598 = vunpack.c.l.b16 %v498
    %v1599 = vunpack.c.l.b16 %v499
    %v1600 = vunpack.c.l.b16 %v500
    %v1601 = vunpack.c.l.b16 %v501
    %v1602 = vunpack.c.l.b16 %v502
    %v1603 = vunpack.c.l.b16 %v503
    %v1604 = vunpack.c.l.b16 %v504
    %v1605 = vunpack.c.l.b16 %v505
    %v1606 = vunpack.c.l.b16 %v506
    %v1607 = vunpack.c.l.b16 %v507
    %v1608 = vunpack.c.l.b16 %v508
    %v1609 = vunpack.c.l.b16 %v509
    %v1610 = vunpack.c.l.b16 %v510
    %v1611 = vunpack.c.l.b16 %v511
    %v1612 = vunpack.c.l.b16 %v512
    %v1613 = vunpack.c.l.b16 %v513
    %v1614 = vunpack.c.l.b16 %v514
    %v1615 = vunpack.c.l.b16 %v515
    %v1616 = vunpack.c.l.b16 %v516
    %v1617 = vunpack.c.l.b16 %v517
    %v1618 = vunpack.c.l.b16 %v518
    %v1619 = vunpack.c.l.b16 %v519
    %v1620 = vunpack.c.l.b16 %v520
    %v1621 = vunpack.c.l.b16 %v521
    %v1622 = vunpack.c.l.b16 %v522
    %v1623 = vunpack.c.l.b16 %v523
    %v1624 = vunpack.c.l.b16 %v524
    %v1625 = vunpack.c.l.b16 %v525
    %v1626 = vunpack.c.l.b16 %v526
    %v1627 = vunpack.c.l.b16 %v527
    %v1628 = vunpack.c.l.b16 %v528
    %v1629 = vunpack.c.l.b16 %v529
    %v1630 = vunpack.c.l.b16 %v530
    %v1631 = vpack.c.b16 %v1120, %v1119
    %v1632 = vpack.c.b16 %v1122, %v1121
    %v1633 = vpack.c.b16 %v1124, %v1123
    %v1634 = vpack.c.b16 %v1126, %v1125
    %v1635 = vpack.c.b16 %v1128, %v1127
    %v1636 = vpack.c.b16 %v1130, %v1129
    %v1637 = vpack.c.b16 %v1132, %v1131
    %v1638 = vpack.c.b16 %v1134, %v1133
    %v1639 = vpack.c.b16 %v1136, %v1135
    %v1640 = vpack.c.b16 %v1138, %v1137
    %v1641 = vpack.c.b16 %v1140, %v1139
    %v1642 = vpack.c.b16 %v1142, %v1141
    %v1643 = vpack.c.b16 %v1144, %v1143
    %v1644 = vpack.c.b16 %v1146, %v1145
    %v1645 = vpack.c.b16 %v1148, %v1147
    %v1646 = vpack.c.b16 %v1150, %v1149
    %v1647 = vpack.c.b16 %v1152, %v1151
    %v1648 = vpack.c.b16 %v1154, %v1153
    %v1649 = vpack.c.b16 %v1156, %v1155
    %v1650 = vpack.c.b16 %v1158, %v1157
    %v1651 = vpack.c.b16 %v1160, %v1159
    %v1652 = vpack.c.b16 %v1162, %v1161
    %v1653 = vpack.c.b16 %v1164, %v1163
    %v1654 = vpack.c.b16 %v1166, %v1165
    %v1655 = vpack.c.b16 %v1168, %v1167
    %v1656 = vpack.c.b16 %v1170, %v1169
    %v1657 = vpack.c.b16 %v1172, %v1171
    %v1658 = vpack.c.b16 %v1174, %v1173
    %v1659 = vpack.c.b16 %v1176, %v1175
    %v1660 = vpack.c.b16 %v1178, %v1177
    %v1661 = vpack.c.b16 %v1180, %v1179
    %v1662 = vpack.c.b16 %v1182, %v1181
    %v1663 = vpack.c.b16 %v1184, %v1183
    %v1664 = vpack.c.b16 %v1186, %v1185
    %v1665 = vpack.c.b16 %v1188, %v1187
    %v1666 = vpack.c.b16 %v1190, %v1189
    %v1667 = vpack.c.b16 %v1192, %v1191
    %v1668 = vpack.c.b16 %v1194, %v1193
    %v1669 = vpack.c.b16 %v1196, %v1195
    %v1670 = vpack.c.b16 %v1198, %v1197
    %v1671 = vpack.c.b16 %v1200, %v1199
    %v1672 = vpack.c.b16 %v1202, %v1201
    %v1673 = vpack.c.b16 %v1204, %v1203
    %v1674 = vpack.c.b16 %v1206, %v1205
    %v1675 = vpack.c.b16 %v1208, %v1207
    %v1676 = vpack.c.b16 %v1210, %v1209
    %v1677 = vpack.c.b16 %v1212, %v1211
    %v1678 = vpack.c.b16 %v1214, %v1213
    %v1679 = vpack.c.b16 %v1216, %v1215
    %v1680 = vpack.c.b16 %v1218, %v1217
    %v1681 = vpack.c.b16 %v1220, %v1219
    %v1682 = vpack.c.b16 %v1222, %v1221
    %v1683 = vpack.c.b16 %v1224, %v1223
    %v1684 = vpack.c.b16 %v1226, %v1225
    %v1685 = vpack.c.b16 %v1228, %v1227
    %v1686 = vpack.c.b16 %v1230, %v1229
    %v1687 = vpack.c.b16 %v1232, %v1231
    %v1688 = vpack.c.b16 %v1234, %v1233
    %v1689 = vpack.c.b16 %v1236, %v1235
    %v1690 = vpack.c.b16 %v1238, %v1237
    %v1691 = vpack.c.b16 %v1240, %v1239
    %v1692 = vpack.c.b16 %v1242, %v1241
    %v1693 = vpack.c.b16 %v1244, %v1243
    %v1694 = vpack.c.b16 %v1246, %v1245
    %v1695 = vpack.c.b16 %v1248, %v1247
    %v1696 = vpack.c.b16 %v1250, %v1249
    %v1697 = vpack.c.b16 %v1252, %v1251
    %v1698 = vpack.c.b16 %v1254, %v1253
    %v1699 = vpack.c.b16 %v1256, %v1255
    %v1700 = vpack.c.b16 %v1258, %v1257
    %v1701 = vpack.c.b16 %v1260, %v1259
    %v1702 = vpack.c.b16 %v1262, %v1261
    %v1703 = vpack.c.b16 %v1264, %v1263
    %v1704 = vpack.c.b16 %v1266, %v1265
    %v1705 = vpack.c.b16 %v1268, %v1267
    %v1706 = vpack.c.b16 %v1270, %v1269
    %v1707 = vpack.c.b16 %v1272, %v1271
    %v1708 = vpack.c.b16 %v1274, %v1273
    %v1709 = vpack.c.b16 %v1276, %v1275
    %v1710 = vpack.c.b16 %v1278, %v1277
    %v1711 = vpack.c.b16 %v1280, %v1279
    %v1712 = vpack.c.b16 %v1282, %v1281
    %v1713 = vpack.c.b16 %v1284, %v1283
    %v1714 = vpack.c.b16 %v1286, %v1285
    %v1715 = vpack.c.b16 %v1288, %v1287
    %v1716 = vpack.c.b16 %v1290, %v1289
    %v1717 = vpack.c.b16 %v1292, %v1291
    %v1718 = vpack.c.b16 %v1294, %v1293
    %v1719 = vpack.c.b16 %v1296, %v1295
    %v1720 = vpack.c.b16 %v1298, %v1297
    %v1721 = vpack.c.b16 %v1300, %v1299
    %v1722 = vpack.c.b16 %v1302, %v1301
    %v1723 = vpack.c.b16 %v1304, %v1303
    %v1724 = vpack.c.b16 %v1306, %v1305
    %v1725 = vpack.c.b16 %v1308, %v1307
    %v1726 = vpack.c.b16 %v1310, %v1309
    %v1727 = vpack.c.b16 %v1312, %v1311
    %v1728 = vpack.c.b16 %v1314, %v1313
    %v1729 = vpack.c.b16 %v1316, %v1315
    %v1730 = vpack.c.b16 %v1318, %v1317
    %v1731 = vpack.c.b16 %v1320, %v1319
    %v1732 = vpack.c.b16 %v1322, %v1321
    %v1733 = vpack.c.b16 %v1324, %v1323
    %v1734 = vpack.c.b16 %v1326, %v1325
    %v1735 = vpack.c.b16 %v1328, %v1327
    %v1736 = vpack.c.b16 %v1330, %v1329
    %v1737 = vpack.c.b16 %v1332, %v1331
    %v1738 = vpack.c.b16 %v1334, %v1333
    %v1739 = vpack.c.b16 %v1336, %v1335
    %v1740 = vpack.c.b16 %v1338, %v1337
    %v1741 = vpack.c.b16 %v1340, %v1339
    %v1742 = vpack.c.b16 %v1342, %v1341
    %v1743 = vpack.c.b16 %v1344, %v1343
    %v1744 = vpack.c.b16 %v1346, %v1345
    %v1745 = vpack.c.b16 %v1348, %v1347
    %v1746 = vpack.c.b16 %v1350, %v1349
    %v1747 = vpack.c.b16 %v1352, %v1351
    %v1748 = vpack.c.b16 %v1354, %v1353
    %v1749 = vpack.c.b16 %v1356, %v1355
    %v1750 = vpack.c.b16 %v1358, %v1357
    %v1751 = vpack.c.b16 %v1360, %v1359
    %v1752 = vpack.c.b16 %v1362, %v1361
    %v1753 = vpack.c.b16 %v1364, %v1363
    %v1754 = vpack.c.b16 %v1366, %v1365
    %v1755 = vpack.c.b16 %v1368, %v1367
    %v1756 = vpack.c.b16 %v1370, %v1369
    %v1757 = vpack.c.b16 %v1372, %v1371
    %v1758 = vpack.c.b16 %v1374, %v1373
    %v1759 = vpack.c.b16 %v1376, %v1375
    %v1760 = vpack.c.b16 %v1378, %v1377
    %v1761 = vpack.c.b16 %v1380, %v1379
    %v1762 = vpack.c.b16 %v1382, %v1381
    %v1763 = vpack.c.b16 %v1384, %v1383
    %v1764 = vpack.c.b16 %v1386, %v1385
    %v1765 = vpack.c.b16 %v1388, %v1387
    %v1766 = vpack.c.b16 %v1390, %v1389
    %v1767 = vpack.c.b16 %v1392, %v1391
    %v1768 = vpack.c.b16 %v1394, %v1393
    %v1769 = vpack.c.b16 %v1396, %v1395
    %v1770 = vpack.c.b16 %v1398, %v1397
    %v1771 = vpack.c.b16 %v1400, %v1399
    %v1772 = vpack.c.b16 %v1402, %v1401
    %v1773 = vpack.c.b16 %v1404, %v1403
    %v1774 = vpack.c.b16 %v1406, %v1405
    %v1775 = vpack.c.b16 %v1408, %v1407
    %v1776 = vpack.c.b16 %v1410, %v1409
    %v1777 = vpack.c.b16 %v1412, %v1411
    %v1778 = vpack.c.b16 %v1414, %v1413
    %v1779 = vpack.c.b16 %v1416, %v1415
    %v1780 = vpack.c.b16 %v1418, %v1417
    %v1781 = vpack.c.b16 %v1420, %v1419
    %v1782 = vpack.c.b16 %v1422, %v1421
    %v1783 = vpack.c.b16 %v1424, %v1423
    %v1784 = vpack.c.b16 %v1426, %v1425
    %v1785 = vpack.c.b16 %v1428, %v1427
    %v1786 = vpack.c.b16 %v1430, %v1429
    %v1787 = vpack.c.b16 %v1432, %v1431
    %v1788 = vpack.c.b16 %v1434, %v1433
    %v1789 = vpack.c.b16 %v1436, %v1435
    %v1790 = vpack.c.b16 %v1438, %v1437
    %v1791 = vpack.c.b16 %v1440, %v1439
    %v1792 = vpack.c.b16 %v1442, %v1441
    %v1793 = vpack.c.b16 %v1444, %v1443
    %v1794 = vpack.c.b16 %v1446, %v1445
    %v1795 = vpack.c.b16 %v1448, %v1447
    %v1796 = vpack.c.b16 %v1450, %v1449
    %v1797 = vpack.c.b16 %v1452, %v1451
    %v1798 = vpack.c.b16 %v1454, %v1453
    %v1799 = vpack.c.b16 %v1456, %v1455
    %v1800 = vpack.c.b16 %v1458, %v1457
    %v1801 = vpack.c.b16 %v1460, %v1459
    %v1802 = vpack.c.b16 %v1462, %v1461
    %v1803 = vpack.c.b16 %v1464, %v1463
    %v1804 = vpack.c.b16 %v1466, %v1465
    %v1805 = vpack.c.b16 %v1468, %v1467
    %v1806 = vpack.c.b16 %v1470, %v1469
    %v1807 = vpack.c.b16 %v1472, %v1471
    %v1808 = vpack.c.b16 %v1474, %v1473
    %v1809 = vpack.c.b16 %v1476, %v1475
    %v1810 = vpack.c.b16 %v1478, %v1477
    %v1811 = vpack.c.b16 %v1480, %v1479
    %v1812 = vpack.c.b16 %v1482, %v1481
    %v1813 = vpack.c.b16 %v1484, %v1483
    %v1814 = vpack.c.b16 %v1486, %v1485
    %v1815 = vpack.c.b16 %v1488, %v1487
    %v1816 = vpack.c.b16 %v1490, %v1489
    %v1817 = vpack.c.b16 %v1492, %v1491
    %v1818 = vpack.c.b16 %v1494, %v1493
    %v1819 = vpack.c.b16 %v1496, %v1495
    %v1820 = vpack.c.b16 %v1498, %v1497
    %v1821 = vpack.c.b16 %v1500, %v1499
    %v1822 = vpack.c.b16 %v1502, %v1501
    %v1823 = vpack.c.b16 %v1504, %v1503
    %v1824 = vpack.c.b16 %v1506, %v1505
    %v1825 = vpack.c.b16 %v1508, %v1507
    %v1826 = vpack.c.b16 %v1510, %v1509
    %v1827 = vpack.c.b16 %v1512, %v1511
    %v1828 = vpack.c.b16 %v1514, %v1513
    %v1829 = vpack.c.b16 %v1516, %v1515
    %v1830 = vpack.c.b16 %v1518, %v1517
    %v1831 = vpack.c.b16 %v1520, %v1519
    %v1832 = vpack.c.b16 %v1522, %v1521
    %v1833 = vpack.c.b16 %v1524, %v1523
    %v1834 = vpack.c.b16 %v1526, %v1525
    %v1835 = vpack.c.b16 %v1528, %v1527
    %v1836 = vpack.c.b16 %v1530, %v1529
    %v1837 = vpack.c.b16 %v1532, %v1531
    %v1838 = vpack.c.b16 %v1534, %v1533
    %v1839 = vpack.c.b16 %v1536, %v1535
    %v1840 = vpack.c.b16 %v1538, %v1537
    %v1841 = vpack.c.b16 %v1540, %v1539
    %v1842 = vpack.c.b16 %v1542, %v1541
    %v1843 = vpack.c.b16 %v1544, %v1543
    %v1844 = vpack.c.b16 %v1546, %v1545
    %v1845 = vpack.c.b16 %v1548, %v1547
    %v1846 = vpack.c.b16 %v1550, %v1549
    %v1847 = vpack.c.b16 %v1552, %v1551
    %v1848 = vpack.c.b16 %v1554, %v1553
    %v1849 = vpack.c.b16 %v1556, %v1555
    %v1850 = vpack.c.b16 %v1558, %v1557
    %v1851 = vpack.c.b16 %v1560, %v1559
    %v1852 = vpack.c.b16 %v1562, %v1561
    %v1853 = vpack.c.b16 %v1564, %v1563
    %v1854 = vpack.c.b16 %v1566, %v1565
    %v1855 = vpack.c.b16 %v1568, %v1567
    %v1856 = vpack.c.b16 %v1570, %v1569
    %v1857 = vpack.c.b16 %v1572, %v1571
    %v1858 = vpack.c.b16 %v1574, %v1573
    %v1859 = vpack.c.b16 %v1576, %v1575
    %v1860 = vpack.c.b16 %v1578, %v1577
    %v1861 = vpack.c.b16 %v1580, %v1579
    %v1862 = vpack.c.b16 %v1582, %v1581
    %v1863 = vpack.c.b16 %v1584, %v1583
    %v1864 = vpack.c.b16 %v1586, %v1585
    %v1865 = vpack.c.b16 %v1588, %v1587
    %v1866 = vpack.c.b16 %v1590, %v1589
    %v1867 = vpack.c.b16 %v1592, %v1591
    %v1868 = vpack.c.b16 %v1594, %v1593
    %v1869 = vpack.c.b16 %v1596, %v1595
    %v1870 = vpack.c.b16 %v1598, %v1597
    %v1871 = vpack.c.b16 %v1600, %v1599
    %v1872 = vpack.c.b16 %v1602, %v1601
    %v1873 = vpack.c.b16 %v1604, %v1603
    %v1874 = vpack.c.b16 %v1606, %v1605
    %v1875 = vpack.c.b16 %v1608, %v1607
    %v1876 = vpack.c.b16 %v1610, %v1609
    %v1877 = vpack.c.b16 %v1612, %v1611
    %v1878 = vpack.c.b16 %v1614, %v1613
    %v1879 = vpack.c.b16 %v1616, %v1615
    %v1880 = vpack.c.b16 %v1618, %v1617
    %v1881 = vpack.c.b16 %v1620, %v1619
    %v1882 = vpack.c.b16 %v1622, %v1621
    %v1883 = vpack.c.b16 %v1624, %v1623
    %v1884 = vpack.c.b16 %v1626, %v1625
    %v1885 = vpack.c.b16 %v1628, %v1627
    %v1886 = vpack.c.b16 %v1630, %v1629
    %2143 = vmatpush.bf16.msra.mxu0 %v1638
    %2144 = vmatpush.bf16.msra.mxu0 %v1637
    %2145 = vmatpush.bf16.msra.mxu0 %v1636
    %2146 = vmatpush.bf16.msra.mxu0 %v1635
    %2147 = vmatpush.bf16.msra.mxu0 %v1634
    %2148 = vmatpush.bf16.msra.mxu0 %v1633
    %2149 = vmatpush.bf16.msra.mxu0 %v1632
    %2150 = vmatpush.bf16.msra.mxu0 %v1631
    %2151 = vmatmul.bf16.gmra.mxu0 %v537
    %v2152 = vpop.f32.mrf.mxu0
    %v2153 = vadd.f32 %v533, %v2152
    %v2154 = vpop.f32.mrf.mxu0
    %2155 = vdwg.mxu0
    %2156 = vmatpush.bf16.msra.mxu0 %v1646
    %2157 = vmatpush.bf16.msra.mxu0 %v1645
    %2158 = vmatpush.bf16.msra.mxu0 %v1644
    %2159 = vmatpush.bf16.msra.mxu0 %v1643
    %2160 = vmatpush.bf16.msra.mxu0 %v1642
    %2161 = vmatpush.bf16.msra.mxu0 %v1641
    %2162 = vmatpush.bf16.msra.mxu0 %v1640
    %2163 = vmatpush.bf16.msra.mxu0 %v1639
    %2164 = vmatmul.bf16.gmra.mxu0 %v538
    %v2165 = vpop.f32.mrf.mxu0
    %v2166 = vadd.f32 %v2153, %v2165
    %v2167 = vpop.f32.mrf.mxu0
    %2168 = vdwg.mxu0
    %2169 = vmatpush.bf16.msra.mxu0 %v1654
    %2170 = vmatpush.bf16.msra.mxu0 %v1653
    %2171 = vmatpush.bf16.msra.mxu0 %v1652
    %2172 = vmatpush.bf16.msra.mxu0 %v1651
    %2173 = vmatpush.bf16.msra.mxu0 %v1650
    %2174 = vmatpush.bf16.msra.mxu0 %v1649
    %2175 = vmatpush.bf16.msra.mxu0 %v1648
    %2176 = vmatpush.bf16.msra.mxu0 %v1647
    %2177 = vmatmul.bf16.gmra.mxu0 %v539
    %v2178 = vpop.f32.mrf.mxu0
    %v2179 = vadd.f32 %v2166, %v2178
    %v2180 = vpop.f32.mrf.mxu0
    %2181 = vdwg.mxu0
    %2182 = vmatpush.bf16.msra.mxu0 %v1662
    %2183 = vmatpush.bf16.msra.mxu0 %v1661
    %2184 = vmatpush.bf16.msra.mxu0 %v1660
    %2185 = vmatpush.bf16.msra.mxu0 %v1659
    %2186 = vmatpush.bf16.msra.mxu0 %v1658
    %2187 = vmatpush.bf16.msra.mxu0 %v1657
    %2188 = vmatpush.bf16.msra.mxu0 %v1656
    %2189 = vmatpush.bf16.msra.mxu0 %v1655
    %2190 = vmatmul.bf16.gmra.mxu0 %v540
    %v2191 = vpop.f32.mrf.mxu0
    %v2192 = vadd.f32 %v2179, %v2191
    %v2193 = vpop.f32.mrf.mxu0
    %2194 = vdwg.mxu0
    %2195 = vmatpush.bf16.msra.mxu0 %v1670
    %2196 = vmatpush.bf16.msra.mxu0 %v1669
    %2197 = vmatpush.bf16.msra.mxu0 %v1668
    %2198 = vmatpush.bf16.msra.mxu0 %v1667
    %2199 = vmatpush.bf16.msra.mxu0 %v1666
    %2200 = vmatpush.bf16.msra.mxu0 %v1665
    %2201 = vmatpush.bf16.msra.mxu0 %v1664
    %2202 = vmatpush.bf16.msra.mxu0 %v1663
    %2203 = vmatmul.bf16.gmra.mxu0 %v541
    %v2204 = vpop.f32.mrf.mxu0
    %v2205 = vadd.f32 %v2192, %v2204
    %v2206 = vpop.f32.mrf.mxu0
    %2207 = vdwg.mxu0
    %2208 = vmatpush.bf16.msra.mxu0 %v1678
    %2209 = vmatpush.bf16.msra.mxu0 %v1677
    %2210 = vmatpush.bf16.msra.mxu0 %v1676
    %2211 = vmatpush.bf16.msra.mxu0 %v1675
    %2212 = vmatpush.bf16.msra.mxu0 %v1674
    %2213 = vmatpush.bf16.msra.mxu0 %v1673
    %2214 = vmatpush.bf16.msra.mxu0 %v1672
    %2215 = vmatpush.bf16.msra.mxu0 %v1671
    %2216 = vmatmul.bf16.gmra.mxu0 %v542
    %v2217 = vpop.f32.mrf.mxu0
    %v2218 = vadd.f32 %v2205, %v2217
    %v2219 = vpop.f32.mrf.mxu0
    %2220 = vdwg.mxu0
    %2221 = vmatpush.bf16.msra.mxu0 %v1686
    %2222 = vmatpush.bf16.msra.mxu0 %v1685
    %2223 = vmatpush.bf16.msra.mxu0 %v1684
    %2224 = vmatpush.bf16.msra.mxu0 %v1683
    %2225 = vmatpush.bf16.msra.mxu0 %v1682
    %2226 = vmatpush.bf16.msra.mxu0 %v1681
    %2227 = vmatpush.bf16.msra.mxu0 %v1680
    %2228 = vmatpush.bf16.msra.mxu0 %v1679
    %2229 = vmatmul.bf16.gmra.mxu0 %v543
    %v2230 = vpop.f32.mrf.mxu0
    %v2231 = vadd.f32 %v2218, %v2230
    %v2232 = vpop.f32.mrf.mxu0
    %2233 = vdwg.mxu0
    %2234 = vmatpush.bf16.msra.mxu0 %v1694
    %2235 = vmatpush.bf16.msra.mxu0 %v1693
    %2236 = vmatpush.bf16.msra.mxu0 %v1692
    %2237 = vmatpush.bf16.msra.mxu0 %v1691
    %2238 = vmatpush.bf16.msra.mxu0 %v1690
    %2239 = vmatpush.bf16.msra.mxu0 %v1689
    %2240 = vmatpush.bf16.msra.mxu0 %v1688
    %2241 = vmatpush.bf16.msra.mxu0 %v1687
    %2242 = vmatmul.bf16.gmra.mxu0 %v544
    %v2243 = vpop.f32.mrf.mxu0
    %v2244 = vadd.f32 %v2231, %v2243
    %v2245 = vpop.f32.mrf.mxu0
    %2246 = vdwg.mxu0
    %2247 = vmatpush.bf16.msra.mxu0 %v1702
    %2248 = vmatpush.bf16.msra.mxu0 %v1701
    %2249 = vmatpush.bf16.msra.mxu0 %v1700
    %2250 = vmatpush.bf16.msra.mxu0 %v1699
    %2251 = vmatpush.bf16.msra.mxu0 %v1698
    %2252 = vmatpush.bf16.msra.mxu0 %v1697
    %2253 = vmatpush.bf16.msra.mxu0 %v1696
    %2254 = vmatpush.bf16.msra.mxu0 %v1695
    %2255 = vmatmul.bf16.gmra.mxu0 %v547
    %v2256 = vpop.f32.mrf.mxu0
    %v2257 = vadd.f32 %v2244, %v2256
    %v2258 = vpop.f32.mrf.mxu0
    %2259 = vdwg.mxu0
    %2260 = vmatpush.bf16.msra.mxu0 %v1710
    %2261 = vmatpush.bf16.msra.mxu0 %v1709
    %2262 = vmatpush.bf16.msra.mxu0 %v1708
    %2263 = vmatpush.bf16.msra.mxu0 %v1707
    %2264 = vmatpush.bf16.msra.mxu0 %v1706
    %2265 = vmatpush.bf16.msra.mxu0 %v1705
    %2266 = vmatpush.bf16.msra.mxu0 %v1704
    %2267 = vmatpush.bf16.msra.mxu0 %v1703
    %2268 = vmatmul.bf16.gmra.mxu0 %v548
    %v2269 = vpop.f32.mrf.mxu0
    %v2270 = vadd.f32 %v2257, %v2269
    %v2271 = vpop.f32.mrf.mxu0
    %2272 = vdwg.mxu0
    %2273 = vmatpush.bf16.msra.mxu0 %v1718
    %2274 = vmatpush.bf16.msra.mxu0 %v1717
    %2275 = vmatpush.bf16.msra.mxu0 %v1716
    %2276 = vmatpush.bf16.msra.mxu0 %v1715
    %2277 = vmatpush.bf16.msra.mxu0 %v1714
    %2278 = vmatpush.bf16.msra.mxu0 %v1713
    %2279 = vmatpush.bf16.msra.mxu0 %v1712
    %2280 = vmatpush.bf16.msra.mxu0 %v1711
    %2281 = vmatmul.bf16.gmra.mxu0 %v549
    %v2282 = vpop.f32.mrf.mxu0
    %v2283 = vadd.f32 %v2270, %v2282
    %v2284 = vpop.f32.mrf.mxu0
    %2285 = vdwg.mxu0
    %2286 = vmatpush.bf16.msra.mxu0 %v1726
    %2287 = vmatpush.bf16.msra.mxu0 %v1725
    %2288 = vmatpush.bf16.msra.mxu0 %v1724
    %2289 = vmatpush.bf16.msra.mxu0 %v1723
    %2290 = vmatpush.bf16.msra.mxu0 %v1722
    %2291 = vmatpush.bf16.msra.mxu0 %v1721
    %2292 = vmatpush.bf16.msra.mxu0 %v1720
    %2293 = vmatpush.bf16.msra.mxu0 %v1719
    %2294 = vmatmul.bf16.gmra.mxu0 %v550
    %v2295 = vpop.f32.mrf.mxu0
    %v2296 = vadd.f32 %v2283, %v2295
    %v2297 = vpop.f32.mrf.mxu0
    %2298 = vdwg.mxu0
    %2299 = vmatpush.bf16.msra.mxu0 %v1734
    %2300 = vmatpush.bf16.msra.mxu0 %v1733
    %2301 = vmatpush.bf16.msra.mxu0 %v1732
    %2302 = vmatpush.bf16.msra.mxu0 %v1731
    %2303 = vmatpush.bf16.msra.mxu0 %v1730
    %2304 = vmatpush.bf16.msra.mxu0 %v1729
    %2305 = vmatpush.bf16.msra.mxu0 %v1728
    %2306 = vmatpush.bf16.msra.mxu0 %v1727
    %2307 = vmatmul.bf16.gmra.mxu0 %v551
    %v2308 = vpop.f32.mrf.mxu0
    %v2309 = vadd.f32 %v2296, %v2308
    %v2310 = vpop.f32.mrf.mxu0
    %2311 = vdwg.mxu0
    %2312 = vmatpush.bf16.msra.mxu0 %v1742
    %2313 = vmatpush.bf16.msra.mxu0 %v1741
    %2314 = vmatpush.bf16.msra.mxu0 %v1740
    %2315 = vmatpush.bf16.msra.mxu0 %v1739
    %2316 = vmatpush.bf16.msra.mxu0 %v1738
    %2317 = vmatpush.bf16.msra.mxu0 %v1737
    %2318 = vmatpush.bf16.msra.mxu0 %v1736
    %2319 = vmatpush.bf16.msra.mxu0 %v1735
    %2320 = vmatmul.bf16.gmra.mxu0 %v552
    %v2321 = vpop.f32.mrf.mxu0
    %v2322 = vadd.f32 %v2309, %v2321
    %v2323 = vpop.f32.mrf.mxu0
    %2324 = vdwg.mxu0
    %2325 = vmatpush.bf16.msra.mxu0 %v1750
    %2326 = vmatpush.bf16.msra.mxu0 %v1749
    %2327 = vmatpush.bf16.msra.mxu0 %v1748
    %2328 = vmatpush.bf16.msra.mxu0 %v1747
    %2329 = vmatpush.bf16.msra.mxu0 %v1746
    %2330 = vmatpush.bf16.msra.mxu0 %v1745
    %2331 = vmatpush.bf16.msra.mxu0 %v1744
    %2332 = vmatpush.bf16.msra.mxu0 %v1743
    %2333 = vmatmul.bf16.gmra.mxu0 %v553
    %v2334 = vpop.f32.mrf.mxu0
    %v2335 = vadd.f32 %v2322, %v2334
    %v2336 = vpop.f32.mrf.mxu0
    %2337 = vdwg.mxu0
    %2338 = vmatpush.bf16.msra.mxu0 %v1758
    %2339 = vmatpush.bf16.msra.mxu0 %v1757
    %2340 = vmatpush.bf16.msra.mxu0 %v1756
    %2341 = vmatpush.bf16.msra.mxu0 %v1755
    %2342 = vmatpush.bf16.msra.mxu0 %v1754
    %2343 = vmatpush.bf16.msra.mxu0 %v1753
    %2344 = vmatpush.bf16.msra.mxu0 %v1752
    %2345 = vmatpush.bf16.msra.mxu0 %v1751
    %2346 = vmatmul.bf16.gmra.mxu0 %v554
    %v2347 = vpop.f32.mrf.mxu0
    %v2348 = vadd.f32 %v2335, %v2347
    %v2349 = vpop.f32.mrf.mxu0
    %2350 = vdwg.mxu0
    %2351 = vmatpush.bf16.msra.mxu0 %v1766
    %2352 = vmatpush.bf16.msra.mxu0 %v1765
    %2353 = vmatpush.bf16.msra.mxu0 %v1764
    %2354 = vmatpush.bf16.msra.mxu0 %v1763
    %2355 = vmatpush.bf16.msra.mxu0 %v1762
    %2356 = vmatpush.bf16.msra.mxu0 %v1761
    %2357 = vmatpush.bf16.msra.mxu0 %v1760
    %2358 = vmatpush.bf16.msra.mxu0 %v1759
    %2359 = vmatmul.bf16.gmra.mxu0 %v557
    %v2360 = vpop.f32.mrf.mxu0
    %v2361 = vadd.f32 %v2348, %v2360
    %v2362 = vpop.f32.mrf.mxu0
    %2363 = vdwg.mxu0
    %2364 = vmatpush.bf16.msra.mxu0 %v1774
    %2365 = vmatpush.bf16.msra.mxu0 %v1773
    %2366 = vmatpush.bf16.msra.mxu0 %v1772
    %2367 = vmatpush.bf16.msra.mxu0 %v1771
    %2368 = vmatpush.bf16.msra.mxu0 %v1770
    %2369 = vmatpush.bf16.msra.mxu0 %v1769
    %2370 = vmatpush.bf16.msra.mxu0 %v1768
    %2371 = vmatpush.bf16.msra.mxu0 %v1767
    %2372 = vmatmul.bf16.gmra.mxu0 %v558
    %v2373 = vpop.f32.mrf.mxu0
    %v2374 = vadd.f32 %v2361, %v2373
    %v2375 = vpop.f32.mrf.mxu0
    %2376 = vdwg.mxu0
    %2377 = vmatpush.bf16.msra.mxu0 %v1782
    %2378 = vmatpush.bf16.msra.mxu0 %v1781
    %2379 = vmatpush.bf16.msra.mxu0 %v1780
    %2380 = vmatpush.bf16.msra.mxu0 %v1779
    %2381 = vmatpush.bf16.msra.mxu0 %v1778
    %2382 = vmatpush.bf16.msra.mxu0 %v1777
    %2383 = vmatpush.bf16.msra.mxu0 %v1776
    %2384 = vmatpush.bf16.msra.mxu0 %v1775
    %2385 = vmatmul.bf16.gmra.mxu0 %v559
    %v2386 = vpop.f32.mrf.mxu0
    %v2387 = vadd.f32 %v2374, %v2386
    %v2388 = vpop.f32.mrf.mxu0
    %2389 = vdwg.mxu0
    %2390 = vmatpush.bf16.msra.mxu0 %v1790
    %2391 = vmatpush.bf16.msra.mxu0 %v1789
    %2392 = vmatpush.bf16.msra.mxu0 %v1788
    %2393 = vmatpush.bf16.msra.mxu0 %v1787
    %2394 = vmatpush.bf16.msra.mxu0 %v1786
    %2395 = vmatpush.bf16.msra.mxu0 %v1785
    %2396 = vmatpush.bf16.msra.mxu0 %v1784
    %2397 = vmatpush.bf16.msra.mxu0 %v1783
    %2398 = vmatmul.bf16.gmra.mxu0 %v560
    %v2399 = vpop.f32.mrf.mxu0
    %v2400 = vadd.f32 %v2387, %v2399
    %v2401 = vpop.f32.mrf.mxu0
    %2402 = vdwg.mxu0
    %2403 = vmatpush.bf16.msra.mxu0 %v1798
    %2404 = vmatpush.bf16.msra.mxu0 %v1797
    %2405 = vmatpush.bf16.msra.mxu0 %v1796
    %2406 = vmatpush.bf16.msra.mxu0 %v1795
    %2407 = vmatpush.bf16.msra.mxu0 %v1794
    %2408 = vmatpush.bf16.msra.mxu0 %v1793
    %2409 = vmatpush.bf16.msra.mxu0 %v1792
    %2410 = vmatpush.bf16.msra.mxu0 %v1791
    %2411 = vmatmul.bf16.gmra.mxu0 %v561
    %v2412 = vpop.f32.mrf.mxu0
    %v2413 = vadd.f32 %v2400, %v2412
    %v2414 = vpop.f32.mrf.mxu0
    %2415 = vdwg.mxu0
    %2416 = vmatpush.bf16.msra.mxu0 %v1806
    %2417 = vmatpush.bf16.msra.mxu0 %v1805
    %2418 = vmatpush.bf16.msra.mxu0 %v1804
    %2419 = vmatpush.bf16.msra.mxu0 %v1803
    %2420 = vmatpush.bf16.msra.mxu0 %v1802
    %2421 = vmatpush.bf16.msra.mxu0 %v1801
    %2422 = vmatpush.bf16.msra.mxu0 %v1800
    %2423 = vmatpush.bf16.msra.mxu0 %v1799
    %2424 = vmatmul.bf16.gmra.mxu0 %v562
    %v2425 = vpop.f32.mrf.mxu0
    %v2426 = vadd.f32 %v2413, %v2425
    %v2427 = vpop.f32.mrf.mxu0
    %2428 = vdwg.mxu0
    %2429 = vmatpush.bf16.msra.mxu0 %v1814
    %2430 = vmatpush.bf16.msra.mxu0 %v1813
    %2431 = vmatpush.bf16.msra.mxu0 %v1812
    %2432 = vmatpush.bf16.msra.mxu0 %v1811
    %2433 = vmatpush.bf16.msra.mxu0 %v1810
    %2434 = vmatpush.bf16.msra.mxu0 %v1809
    %2435 = vmatpush.bf16.msra.mxu0 %v1808
    %2436 = vmatpush.bf16.msra.mxu0 %v1807
    %2437 = vmatmul.bf16.gmra.mxu0 %v563
    %v2438 = vpop.f32.mrf.mxu0
    %v2439 = vadd.f32 %v2426, %v2438
    %v2440 = vpop.f32.mrf.mxu0
    %2441 = vdwg.mxu0
    %2442 = vmatpush.bf16.msra.mxu0 %v1822
    %2443 = vmatpush.bf16.msra.mxu0 %v1821
    %2444 = vmatpush.bf16.msra.mxu0 %v1820
    %2445 = vmatpush.bf16.msra.mxu0 %v1819
    %2446 = vmatpush.bf16.msra.mxu0 %v1818
    %2447 = vmatpush.bf16.msra.mxu0 %v1817
    %2448 = vmatpush.bf16.msra.mxu0 %v1816
    %2449 = vmatpush.bf16.msra.mxu0 %v1815
    %2450 = vmatmul.bf16.gmra.mxu0 %v564
    %v2451 = vpop.f32.mrf.mxu0
    %v2452 = vadd.f32 %v2439, %v2451
    %v2453 = vpop.f32.mrf.mxu0
    %2454 = vdwg.mxu0
    %2455 = vmatpush.bf16.msra.mxu0 %v1830
    %2456 = vmatpush.bf16.msra.mxu0 %v1829
    %2457 = vmatpush.bf16.msra.mxu0 %v1828
    %2458 = vmatpush.bf16.msra.mxu0 %v1827
    %2459 = vmatpush.bf16.msra.mxu0 %v1826
    %2460 = vmatpush.bf16.msra.mxu0 %v1825
    %2461 = vmatpush.bf16.msra.mxu0 %v1824
    %2462 = vmatpush.bf16.msra.mxu0 %v1823
    %2463 = vmatmul.bf16.gmra.mxu0 %v567
    %v2464 = vpop.f32.mrf.mxu0
    %v2465 = vadd.f32 %v2452, %v2464
    %v2466 = vpop.f32.mrf.mxu0
    %2467 = vdwg.mxu0
    %2468 = vmatpush.bf16.msra.mxu0 %v1838
    %2469 = vmatpush.bf16.msra.mxu0 %v1837
    %2470 = vmatpush.bf16.msra.mxu0 %v1836
    %2471 = vmatpush.bf16.msra.mxu0 %v1835
    %2472 = vmatpush.bf16.msra.mxu0 %v1834
    %2473 = vmatpush.bf16.msra.mxu0 %v1833
    %2474 = vmatpush.bf16.msra.mxu0 %v1832
    %2475 = vmatpush.bf16.msra.mxu0 %v1831
    %2476 = vmatmul.bf16.gmra.mxu0 %v568
    %v2477 = vpop.f32.mrf.mxu0
    %v2478 = vadd.f32 %v2465, %v2477
    %v2479 = vpop.f32.mrf.mxu0
    %2480 = vdwg.mxu0
    %2481 = vmatpush.bf16.msra.mxu0 %v1846
    %2482 = vmatpush.bf16.msra.mxu0 %v1845
    %2483 = vmatpush.bf16.msra.mxu0 %v1844
    %2484 = vmatpush.bf16.msra.mxu0 %v1843
    %2485 = vmatpush.bf16.msra.mxu0 %v1842
    %2486 = vmatpush.bf16.msra.mxu0 %v1841
    %2487 = vmatpush.bf16.msra.mxu0 %v1840
    %2488 = vmatpush.bf16.msra.mxu0 %v1839
    %2489 = vmatmul.bf16.gmra.mxu0 %v569
    %v2490 = vpop.f32.mrf.mxu0
    %v2491 = vadd.f32 %v2478, %v2490
    %v2492 = vpop.f32.mrf.mxu0
    %2493 = vdwg.mxu0
    %2494 = vmatpush.bf16.msra.mxu0 %v1854
    %2495 = vmatpush.bf16.msra.mxu0 %v1853
    %2496 = vmatpush.bf16.msra.mxu0 %v1852
    %2497 = vmatpush.bf16.msra.mxu0 %v1851
    %2498 = vmatpush.bf16.msra.mxu0 %v1850
    %2499 = vmatpush.bf16.msra.mxu0 %v1849
    %2500 = vmatpush.bf16.msra.mxu0 %v1848
    %2501 = vmatpush.bf16.msra.mxu0 %v1847
    %2502 = vmatmul.bf16.gmra.mxu0 %v570
    %v2503 = vpop.f32.mrf.mxu0
    %v2504 = vadd.f32 %v2491, %v2503
    %v2505 = vpop.f32.mrf.mxu0
    %2506 = vdwg.mxu0
    %2507 = vmatpush.bf16.msra.mxu0 %v1862
    %2508 = vmatpush.bf16.msra.mxu0 %v1861
    %2509 = vmatpush.bf16.msra.mxu0 %v1860
    %2510 = vmatpush.bf16.msra.mxu0 %v1859
    %2511 = vmatpush.bf16.msra.mxu0 %v1858
    %2512 = vmatpush.bf16.msra.mxu0 %v1857
    %2513 = vmatpush.bf16.msra.mxu0 %v1856
    %2514 = vmatpush.bf16.msra.mxu0 %v1855
    %2515 = vmatmul.bf16.gmra.mxu0 %v571
    %v2516 = vpop.f32.mrf.mxu0
    %v2517 = vadd.f32 %v2504, %v2516
    %v2518 = vpop.f32.mrf.mxu0
    %2519 = vdwg.mxu0
    %2520 = vmatpush.bf16.msra.mxu0 %v1870
    %2521 = vmatpush.bf16.msra.mxu0 %v1869
    %2522 = vmatpush.bf16.msra.mxu0 %v1868
    %2523 = vmatpush.bf16.msra.mxu0 %v1867
    %2524 = vmatpush.bf16.msra.mxu0 %v1866
    %2525 = vmatpush.bf16.msra.mxu0 %v1865
    %2526 = vmatpush.bf16.msra.mxu0 %v1864
    %2527 = vmatpush.bf16.msra.mxu0 %v1863
    %2528 = vmatmul.bf16.gmra.mxu0 %v572
    %v2529 = vpop.f32.mrf.mxu0
    %v2530 = vadd.f32 %v2517, %v2529
    %v2531 = vpop.f32.mrf.mxu0
    %2532 = vdwg.mxu0
    %2533 = vmatpush.bf16.msra.mxu0 %v1878
    %2534 = vmatpush.bf16.msra.mxu0 %v1877
    %2535 = vmatpush.bf16.msra.mxu0 %v1876
    %2536 = vmatpush.bf16.msra.mxu0 %v1875
    %2537 = vmatpush.bf16.msra.mxu0 %v1874
    %2538 = vmatpush.bf16.msra.mxu0 %v1873
    %2539 = vmatpush.bf16.msra.mxu0 %v1872
    %2540 = vmatpush.bf16.msra.mxu0 %v1871
    %2541 = vmatmul.bf16.gmra.mxu0 %v573
    %v2542 = vpop.f32.mrf.mxu0
    %v2543 = vadd.f32 %v2530, %v2542
    %v2544 = vpop.f32.mrf.mxu0
    %2545 = vdwg.mxu0
    %2546 = vmatpush.bf16.msra.mxu0 %v1886
    %2547 = vmatpush.bf16.msra.mxu0 %v1885
    %2548 = vmatpush.bf16.msra.mxu0 %v1884
    %2549 = vmatpush.bf16.msra.mxu0 %v1883
    %2550 = vmatpush.bf16.msra.mxu0 %v1882
    %2551 = vmatpush.bf16.msra.mxu0 %v1881
    %2552 = vmatpush.bf16.msra.mxu0 %v1880
    %2553 = vmatpush.bf16.msra.mxu0 %v1879
    %2554 = vmatmul.bf16.gmra.mxu0 %v574
    %v2555 = vpop.f32.mrf.mxu0
    %v2556 = vadd.f32 %v2543, %v2555
    %v2557 = vpop.f32.mrf.mxu0
    %2558 = vdwg.mxu0
    %vm2559 = vcmask 74752
    %2560 = vst.msk [vmem:[#allocation2] sm:$0x3] %vm2559, %v2556
    // Predicated region
    $region14: #{cnn_cifar_forward.13} parent=1 // pred_check
      _
    $region15: #{cnn_cifar_forward.13} parent=1 // pred_check_branch
      %2562 = sbr.rel (0) target = $region17
    $region16: #{cnn_cifar_forward.13} parent=1 // pred_region
      %2564 = vsyncadd [#allocation3], 0
      %s2566 = sshll.u32 [#allocation2], 4
      %s2567 = int_to_ptr.vmem [resolvable:$true] %s2566
      %s2568 = sshll.u32 %s3, 4
      %s2569 = int_to_ptr.hbm [resolvable:$true] %s2568
      %2571 = dma.vmem_to_hbm [thread:$0]  %s2567, 32, %s2569, [#allocation3]
    $region17: #{cnn_cifar_forward.13} parent=1 // pred_fallthru
      _
    // Predicated region
    $region18: #{cnn_cifar_forward.13} parent=1 // pred_check
      _
    $region19: #{cnn_cifar_forward.13} parent=1 // pred_check_branch
      %2573 = sbr.rel (0) target = $region21
    $region20: #{cnn_cifar_forward.13} parent=1 // pred_region
      %2575 = dma.done [#allocation3], 32
    $region21: #{cnn_cifar_forward.13} parent=1 // pred_fallthru
      _
    %2576 = vsyncpa [#allocation3], 1

</llo_original>
